<compile_context>
chip_gen: v6e
topology: v6e:2x2x1
jax: 0.10.0
libtpu: 0.0.40
codegen_flags: <defaults>
</compile_context>

<pallas_src>
import functools
import math

import jax
import jax.numpy as jnp
from jax.experimental import pallas as pl
from jax.experimental.pallas import tpu as pltpu

_CLS_PAD = 128  # lane-dense classifier output width


# ----------------------------- fused kernel -----------------------------

def _layer_norm(a, g, b, eps):
    mu = jnp.mean(a, axis=-1, keepdims=True)
    c = a - mu
    var = jnp.mean(c * c, axis=-1, keepdims=True)
    return c * jax.lax.rsqrt(var + eps) * g + b


def _transformer_kernel(
    x_ref, mask_ref,
    wqkv_ref, bqkv_ref, wo_ref, bo_ref, lng_ref, lnb_ref,
    w1_ref, b1_ref, w2_ref, b2_ref,
    clsw_ref, clsb_ref,
    out_ref,
    act_ref,
    *, num_head, eps):
    """Grid = (batch_block, layer).  One block = `Bt` whole sequences."""
    l = pl.program_id(1)
    Bt, S, D = x_ref.shape
    M = Bt * S
    dk = D // num_head
    scale = 1.0 / math.sqrt(dk)

    # First layer step: load this block's embeddings into the resident buffer.
    @pl.when(l == 0)
    def _():
        act_ref[...] = x_ref[...].reshape(M, D)

    x2 = act_ref[...]                       # (M, D) activations carried across layers

    # Hoisted mask compare: one boolean (Bt, S, S) reused by every head.
    masked = mask_ref[...] > 0.5

    # ---- multi-head self-attention: single fused QKV matmul, M = Bt*S rows ----
    qkv = jnp.dot(x2, wqkv_ref[...], preferred_element_type=jnp.float32) + bqkv_ref[...]

    attn_acc = None
    for h in range(num_head):               # static unrolled head loop
        qh = qkv[:, h * dk:(h + 1) * dk].reshape(Bt, S, dk)
        kh = qkv[:, D + h * dk:D + (h + 1) * dk].reshape(Bt, S, dk)
        vh = qkv[:, 2 * D + h * dk:2 * D + (h + 1) * dk].reshape(Bt, S, dk)
        s = jnp.einsum("bqd,bkd->bqk", qh, kh,
                       preferred_element_type=jnp.float32) * scale
        s = jnp.where(masked, -1.0e9, s)     # exact masked_fill_ semantics
        s = s - jnp.max(s, axis=-1, keepdims=True)
        p = jnp.exp(s)
        p = p * pl.reciprocal(jnp.sum(p, axis=-1, keepdims=True), approx=True)
        ctx_h = jnp.einsum("bqk,bkd->bqd", p, vh,
                           preferred_element_type=jnp.float32).reshape(M, dk)
        # Fold the head "concat" into the output projection: a sublane-aligned
        # slice of wo instead of a lane-wise concatenate of dk-wide pieces.
        contrib = jnp.dot(ctx_h, wo_ref[h * dk:(h + 1) * dk, :],
                          preferred_element_type=jnp.float32)
        attn_acc = contrib if attn_acc is None else attn_acc + contrib
    attn_out = attn_acc + bo_ref[...]

    # y = x + norm(attn(x))    (dropout = identity in eval)
    y = x2 + _layer_norm(attn_out, lng_ref[...], lnb_ref[...], eps)

    # ---- position-wise feed-forward ----
    h1 = jnp.maximum(
        jnp.dot(y, w1_ref[...], preferred_element_type=jnp.float32) + b1_ref[...], 0.0)
    f = jnp.dot(h1, w2_ref[...], preferred_element_type=jnp.float32) + b2_ref[...]

    # z = y + norm(ffn(y))   (same LayerNorm params, as in the torch module)
    z = y + _layer_norm(f, lng_ref[...], lnb_ref[...], eps)
    act_ref[...] = z

    # ---- after the last layer: mean-pool over seq, ReLU, classifier ----
    @pl.when(l == pl.num_programs(1) - 1)
    def _():
        pooled = jnp.maximum(jnp.mean(z.reshape(Bt, S, D), axis=1), 0.0)   # (Bt, D)
        out_ref[...] = (jnp.dot(pooled, clsw_ref[...],
                                preferred_element_type=jnp.float32)
                        + clsb_ref[...])                                    # (Bt, 128)


# ----------------------------- one-time weight packing -----------------------------

def pack_params(params):
    """Stack per-layer weights, fuse QKV, pad the classifier. Call ONCE (outside
    the per-call forward) so no HBM weight re-materialization is paid per step."""
    layers = params["layers"]
    D = params["embed"].shape[1]

    def stack(name):
        return jnp.stack([p[name] for p in layers], axis=0)

    packed = {
        "embed": params["embed"].astype(jnp.float32),
        "wqkv": jnp.stack(
            [jnp.concatenate([p["wq_w"], p["wk_w"], p["wv_w"]], axis=1) for p in layers],
            axis=0),                                                  # (L, D, 3D)
        "bqkv": jnp.stack(
            [jnp.concatenate([p["wq_b"], p["wk_b"], p["wv_b"]])[None, :] for p in layers],
            axis=0),                                                  # (L, 1, 3D)
        "wo": stack("wo_w"),                                          # (L, D, D)
        "bo": stack("wo_b")[:, None, :],                              # (L, 1, D)
        "lng": stack("ln_g")[:, None, :],                             # (L, 1, D)
        "lnb": stack("ln_b")[:, None, :],                             # (L, 1, D)
        "w1": stack("ffn1_w"),                                        # (L, D, H)
        "b1": stack("ffn1_b")[:, None, :],                            # (L, 1, H)
        "w2": stack("ffn2_w"),                                        # (L, H, D)
        "b2": stack("ffn2_b")[:, None, :],                            # (L, 1, D)
    }
    C = params["cls_w"].shape[1]
    packed["clsw"] = jnp.zeros((D, _CLS_PAD), jnp.float32).at[:, :C].set(params["cls_w"])
    packed["clsb"] = jnp.zeros((1, _CLS_PAD), jnp.float32).at[:, :C].set(
        params["cls_b"][None, :])
    # TODO(synk): at production sizes store these packed weights in bf16 (MXU inputs),
    # keeping f32 accumulation and f32 elementwise math (especially on v5e).
    return packed


# ----------------------------- model wrapper -----------------------------

def transformer_forward(packed, inputs, mask_bool, *, num_head, num_class, block_b):
    # embedding lookup (frozen table) -- gather glue kept in plain JAX
    x = jnp.take(packed["embed"], inputs, axis=0)                      # (B, S, D)
    B, S, D = x.shape
    L = packed["wqkv"].shape[0]
    assert D % num_head == 0, "d_model must be divisible by num_head"
    assert B % block_b == 0, "batch must be divisible by the batch block size"
    nb = B // block_b          # keep >= 2 batch blocks so both v7x TCs get work

    maskf = mask_bool.astype(jnp.float32)                              # (B, S, S)
    # TODO(synk): at production S, replace the (B,S,S) mask stream with per-example
    # valid lengths via PrefetchScalarGridSpec + in-kernel broadcasted_iota.

    kern = functools.partial(_transformer_kernel, num_head=num_head, eps=1e-5)

    def layer_spec(arr):   # stacked per-layer weight (L, a, b) -> (a, b) block at layer l
        return pl.BlockSpec((None,) + arr.shape[1:], lambda b, l: (l, 0, 0))

    def shared_spec(arr):  # layer-independent 2-D weight, whole-array block
        return pl.BlockSpec(arr.shape, lambda b, l: (0, 0))

    out = pl.pallas_call(
        kern,
        out_shape=jax.ShapeDtypeStruct((B, _CLS_PAD), jnp.float32),
        grid=(nb, L),                              # layer axis LAST (sequential carry)
        in_specs=[
            pl.BlockSpec((block_b, S, D), lambda b, l: (b, 0, 0)),   # embeddings
            pl.BlockSpec((block_b, S, S), lambda b, l: (b, 0, 0)),   # attention mask
            layer_spec(packed["wqkv"]), layer_spec(packed["bqkv"]),
            layer_spec(packed["wo"]), layer_spec(packed["bo"]),
            layer_spec(packed["lng"]), layer_spec(packed["lnb"]),
            layer_spec(packed["w1"]), layer_spec(packed["b1"]),
            layer_spec(packed["w2"]), layer_spec(packed["b2"]),
            shared_spec(packed["clsw"]), shared_spec(packed["clsb"]),
        ],
        out_specs=pl.BlockSpec((block_b, _CLS_PAD), lambda b, l: (b, 0)),
        scratch_shapes=[pltpu.VMEM((block_b * S, D), jnp.float32)],   # resident activations
        compiler_params=pltpu.CompilerParams(
            dimension_semantics=("parallel", "arbitrary"),
            vmem_limit_bytes=32 * 1024 * 1024),    # explicit budget; fits v7x's 64 MiB
    )(x, maskf,
      packed["wqkv"], packed["bqkv"], packed["wo"], packed["bo"],
      packed["lng"], packed["lnb"],
      packed["w1"], packed["b1"], packed["w2"], packed["b2"],
      packed["clsw"], packed["clsb"])

    return out[:, :num_class]                                          # (B, num_class)


# ----------------------------- pure-JAX reference -----------------------------

def _ref_ln(a, g, b, eps=1e-5):
    mu = jnp.mean(a, axis=-1, keepdims=True)
    var = jnp.mean((a - mu) ** 2, axis=-1, keepdims=True)
    return (a - mu) * jax.lax.rsqrt(var + eps) * g + b


def ref_forward(params, inputs, mask_bool, num_head):
    x = jnp.take(params["embed"], inputs, axis=0).astype(jnp.float32)
    B, S, D = x.shape
    dk = D // num_head
    mask4 = mask_bool[:, None, :, :]                                    # (B,1,S,S)
    for p in params["layers"]:
        q = (x @ p["wq_w"] + p["wq_b"]).reshape(B, S, num_head, dk).transpose(0, 2, 1, 3)
        k = (x @ p["wk_w"] + p["wk_b"]).reshape(B, S, num_head, dk).transpose(0, 2, 1, 3)
        v = (x @ p["wv_w"] + p["wv_b"]).reshape(B, S, num_head, dk).transpose(0, 2, 1, 3)
        score = jnp.einsum("bhqd,bhkd->bhqk", q, k) / math.sqrt(dk)
        score = jnp.where(mask4, -1.0e9, score)
        attn = jax.nn.softmax(score, axis=-1)
        ctx = jnp.einsum("bhqk,bhkd->bhqd", attn, v).transpose(0, 2, 1, 3).reshape(B, S, D)
        a = ctx @ p["wo_w"] + p["wo_b"]
        y = x + _ref_ln(a, p["ln_g"], p["ln_b"])
        h = jnp.maximum(y @ p["ffn1_w"] + p["ffn1_b"], 0.0)
        f = h @ p["ffn2_w"] + p["ffn2_b"]
        x = y + _ref_ln(f, p["ln_g"], p["ln_b"])
    pooled = jnp.maximum(jnp.mean(x, axis=1), 0.0)
    return pooled @ params["cls_w"] + params["cls_b"]


# ----------------------------- param init -----------------------------

def init_params(key, vocab, d_model, hidden, num_layers, num_class):
    def dense(k, fan_in, fan_out):
        kw, kb = jax.random.split(k)
        scale = 1.0 / math.sqrt(fan_in)
        w = jax.random.uniform(kw, (fan_in, fan_out), jnp.float32, -scale, scale)
        b = jax.random.uniform(kb, (fan_out,), jnp.float32, -scale, scale)
        return w, b

    keys = jax.random.split(key, 2 + num_layers)
    params = {
        "embed": jax.random.normal(keys[0], (vocab, d_model), jnp.float32) * 0.5,
    }
    params["cls_w"], params["cls_b"] = dense(keys[1], d_model, num_class)

    layers = []
    for li in range(num_layers):
        lk = jax.random.split(keys[2 + li], 8)
        p = {}
        p["wq_w"], p["wq_b"] = dense(lk[0], d_model, d_model)
        p["wk_w"], p["wk_b"] = dense(lk[1], d_model, d_model)
        p["wv_w"], p["wv_b"] = dense(lk[2], d_model, d_model)
        p["wo_w"], p["wo_b"] = dense(lk[3], d_model, d_model)
        p["ffn1_w"], p["ffn1_b"] = dense(lk[4], d_model, hidden)
        p["ffn2_w"], p["ffn2_b"] = dense(lk[5], hidden, d_model)
        # LayerNorm params (perturbed from torch default ones/zeros for a stronger test)
        p["ln_g"] = 1.0 + 0.1 * jax.random.normal(lk[6], (d_model,), jnp.float32)
        p["ln_b"] = 0.1 * jax.random.normal(lk[7], (d_model,), jnp.float32)
        layers.append(p)
    params["layers"] = layers
    return params


# ----------------------------- main -----------------------------

if __name__ == "__main__":
    B, S = 16, 8
    VOCAB = 50
    D_MODEL = 32
    HIDDEN = 64
    NUM_HEAD = 4
    NUM_LAYERS = 2
    NUM_CLASS = 8
    BLOCK_B = 8       # 8 sequences/block -> M = 64 matmul rows; 2 blocks on the parallel axis

    root = jax.random.PRNGKey(0)
    k_param, k_tok, k_len = jax.random.split(root, 3)

    params = init_params(k_param, VOCAB, D_MODEL, HIDDEN, NUM_LAYERS, NUM_CLASS)
    packed = pack_params(params)        # one-time weight packing, outside the jitted forward

    inputs = jax.random.randint(k_tok, (B, S), 0, VOCAB, dtype=jnp.int32)

    # boolean attention mask (True = masked); mask out padding key positions per example
    lens = jax.random.randint(k_len, (B,), 1, S + 1)           # valid lengths in [1, S]
    key_pos = jnp.arange(S)[None, None, :]                     # (1,1,S)
    mask_bool = jnp.broadcast_to(key_pos >= lens[:, None, None], (B, S, S))  # (B,S,S)

    fwd = jax.jit(functools.partial(transformer_forward, num_head=NUM_HEAD,
                                    num_class=NUM_CLASS, block_b=BLOCK_B))
    out = jax.block_until_ready(fwd(packed, inputs, mask_bool))

    ref = ref_forward(params, inputs, mask_bool, NUM_HEAD)
    assert out.shape == (B, NUM_CLASS)
    max_err = float(jnp.max(jnp.abs(out - ref)))
    assert max_err < 2e-2, f"mismatch vs reference, max abs err = {max_err}"

    print("KERNEL_OK")
</pallas_src>

<mosaic_0001>
module attributes {stable_mosaic.version = 11 : i64} {
  func.func @_transformer_kernel(%arg0: i32, %arg1: i32, %arg2: memref<8x8x32xf32, #tpu.memory_space<vmem>>, %arg3: memref<8x8x8xf32, #tpu.memory_space<vmem>>, %arg4: memref<1x32x96xf32, #tpu.memory_space<vmem>>, %arg5: memref<1x1x96xf32, #tpu.memory_space<vmem>>, %arg6: memref<1x32x32xf32, #tpu.memory_space<vmem>>, %arg7: memref<1x1x32xf32, #tpu.memory_space<vmem>>, %arg8: memref<1x1x32xf32, #tpu.memory_space<vmem>>, %arg9: memref<1x1x32xf32, #tpu.memory_space<vmem>>, %arg10: memref<1x32x64xf32, #tpu.memory_space<vmem>>, %arg11: memref<1x1x64xf32, #tpu.memory_space<vmem>>, %arg12: memref<1x64x32xf32, #tpu.memory_space<vmem>>, %arg13: memref<1x1x32xf32, #tpu.memory_space<vmem>>, %arg14: memref<32x128xf32, #tpu.memory_space<vmem>>, %arg15: memref<1x128xf32, #tpu.memory_space<vmem>>, %arg16: memref<8x128xf32, #tpu.memory_space<vmem>>, %arg17: memref<64x32xf32, #tpu.memory_space<vmem>>) attributes {dimension_semantics = [#tpu.dimension_semantics<parallel>, #tpu.dimension_semantics<arbitrary>], iteration_bounds = array<i64: 2, 2>, scalar_prefetch = 0 : i64, scratch_operands = 1 : i64, tpu.core_type = #tpu.core_type<tc>, window_params = [{transform_indices = @transform_0, window_bounds = array<i64: 8, 8, 32>}, {transform_indices = @transform_1, window_bounds = array<i64: 8, 8, 8>}, {transform_indices = @transform_2, window_bounds = array<i64: 1, 32, 96>}, {transform_indices = @transform_3, window_bounds = array<i64: 1, 1, 96>}, {transform_indices = @transform_4, window_bounds = array<i64: 1, 32, 32>}, {transform_indices = @transform_5, window_bounds = array<i64: 1, 1, 32>}, {transform_indices = @transform_6, window_bounds = array<i64: 1, 1, 32>}, {transform_indices = @transform_7, window_bounds = array<i64: 1, 1, 32>}, {transform_indices = @transform_8, window_bounds = array<i64: 1, 32, 64>}, {transform_indices = @transform_9, window_bounds = array<i64: 1, 1, 64>}, {transform_indices = @transform_10, window_bounds = array<i64: 1, 64, 32>}, {transform_indices = @transform_11, window_bounds = array<i64: 1, 1, 32>}, {pipeline_mode = #tpu.pipeline_mode<synchronous>, transform_indices = @transform_12, window_bounds = array<i64: 32, 128>}, {pipeline_mode = #tpu.pipeline_mode<synchronous>, transform_indices = @transform_13, window_bounds = array<i64: 1, 128>}, {transform_indices = @transform_14, window_bounds = array<i64: 8, 128>}]} {
    %c0_i32 = arith.constant 0 : i32
    %0 = arith.cmpi eq, %arg1, %c0_i32 : i32
    %1 = arith.extui %0 : i1 to i32
    %c0_i32_0 = arith.constant 0 : i32
    %2 = arith.cmpi ne, %1, %c0_i32_0 : i32
    scf.if %2 {
      %c0_92 = arith.constant 0 : index
      %c0_93 = arith.constant 0 : index
      %c0_94 = arith.constant 0 : index
      %195 = vector.load %arg2[%c0_92, %c0_93, %c0_94] : memref<8x8x32xf32, #tpu.memory_space<vmem>>, vector<8x8x32xf32>
      %196 = vector.shape_cast %195 : vector<8x8x32xf32> to vector<64x32xf32>
      %c0_95 = arith.constant 0 : index
      %c0_96 = arith.constant 0 : index
      %197 = vector.load %arg17[%c0_95, %c0_96] : memref<64x32xf32, #tpu.memory_space<vmem>>, vector<64x32xf32>
      tpu.vector_store %arg17[%c0_95, %c0_96], %196 {strides = array<i32>} : memref<64x32xf32, #tpu.memory_space<vmem>>, vector<64x32xf32>,
    } else {
    }
    %c0 = arith.constant 0 : index
    %c0_1 = arith.constant 0 : index
    %3 = vector.load %arg17[%c0, %c0_1] : memref<64x32xf32, #tpu.memory_space<vmem>>, vector<64x32xf32>
    %c0_2 = arith.constant 0 : index
    %c0_3 = arith.constant 0 : index
    %c0_4 = arith.constant 0 : index
    %4 = vector.load %arg3[%c0_2, %c0_3, %c0_4] : memref<8x8x8xf32, #tpu.memory_space<vmem>>, vector<8x8x8xf32>
    %cst = arith.constant 5.000000e-01 : f32
    %5 = vector.broadcast %cst : f32 to vector<8x8x8xf32>
    %6 = arith.cmpf ogt, %4, %5 : vector<8x8x8xf32>
    %c0_5 = arith.constant 0 : index
    %c0_6 = arith.constant 0 : index
    %c0_7 = arith.constant 0 : index
    %7 = vector.load %arg4[%c0_5, %c0_6, %c0_7] : memref<1x32x96xf32, #tpu.memory_space<vmem>>, vector<1x32x96xf32>
    %8 = vector.shape_cast %7 : vector<1x32x96xf32> to vector<32x96xf32>
    %cst_8 = arith.constant dense<0.000000e+00> : vector<64x96xf32>
    %9 = tpu.matmul %3, %8, %cst_8 {dimension_numbers = #tpu.dot_dimension_numbers<[1], [0], [0], [1], [0, 0, 1, 1], [], []>} : vector<64x32xf32>, vector<32x96xf32>, vector<64x96xf32> -> vector<64x96xf32>
    %c0_9 = arith.constant 0 : index
    %c0_10 = arith.constant 0 : index
    %c0_11 = arith.constant 0 : index
    %10 = vector.load %arg5[%c0_9, %c0_10, %c0_11] : memref<1x1x96xf32, #tpu.memory_space<vmem>>, vector<1x1x96xf32>
    %11 = vector.shape_cast %10 : vector<1x1x96xf32> to vector<1x96xf32>
    %12 = vector.broadcast %11 : vector<1x96xf32> to vector<64x96xf32>
    %13 = arith.addf %9, %12 : vector<64x96xf32>
    %14 = vector.extract_strided_slice %13 {offsets = [0, 0], sizes = [64, 8], strides = [1, 1]} : vector<64x96xf32> to vector<64x8xf32>
    %15 = vector.shape_cast %14 : vector<64x8xf32> to vector<8x8x8xf32>
    %16 = vector.extract_strided_slice %13 {offsets = [0, 32], sizes = [64, 8], strides = [1, 1]} : vector<64x96xf32> to vector<64x8xf32>
    %17 = vector.shape_cast %16 : vector<64x8xf32> to vector<8x8x8xf32>
    %18 = vector.extract_strided_slice %13 {offsets = [0, 64], sizes = [64, 8], strides = [1, 1]} : vector<64x96xf32> to vector<64x8xf32>
    %19 = vector.shape_cast %18 : vector<64x8xf32> to vector<8x8x8xf32>
    "tpu.trace_start"() <{level = 10 : i32, message = "bqd,bkd->bqk"}> : () -> ()
    %cst_12 = arith.constant dense<0.000000e+00> : vector<8x8x8xf32>
    %20 = tpu.matmul %15, %17, %cst_12 {dimension_numbers = #tpu.dot_dimension_numbers<[2], [2], [1], [1], [0, 0, 0, 1, 1, 1], [0], [0]>} : vector<8x8x8xf32>, vector<8x8x8xf32>, vector<8x8x8xf32> -> vector<8x8x8xf32>
    "tpu.trace_stop"() : () -> ()
    %cst_13 = arith.constant 0.353553385 : f32
    %21 = vector.broadcast %cst_13 : f32 to vector<8x8x8xf32>
    %22 = arith.mulf %20, %21 : vector<8x8x8xf32>
    %cst_14 = arith.constant -1.000000e+09 : f32
    %23 = vector.broadcast %cst_14 : f32 to vector<8x8x8xf32>
    %24 = arith.select %6, %23, %22 : vector<8x8x8xi1>, vector<8x8x8xf32>
    %cst_15 = arith.constant dense<0xFF800000> : vector<8x8xf32>
    %25 = vector.multi_reduction <maximumf>, %24, %cst_15 [2] : vector<8x8x8xf32> to vector<8x8xf32>
    %26 = vector.shape_cast %25 : vector<8x8xf32> to vector<8x8x1xf32>
    %27 = vector.broadcast %26 : vector<8x8x1xf32> to vector<8x8x8xf32>
    %28 = arith.subf %24, %27 : vector<8x8x8xf32>
    %29 = math.exp %28 : vector<8x8x8xf32>
    %cst_16 = arith.constant dense<0.000000e+00> : vector<8x8xf32>
    %30 = vector.multi_reduction <add>, %29, %cst_16 [2] : vector<8x8x8xf32> to vector<8x8xf32>
    %31 = vector.shape_cast %30 : vector<8x8xf32> to vector<8x8x1xf32>
    %32 = tpu.reciprocal %31 {approx = true} : vector<8x8x1xf32> -> vector<8x8x1xf32>
    %33 = vector.broadcast %32 : vector<8x8x1xf32> to vector<8x8x8xf32>
    %34 = arith.mulf %29, %33 : vector<8x8x8xf32>
    "tpu.trace_start"() <{level = 10 : i32, message = "bqk,bkd->bqd"}> : () -> ()
    %cst_17 = arith.constant dense<0.000000e+00> : vector<8x8x8xf32>
    %35 = tpu.matmul %34, %19, %cst_17 {dimension_numbers = #tpu.dot_dimension_numbers<[2], [1], [1], [2], [0, 0, 0, 1, 1, 2], [0], [0]>} : vector<8x8x8xf32>, vector<8x8x8xf32>, vector<8x8x8xf32> -> vector<8x8x8xf32>
    "tpu.trace_stop"() : () -> ()
    %36 = vector.shape_cast %35 : vector<8x8x8xf32> to vector<64x8xf32>
    %c0_18 = arith.constant 0 : index
    %c0_19 = arith.constant 0 : index
    %c0_20 = arith.constant 0 : index
    %37 = vector.load %arg6[%c0_18, %c0_19, %c0_20] : memref<1x32x32xf32, #tpu.memory_space<vmem>>, vector<1x8x32xf32>
    %38 = vector.shape_cast %37 : vector<1x8x32xf32> to vector<8x32xf32>
    %cst_21 = arith.constant dense<0.000000e+00> : vector<64x32xf32>
    %39 = tpu.matmul %36, %38, %cst_21 {dimension_numbers = #tpu.dot_dimension_numbers<[1], [0], [0], [1], [0, 0, 1, 1], [], []>} : vector<64x8xf32>, vector<8x32xf32>, vector<64x32xf32> -> vector<64x32xf32>
    %40 = vector.extract_strided_slice %13 {offsets = [0, 8], sizes = [64, 8], strides = [1, 1]} : vector<64x96xf32> to vector<64x8xf32>
    %41 = vector.shape_cast %40 : vector<64x8xf32> to vector<8x8x8xf32>
    %42 = vector.extract_strided_slice %13 {offsets = [0, 40], sizes = [64, 8], strides = [1, 1]} : vector<64x96xf32> to vector<64x8xf32>
    %43 = vector.shape_cast %42 : vector<64x8xf32> to vector<8x8x8xf32>
    %44 = vector.extract_strided_slice %13 {offsets = [0, 72], sizes = [64, 8], strides = [1, 1]} : vector<64x96xf32> to vector<64x8xf32>
    %45 = vector.shape_cast %44 : vector<64x8xf32> to vector<8x8x8xf32>
    "tpu.trace_start"() <{level = 10 : i32, message = "bqd,bkd->bqk"}> : () -> ()
    %cst_22 = arith.constant dense<0.000000e+00> : vector<8x8x8xf32>
    %46 = tpu.matmul %41, %43, %cst_22 {dimension_numbers = #tpu.dot_dimension_numbers<[2], [2], [1], [1], [0, 0, 0, 1, 1, 1], [0], [0]>} : vector<8x8x8xf32>, vector<8x8x8xf32>, vector<8x8x8xf32> -> vector<8x8x8xf32>
    "tpu.trace_stop"() : () -> ()
    %cst_23 = arith.constant 0.353553385 : f32
    %47 = vector.broadcast %cst_23 : f32 to vector<8x8x8xf32>
    %48 = arith.mulf %46, %47 : vector<8x8x8xf32>
    %cst_24 = arith.constant -1.000000e+09 : f32
    %49 = vector.broadcast %cst_24 : f32 to vector<8x8x8xf32>
    %50 = arith.select %6, %49, %48 : vector<8x8x8xi1>, vector<8x8x8xf32>
    %cst_25 = arith.constant dense<0xFF800000> : vector<8x8xf32>
    %51 = vector.multi_reduction <maximumf>, %50, %cst_25 [2] : vector<8x8x8xf32> to vector<8x8xf32>
    %52 = vector.shape_cast %51 : vector<8x8xf32> to vector<8x8x1xf32>
    %53 = vector.broadcast %52 : vector<8x8x1xf32> to vector<8x8x8xf32>
    %54 = arith.subf %50, %53 : vector<8x8x8xf32>
    %55 = math.exp %54 : vector<8x8x8xf32>
    %cst_26 = arith.constant dense<0.000000e+00> : vector<8x8xf32>
    %56 = vector.multi_reduction <add>, %55, %cst_26 [2] : vector<8x8x8xf32> to vector<8x8xf32>
    %57 = vector.shape_cast %56 : vector<8x8xf32> to vector<8x8x1xf32>
    %58 = tpu.reciprocal %57 {approx = true} : vector<8x8x1xf32> -> vector<8x8x1xf32>
    %59 = vector.broadcast %58 : vector<8x8x1xf32> to vector<8x8x8xf32>
    %60 = arith.mulf %55, %59 : vector<8x8x8xf32>
    "tpu.trace_start"() <{level = 10 : i32, message = "bqk,bkd->bqd"}> : () -> ()
    %cst_27 = arith.constant dense<0.000000e+00> : vector<8x8x8xf32>
    %61 = tpu.matmul %60, %45, %cst_27 {dimension_numbers = #tpu.dot_dimension_numbers<[2], [1], [1], [2], [0, 0, 0, 1, 1, 2], [0], [0]>} : vector<8x8x8xf32>, vector<8x8x8xf32>, vector<8x8x8xf32> -> vector<8x8x8xf32>
    "tpu.trace_stop"() : () -> ()
    %62 = vector.shape_cast %61 : vector<8x8x8xf32> to vector<64x8xf32>
    %c0_28 = arith.constant 0 : index
    %c8 = arith.constant 8 : index
    %c0_29 = arith.constant 0 : index
    %63 = vector.load %arg6[%c0_28, %c8, %c0_29] : memref<1x32x32xf32, #tpu.memory_space<vmem>>, vector<1x8x32xf32>
    %64 = vector.shape_cast %63 : vector<1x8x32xf32> to vector<8x32xf32>
    %cst_30 = arith.constant dense<0.000000e+00> : vector<64x32xf32>
    %65 = tpu.matmul %62, %64, %cst_30 {dimension_numbers = #tpu.dot_dimension_numbers<[1], [0], [0], [1], [0, 0, 1, 1], [], []>} : vector<64x8xf32>, vector<8x32xf32>, vector<64x32xf32> -> vector<64x32xf32>
    %66 = arith.addf %39, %65 : vector<64x32xf32>
    %67 = vector.extract_strided_slice %13 {offsets = [0, 16], sizes = [64, 8], strides = [1, 1]} : vector<64x96xf32> to vector<64x8xf32>
    %68 = vector.shape_cast %67 : vector<64x8xf32> to vector<8x8x8xf32>
    %69 = vector.extract_strided_slice %13 {offsets = [0, 48], sizes = [64, 8], strides = [1, 1]} : vector<64x96xf32> to vector<64x8xf32>
    %70 = vector.shape_cast %69 : vector<64x8xf32> to vector<8x8x8xf32>
    %71 = vector.extract_strided_slice %13 {offsets = [0, 80], sizes = [64, 8], strides = [1, 1]} : vector<64x96xf32> to vector<64x8xf32>
    %72 = vector.shape_cast %71 : vector<64x8xf32> to vector<8x8x8xf32>
    "tpu.trace_start"() <{level = 10 : i32, message = "bqd,bkd->bqk"}> : () -> ()
    %cst_31 = arith.constant dense<0.000000e+00> : vector<8x8x8xf32>
    %73 = tpu.matmul %68, %70, %cst_31 {dimension_numbers = #tpu.dot_dimension_numbers<[2], [2], [1], [1], [0, 0, 0, 1, 1, 1], [0], [0]>} : vector<8x8x8xf32>, vector<8x8x8xf32>, vector<8x8x8xf32> -> vector<8x8x8xf32>
    "tpu.trace_stop"() : () -> ()
    %cst_32 = arith.constant 0.353553385 : f32
    %74 = vector.broadcast %cst_32 : f32 to vector<8x8x8xf32>
    %75 = arith.mulf %73, %74 : vector<8x8x8xf32>
    %cst_33 = arith.constant -1.000000e+09 : f32
    %76 = vector.broadcast %cst_33 : f32 to vector<8x8x8xf32>
    %77 = arith.select %6, %76, %75 : vector<8x8x8xi1>, vector<8x8x8xf32>
    %cst_34 = arith.constant dense<0xFF800000> : vector<8x8xf32>
    %78 = vector.multi_reduction <maximumf>, %77, %cst_34 [2] : vector<8x8x8xf32> to vector<8x8xf32>
    %79 = vector.shape_cast %78 : vector<8x8xf32> to vector<8x8x1xf32>
    %80 = vector.broadcast %79 : vector<8x8x1xf32> to vector<8x8x8xf32>
    %81 = arith.subf %77, %80 : vector<8x8x8xf32>
    %82 = math.exp %81 : vector<8x8x8xf32>
    %cst_35 = arith.constant dense<0.000000e+00> : vector<8x8xf32>
    %83 = vector.multi_reduction <add>, %82, %cst_35 [2] : vector<8x8x8xf32> to vector<8x8xf32>
    %84 = vector.shape_cast %83 : vector<8x8xf32> to vector<8x8x1xf32>
    %85 = tpu.reciprocal %84 {approx = true} : vector<8x8x1xf32> -> vector<8x8x1xf32>
    %86 = vector.broadcast %85 : vector<8x8x1xf32> to vector<8x8x8xf32>
    %87 = arith.mulf %82, %86 : vector<8x8x8xf32>
    "tpu.trace_start"() <{level = 10 : i32, message = "bqk,bkd->bqd"}> : () -> ()
    %cst_36 = arith.constant dense<0.000000e+00> : vector<8x8x8xf32>
    %88 = tpu.matmul %87, %72, %cst_36 {dimension_numbers = #tpu.dot_dimension_numbers<[2], [1], [1], [2], [0, 0, 0, 1, 1, 2], [0], [0]>} : vector<8x8x8xf32>, vector<8x8x8xf32>, vector<8x8x8xf32> -> vector<8x8x8xf32>
    "tpu.trace_stop"() : () -> ()
    %89 = vector.shape_cast %88 : vector<8x8x8xf32> to vector<64x8xf32>
    %c0_37 = arith.constant 0 : index
    %c16 = arith.constant 16 : index
    %c0_38 = arith.constant 0 : index
    %90 = vector.load %arg6[%c0_37, %c16, %c0_38] : memref<1x32x32xf32, #tpu.memory_space<vmem>>, vector<1x8x32xf32>
    %91 = vector.shape_cast %90 : vector<1x8x32xf32> to vector<8x32xf32>
    %cst_39 = arith.constant dense<0.000000e+00> : vector<64x32xf32>
    %92 = tpu.matmul %89, %91, %cst_39 {dimension_numbers = #tpu.dot_dimension_numbers<[1], [0], [0], [1], [0, 0, 1, 1], [], []>} : vector<64x8xf32>, vector<8x32xf32>, vector<64x32xf32> -> vector<64x32xf32>
    %93 = arith.addf %66, %92 : vector<64x32xf32>
    %94 = vector.extract_strided_slice %13 {offsets = [0, 24], sizes = [64, 8], strides = [1, 1]} : vector<64x96xf32> to vector<64x8xf32>
    %95 = vector.shape_cast %94 : vector<64x8xf32> to vector<8x8x8xf32>
    %96 = vector.extract_strided_slice %13 {offsets = [0, 56], sizes = [64, 8], strides = [1, 1]} : vector<64x96xf32> to vector<64x8xf32>
    %97 = vector.shape_cast %96 : vector<64x8xf32> to vector<8x8x8xf32>
    %98 = vector.extract_strided_slice %13 {offsets = [0, 88], sizes = [64, 8], strides = [1, 1]} : vector<64x96xf32> to vector<64x8xf32>
    %99 = vector.shape_cast %98 : vector<64x8xf32> to vector<8x8x8xf32>
    "tpu.trace_start"() <{level = 10 : i32, message = "bqd,bkd->bqk"}> : () -> ()
    %cst_40 = arith.constant dense<0.000000e+00> : vector<8x8x8xf32>
    %100 = tpu.matmul %95, %97, %cst_40 {dimension_numbers = #tpu.dot_dimension_numbers<[2], [2], [1], [1], [0, 0, 0, 1, 1, 1], [0], [0]>} : vector<8x8x8xf32>, vector<8x8x8xf32>, vector<8x8x8xf32> -> vector<8x8x8xf32>
    "tpu.trace_stop"() : () -> ()
    %cst_41 = arith.constant 0.353553385 : f32
    %101 = vector.broadcast %cst_41 : f32 to vector<8x8x8xf32>
    %102 = arith.mulf %100, %101 : vector<8x8x8xf32>
    %cst_42 = arith.constant -1.000000e+09 : f32
    %103 = vector.broadcast %cst_42 : f32 to vector<8x8x8xf32>
    %104 = arith.select %6, %103, %102 : vector<8x8x8xi1>, vector<8x8x8xf32>
    %cst_43 = arith.constant dense<0xFF800000> : vector<8x8xf32>
    %105 = vector.multi_reduction <maximumf>, %104, %cst_43 [2] : vector<8x8x8xf32> to vector<8x8xf32>
    %106 = vector.shape_cast %105 : vector<8x8xf32> to vector<8x8x1xf32>
    %107 = vector.broadcast %106 : vector<8x8x1xf32> to vector<8x8x8xf32>
    %108 = arith.subf %104, %107 : vector<8x8x8xf32>
    %109 = math.exp %108 : vector<8x8x8xf32>
    %cst_44 = arith.constant dense<0.000000e+00> : vector<8x8xf32>
    %110 = vector.multi_reduction <add>, %109, %cst_44 [2] : vector<8x8x8xf32> to vector<8x8xf32>
    %111 = vector.shape_cast %110 : vector<8x8xf32> to vector<8x8x1xf32>
    %112 = tpu.reciprocal %111 {approx = true} : vector<8x8x1xf32> -> vector<8x8x1xf32>
    %113 = vector.broadcast %112 : vector<8x8x1xf32> to vector<8x8x8xf32>
    %114 = arith.mulf %109, %113 : vector<8x8x8xf32>
    "tpu.trace_start"() <{level = 10 : i32, message = "bqk,bkd->bqd"}> : () -> ()
    %cst_45 = arith.constant dense<0.000000e+00> : vector<8x8x8xf32>
    %115 = tpu.matmul %114, %99, %cst_45 {dimension_numbers = #tpu.dot_dimension_numbers<[2], [1], [1], [2], [0, 0, 0, 1, 1, 2], [0], [0]>} : vector<8x8x8xf32>, vector<8x8x8xf32>, vector<8x8x8xf32> -> vector<8x8x8xf32>
    "tpu.trace_stop"() : () -> ()
    %116 = vector.shape_cast %115 : vector<8x8x8xf32> to vector<64x8xf32>
    %c0_46 = arith.constant 0 : index
    %c24 = arith.constant 24 : index
    %c0_47 = arith.constant 0 : index
    %117 = vector.load %arg6[%c0_46, %c24, %c0_47] : memref<1x32x32xf32, #tpu.memory_space<vmem>>, vector<1x8x32xf32>
    %118 = vector.shape_cast %117 : vector<1x8x32xf32> to vector<8x32xf32>
    %cst_48 = arith.constant dense<0.000000e+00> : vector<64x32xf32>
    %119 = tpu.matmul %116, %118, %cst_48 {dimension_numbers = #tpu.dot_dimension_numbers<[1], [0], [0], [1], [0, 0, 1, 1], [], []>} : vector<64x8xf32>, vector<8x32xf32>, vector<64x32xf32> -> vector<64x32xf32>
    %120 = arith.addf %93, %119 : vector<64x32xf32>
    %c0_49 = arith.constant 0 : index
    %c0_50 = arith.constant 0 : index
    %c0_51 = arith.constant 0 : index
    %121 = vector.load %arg7[%c0_49, %c0_50, %c0_51] : memref<1x1x32xf32, #tpu.memory_space<vmem>>, vector<1x1x32xf32>
    %122 = vector.shape_cast %121 : vector<1x1x32xf32> to vector<1x32xf32>
    %123 = vector.broadcast %122 : vector<1x32xf32> to vector<64x32xf32>
    %124 = arith.addf %120, %123 : vector<64x32xf32>
    %c0_52 = arith.constant 0 : index
    %c0_53 = arith.constant 0 : index
    %c0_54 = arith.constant 0 : index
    %125 = vector.load %arg8[%c0_52, %c0_53, %c0_54] : memref<1x1x32xf32, #tpu.memory_space<vmem>>, vector<1x1x32xf32>
    %126 = vector.shape_cast %125 : vector<1x1x32xf32> to vector<1x32xf32>
    %c0_55 = arith.constant 0 : index
    %c0_56 = arith.constant 0 : index
    %c0_57 = arith.constant 0 : index
    %127 = vector.load %arg9[%c0_55, %c0_56, %c0_57] : memref<1x1x32xf32, #tpu.memory_space<vmem>>, vector<1x1x32xf32>
    %128 = vector.shape_cast %127 : vector<1x1x32xf32> to vector<1x32xf32>
    %cst_58 = arith.constant dense<0.000000e+00> : vector<64xf32>
    %129 = vector.multi_reduction <add>, %124, %cst_58 [1] : vector<64x32xf32> to vector<64xf32>
    %130 = vector.shape_cast %129 : vector<64xf32> to vector<64x1xf32>
    %cst_59 = arith.constant 3.200000e+01 : f32
    %131 = vector.broadcast %cst_59 : f32 to vector<64x1xf32>
    %132 = arith.divf %130, %131 : vector<64x1xf32>
    %133 = vector.broadcast %132 : vector<64x1xf32> to vector<64x32xf32>
    %134 = arith.subf %124, %133 : vector<64x32xf32>
    %135 = arith.mulf %134, %134 : vector<64x32xf32>
    %cst_60 = arith.constant dense<0.000000e+00> : vector<64xf32>
    %136 = vector.multi_reduction <add>, %135, %cst_60 [1] : vector<64x32xf32> to vector<64xf32>
    %137 = vector.shape_cast %136 : vector<64xf32> to vector<64x1xf32>
    %cst_61 = arith.constant 3.200000e+01 : f32
    %138 = vector.broadcast %cst_61 : f32 to vector<64x1xf32>
    %139 = arith.divf %137, %138 : vector<64x1xf32>
    %cst_62 = arith.constant 9.99999974E-6 : f32
    %140 = vector.broadcast %cst_62 : f32 to vector<64x1xf32>
    %141 = arith.addf %139, %140 : vector<64x1xf32>
    %142 = math.rsqrt %141 : vector<64x1xf32>
    %143 = vector.broadcast %142 : vector<64x1xf32> to vector<64x32xf32>
    %144 = arith.mulf %134, %143 : vector<64x32xf32>
    %145 = vector.broadcast %126 : vector<1x32xf32> to vector<64x32xf32>
    %146 = arith.mulf %144, %145 : vector<64x32xf32>
    %147 = vector.broadcast %128 : vector<1x32xf32> to vector<64x32xf32>
    %148 = arith.addf %146, %147 : vector<64x32xf32>
    %149 = arith.addf %3, %148 : vector<64x32xf32>
    %c0_63 = arith.constant 0 : index
    %c0_64 = arith.constant 0 : index
    %c0_65 = arith.constant 0 : index
    %150 = vector.load %arg10[%c0_63, %c0_64, %c0_65] : memref<1x32x64xf32, #tpu.memory_space<vmem>>, vector<1x32x64xf32>
    %151 = vector.shape_cast %150 : vector<1x32x64xf32> to vector<32x64xf32>
    %cst_66 = arith.constant dense<0.000000e+00> : vector<64x64xf32>
    %152 = tpu.matmul %149, %151, %cst_66 {dimension_numbers = #tpu.dot_dimension_numbers<[1], [0], [0], [1], [0, 0, 1, 1], [], []>} : vector<64x32xf32>, vector<32x64xf32>, vector<64x64xf32> -> vector<64x64xf32>
    %c0_67 = arith.constant 0 : index
    %c0_68 = arith.constant 0 : index
    %c0_69 = arith.constant 0 : index
    %153 = vector.load %arg11[%c0_67, %c0_68, %c0_69] : memref<1x1x64xf32, #tpu.memory_space<vmem>>, vector<1x1x64xf32>
    %154 = vector.shape_cast %153 : vector<1x1x64xf32> to vector<1x64xf32>
    %155 = vector.broadcast %154 : vector<1x64xf32> to vector<64x64xf32>
    %156 = arith.addf %152, %155 : vector<64x64xf32>
    %cst_70 = arith.constant 0.000000e+00 : f32
    %157 = vector.broadcast %cst_70 : f32 to vector<64x64xf32>
    %158 = arith.maximumf %156, %157 : vector<64x64xf32>
    %c0_71 = arith.constant 0 : index
    %c0_72 = arith.constant 0 : index
    %c0_73 = arith.constant 0 : index
    %159 = vector.load %arg12[%c0_71, %c0_72, %c0_73] : memref<1x64x32xf32, #tpu.memory_space<vmem>>, vector<1x64x32xf32>
    %160 = vector.shape_cast %159 : vector<1x64x32xf32> to vector<64x32xf32>
    %cst_74 = arith.constant dense<0.000000e+00> : vector<64x32xf32>
    %161 = tpu.matmul %158, %160, %cst_74 {dimension_numbers = #tpu.dot_dimension_numbers<[1], [0], [0], [1], [0, 0, 1, 1], [], []>} : vector<64x64xf32>, vector<64x32xf32>, vector<64x32xf32> -> vector<64x32xf32>
    %c0_75 = arith.constant 0 : index
    %c0_76 = arith.constant 0 : index
    %c0_77 = arith.constant 0 : index
    %162 = vector.load %arg13[%c0_75, %c0_76, %c0_77] : memref<1x1x32xf32, #tpu.memory_space<vmem>>, vector<1x1x32xf32>
    %163 = vector.shape_cast %162 : vector<1x1x32xf32> to vector<1x32xf32>
    %164 = vector.broadcast %163 : vector<1x32xf32> to vector<64x32xf32>
    %165 = arith.addf %161, %164 : vector<64x32xf32>
    %c0_78 = arith.constant 0 : index
    %c0_79 = arith.constant 0 : index
    %c0_80 = arith.constant 0 : index
    %166 = vector.load %arg8[%c0_78, %c0_79, %c0_80] : memref<1x1x32xf32, #tpu.memory_space<vmem>>, vector<1x1x32xf32>
    %167 = vector.shape_cast %166 : vector<1x1x32xf32> to vector<1x32xf32>
    %c0_81 = arith.constant 0 : index
    %c0_82 = arith.constant 0 : index
    %c0_83 = arith.constant 0 : index
    %168 = vector.load %arg9[%c0_81, %c0_82, %c0_83] : memref<1x1x32xf32, #tpu.memory_space<vmem>>, vector<1x1x32xf32>
    %169 = vector.shape_cast %168 : vector<1x1x32xf32> to vector<1x32xf32>
    %cst_84 = arith.constant dense<0.000000e+00> : vector<64xf32>
    %170 = vector.multi_reduction <add>, %165, %cst_84 [1] : vector<64x32xf32> to vector<64xf32>
    %171 = vector.shape_cast %170 : vector<64xf32> to vector<64x1xf32>
    %cst_85 = arith.constant 3.200000e+01 : f32
    %172 = vector.broadcast %cst_85 : f32 to vector<64x1xf32>
    %173 = arith.divf %171, %172 : vector<64x1xf32>
    %174 = vector.broadcast %173 : vector<64x1xf32> to vector<64x32xf32>
    %175 = arith.subf %165, %174 : vector<64x32xf32>
    %176 = arith.mulf %175, %175 : vector<64x32xf32>
    %cst_86 = arith.constant dense<0.000000e+00> : vector<64xf32>
    %177 = vector.multi_reduction <add>, %176, %cst_86 [1] : vector<64x32xf32> to vector<64xf32>
    %178 = vector.shape_cast %177 : vector<64xf32> to vector<64x1xf32>
    %cst_87 = arith.constant 3.200000e+01 : f32
    %179 = vector.broadcast %cst_87 : f32 to vector<64x1xf32>
    %180 = arith.divf %178, %179 : vector<64x1xf32>
    %cst_88 = arith.constant 9.99999974E-6 : f32
    %181 = vector.broadcast %cst_88 : f32 to vector<64x1xf32>
    %182 = arith.addf %180, %181 : vector<64x1xf32>
    %183 = math.rsqrt %182 : vector<64x1xf32>
    %184 = vector.broadcast %183 : vector<64x1xf32> to vector<64x32xf32>
    %185 = arith.mulf %175, %184 : vector<64x32xf32>
    %186 = vector.broadcast %167 : vector<1x32xf32> to vector<64x32xf32>
    %187 = arith.mulf %185, %186 : vector<64x32xf32>
    %188 = vector.broadcast %169 : vector<1x32xf32> to vector<64x32xf32>
    %189 = arith.addf %187, %188 : vector<64x32xf32>
    %190 = arith.addf %149, %189 : vector<64x32xf32>
    %c0_89 = arith.constant 0 : index
    %c0_90 = arith.constant 0 : index
    %191 = vector.load %arg17[%c0_89, %c0_90] : memref<64x32xf32, #tpu.memory_space<vmem>>, vector<64x32xf32>
    tpu.vector_store %arg17[%c0_89, %c0_90], %190 {strides = array<i32>} : memref<64x32xf32, #tpu.memory_space<vmem>>, vector<64x32xf32>,
    %c1_i32 = arith.constant 1 : i32
    %192 = arith.cmpi eq, %arg1, %c1_i32 : i32
    %193 = arith.extui %192 : i1 to i32
    %c0_i32_91 = arith.constant 0 : i32
    %194 = arith.cmpi ne, %193, %c0_i32_91 : i32
    scf.if %194 {
      %195 = vector.shape_cast %190 : vector<64x32xf32> to vector<8x8x32xf32>
      %cst_92 = arith.constant dense<0.000000e+00> : vector<8x32xf32>
      %196 = vector.multi_reduction <add>, %195, %cst_92 [1] : vector<8x8x32xf32> to vector<8x32xf32>
      %cst_93 = arith.constant 8.000000e+00 : f32
      %197 = vector.broadcast %cst_93 : f32 to vector<8x32xf32>
      %198 = arith.divf %196, %197 : vector<8x32xf32>
      %cst_94 = arith.constant 0.000000e+00 : f32
      %199 = vector.broadcast %cst_94 : f32 to vector<8x32xf32>
      %200 = arith.maximumf %198, %199 : vector<8x32xf32>
      %c0_95 = arith.constant 0 : index
      %c0_96 = arith.constant 0 : index
      %201 = vector.load %arg14[%c0_95, %c0_96] : memref<32x128xf32, #tpu.memory_space<vmem>>, vector<32x128xf32>
      %cst_97 = arith.constant dense<0.000000e+00> : vector<8x128xf32>
      %202 = tpu.matmul %200, %201, %cst_97 {dimension_numbers = #tpu.dot_dimension_numbers<[1], [0], [0], [1], [0, 0, 1, 1], [], []>} : vector<8x32xf32>, vector<32x128xf32>, vector<8x128xf32> -> vector<8x128xf32>
      %c0_98 = arith.constant 0 : index
      %c0_99 = arith.constant 0 : index
      %203 = vector.load %arg15[%c0_98, %c0_99] : memref<1x128xf32, #tpu.memory_space<vmem>>, vector<1x128xf32>
      %204 = vector.broadcast %203 : vector<1x128xf32> to vector<8x128xf32>
      %205 = arith.addf %202, %204 : vector<8x128xf32>
      %c0_100 = arith.constant 0 : index
      %c0_101 = arith.constant 0 : index
      %206 = vector.load %arg16[%c0_100, %c0_101] : memref<8x128xf32, #tpu.memory_space<vmem>>, vector<8x128xf32>
      tpu.vector_store %arg16[%c0_100, %c0_101], %205 {strides = array<i32>} : memref<8x128xf32, #tpu.memory_space<vmem>>, vector<8x128xf32>,
    } else {
    }
    return
  }
  func.func @transform_0(%arg0: i32, %arg1: i32) -> (i32, i32, i32) {
    %c0_i32 = arith.constant 0 : i32
    %c0_i32_0 = arith.constant 0 : i32
    %c0_i32_1 = arith.constant 0 : i32
    return %arg0, %c0_i32, %c0_i32_0 : i32, i32, i32
  }
  func.func @transform_1(%arg0: i32, %arg1: i32) -> (i32, i32, i32) {
    %c0_i32 = arith.constant 0 : i32
    %c0_i32_0 = arith.constant 0 : i32
    %c0_i32_1 = arith.constant 0 : i32
    return %arg0, %c0_i32, %c0_i32_0 : i32, i32, i32
  }
  func.func @transform_2(%arg0: i32, %arg1: i32) -> (i32, i32, i32) {
    %c0_i32 = arith.constant 0 : i32
    %c0_i32_0 = arith.constant 0 : i32
    %c0_i32_1 = arith.constant 0 : i32
    return %arg1, %c0_i32, %c0_i32_0 : i32, i32, i32
  }
  func.func @transform_3(%arg0: i32, %arg1: i32) -> (i32, i32, i32) {
    %c0_i32 = arith.constant 0 : i32
    %c0_i32_0 = arith.constant 0 : i32
    %c0_i32_1 = arith.constant 0 : i32
    return %arg1, %c0_i32, %c0_i32_0 : i32, i32, i32
  }
  func.func @transform_4(%arg0: i32, %arg1: i32) -> (i32, i32, i32) {
    %c0_i32 = arith.constant 0 : i32
    %c0_i32_0 = arith.constant 0 : i32
    %c0_i32_1 = arith.constant 0 : i32
    return %arg1, %c0_i32, %c0_i32_0 : i32, i32, i32
  }
  func.func @transform_5(%arg0: i32, %arg1: i32) -> (i32, i32, i32) {
    %c0_i32 = arith.constant 0 : i32
    %c0_i32_0 = arith.constant 0 : i32
    %c0_i32_1 = arith.constant 0 : i32
    return %arg1, %c0_i32, %c0_i32_0 : i32, i32, i32
  }
  func.func @transform_6(%arg0: i32, %arg1: i32) -> (i32, i32, i32) {
    %c0_i32 = arith.constant 0 : i32
    %c0_i32_0 = arith.constant 0 : i32
    %c0_i32_1 = arith.constant 0 : i32
    return %arg1, %c0_i32, %c0_i32_0 : i32, i32, i32
  }
  func.func @transform_7(%arg0: i32, %arg1: i32) -> (i32, i32, i32) {
    %c0_i32 = arith.constant 0 : i32
    %c0_i32_0 = arith.constant 0 : i32
    %c0_i32_1 = arith.constant 0 : i32
    return %arg1, %c0_i32, %c0_i32_0 : i32, i32, i32
  }
  func.func @transform_8(%arg0: i32, %arg1: i32) -> (i32, i32, i32) {
    %c0_i32 = arith.constant 0 : i32
    %c0_i32_0 = arith.constant 0 : i32
    %c0_i32_1 = arith.constant 0 : i32
    return %arg1, %c0_i32, %c0_i32_0 : i32, i32, i32
  }
  func.func @transform_9(%arg0: i32, %arg1: i32) -> (i32, i32, i32) {
    %c0_i32 = arith.constant 0 : i32
    %c0_i32_0 = arith.constant 0 : i32
    %c0_i32_1 = arith.constant 0 : i32
    return %arg1, %c0_i32, %c0_i32_0 : i32, i32, i32
  }
  func.func @transform_10(%arg0: i32, %arg1: i32) -> (i32, i32, i32) {
    %c0_i32 = arith.constant 0 : i32
    %c0_i32_0 = arith.constant 0 : i32
    %c0_i32_1 = arith.constant 0 : i32
    return %arg1, %c0_i32, %c0_i32_0 : i32, i32, i32
  }
  func.func @transform_11(%arg0: i32, %arg1: i32) -> (i32, i32, i32) {
    %c0_i32 = arith.constant 0 : i32
    %c0_i32_0 = arith.constant 0 : i32
    %c0_i32_1 = arith.constant 0 : i32
    return %arg1, %c0_i32, %c0_i32_0 : i32, i32, i32
  }
  func.func @transform_12(%arg0: i32, %arg1: i32) -> (i32, i32) {
    %c0_i32 = arith.constant 0 : i32
    %c0_i32_0 = arith.constant 0 : i32
    %c0_i32_1 = arith.constant 0 : i32
    return %c0_i32, %c0_i32_0 : i32, i32
  }
  func.func @transform_13(%arg0: i32, %arg1: i32) -> (i32, i32) {
    %c0_i32 = arith.constant 0 : i32
    %c0_i32_0 = arith.constant 0 : i32
    %c0_i32_1 = arith.constant 0 : i32
    return %c0_i32, %c0_i32_0 : i32, i32
  }
  func.func @transform_14(%arg0: i32, %arg1: i32) -> (i32, i32) {
    %c0_i32 = arith.constant 0 : i32
    %c0_i32_0 = arith.constant 0 : i32
    return %arg0, %c0_i32 : i32, i32
  }
}

</mosaic_0001>

<llo_original>
// kernel: transformer_forward.1
$region0: #{transformer_forward.1}
  #allocation0 [shape = 'u32[]', space=smem, size = 0x4, offset = 0x4, fixed_abs, tag = 'smem constant byte address 0x4 - core index']
  #allocation1 [shape = 'u32[144,128]{1,0:T(1,128)}', space=vmem, size = 0x12000, scoped, tag = 'internal scratch']
  #allocation2 [shape = 'f32[64,32]{1,0:T(8,128)}', space=vmem, size = 0x8000, scoped, tag = 'scratch operand']
  %s0 = inlined_call_operand.vmem [shape: f32[16,8,32], index: 0, kind: input, shape index: {}]
  %s1 = inlined_call_operand.vmem [shape: f32[16,8,8], index: 1, kind: input, shape index: {}]
  %s2 = inlined_call_operand.vmem [shape: f32[2,32,96], index: 2, kind: input, shape index: {}]
  %s3 = inlined_call_operand.vmem [shape: f32[2,1,96], index: 3, kind: input, shape index: {}]
  %s4 = inlined_call_operand.vmem [shape: f32[2,32,32], index: 4, kind: input, shape index: {}]
  %s5 = inlined_call_operand.vmem [shape: f32[2,1,32], index: 5, kind: input, shape index: {}]
  %s6 = inlined_call_operand.vmem [shape: f32[2,1,32], index: 6, kind: input, shape index: {}]
  %s7 = inlined_call_operand.vmem [shape: f32[2,1,32], index: 7, kind: input, shape index: {}]
  %s8 = inlined_call_operand.vmem [shape: f32[2,32,64], index: 8, kind: input, shape index: {}]
  %s9 = inlined_call_operand.vmem [shape: f32[2,1,64], index: 9, kind: input, shape index: {}]
  %s10 = inlined_call_operand.vmem [shape: f32[2,64,32], index: 10, kind: input, shape index: {}]
  %s11 = inlined_call_operand.vmem [shape: f32[2,1,32], index: 11, kind: input, shape index: {}]
  %s12 = inlined_call_operand.vmem [shape: f32[32,128], index: 12, kind: input, shape index: {}]
  %s13 = inlined_call_operand.vmem [shape: f32[1,128], index: 13, kind: input, shape index: {}]
  %s14 = inlined_call_operand.vmem [shape: f32[16,128], index: 14, kind: output, shape index: {}]
  %s15 = sld [smem:[#allocation0]]
  $region97: #{transformer_forward.1} parent=0
    _
  %s17 = ssub.s32 1, %s15
  %s18 = scalar_select 0, %s17, %s15
  loop: start=0, step=1, limit=6
  $region2: #{transformer_forward.1} parent=0 // loop_pre_header
    _
  $region3: #{transformer_forward.1} parent=0 // loop_header
    %s20 = sphi 0, %s24
    %p21 = scmp.ge.s32.totalorder %s20, 6
    %s27 = sphi 0, %s39
    %s28 = sphi 0, %s35
    %s29 = sphi 0, %s27
    %s30 = sphi 0, %s28
    %s31 = sphi 0, %s29
    %s32 = sphi 0, %s30
    %s42 = sphi 0, %s44
    %s45 = sphi 0, %s42
    %s46 = sphi 0, %s45
    %s62 = sphi 0, %s46
    %s68 = sphi 0, %s70
    %s71 = sphi 0, %s68
    %s72 = sphi 0, %s71
    %s88 = sphi 0, %s72
    %s94 = sphi 0, %s96
    %s97 = sphi 0, %s94
    %s98 = sphi 0, %s97
    %s114 = sphi 0, %s98
    %s120 = sphi 0, %s122
    %s123 = sphi 0, %s120
    %s124 = sphi 0, %s123
    %s140 = sphi 0, %s124
    %s146 = sphi 0, %s148
    %s149 = sphi 0, %s146
    %s150 = sphi 0, %s149
    %s166 = sphi 0, %s150
    %s172 = sphi 0, %s174
    %s175 = sphi 0, %s172
    %s176 = sphi 0, %s175
    %s192 = sphi 0, %s176
    %s198 = sphi 0, %s200
    %s201 = sphi 0, %s198
    %s202 = sphi 0, %s201
    %s218 = sphi 0, %s202
    %s224 = sphi 0, %s226
    %s227 = sphi 0, %s224
    %s228 = sphi 0, %s227
    %s244 = sphi 0, %s228
    %s250 = sphi 0, %s252
    %s253 = sphi 0, %s250
    %s254 = sphi 0, %s253
    %s270 = sphi 0, %s254
    %s276 = sphi 0, %s278
    %s279 = sphi 0, %s276
    %s280 = sphi 0, %s279
    %s296 = sphi 0, %s280
    %s302 = sphi 0, %s304
    %s305 = sphi 0, %s302
    %s306 = sphi 0, %s305
    %s322 = sphi 0, %s306
    %s328 = sphi 0, %s330
    %s331 = sphi 0, %s328
    %s332 = sphi 0, %s331
    %s348 = sphi 0, %s332
    %s352 = sphi 0, %s352
    %s354 = sphi 0, %s352
    %s355 = sphi 0, %s354
    %s369 = sphi 0, %s355
    %s373 = sphi 0, %s373
    %s375 = sphi 0, %s373
    %s376 = sphi 0, %s375
    %s390 = sphi 0, %s376
    %s396 = sphi 0, %s398
    %s399 = sphi 0, %s396
    %s400 = sphi 0, %s399
    %s416 = sphi 0, %s400
  $region4: #{transformer_forward.1} parent=0 // loop_header_branch
    %23 = sbr.rel (%p21) target = $region8
  $region5: #{transformer_forward.1} parent=0 // loop_body
    %s25 = ssub.s32 %s20, 1
    %s26 = ssub.s32 %s20, 2
    %s33 = sadd.s32 1, %s28
    %p34 = scmp.ge.s32.totalorder %s33, 2
    %s35 = scalar_select %p34, 0, %s33
    %s36 = sadd.s32 1, %s27
    %s37 = scalar_select %p34, %s36, %s27
    %p38 = scmp.ge.s32.totalorder %s37, 2
    %s39 = scalar_select %p38, 0, %s37
    %s40 = ssub.s32 %s27, %s39
    %p41 = scmp.eq.s32.totalorder %s40, 0
    %s43 = sadd.s32 %s42, 1
    %s44 = scalar_select %p41, %s42, %s43
    %p47 = pneg %p41
    %p48 = scmp.eq.s32.totalorder %s20, 3
    %p49 = por %p47, %p48
    %p50 = scmp.ne.s32.totalorder %s42, %s45
    %p51 = scmp.eq.s32.totalorder %s20, 0
    %p52 = por %p50, %p51
    %p53 = scmp.ne.s32.totalorder %s42, %s45
    %p54 = scmp.eq.s32.totalorder %s25, 3
    %p55 = por %p53, %p54
    %p56 = scmp.ne.s32.totalorder %s45, %s46
    %p57 = scmp.eq.s32.totalorder %s25, 0
    %p58 = por %p56, %p57
    %p59 = scmp.ne.s32.totalorder %s45, %s46
    %p60 = scmp.eq.s32.totalorder %s26, 3
    %p61 = por %p59, %p60
    %p63 = scmp.ne.s32.totalorder %s46, %s62
    %p64 = scmp.eq.s32.totalorder %s26, 0
    %p65 = por %p63, %p64
    %s66 = ssub.s32 %s27, %s39
    %p67 = scmp.eq.s32.totalorder %s66, 0
    %s69 = sadd.s32 %s68, 1
    %s70 = scalar_select %p67, %s68, %s69
    %p73 = pneg %p67
    %p74 = scmp.eq.s32.totalorder %s20, 3
    %p75 = por %p73, %p74
    %p76 = scmp.ne.s32.totalorder %s68, %s71
    %p77 = scmp.eq.s32.totalorder %s20, 0
    %p78 = por %p76, %p77
    %p79 = scmp.ne.s32.totalorder %s68, %s71
    %p80 = scmp.eq.s32.totalorder %s25, 3
    %p81 = por %p79, %p80
    %p82 = scmp.ne.s32.totalorder %s71, %s72
    %p83 = scmp.eq.s32.totalorder %s25, 0
    %p84 = por %p82, %p83
    %p85 = scmp.ne.s32.totalorder %s71, %s72
    %p86 = scmp.eq.s32.totalorder %s26, 3
    %p87 = por %p85, %p86
    %p89 = scmp.ne.s32.totalorder %s72, %s88
    %p90 = scmp.eq.s32.totalorder %s26, 0
    %p91 = por %p89, %p90
    %s92 = ssub.s32 %s28, %s35
    %p93 = scmp.eq.s32.totalorder %s92, 0
    %s95 = sadd.s32 %s94, 1
    %s96 = scalar_select %p93, %s94, %s95
    %p99 = pneg %p93
    %p100 = scmp.eq.s32.totalorder %s20, 3
    %p101 = por %p99, %p100
    %p102 = scmp.ne.s32.totalorder %s94, %s97
    %p103 = scmp.eq.s32.totalorder %s20, 0
    %p104 = por %p102, %p103
    %p105 = scmp.ne.s32.totalorder %s94, %s97
    %p106 = scmp.eq.s32.totalorder %s25, 3
    %p107 = por %p105, %p106
    %p108 = scmp.ne.s32.totalorder %s97, %s98
    %p109 = scmp.eq.s32.totalorder %s25, 0
    %p110 = por %p108, %p109
    %p111 = scmp.ne.s32.totalorder %s97, %s98
    %p112 = scmp.eq.s32.totalorder %s26, 3
    %p113 = por %p111, %p112
    %p115 = scmp.ne.s32.totalorder %s98, %s114
    %p116 = scmp.eq.s32.totalorder %s26, 0
    %p117 = por %p115, %p116
    %s118 = ssub.s32 %s28, %s35
    %p119 = scmp.eq.s32.totalorder %s118, 0
    %s121 = sadd.s32 %s120, 1
    %s122 = scalar_select %p119, %s120, %s121
    %p125 = pneg %p119
    %p126 = scmp.eq.s32.totalorder %s20, 3
    %p127 = por %p125, %p126
    %p128 = scmp.ne.s32.totalorder %s120, %s123
    %p129 = scmp.eq.s32.totalorder %s20, 0
    %p130 = por %p128, %p129
    %p131 = scmp.ne.s32.totalorder %s120, %s123
    %p132 = scmp.eq.s32.totalorder %s25, 3
    %p133 = por %p131, %p132
    %p134 = scmp.ne.s32.totalorder %s123, %s124
    %p135 = scmp.eq.s32.totalorder %s25, 0
    %p136 = por %p134, %p135
    %p137 = scmp.ne.s32.totalorder %s123, %s124
    %p138 = scmp.eq.s32.totalorder %s26, 3
    %p139 = por %p137, %p138
    %p141 = scmp.ne.s32.totalorder %s124, %s140
    %p142 = scmp.eq.s32.totalorder %s26, 0
    %p143 = por %p141, %p142
    %s144 = ssub.s32 %s28, %s35
    %p145 = scmp.eq.s32.totalorder %s144, 0
    %s147 = sadd.s32 %s146, 1
    %s148 = scalar_select %p145, %s146, %s147
    %p151 = pneg %p145
    %p152 = scmp.eq.s32.totalorder %s20, 3
    %p153 = por %p151, %p152
    %p154 = scmp.ne.s32.totalorder %s146, %s149
    %p155 = scmp.eq.s32.totalorder %s20, 0
    %p156 = por %p154, %p155
    %p157 = scmp.ne.s32.totalorder %s146, %s149
    %p158 = scmp.eq.s32.totalorder %s25, 3
    %p159 = por %p157, %p158
    %p160 = scmp.ne.s32.totalorder %s149, %s150
    %p161 = scmp.eq.s32.totalorder %s25, 0
    %p162 = por %p160, %p161
    %p163 = scmp.ne.s32.totalorder %s149, %s150
    %p164 = scmp.eq.s32.totalorder %s26, 3
    %p165 = por %p163, %p164
    %p167 = scmp.ne.s32.totalorder %s150, %s166
    %p168 = scmp.eq.s32.totalorder %s26, 0
    %p169 = por %p167, %p168
    %s170 = ssub.s32 %s28, %s35
    %p171 = scmp.eq.s32.totalorder %s170, 0
    %s173 = sadd.s32 %s172, 1
    %s174 = scalar_select %p171, %s172, %s173
    %p177 = pneg %p171
    %p178 = scmp.eq.s32.totalorder %s20, 3
    %p179 = por %p177, %p178
    %p180 = scmp.ne.s32.totalorder %s172, %s175
    %p181 = scmp.eq.s32.totalorder %s20, 0
    %p182 = por %p180, %p181
    %p183 = scmp.ne.s32.totalorder %s172, %s175
    %p184 = scmp.eq.s32.totalorder %s25, 3
    %p185 = por %p183, %p184
    %p186 = scmp.ne.s32.totalorder %s175, %s176
    %p187 = scmp.eq.s32.totalorder %s25, 0
    %p188 = por %p186, %p187
    %p189 = scmp.ne.s32.totalorder %s175, %s176
    %p190 = scmp.eq.s32.totalorder %s26, 3
    %p191 = por %p189, %p190
    %p193 = scmp.ne.s32.totalorder %s176, %s192
    %p194 = scmp.eq.s32.totalorder %s26, 0
    %p195 = por %p193, %p194
    %s196 = ssub.s32 %s28, %s35
    %p197 = scmp.eq.s32.totalorder %s196, 0
    %s199 = sadd.s32 %s198, 1
    %s200 = scalar_select %p197, %s198, %s199
    %p203 = pneg %p197
    %p204 = scmp.eq.s32.totalorder %s20, 3
    %p205 = por %p203, %p204
    %p206 = scmp.ne.s32.totalorder %s198, %s201
    %p207 = scmp.eq.s32.totalorder %s20, 0
    %p208 = por %p206, %p207
    %p209 = scmp.ne.s32.totalorder %s198, %s201
    %p210 = scmp.eq.s32.totalorder %s25, 3
    %p211 = por %p209, %p210
    %p212 = scmp.ne.s32.totalorder %s201, %s202
    %p213 = scmp.eq.s32.totalorder %s25, 0
    %p214 = por %p212, %p213
    %p215 = scmp.ne.s32.totalorder %s201, %s202
    %p216 = scmp.eq.s32.totalorder %s26, 3
    %p217 = por %p215, %p216
    %p219 = scmp.ne.s32.totalorder %s202, %s218
    %p220 = scmp.eq.s32.totalorder %s26, 0
    %p221 = por %p219, %p220
    %s222 = ssub.s32 %s28, %s35
    %p223 = scmp.eq.s32.totalorder %s222, 0
    %s225 = sadd.s32 %s224, 1
    %s226 = scalar_select %p223, %s224, %s225
    %p229 = pneg %p223
    %p230 = scmp.eq.s32.totalorder %s20, 3
    %p231 = por %p229, %p230
    %p232 = scmp.ne.s32.totalorder %s224, %s227
    %p233 = scmp.eq.s32.totalorder %s20, 0
    %p234 = por %p232, %p233
    %p235 = scmp.ne.s32.totalorder %s224, %s227
    %p236 = scmp.eq.s32.totalorder %s25, 3
    %p237 = por %p235, %p236
    %p238 = scmp.ne.s32.totalorder %s227, %s228
    %p239 = scmp.eq.s32.totalorder %s25, 0
    %p240 = por %p238, %p239
    %p241 = scmp.ne.s32.totalorder %s227, %s228
    %p242 = scmp.eq.s32.totalorder %s26, 3
    %p243 = por %p241, %p242
    %p245 = scmp.ne.s32.totalorder %s228, %s244
    %p246 = scmp.eq.s32.totalorder %s26, 0
    %p247 = por %p245, %p246
    %s248 = ssub.s32 %s28, %s35
    %p249 = scmp.eq.s32.totalorder %s248, 0
    %s251 = sadd.s32 %s250, 1
    %s252 = scalar_select %p249, %s250, %s251
    %p255 = pneg %p249
    %p256 = scmp.eq.s32.totalorder %s20, 3
    %p257 = por %p255, %p256
    %p258 = scmp.ne.s32.totalorder %s250, %s253
    %p259 = scmp.eq.s32.totalorder %s20, 0
    %p260 = por %p258, %p259
    %p261 = scmp.ne.s32.totalorder %s250, %s253
    %p262 = scmp.eq.s32.totalorder %s25, 3
    %p263 = por %p261, %p262
    %p264 = scmp.ne.s32.totalorder %s253, %s254
    %p265 = scmp.eq.s32.totalorder %s25, 0
    %p266 = por %p264, %p265
    %p267 = scmp.ne.s32.totalorder %s253, %s254
    %p268 = scmp.eq.s32.totalorder %s26, 3
    %p269 = por %p267, %p268
    %p271 = scmp.ne.s32.totalorder %s254, %s270
    %p272 = scmp.eq.s32.totalorder %s26, 0
    %p273 = por %p271, %p272
    %s274 = ssub.s32 %s28, %s35
    %p275 = scmp.eq.s32.totalorder %s274, 0
    %s277 = sadd.s32 %s276, 1
    %s278 = scalar_select %p275, %s276, %s277
    %p281 = pneg %p275
    %p282 = scmp.eq.s32.totalorder %s20, 3
    %p283 = por %p281, %p282
    %p284 = scmp.ne.s32.totalorder %s276, %s279
    %p285 = scmp.eq.s32.totalorder %s20, 0
    %p286 = por %p284, %p285
    %p287 = scmp.ne.s32.totalorder %s276, %s279
    %p288 = scmp.eq.s32.totalorder %s25, 3
    %p289 = por %p287, %p288
    %p290 = scmp.ne.s32.totalorder %s279, %s280
    %p291 = scmp.eq.s32.totalorder %s25, 0
    %p292 = por %p290, %p291
    %p293 = scmp.ne.s32.totalorder %s279, %s280
    %p294 = scmp.eq.s32.totalorder %s26, 3
    %p295 = por %p293, %p294
    %p297 = scmp.ne.s32.totalorder %s280, %s296
    %p298 = scmp.eq.s32.totalorder %s26, 0
    %p299 = por %p297, %p298
    %s300 = ssub.s32 %s28, %s35
    %p301 = scmp.eq.s32.totalorder %s300, 0
    %s303 = sadd.s32 %s302, 1
    %s304 = scalar_select %p301, %s302, %s303
    %p307 = pneg %p301
    %p308 = scmp.eq.s32.totalorder %s20, 3
    %p309 = por %p307, %p308
    %p310 = scmp.ne.s32.totalorder %s302, %s305
    %p311 = scmp.eq.s32.totalorder %s20, 0
    %p312 = por %p310, %p311
    %p313 = scmp.ne.s32.totalorder %s302, %s305
    %p314 = scmp.eq.s32.totalorder %s25, 3
    %p315 = por %p313, %p314
    %p316 = scmp.ne.s32.totalorder %s305, %s306
    %p317 = scmp.eq.s32.totalorder %s25, 0
    %p318 = por %p316, %p317
    %p319 = scmp.ne.s32.totalorder %s305, %s306
    %p320 = scmp.eq.s32.totalorder %s26, 3
    %p321 = por %p319, %p320
    %p323 = scmp.ne.s32.totalorder %s306, %s322
    %p324 = scmp.eq.s32.totalorder %s26, 0
    %p325 = por %p323, %p324
    %s326 = ssub.s32 %s28, %s35
    %p327 = scmp.eq.s32.totalorder %s326, 0
    %s329 = sadd.s32 %s328, 1
    %s330 = scalar_select %p327, %s328, %s329
    %p333 = pneg %p327
    %p334 = scmp.eq.s32.totalorder %s20, 3
    %p335 = por %p333, %p334
    %p336 = scmp.ne.s32.totalorder %s328, %s331
    %p337 = scmp.eq.s32.totalorder %s20, 0
    %p338 = por %p336, %p337
    %p339 = scmp.ne.s32.totalorder %s328, %s331
    %p340 = scmp.eq.s32.totalorder %s25, 3
    %p341 = por %p339, %p340
    %p342 = scmp.ne.s32.totalorder %s331, %s332
    %p343 = scmp.eq.s32.totalorder %s25, 0
    %p344 = por %p342, %p343
    %p345 = scmp.ne.s32.totalorder %s331, %s332
    %p346 = scmp.eq.s32.totalorder %s26, 3
    %p347 = por %p345, %p346
    %p349 = scmp.ne.s32.totalorder %s332, %s348
    %p350 = scmp.eq.s32.totalorder %s26, 0
    %p351 = por %p349, %p350
    %s353 = sadd.s32 %s352, 1
    %p356 = scmp.eq.s32.totalorder %s20, 3
    %p357 = scmp.ne.s32.totalorder %s352, %s354
    %p358 = scmp.eq.s32.totalorder %s20, 0
    %p359 = por %p357, %p358
    %p360 = scmp.ne.s32.totalorder %s352, %s354
    %p361 = scmp.eq.s32.totalorder %s25, 3
    %p362 = por %p360, %p361
    %p363 = scmp.ne.s32.totalorder %s354, %s355
    %p364 = scmp.eq.s32.totalorder %s25, 0
    %p365 = por %p363, %p364
    %p366 = scmp.ne.s32.totalorder %s354, %s355
    %p367 = scmp.eq.s32.totalorder %s26, 3
    %p368 = por %p366, %p367
    %p370 = scmp.ne.s32.totalorder %s355, %s369
    %p371 = scmp.eq.s32.totalorder %s26, 0
    %p372 = por %p370, %p371
    %s374 = sadd.s32 %s373, 1
    %p377 = scmp.eq.s32.totalorder %s20, 3
    %p378 = scmp.ne.s32.totalorder %s373, %s375
    %p379 = scmp.eq.s32.totalorder %s20, 0
    %p380 = por %p378, %p379
    %p381 = scmp.ne.s32.totalorder %s373, %s375
    %p382 = scmp.eq.s32.totalorder %s25, 3
    %p383 = por %p381, %p382
    %p384 = scmp.ne.s32.totalorder %s375, %s376
    %p385 = scmp.eq.s32.totalorder %s25, 0
    %p386 = por %p384, %p385
    %p387 = scmp.ne.s32.totalorder %s375, %s376
    %p388 = scmp.eq.s32.totalorder %s26, 3
    %p389 = por %p387, %p388
    %p391 = scmp.ne.s32.totalorder %s376, %s390
    %p392 = scmp.eq.s32.totalorder %s26, 0
    %p393 = por %p391, %p392
    %s394 = ssub.s32 %s27, %s39
    %p395 = scmp.eq.s32.totalorder %s394, 0
    %s397 = sadd.s32 %s396, 1
    %s398 = scalar_select %p395, %s396, %s397
    %p401 = pneg %p395
    %p402 = scmp.eq.s32.totalorder %s20, 3
    %p403 = por %p401, %p402
    %p404 = scmp.ne.s32.totalorder %s396, %s399
    %p405 = scmp.eq.s32.totalorder %s20, 0
    %p406 = por %p404, %p405
    %p407 = scmp.ne.s32.totalorder %s396, %s399
    %p408 = scmp.eq.s32.totalorder %s25, 3
    %p409 = por %p407, %p408
    %p410 = scmp.ne.s32.totalorder %s399, %s400
    %p411 = scmp.eq.s32.totalorder %s25, 0
    %p412 = por %p410, %p411
    %p413 = scmp.ne.s32.totalorder %s399, %s400
    %p414 = scmp.eq.s32.totalorder %s26, 3
    %p415 = por %p413, %p414
    %p417 = scmp.ne.s32.totalorder %s400, %s416
    %p418 = scmp.eq.s32.totalorder %s26, 0
    %p419 = por %p417, %p418
    %p420 = scmp.le.s32.totalorder 1, %s20
    %p421 = scmp.lt.s32.totalorder %s20, 5
    %p422 = pnand %p420, %p421
    %p423 = pneg %p422
    // Predicated region
    $region9: #{transformer_forward.1} parent=5 // pred_check
      _
    $region10: #{transformer_forward.1} parent=5 // pred_check_branch
      %425 = sbr.rel (%p422) target = $region12
    $region11: #{transformer_forward.1} parent=5 // pred_region
      %s426 = ssub.s32 %s20, 1
      // Predicated region
      $region13: #{transformer_forward.1} parent=11 // pred_check
        %p427 = pneg %p365
      $region14: #{transformer_forward.1} parent=11 // pred_check_branch
        %429 = sbr.rel (%p427) target = $region16
      $region15: #{transformer_forward.1} parent=11 // pred_region
        _
      $region16: #{transformer_forward.1} parent=11 // pred_fallthru
        _
      // Predicated region
      $region17: #{transformer_forward.1} parent=11 // pred_check
        %p430 = pneg %p386
      $region18: #{transformer_forward.1} parent=11 // pred_check_branch
        %432 = sbr.rel (%p430) target = $region20
      $region19: #{transformer_forward.1} parent=11 // pred_region
        _
      $region20: #{transformer_forward.1} parent=11 // pred_fallthru
        _
    $region12: #{transformer_forward.1} parent=5 // pred_fallthru
      _
    %p433 = scmp.lt.s32.totalorder %s20, 4
    // Predicated region
    $region21: #{transformer_forward.1} parent=5 // pred_check
      %p434 = pneg %p433
    $region22: #{transformer_forward.1} parent=5 // pred_check_branch
      %436 = sbr.rel (%p434) target = $region24
    $region23: #{transformer_forward.1} parent=5 // pred_region
      // Predicated region
      $region25: #{transformer_forward.1} parent=23 // pred_check
        %p437 = pneg %p52
      $region26: #{transformer_forward.1} parent=23 // pred_check_branch
        %439 = sbr.rel (%p437) target = $region28
      $region27: #{transformer_forward.1} parent=23 // pred_region
        %s440 = smul.u32 8, %s27
        %p441 = scmp.lt.s32.totalorder %s440, 15
        %s442 = scalar_select %p441, %s440, 15
        %s443 = smul.addr %s442, 8
        %s444 = scalar_lea.vmem %s0, %s443
        %s445 = smul.u32 8, %s27
      $region28: #{transformer_forward.1} parent=23 // pred_fallthru
        _
      // Predicated region
      $region29: #{transformer_forward.1} parent=23 // pred_check
        %p446 = pneg %p78
      $region30: #{transformer_forward.1} parent=23 // pred_check_branch
        %448 = sbr.rel (%p446) target = $region32
      $region31: #{transformer_forward.1} parent=23 // pred_region
        %s449 = smul.u32 8, %s27
        %p450 = scmp.lt.s32.totalorder %s449, 15
        %s451 = scalar_select %p450, %s449, 15
        %s452 = smul.addr %s451, 8
        %s453 = scalar_lea.vmem %s1, %s452
        %s454 = smul.u32 8, %s27
      $region32: #{transformer_forward.1} parent=23 // pred_fallthru
        _
      // Predicated region
      $region33: #{transformer_forward.1} parent=23 // pred_check
        %p455 = pneg %p104
      $region34: #{transformer_forward.1} parent=23 // pred_check_branch
        %457 = sbr.rel (%p455) target = $region36
      $region35: #{transformer_forward.1} parent=23 // pred_region
        %p458 = scmp.lt.s32.totalorder %s28, 1
        %s459 = scalar_select %p458, %s28, 1
        %s460 = smul.addr %s459, 4
        %s461 = smul.addr %s460, 8
        %s462 = scalar_lea.vmem %s2, %s461
      $region36: #{transformer_forward.1} parent=23 // pred_fallthru
        _
      // Predicated region
      $region37: #{transformer_forward.1} parent=23 // pred_check
        %p463 = pneg %p130
      $region38: #{transformer_forward.1} parent=23 // pred_check_branch
        %465 = sbr.rel (%p463) target = $region40
      $region39: #{transformer_forward.1} parent=23 // pred_region
        %p466 = scmp.lt.s32.totalorder %s28, 1
        %s467 = scalar_select %p466, %s28, 1
        %s468 = scalar_lea.vmem %s3, %s467
      $region40: #{transformer_forward.1} parent=23 // pred_fallthru
        _
      // Predicated region
      $region41: #{transformer_forward.1} parent=23 // pred_check
        %p469 = pneg %p156
      $region42: #{transformer_forward.1} parent=23 // pred_check_branch
        %471 = sbr.rel (%p469) target = $region44
      $region43: #{transformer_forward.1} parent=23 // pred_region
        %p472 = scmp.lt.s32.totalorder %s28, 1
        %s473 = scalar_select %p472, %s28, 1
        %s474 = smul.addr %s473, 4
        %s475 = smul.addr %s474, 8
        %s476 = scalar_lea.vmem %s4, %s475
      $region44: #{transformer_forward.1} parent=23 // pred_fallthru
        _
      // Predicated region
      $region45: #{transformer_forward.1} parent=23 // pred_check
        %p477 = pneg %p182
      $region46: #{transformer_forward.1} parent=23 // pred_check_branch
        %479 = sbr.rel (%p477) target = $region48
      $region47: #{transformer_forward.1} parent=23 // pred_region
        %p480 = scmp.lt.s32.totalorder %s28, 1
        %s481 = scalar_select %p480, %s28, 1
        %s482 = scalar_lea.vmem %s5, %s481
      $region48: #{transformer_forward.1} parent=23 // pred_fallthru
        _
      // Predicated region
      $region49: #{transformer_forward.1} parent=23 // pred_check
        %p483 = pneg %p208
      $region50: #{transformer_forward.1} parent=23 // pred_check_branch
        %485 = sbr.rel (%p483) target = $region52
      $region51: #{transformer_forward.1} parent=23 // pred_region
        %p486 = scmp.lt.s32.totalorder %s28, 1
        %s487 = scalar_select %p486, %s28, 1
        %s488 = scalar_lea.vmem %s6, %s487
      $region52: #{transformer_forward.1} parent=23 // pred_fallthru
        _
      // Predicated region
      $region53: #{transformer_forward.1} parent=23 // pred_check
        %p489 = pneg %p234
      $region54: #{transformer_forward.1} parent=23 // pred_check_branch
        %491 = sbr.rel (%p489) target = $region56
      $region55: #{transformer_forward.1} parent=23 // pred_region
        %p492 = scmp.lt.s32.totalorder %s28, 1
        %s493 = scalar_select %p492, %s28, 1
        %s494 = scalar_lea.vmem %s7, %s493
      $region56: #{transformer_forward.1} parent=23 // pred_fallthru
        _
      // Predicated region
      $region57: #{transformer_forward.1} parent=23 // pred_check
        %p495 = pneg %p260
      $region58: #{transformer_forward.1} parent=23 // pred_check_branch
        %497 = sbr.rel (%p495) target = $region60
      $region59: #{transformer_forward.1} parent=23 // pred_region
        %p498 = scmp.lt.s32.totalorder %s28, 1
        %s499 = scalar_select %p498, %s28, 1
        %s500 = smul.addr %s499, 4
        %s501 = smul.addr %s500, 8
        %s502 = scalar_lea.vmem %s8, %s501
      $region60: #{transformer_forward.1} parent=23 // pred_fallthru
        _
      // Predicated region
      $region61: #{transformer_forward.1} parent=23 // pred_check
        %p503 = pneg %p286
      $region62: #{transformer_forward.1} parent=23 // pred_check_branch
        %505 = sbr.rel (%p503) target = $region64
      $region63: #{transformer_forward.1} parent=23 // pred_region
        %p506 = scmp.lt.s32.totalorder %s28, 1
        %s507 = scalar_select %p506, %s28, 1
        %s508 = scalar_lea.vmem %s9, %s507
      $region64: #{transformer_forward.1} parent=23 // pred_fallthru
        _
      // Predicated region
      $region65: #{transformer_forward.1} parent=23 // pred_check
        %p509 = pneg %p312
      $region66: #{transformer_forward.1} parent=23 // pred_check_branch
        %511 = sbr.rel (%p509) target = $region68
      $region67: #{transformer_forward.1} parent=23 // pred_region
        %p512 = scmp.lt.s32.totalorder %s28, 1
        %s513 = scalar_select %p512, %s28, 1
        %s514 = smul.addr %s513, 8
        %s515 = smul.addr %s514, 8
        %s516 = scalar_lea.vmem %s10, %s515
      $region68: #{transformer_forward.1} parent=23 // pred_fallthru
        _
      // Predicated region
      $region69: #{transformer_forward.1} parent=23 // pred_check
        %p517 = pneg %p338
      $region70: #{transformer_forward.1} parent=23 // pred_check_branch
        %519 = sbr.rel (%p517) target = $region72
      $region71: #{transformer_forward.1} parent=23 // pred_region
        %p520 = scmp.lt.s32.totalorder %s28, 1
        %s521 = scalar_select %p520, %s28, 1
        %s522 = scalar_lea.vmem %s11, %s521
      $region72: #{transformer_forward.1} parent=23 // pred_fallthru
        _
    $region24: #{transformer_forward.1} parent=5 // pred_fallthru
      _
    %p523 = scmp.le.s32.totalorder 1, %s20
    %p524 = scmp.lt.s32.totalorder %s20, 5
    %p525 = pnand %p523, %p524
    %p526 = pneg %p525
    // Predicated region
    $region73: #{transformer_forward.1} parent=5 // pred_check
      _
    $region74: #{transformer_forward.1} parent=5 // pred_check_branch
      %528 = sbr.rel (%p525) target = $region76
    $region75: #{transformer_forward.1} parent=5 // pred_region
      %s529 = ssub.s32 %s20, 1
      %s530 = smul.u32 8, %s29
      %p531 = scmp.lt.s32.totalorder %s530, 15
      %s532 = scalar_select %p531, %s530, 15
      %s533 = smul.addr %s532, 8
      %s534 = scalar_lea.vmem %s0, %s533
      %p535 = pneg %p58
      %p536 = pneg %p55
      %s537 = smul.u32 8, %s29
      %p538 = scmp.lt.s32.totalorder %s537, 15
      %s539 = scalar_select %p538, %s537, 15
      %s540 = smul.addr %s539, 8
      %s541 = scalar_lea.vmem %s1, %s540
      %p542 = pneg %p84
      %p543 = pneg %p81
      %p544 = scmp.lt.s32.totalorder %s30, 1
      %s545 = scalar_select %p544, %s30, 1
      %s546 = smul.addr %s545, 4
      %s547 = smul.addr %s546, 8
      %s548 = scalar_lea.vmem %s2, %s547
      %p549 = pneg %p110
      %p550 = pneg %p107
      %p551 = scmp.lt.s32.totalorder %s30, 1
      %s552 = scalar_select %p551, %s30, 1
      %s553 = scalar_lea.vmem %s3, %s552
      %p554 = pneg %p136
      %p555 = pneg %p133
      %p556 = scmp.lt.s32.totalorder %s30, 1
      %s557 = scalar_select %p556, %s30, 1
      %s558 = smul.addr %s557, 4
      %s559 = smul.addr %s558, 8
      %s560 = scalar_lea.vmem %s4, %s559
      %p561 = pneg %p162
      %p562 = pneg %p159
      %p563 = scmp.lt.s32.totalorder %s30, 1
      %s564 = scalar_select %p563, %s30, 1
      %s565 = scalar_lea.vmem %s5, %s564
      %p566 = pneg %p188
      %p567 = pneg %p185
      %p568 = scmp.lt.s32.totalorder %s30, 1
      %s569 = scalar_select %p568, %s30, 1
      %s570 = scalar_lea.vmem %s6, %s569
      %p571 = pneg %p214
      %p572 = pneg %p211
      %p573 = scmp.lt.s32.totalorder %s30, 1
      %s574 = scalar_select %p573, %s30, 1
      %s575 = scalar_lea.vmem %s7, %s574
      %p576 = pneg %p240
      %p577 = pneg %p237
      %p578 = scmp.lt.s32.totalorder %s30, 1
      %s579 = scalar_select %p578, %s30, 1
      %s580 = smul.addr %s579, 4
      %s581 = smul.addr %s580, 8
      %s582 = scalar_lea.vmem %s8, %s581
      %p583 = pneg %p266
      %p584 = pneg %p263
      %p585 = scmp.lt.s32.totalorder %s30, 1
      %s586 = scalar_select %p585, %s30, 1
      %s587 = scalar_lea.vmem %s9, %s586
      %p588 = pneg %p292
      %p589 = pneg %p289
      %p590 = scmp.lt.s32.totalorder %s30, 1
      %s591 = scalar_select %p590, %s30, 1
      %s592 = smul.addr %s591, 8
      %s593 = smul.addr %s592, 8
      %s594 = scalar_lea.vmem %s10, %s593
      %p595 = pneg %p318
      %p596 = pneg %p315
      %p597 = scmp.lt.s32.totalorder %s30, 1
      %s598 = scalar_select %p597, %s30, 1
      %s599 = scalar_lea.vmem %s11, %s598
      %p600 = pneg %p344
      %p601 = pneg %p341
      %p602 = pneg %p365
      %p603 = pneg %p362
      %p604 = pneg %p386
      %p605 = pneg %p383
      %p606 = pneg %p412
      %p607 = pneg %p409
      %p608 = scmp.lt.s32.totalorder %s29, 1
      %s609 = scalar_select %p608, %s29, 1
      %s610 = smul.addr %s609, 8
      %s611 = scalar_lea.vmem %s14, %s610
      %s612 = smul.u32 8, %s29
      %p613 = scmp.lt.s32.totalorder %s612, 15
      %s614 = scalar_select %p613, %s612, 15
      %s615 = smul.addr %s614, 8
      %s616 = scalar_lea.vmem %s0, %s615
      %s617 = smul.u32 8, %s29
      %s618 = smul.u32 8, %s29
      %p619 = scmp.lt.s32.totalorder %s618, 15
      %s620 = scalar_select %p619, %s618, 15
      %s621 = smul.addr %s620, 8
      %s622 = scalar_lea.vmem %s1, %s621
      %s623 = smul.u32 8, %s29
      %p624 = scmp.lt.s32.totalorder %s30, 1
      %s625 = scalar_select %p624, %s30, 1
      %s626 = smul.addr %s625, 4
      %s627 = smul.addr %s626, 8
      %s628 = scalar_lea.vmem %s2, %s627
      %p629 = scmp.lt.s32.totalorder %s30, 1
      %s630 = scalar_select %p629, %s30, 1
      %s631 = scalar_lea.vmem %s3, %s630
      %p632 = scmp.lt.s32.totalorder %s30, 1
      %s633 = scalar_select %p632, %s30, 1
      %s634 = smul.addr %s633, 4
      %s635 = smul.addr %s634, 8
      %s636 = scalar_lea.vmem %s4, %s635
      %p637 = scmp.lt.s32.totalorder %s30, 1
      %s638 = scalar_select %p637, %s30, 1
      %s639 = scalar_lea.vmem %s5, %s638
      %p640 = scmp.lt.s32.totalorder %s30, 1
      %s641 = scalar_select %p640, %s30, 1
      %s642 = scalar_lea.vmem %s6, %s641
      %p643 = scmp.lt.s32.totalorder %s30, 1
      %s644 = scalar_select %p643, %s30, 1
      %s645 = scalar_lea.vmem %s7, %s644
      %p646 = scmp.lt.s32.totalorder %s30, 1
      %s647 = scalar_select %p646, %s30, 1
      %s648 = smul.addr %s647, 4
      %s649 = smul.addr %s648, 8
      %s650 = scalar_lea.vmem %s8, %s649
      %p651 = scmp.lt.s32.totalorder %s30, 1
      %s652 = scalar_select %p651, %s30, 1
      %s653 = scalar_lea.vmem %s9, %s652
      %p654 = scmp.lt.s32.totalorder %s30, 1
      %s655 = scalar_select %p654, %s30, 1
      %s656 = smul.addr %s655, 8
      %s657 = smul.addr %s656, 8
      %s658 = scalar_lea.vmem %s10, %s657
      %p659 = scmp.lt.s32.totalorder %s30, 1
      %s660 = scalar_select %p659, %s30, 1
      %s661 = scalar_lea.vmem %s11, %s660
      %p662 = scmp.lt.s32.totalorder %s29, 1
      %s663 = scalar_select %p662, %s29, 1
      %s664 = smul.addr %s663, 8
      %s665 = scalar_lea.vmem %s14, %s664
      %p666 = scmp.eq.s32.totalorder %s30, 0
      // Predicated region
      $region77: #{transformer_forward.1} parent=75 // pred_check
        %p667 = pneg %p666
      $region78: #{transformer_forward.1} parent=75 // pred_check_branch
        %669 = sbr.rel (%p667) target = $region80
      $region79: #{transformer_forward.1} parent=75 // pred_region
        %v670 = vld [vmem:[%s616] sm:$0xff]
        %v671 = vld [vmem:[%s616 + $0x8] sm:$0xff]
        %v672 = vld [vmem:[%s616 + $0x10] sm:$0xff]
        %v673 = vld [vmem:[%s616 + $0x18] sm:$0xff]
        %v674 = vld [vmem:[%s616 + $0x20] sm:$0xff]
        %v675 = vld [vmem:[%s616 + $0x28] sm:$0xff]
        %v676 = vld [vmem:[%s616 + $0x30] sm:$0xff]
        %v677 = vld [vmem:[%s616 + $0x38] sm:$0xff]
        %vm678 = vcmask 261120
        %679 = vst.msk [vmem:[#allocation2] sm:$0xff] %vm678, %v670
        %680 = vst.msk [vmem:[#allocation2 + $0x8] sm:$0xff] %vm678, %v671
        %681 = vst.msk [vmem:[#allocation2 + $0x10] sm:$0xff] %vm678, %v672
        %682 = vst.msk [vmem:[#allocation2 + $0x18] sm:$0xff] %vm678, %v673
        %683 = vst.msk [vmem:[#allocation2 + $0x20] sm:$0xff] %vm678, %v674
        %684 = vst.msk [vmem:[#allocation2 + $0x28] sm:$0xff] %vm678, %v675
        %685 = vst.msk [vmem:[#allocation2 + $0x30] sm:$0xff] %vm678, %v676
        %686 = vst.msk [vmem:[#allocation2 + $0x38] sm:$0xff] %vm678, %v677
      $region80: #{transformer_forward.1} parent=75 // pred_fallthru
        _
      %v687 = vld [vmem:[#allocation2] sm:$0xff]
      %v688 = vld [vmem:[#allocation2 + $0x8] sm:$0xff]
      %v689 = vld [vmem:[#allocation2 + $0x10] sm:$0xff]
      %v690 = vld [vmem:[#allocation2 + $0x18] sm:$0xff]
      %v691 = vld [vmem:[#allocation2 + $0x20] sm:$0xff]
      %v692 = vld [vmem:[#allocation2 + $0x28] sm:$0xff]
      %v693 = vld [vmem:[#allocation2 + $0x30] sm:$0xff]
      %v694 = vld [vmem:[#allocation2 + $0x38] sm:$0xff]
      %v695 = vld [vmem:[%s622] sm:$0xff]
      %v696 = vld [vmem:[%s622 + $0x8] sm:$0xff]
      %v697 = vld [vmem:[%s622 + $0x10] sm:$0xff]
      %v698 = vld [vmem:[%s622 + $0x18] sm:$0xff]
      %v699 = vld [vmem:[%s622 + $0x20] sm:$0xff]
      %v700 = vld [vmem:[%s622 + $0x28] sm:$0xff]
      %v701 = vld [vmem:[%s622 + $0x30] sm:$0xff]
      %v702 = vld [vmem:[%s622 + $0x38] sm:$0xff]
      %vm703 = vcmp.gt.f32.partialorder %v695, 0.5
      %vm704 = vcmp.gt.f32.partialorder %v696, 0.5
      %vm705 = vcmp.gt.f32.partialorder %v697, 0.5
      %vm706 = vcmp.gt.f32.partialorder %v698, 0.5
      %vm707 = vcmp.gt.f32.partialorder %v699, 0.5
      %vm708 = vcmp.gt.f32.partialorder %v700, 0.5
      %vm709 = vcmp.gt.f32.partialorder %v701, 0.5
      %vm710 = vcmp.gt.f32.partialorder %v702, 0.5
      %v711 = vld [vmem:[%s628] sm:$0xff]
      %v712 = vld [vmem:[%s628 + $0x8] sm:$0xff]
      %v713 = vld [vmem:[%s628 + $0x10] sm:$0xff]
      %v714 = vld [vmem:[%s628 + $0x18] sm:$0xff]
      %v715 = vld [vmem:[%s631] sm:$0x1]
      %v717 = vlaneseq
      %v718 = vshrl.u32 %v717, 7
      %v719 = vsub.s32 0, %v718
      %v720 = vrot.slane %v715, %v719
      %vm722 = vcmask 261120
      %v724 = vsel %vm722, %v687, 0
      %v727 = vsel %vm722, %v688, 0
      %v730 = vsel %vm722, %v689, 0
      %v733 = vsel %vm722, %v690, 0
      %v736 = vsel %vm722, %v691, 0
      %v739 = vsel %vm722, %v692, 0
      %v742 = vsel %vm722, %v693, 0
      %v745 = vsel %vm722, %v694, 0
      %747 = vmatprep.subr.mxu0 0.0
      %748 = vmatpush1.msra.mxu0 0.0
      %749 = vmatprep.subr.mxu0 0.0
      %750 = vmatpush1.msra.mxu0 0.0
      %751 = vmatprep.subr.mxu0 0.0
      %752 = vmatpush1.msra.mxu0 0.0
      %753 = vmatprep.subr.mxu0 0.0
      %754 = vmatpush1.msra.mxu0 0.0
      %755 = vmatprep.subr.mxu0 0.0
      %756 = vmatpush1.msra.mxu0 0.0
      %757 = vmatprep.subr.mxu0 0.0
      %758 = vmatpush1.msra.mxu0 0.0
      %759 = vmatprep.subr.mxu0 0.0
      %760 = vmatpush1.msra.mxu0 0.0
      %761 = vmatprep.subr.mxu0 0.0
      %762 = vmatpush1.msra.mxu0 0.0
      %763 = vmatprep.subr.mxu0 0.0
      %764 = vmatpush1.msra.mxu0 0.0
      %765 = vmatprep.subr.mxu0 0.0
      %766 = vmatpush1.msra.mxu0 0.0
      %767 = vmatprep.subr.mxu0 0.0
      %768 = vmatpush1.msra.mxu0 0.0
      %769 = vmatprep.subr.mxu0 0.0
      %770 = vmatpush1.msra.mxu0 0.0
      %771 = vmatprep.subr.mxu0 0.0
      %772 = vmatpush1.msra.mxu0 %v714
      %773 = vmatprep.subr.mxu0 0.0
      %774 = vmatpush1.msra.mxu0 %v713
      %775 = vmatprep.subr.mxu0 0.0
      %776 = vmatpush1.msra.mxu0 %v712
      %777 = vmatprep.subr.mxu0 0.0
      %778 = vmatpush1.msra.mxu0 %v711
      %779 = vmatprep.subr.mxu0 0.0
      %780 = vmatpush2.msra.mxu0 0.0
      %781 = vmatprep.subr.mxu0 0.0
      %782 = vmatpush2.msra.mxu0 0.0
      %783 = vmatprep.subr.mxu0 0.0
      %784 = vmatpush2.msra.mxu0 0.0
      %785 = vmatprep.subr.mxu0 0.0
      %786 = vmatpush2.msra.mxu0 0.0
      %787 = vmatprep.subr.mxu0 0.0
      %788 = vmatpush2.msra.mxu0 0.0
      %789 = vmatprep.subr.mxu0 0.0
      %790 = vmatpush2.msra.mxu0 0.0
      %791 = vmatprep.subr.mxu0 0.0
      %792 = vmatpush2.msra.mxu0 0.0
      %793 = vmatprep.subr.mxu0 0.0
      %794 = vmatpush2.msra.mxu0 0.0
      %795 = vmatprep.subr.mxu0 0.0
      %796 = vmatpush2.msra.mxu0 0.0
      %797 = vmatprep.subr.mxu0 0.0
      %798 = vmatpush2.msra.mxu0 0.0
      %799 = vmatprep.subr.mxu0 0.0
      %800 = vmatpush2.msra.mxu0 0.0
      %801 = vmatprep.subr.mxu0 0.0
      %802 = vmatpush2.msra.mxu0 0.0
      %803 = vmatprep.subr.mxu0 0.0
      %804 = vmatpush2.msra.mxu0 0.0
      %805 = vmatprep.subr.mxu0 0.0
      %806 = vmatpush2.msra.mxu0 0.0
      %807 = vmatprep.subr.mxu0 0.0
      %808 = vmatpush2.msra.mxu0 0.0
      %809 = vmatprep.subr.mxu0 0.0
      %810 = vmatpush2.msra.mxu0 0.0
      %811 = vmatprep.mubr.f32.mxu0 0.0
      %812 = vmatmul.mubr.f32.gmra.mxu0 %v724
      %v813 = vpop.f32.mrf.mxu0
      %v814 = vadd.f32 %v720, %v813
      %v815 = vpop.f32.mrf.mxu0
      %816 = vmatprep.mubr.f32.mxu0 0.0
      %817 = vmatmul.mubr.f32.gmra.mxu0 %v727
      %v818 = vpop.f32.mrf.mxu0
      %v819 = vadd.f32 %v720, %v818
      %v820 = vpop.f32.mrf.mxu0
      %821 = vmatprep.mubr.f32.mxu0 0.0
      %822 = vmatmul.mubr.f32.gmra.mxu0 %v730
      %v823 = vpop.f32.mrf.mxu0
      %v824 = vadd.f32 %v720, %v823
      %v825 = vpop.f32.mrf.mxu0
      %826 = vmatprep.mubr.f32.mxu0 0.0
      %827 = vmatmul.mubr.f32.gmra.mxu0 %v733
      %v828 = vpop.f32.mrf.mxu0
      %v829 = vadd.f32 %v720, %v828
      %v830 = vpop.f32.mrf.mxu0
      %831 = vmatprep.mubr.f32.mxu0 0.0
      %832 = vmatmul.mubr.f32.gmra.mxu0 %v736
      %v833 = vpop.f32.mrf.mxu0
      %v834 = vadd.f32 %v720, %v833
      %v835 = vpop.f32.mrf.mxu0
      %836 = vmatprep.mubr.f32.mxu0 0.0
      %837 = vmatmul.mubr.f32.gmra.mxu0 %v739
      %v838 = vpop.f32.mrf.mxu0
      %v839 = vadd.f32 %v720, %v838
      %v840 = vpop.f32.mrf.mxu0
      %841 = vmatprep.mubr.f32.mxu0 0.0
      %842 = vmatmul.mubr.f32.gmra.mxu0 %v742
      %v843 = vpop.f32.mrf.mxu0
      %v844 = vadd.f32 %v720, %v843
      %v845 = vpop.f32.mrf.mxu0
      %846 = vmatprep.mubr.f32.mxu0 0.0
      %847 = vmatmul.mubr.f32.gmra.mxu0 %v745
      %v848 = vpop.f32.mrf.mxu0
      %v849 = vadd.f32 %v720, %v848
      %v850 = vpop.f32.mrf.mxu0
      %851 = vdwg.mxu0
      %853 = vrot.lane.b32.xlu0 %v814, 96
      %v854 = vpop.permute.xlu0 %853
      %vm855 = vcmask 64512
      %v856 = vsel %vm855, %v814, 0
      %v858 = vsel %vm855, %v854, 0
      %860 = vmatprep.subr.mxu0 0.0
      %861 = vmatpush1.xpose.msra.mxu0 0.0
      %862 = vmatprep.subr.mxu0 0.0
      %863 = vmatpush1.xpose.msra.mxu0 0.0
      %864 = vmatprep.subr.mxu0 0.0
      %865 = vmatpush1.xpose.msra.mxu0 0.0
      %866 = vmatprep.subr.mxu0 0.0
      %867 = vmatpush1.xpose.msra.mxu0 0.0
      %868 = vmatprep.subr.mxu0 0.0
      %869 = vmatpush1.xpose.msra.mxu0 0.0
      %870 = vmatprep.subr.mxu0 0.0
      %871 = vmatpush1.xpose.msra.mxu0 0.0
      %872 = vmatprep.subr.mxu0 0.0
      %873 = vmatpush1.xpose.msra.mxu0 0.0
      %874 = vmatprep.subr.mxu0 0.0
      %875 = vmatpush1.xpose.msra.mxu0 0.0
      %876 = vmatprep.subr.mxu0 0.0
      %877 = vmatpush1.xpose.msra.mxu0 0.0
      %878 = vmatprep.subr.mxu0 0.0
      %879 = vmatpush1.xpose.msra.mxu0 0.0
      %880 = vmatprep.subr.mxu0 0.0
      %881 = vmatpush1.xpose.msra.mxu0 0.0
      %882 = vmatprep.subr.mxu0 0.0
      %883 = vmatpush1.xpose.msra.mxu0 0.0
      %884 = vmatprep.subr.mxu0 0.0
      %885 = vmatpush1.xpose.msra.mxu0 0.0
      %886 = vmatprep.subr.mxu0 0.0
      %887 = vmatpush1.xpose.msra.mxu0 0.0
      %888 = vmatprep.subr.mxu0 0.0
      %889 = vmatpush1.xpose.msra.mxu0 0.0
      %890 = vmatprep.subr.mxu0 0.0
      %891 = vmatpush1.xpose.msra.mxu0 %v858
      %892 = vmatprep.subr.mxu0 0.0
      %893 = vmatpush2.xpose.msra.mxu0 0.0
      %894 = vmatprep.subr.mxu0 0.0
      %895 = vmatpush2.xpose.msra.mxu0 0.0
      %896 = vmatprep.subr.mxu0 0.0
      %897 = vmatpush2.xpose.msra.mxu0 0.0
      %898 = vmatprep.subr.mxu0 0.0
      %899 = vmatpush2.xpose.msra.mxu0 0.0
      %900 = vmatprep.subr.mxu0 0.0
      %901 = vmatpush2.xpose.msra.mxu0 0.0
      %902 = vmatprep.subr.mxu0 0.0
      %903 = vmatpush2.xpose.msra.mxu0 0.0
      %904 = vmatprep.subr.mxu0 0.0
      %905 = vmatpush2.xpose.msra.mxu0 0.0
      %906 = vmatprep.subr.mxu0 0.0
      %907 = vmatpush2.xpose.msra.mxu0 0.0
      %908 = vmatprep.subr.mxu0 0.0
      %909 = vmatpush2.xpose.msra.mxu0 0.0
      %910 = vmatprep.subr.mxu0 0.0
      %911 = vmatpush2.xpose.msra.mxu0 0.0
      %912 = vmatprep.subr.mxu0 0.0
      %913 = vmatpush2.xpose.msra.mxu0 0.0
      %914 = vmatprep.subr.mxu0 0.0
      %915 = vmatpush2.xpose.msra.mxu0 0.0
      %916 = vmatprep.subr.mxu0 0.0
      %917 = vmatpush2.xpose.msra.mxu0 0.0
      %918 = vmatprep.subr.mxu0 0.0
      %919 = vmatpush2.xpose.msra.mxu0 0.0
      %920 = vmatprep.subr.mxu0 0.0
      %921 = vmatpush2.xpose.msra.mxu0 0.0
      %922 = vmatprep.subr.mxu0 0.0
      %923 = vmatpush2.xpose.msra.mxu0 0.0
      %924 = vmatprep.mubr.f32.mxu0 0.0
      %925 = vmatmul.mubr.f32.gmra.mxu0 %v856
      %v926 = vpop.f32.mrf.mxu0
      %v927 = vadd.f32 0.0, %v926
      %v928 = vpop.f32.mrf.mxu0
      %929 = vdwg.mxu0
      %931 = vrot.lane.b32.xlu0 %v819, 96
      %v932 = vpop.permute.xlu0 %931
      %v933 = vsel %vm855, %v819, 0
      %v935 = vsel %vm855, %v932, 0
      %937 = vmatprep.subr.mxu0 0.0
      %938 = vmatpush1.xpose.msra.mxu0 0.0
      %939 = vmatprep.subr.mxu0 0.0
      %940 = vmatpush1.xpose.msra.mxu0 0.0
      %941 = vmatprep.subr.mxu0 0.0
      %942 = vmatpush1.xpose.msra.mxu0 0.0
      %943 = vmatprep.subr.mxu0 0.0
      %944 = vmatpush1.xpose.msra.mxu0 0.0
      %945 = vmatprep.subr.mxu0 0.0
      %946 = vmatpush1.xpose.msra.mxu0 0.0
      %947 = vmatprep.subr.mxu0 0.0
      %948 = vmatpush1.xpose.msra.mxu0 0.0
      %949 = vmatprep.subr.mxu0 0.0
      %950 = vmatpush1.xpose.msra.mxu0 0.0
      %951 = vmatprep.subr.mxu0 0.0
      %952 = vmatpush1.xpose.msra.mxu0 0.0
      %953 = vmatprep.subr.mxu0 0.0
      %954 = vmatpush1.xpose.msra.mxu0 0.0
      %955 = vmatprep.subr.mxu0 0.0
      %956 = vmatpush1.xpose.msra.mxu0 0.0
      %957 = vmatprep.subr.mxu0 0.0
      %958 = vmatpush1.xpose.msra.mxu0 0.0
      %959 = vmatprep.subr.mxu0 0.0
      %960 = vmatpush1.xpose.msra.mxu0 0.0
      %961 = vmatprep.subr.mxu0 0.0
      %962 = vmatpush1.xpose.msra.mxu0 0.0
      %963 = vmatprep.subr.mxu0 0.0
      %964 = vmatpush1.xpose.msra.mxu0 0.0
      %965 = vmatprep.subr.mxu0 0.0
      %966 = vmatpush1.xpose.msra.mxu0 0.0
      %967 = vmatprep.subr.mxu0 0.0
      %968 = vmatpush1.xpose.msra.mxu0 %v935
      %969 = vmatprep.subr.mxu0 0.0
      %970 = vmatpush2.xpose.msra.mxu0 0.0
      %971 = vmatprep.subr.mxu0 0.0
      %972 = vmatpush2.xpose.msra.mxu0 0.0
      %973 = vmatprep.subr.mxu0 0.0
      %974 = vmatpush2.xpose.msra.mxu0 0.0
      %975 = vmatprep.subr.mxu0 0.0
      %976 = vmatpush2.xpose.msra.mxu0 0.0
      %977 = vmatprep.subr.mxu0 0.0
      %978 = vmatpush2.xpose.msra.mxu0 0.0
      %979 = vmatprep.subr.mxu0 0.0
      %980 = vmatpush2.xpose.msra.mxu0 0.0
      %981 = vmatprep.subr.mxu0 0.0
      %982 = vmatpush2.xpose.msra.mxu0 0.0
      %983 = vmatprep.subr.mxu0 0.0
      %984 = vmatpush2.xpose.msra.mxu0 0.0
      %985 = vmatprep.subr.mxu0 0.0
      %986 = vmatpush2.xpose.msra.mxu0 0.0
      %987 = vmatprep.subr.mxu0 0.0
      %988 = vmatpush2.xpose.msra.mxu0 0.0
      %989 = vmatprep.subr.mxu0 0.0
      %990 = vmatpush2.xpose.msra.mxu0 0.0
      %991 = vmatprep.subr.mxu0 0.0
      %992 = vmatpush2.xpose.msra.mxu0 0.0
      %993 = vmatprep.subr.mxu0 0.0
      %994 = vmatpush2.xpose.msra.mxu0 0.0
      %995 = vmatprep.subr.mxu0 0.0
      %996 = vmatpush2.xpose.msra.mxu0 0.0
      %997 = vmatprep.subr.mxu0 0.0
      %998 = vmatpush2.xpose.msra.mxu0 0.0
      %999 = vmatprep.subr.mxu0 0.0
      %1000 = vmatpush2.xpose.msra.mxu0 0.0
      %1001 = vmatprep.mubr.f32.mxu0 0.0
      %1002 = vmatmul.mubr.f32.gmra.mxu0 %v933
      %v1003 = vpop.f32.mrf.mxu0
      %v1004 = vadd.f32 0.0, %v1003
      %v1005 = vpop.f32.mrf.mxu0
      %1006 = vdwg.mxu0
      %1008 = vrot.lane.b32.xlu0 %v824, 96
      %v1009 = vpop.permute.xlu0 %1008
      %v1010 = vsel %vm855, %v824, 0
      %v1012 = vsel %vm855, %v1009, 0
      %1014 = vmatprep.subr.mxu0 0.0
      %1015 = vmatpush1.xpose.msra.mxu0 0.0
      %1016 = vmatprep.subr.mxu0 0.0
      %1017 = vmatpush1.xpose.msra.mxu0 0.0
      %1018 = vmatprep.subr.mxu0 0.0
      %1019 = vmatpush1.xpose.msra.mxu0 0.0
      %1020 = vmatprep.subr.mxu0 0.0
      %1021 = vmatpush1.xpose.msra.mxu0 0.0
      %1022 = vmatprep.subr.mxu0 0.0
      %1023 = vmatpush1.xpose.msra.mxu0 0.0
      %1024 = vmatprep.subr.mxu0 0.0
      %1025 = vmatpush1.xpose.msra.mxu0 0.0
      %1026 = vmatprep.subr.mxu0 0.0
      %1027 = vmatpush1.xpose.msra.mxu0 0.0
      %1028 = vmatprep.subr.mxu0 0.0
      %1029 = vmatpush1.xpose.msra.mxu0 0.0
      %1030 = vmatprep.subr.mxu0 0.0
      %1031 = vmatpush1.xpose.msra.mxu0 0.0
      %1032 = vmatprep.subr.mxu0 0.0
      %1033 = vmatpush1.xpose.msra.mxu0 0.0
      %1034 = vmatprep.subr.mxu0 0.0
      %1035 = vmatpush1.xpose.msra.mxu0 0.0
      %1036 = vmatprep.subr.mxu0 0.0
      %1037 = vmatpush1.xpose.msra.mxu0 0.0
      %1038 = vmatprep.subr.mxu0 0.0
      %1039 = vmatpush1.xpose.msra.mxu0 0.0
      %1040 = vmatprep.subr.mxu0 0.0
      %1041 = vmatpush1.xpose.msra.mxu0 0.0
      %1042 = vmatprep.subr.mxu0 0.0
      %1043 = vmatpush1.xpose.msra.mxu0 0.0
      %1044 = vmatprep.subr.mxu0 0.0
      %1045 = vmatpush1.xpose.msra.mxu0 %v1012
      %1046 = vmatprep.subr.mxu0 0.0
      %1047 = vmatpush2.xpose.msra.mxu0 0.0
      %1048 = vmatprep.subr.mxu0 0.0
      %1049 = vmatpush2.xpose.msra.mxu0 0.0
      %1050 = vmatprep.subr.mxu0 0.0
      %1051 = vmatpush2.xpose.msra.mxu0 0.0
      %1052 = vmatprep.subr.mxu0 0.0
      %1053 = vmatpush2.xpose.msra.mxu0 0.0
      %1054 = vmatprep.subr.mxu0 0.0
      %1055 = vmatpush2.xpose.msra.mxu0 0.0
      %1056 = vmatprep.subr.mxu0 0.0
      %1057 = vmatpush2.xpose.msra.mxu0 0.0
      %1058 = vmatprep.subr.mxu0 0.0
      %1059 = vmatpush2.xpose.msra.mxu0 0.0
      %1060 = vmatprep.subr.mxu0 0.0
      %1061 = vmatpush2.xpose.msra.mxu0 0.0
      %1062 = vmatprep.subr.mxu0 0.0
      %1063 = vmatpush2.xpose.msra.mxu0 0.0
      %1064 = vmatprep.subr.mxu0 0.0
      %1065 = vmatpush2.xpose.msra.mxu0 0.0
      %1066 = vmatprep.subr.mxu0 0.0
      %1067 = vmatpush2.xpose.msra.mxu0 0.0
      %1068 = vmatprep.subr.mxu0 0.0
      %1069 = vmatpush2.xpose.msra.mxu0 0.0
      %1070 = vmatprep.subr.mxu0 0.0
      %1071 = vmatpush2.xpose.msra.mxu0 0.0
      %1072 = vmatprep.subr.mxu0 0.0
      %1073 = vmatpush2.xpose.msra.mxu0 0.0
      %1074 = vmatprep.subr.mxu0 0.0
      %1075 = vmatpush2.xpose.msra.mxu0 0.0
      %1076 = vmatprep.subr.mxu0 0.0
      %1077 = vmatpush2.xpose.msra.mxu0 0.0
      %1078 = vmatprep.mubr.f32.mxu0 0.0
      %1079 = vmatmul.mubr.f32.gmra.mxu0 %v1010
      %v1080 = vpop.f32.mrf.mxu0
      %v1081 = vadd.f32 0.0, %v1080
      %v1082 = vpop.f32.mrf.mxu0
      %1083 = vdwg.mxu0
      %1085 = vrot.lane.b32.xlu0 %v829, 96
      %v1086 = vpop.permute.xlu0 %1085
      %v1087 = vsel %vm855, %v829, 0
      %v1089 = vsel %vm855, %v1086, 0
      %1091 = vmatprep.subr.mxu0 0.0
      %1092 = vmatpush1.xpose.msra.mxu0 0.0
      %1093 = vmatprep.subr.mxu0 0.0
      %1094 = vmatpush1.xpose.msra.mxu0 0.0
      %1095 = vmatprep.subr.mxu0 0.0
      %1096 = vmatpush1.xpose.msra.mxu0 0.0
      %1097 = vmatprep.subr.mxu0 0.0
      %1098 = vmatpush1.xpose.msra.mxu0 0.0
      %1099 = vmatprep.subr.mxu0 0.0
      %1100 = vmatpush1.xpose.msra.mxu0 0.0
      %1101 = vmatprep.subr.mxu0 0.0
      %1102 = vmatpush1.xpose.msra.mxu0 0.0
      %1103 = vmatprep.subr.mxu0 0.0
      %1104 = vmatpush1.xpose.msra.mxu0 0.0
      %1105 = vmatprep.subr.mxu0 0.0
      %1106 = vmatpush1.xpose.msra.mxu0 0.0
      %1107 = vmatprep.subr.mxu0 0.0
      %1108 = vmatpush1.xpose.msra.mxu0 0.0
      %1109 = vmatprep.subr.mxu0 0.0
      %1110 = vmatpush1.xpose.msra.mxu0 0.0
      %1111 = vmatprep.subr.mxu0 0.0
      %1112 = vmatpush1.xpose.msra.mxu0 0.0
      %1113 = vmatprep.subr.mxu0 0.0
      %1114 = vmatpush1.xpose.msra.mxu0 0.0
      %1115 = vmatprep.subr.mxu0 0.0
      %1116 = vmatpush1.xpose.msra.mxu0 0.0
      %1117 = vmatprep.subr.mxu0 0.0
      %1118 = vmatpush1.xpose.msra.mxu0 0.0
      %1119 = vmatprep.subr.mxu0 0.0
      %1120 = vmatpush1.xpose.msra.mxu0 0.0
      %1121 = vmatprep.subr.mxu0 0.0
      %1122 = vmatpush1.xpose.msra.mxu0 %v1089
      %1123 = vmatprep.subr.mxu0 0.0
      %1124 = vmatpush2.xpose.msra.mxu0 0.0
      %1125 = vmatprep.subr.mxu0 0.0
      %1126 = vmatpush2.xpose.msra.mxu0 0.0
      %1127 = vmatprep.subr.mxu0 0.0
      %1128 = vmatpush2.xpose.msra.mxu0 0.0
      %1129 = vmatprep.subr.mxu0 0.0
      %1130 = vmatpush2.xpose.msra.mxu0 0.0
      %1131 = vmatprep.subr.mxu0 0.0
      %1132 = vmatpush2.xpose.msra.mxu0 0.0
      %1133 = vmatprep.subr.mxu0 0.0
      %1134 = vmatpush2.xpose.msra.mxu0 0.0
      %1135 = vmatprep.subr.mxu0 0.0
      %1136 = vmatpush2.xpose.msra.mxu0 0.0
      %1137 = vmatprep.subr.mxu0 0.0
      %1138 = vmatpush2.xpose.msra.mxu0 0.0
      %1139 = vmatprep.subr.mxu0 0.0
      %1140 = vmatpush2.xpose.msra.mxu0 0.0
      %1141 = vmatprep.subr.mxu0 0.0
      %1142 = vmatpush2.xpose.msra.mxu0 0.0
      %1143 = vmatprep.subr.mxu0 0.0
      %1144 = vmatpush2.xpose.msra.mxu0 0.0
      %1145 = vmatprep.subr.mxu0 0.0
      %1146 = vmatpush2.xpose.msra.mxu0 0.0
      %1147 = vmatprep.subr.mxu0 0.0
      %1148 = vmatpush2.xpose.msra.mxu0 0.0
      %1149 = vmatprep.subr.mxu0 0.0
      %1150 = vmatpush2.xpose.msra.mxu0 0.0
      %1151 = vmatprep.subr.mxu0 0.0
      %1152 = vmatpush2.xpose.msra.mxu0 0.0
      %1153 = vmatprep.subr.mxu0 0.0
      %1154 = vmatpush2.xpose.msra.mxu0 0.0
      %1155 = vmatprep.mubr.f32.mxu0 0.0
      %1156 = vmatmul.mubr.f32.gmra.mxu0 %v1087
      %v1157 = vpop.f32.mrf.mxu0
      %v1158 = vadd.f32 0.0, %v1157
      %v1159 = vpop.f32.mrf.mxu0
      %1160 = vdwg.mxu0
      %1162 = vrot.lane.b32.xlu0 %v834, 96
      %v1163 = vpop.permute.xlu0 %1162
      %v1164 = vsel %vm855, %v834, 0
      %v1166 = vsel %vm855, %v1163, 0
      %1168 = vmatprep.subr.mxu0 0.0
      %1169 = vmatpush1.xpose.msra.mxu0 0.0
      %1170 = vmatprep.subr.mxu0 0.0
      %1171 = vmatpush1.xpose.msra.mxu0 0.0
      %1172 = vmatprep.subr.mxu0 0.0
      %1173 = vmatpush1.xpose.msra.mxu0 0.0
      %1174 = vmatprep.subr.mxu0 0.0
      %1175 = vmatpush1.xpose.msra.mxu0 0.0
      %1176 = vmatprep.subr.mxu0 0.0
      %1177 = vmatpush1.xpose.msra.mxu0 0.0
      %1178 = vmatprep.subr.mxu0 0.0
      %1179 = vmatpush1.xpose.msra.mxu0 0.0
      %1180 = vmatprep.subr.mxu0 0.0
      %1181 = vmatpush1.xpose.msra.mxu0 0.0
      %1182 = vmatprep.subr.mxu0 0.0
      %1183 = vmatpush1.xpose.msra.mxu0 0.0
      %1184 = vmatprep.subr.mxu0 0.0
      %1185 = vmatpush1.xpose.msra.mxu0 0.0
      %1186 = vmatprep.subr.mxu0 0.0
      %1187 = vmatpush1.xpose.msra.mxu0 0.0
      %1188 = vmatprep.subr.mxu0 0.0
      %1189 = vmatpush1.xpose.msra.mxu0 0.0
      %1190 = vmatprep.subr.mxu0 0.0
      %1191 = vmatpush1.xpose.msra.mxu0 0.0
      %1192 = vmatprep.subr.mxu0 0.0
      %1193 = vmatpush1.xpose.msra.mxu0 0.0
      %1194 = vmatprep.subr.mxu0 0.0
      %1195 = vmatpush1.xpose.msra.mxu0 0.0
      %1196 = vmatprep.subr.mxu0 0.0
      %1197 = vmatpush1.xpose.msra.mxu0 0.0
      %1198 = vmatprep.subr.mxu0 0.0
      %1199 = vmatpush1.xpose.msra.mxu0 %v1166
      %1200 = vmatprep.subr.mxu0 0.0
      %1201 = vmatpush2.xpose.msra.mxu0 0.0
      %1202 = vmatprep.subr.mxu0 0.0
      %1203 = vmatpush2.xpose.msra.mxu0 0.0
      %1204 = vmatprep.subr.mxu0 0.0
      %1205 = vmatpush2.xpose.msra.mxu0 0.0
      %1206 = vmatprep.subr.mxu0 0.0
      %1207 = vmatpush2.xpose.msra.mxu0 0.0
      %1208 = vmatprep.subr.mxu0 0.0
      %1209 = vmatpush2.xpose.msra.mxu0 0.0
      %1210 = vmatprep.subr.mxu0 0.0
      %1211 = vmatpush2.xpose.msra.mxu0 0.0
      %1212 = vmatprep.subr.mxu0 0.0
      %1213 = vmatpush2.xpose.msra.mxu0 0.0
      %1214 = vmatprep.subr.mxu0 0.0
      %1215 = vmatpush2.xpose.msra.mxu0 0.0
      %1216 = vmatprep.subr.mxu0 0.0
      %1217 = vmatpush2.xpose.msra.mxu0 0.0
      %1218 = vmatprep.subr.mxu0 0.0
      %1219 = vmatpush2.xpose.msra.mxu0 0.0
      %1220 = vmatprep.subr.mxu0 0.0
      %1221 = vmatpush2.xpose.msra.mxu0 0.0
      %1222 = vmatprep.subr.mxu0 0.0
      %1223 = vmatpush2.xpose.msra.mxu0 0.0
      %1224 = vmatprep.subr.mxu0 0.0
      %1225 = vmatpush2.xpose.msra.mxu0 0.0
      %1226 = vmatprep.subr.mxu0 0.0
      %1227 = vmatpush2.xpose.msra.mxu0 0.0
      %1228 = vmatprep.subr.mxu0 0.0
      %1229 = vmatpush2.xpose.msra.mxu0 0.0
      %1230 = vmatprep.subr.mxu0 0.0
      %1231 = vmatpush2.xpose.msra.mxu0 0.0
      %1232 = vmatprep.mubr.f32.mxu0 0.0
      %1233 = vmatmul.mubr.f32.gmra.mxu0 %v1164
      %v1234 = vpop.f32.mrf.mxu0
      %v1235 = vadd.f32 0.0, %v1234
      %v1236 = vpop.f32.mrf.mxu0
      %1237 = vdwg.mxu0
      %1239 = vrot.lane.b32.xlu0 %v839, 96
      %v1240 = vpop.permute.xlu0 %1239
      %v1241 = vsel %vm855, %v839, 0
      %v1243 = vsel %vm855, %v1240, 0
      %1245 = vmatprep.subr.mxu0 0.0
      %1246 = vmatpush1.xpose.msra.mxu0 0.0
      %1247 = vmatprep.subr.mxu0 0.0
      %1248 = vmatpush1.xpose.msra.mxu0 0.0
      %1249 = vmatprep.subr.mxu0 0.0
      %1250 = vmatpush1.xpose.msra.mxu0 0.0
      %1251 = vmatprep.subr.mxu0 0.0
      %1252 = vmatpush1.xpose.msra.mxu0 0.0
      %1253 = vmatprep.subr.mxu0 0.0
      %1254 = vmatpush1.xpose.msra.mxu0 0.0
      %1255 = vmatprep.subr.mxu0 0.0
      %1256 = vmatpush1.xpose.msra.mxu0 0.0
      %1257 = vmatprep.subr.mxu0 0.0
      %1258 = vmatpush1.xpose.msra.mxu0 0.0
      %1259 = vmatprep.subr.mxu0 0.0
      %1260 = vmatpush1.xpose.msra.mxu0 0.0
      %1261 = vmatprep.subr.mxu0 0.0
      %1262 = vmatpush1.xpose.msra.mxu0 0.0
      %1263 = vmatprep.subr.mxu0 0.0
      %1264 = vmatpush1.xpose.msra.mxu0 0.0
      %1265 = vmatprep.subr.mxu0 0.0
      %1266 = vmatpush1.xpose.msra.mxu0 0.0
      %1267 = vmatprep.subr.mxu0 0.0
      %1268 = vmatpush1.xpose.msra.mxu0 0.0
      %1269 = vmatprep.subr.mxu0 0.0
      %1270 = vmatpush1.xpose.msra.mxu0 0.0
      %1271 = vmatprep.subr.mxu0 0.0
      %1272 = vmatpush1.xpose.msra.mxu0 0.0
      %1273 = vmatprep.subr.mxu0 0.0
      %1274 = vmatpush1.xpose.msra.mxu0 0.0
      %1275 = vmatprep.subr.mxu0 0.0
      %1276 = vmatpush1.xpose.msra.mxu0 %v1243
      %1277 = vmatprep.subr.mxu0 0.0
      %1278 = vmatpush2.xpose.msra.mxu0 0.0
      %1279 = vmatprep.subr.mxu0 0.0
      %1280 = vmatpush2.xpose.msra.mxu0 0.0
      %1281 = vmatprep.subr.mxu0 0.0
      %1282 = vmatpush2.xpose.msra.mxu0 0.0
      %1283 = vmatprep.subr.mxu0 0.0
      %1284 = vmatpush2.xpose.msra.mxu0 0.0
      %1285 = vmatprep.subr.mxu0 0.0
      %1286 = vmatpush2.xpose.msra.mxu0 0.0
      %1287 = vmatprep.subr.mxu0 0.0
      %1288 = vmatpush2.xpose.msra.mxu0 0.0
      %1289 = vmatprep.subr.mxu0 0.0
      %1290 = vmatpush2.xpose.msra.mxu0 0.0
      %1291 = vmatprep.subr.mxu0 0.0
      %1292 = vmatpush2.xpose.msra.mxu0 0.0
      %1293 = vmatprep.subr.mxu0 0.0
      %1294 = vmatpush2.xpose.msra.mxu0 0.0
      %1295 = vmatprep.subr.mxu0 0.0
      %1296 = vmatpush2.xpose.msra.mxu0 0.0
      %1297 = vmatprep.subr.mxu0 0.0
      %1298 = vmatpush2.xpose.msra.mxu0 0.0
      %1299 = vmatprep.subr.mxu0 0.0
      %1300 = vmatpush2.xpose.msra.mxu0 0.0
      %1301 = vmatprep.subr.mxu0 0.0
      %1302 = vmatpush2.xpose.msra.mxu0 0.0
      %1303 = vmatprep.subr.mxu0 0.0
      %1304 = vmatpush2.xpose.msra.mxu0 0.0
      %1305 = vmatprep.subr.mxu0 0.0
      %1306 = vmatpush2.xpose.msra.mxu0 0.0
      %1307 = vmatprep.subr.mxu0 0.0
      %1308 = vmatpush2.xpose.msra.mxu0 0.0
      %1309 = vmatprep.mubr.f32.mxu0 0.0
      %1310 = vmatmul.mubr.f32.gmra.mxu0 %v1241
      %v1311 = vpop.f32.mrf.mxu0
      %v1312 = vadd.f32 0.0, %v1311
      %v1313 = vpop.f32.mrf.mxu0
      %1314 = vdwg.mxu0
      %1316 = vrot.lane.b32.xlu0 %v844, 96
      %v1317 = vpop.permute.xlu0 %1316
      %v1318 = vsel %vm855, %v844, 0
      %v1320 = vsel %vm855, %v1317, 0
      %1322 = vmatprep.subr.mxu0 0.0
      %1323 = vmatpush1.xpose.msra.mxu0 0.0
      %1324 = vmatprep.subr.mxu0 0.0
      %1325 = vmatpush1.xpose.msra.mxu0 0.0
      %1326 = vmatprep.subr.mxu0 0.0
      %1327 = vmatpush1.xpose.msra.mxu0 0.0
      %1328 = vmatprep.subr.mxu0 0.0
      %1329 = vmatpush1.xpose.msra.mxu0 0.0
      %1330 = vmatprep.subr.mxu0 0.0
      %1331 = vmatpush1.xpose.msra.mxu0 0.0
      %1332 = vmatprep.subr.mxu0 0.0
      %1333 = vmatpush1.xpose.msra.mxu0 0.0
      %1334 = vmatprep.subr.mxu0 0.0
      %1335 = vmatpush1.xpose.msra.mxu0 0.0
      %1336 = vmatprep.subr.mxu0 0.0
      %1337 = vmatpush1.xpose.msra.mxu0 0.0
      %1338 = vmatprep.subr.mxu0 0.0
      %1339 = vmatpush1.xpose.msra.mxu0 0.0
      %1340 = vmatprep.subr.mxu0 0.0
      %1341 = vmatpush1.xpose.msra.mxu0 0.0
      %1342 = vmatprep.subr.mxu0 0.0
      %1343 = vmatpush1.xpose.msra.mxu0 0.0
      %1344 = vmatprep.subr.mxu0 0.0
      %1345 = vmatpush1.xpose.msra.mxu0 0.0
      %1346 = vmatprep.subr.mxu0 0.0
      %1347 = vmatpush1.xpose.msra.mxu0 0.0
      %1348 = vmatprep.subr.mxu0 0.0
      %1349 = vmatpush1.xpose.msra.mxu0 0.0
      %1350 = vmatprep.subr.mxu0 0.0
      %1351 = vmatpush1.xpose.msra.mxu0 0.0
      %1352 = vmatprep.subr.mxu0 0.0
      %1353 = vmatpush1.xpose.msra.mxu0 %v1320
      %1354 = vmatprep.subr.mxu0 0.0
      %1355 = vmatpush2.xpose.msra.mxu0 0.0
      %1356 = vmatprep.subr.mxu0 0.0
      %1357 = vmatpush2.xpose.msra.mxu0 0.0
      %1358 = vmatprep.subr.mxu0 0.0
      %1359 = vmatpush2.xpose.msra.mxu0 0.0
      %1360 = vmatprep.subr.mxu0 0.0
      %1361 = vmatpush2.xpose.msra.mxu0 0.0
      %1362 = vmatprep.subr.mxu0 0.0
      %1363 = vmatpush2.xpose.msra.mxu0 0.0
      %1364 = vmatprep.subr.mxu0 0.0
      %1365 = vmatpush2.xpose.msra.mxu0 0.0
      %1366 = vmatprep.subr.mxu0 0.0
      %1367 = vmatpush2.xpose.msra.mxu0 0.0
      %1368 = vmatprep.subr.mxu0 0.0
      %1369 = vmatpush2.xpose.msra.mxu0 0.0
      %1370 = vmatprep.subr.mxu0 0.0
      %1371 = vmatpush2.xpose.msra.mxu0 0.0
      %1372 = vmatprep.subr.mxu0 0.0
      %1373 = vmatpush2.xpose.msra.mxu0 0.0
      %1374 = vmatprep.subr.mxu0 0.0
      %1375 = vmatpush2.xpose.msra.mxu0 0.0
      %1376 = vmatprep.subr.mxu0 0.0
      %1377 = vmatpush2.xpose.msra.mxu0 0.0
      %1378 = vmatprep.subr.mxu0 0.0
      %1379 = vmatpush2.xpose.msra.mxu0 0.0
      %1380 = vmatprep.subr.mxu0 0.0
      %1381 = vmatpush2.xpose.msra.mxu0 0.0
      %1382 = vmatprep.subr.mxu0 0.0
      %1383 = vmatpush2.xpose.msra.mxu0 0.0
      %1384 = vmatprep.subr.mxu0 0.0
      %1385 = vmatpush2.xpose.msra.mxu0 0.0
      %1386 = vmatprep.mubr.f32.mxu0 0.0
      %1387 = vmatmul.mubr.f32.gmra.mxu0 %v1318
      %v1388 = vpop.f32.mrf.mxu0
      %v1389 = vadd.f32 0.0, %v1388
      %v1390 = vpop.f32.mrf.mxu0
      %1391 = vdwg.mxu0
      %1393 = vrot.lane.b32.xlu0 %v849, 96
      %v1394 = vpop.permute.xlu0 %1393
      %v1395 = vsel %vm855, %v849, 0
      %v1397 = vsel %vm855, %v1394, 0
      %1399 = vmatprep.subr.mxu0 0.0
      %1400 = vmatpush1.xpose.msra.mxu0 0.0
      %1401 = vmatprep.subr.mxu0 0.0
      %1402 = vmatpush1.xpose.msra.mxu0 0.0
      %1403 = vmatprep.subr.mxu0 0.0
      %1404 = vmatpush1.xpose.msra.mxu0 0.0
      %1405 = vmatprep.subr.mxu0 0.0
      %1406 = vmatpush1.xpose.msra.mxu0 0.0
      %1407 = vmatprep.subr.mxu0 0.0
      %1408 = vmatpush1.xpose.msra.mxu0 0.0
      %1409 = vmatprep.subr.mxu0 0.0
      %1410 = vmatpush1.xpose.msra.mxu0 0.0
      %1411 = vmatprep.subr.mxu0 0.0
      %1412 = vmatpush1.xpose.msra.mxu0 0.0
      %1413 = vmatprep.subr.mxu0 0.0
      %1414 = vmatpush1.xpose.msra.mxu0 0.0
      %1415 = vmatprep.subr.mxu0 0.0
      %1416 = vmatpush1.xpose.msra.mxu0 0.0
      %1417 = vmatprep.subr.mxu0 0.0
      %1418 = vmatpush1.xpose.msra.mxu0 0.0
      %1419 = vmatprep.subr.mxu0 0.0
      %1420 = vmatpush1.xpose.msra.mxu0 0.0
      %1421 = vmatprep.subr.mxu0 0.0
      %1422 = vmatpush1.xpose.msra.mxu0 0.0
      %1423 = vmatprep.subr.mxu0 0.0
      %1424 = vmatpush1.xpose.msra.mxu0 0.0
      %1425 = vmatprep.subr.mxu0 0.0
      %1426 = vmatpush1.xpose.msra.mxu0 0.0
      %1427 = vmatprep.subr.mxu0 0.0
      %1428 = vmatpush1.xpose.msra.mxu0 0.0
      %1429 = vmatprep.subr.mxu0 0.0
      %1430 = vmatpush1.xpose.msra.mxu0 %v1397
      %1431 = vmatprep.subr.mxu0 0.0
      %1432 = vmatpush2.xpose.msra.mxu0 0.0
      %1433 = vmatprep.subr.mxu0 0.0
      %1434 = vmatpush2.xpose.msra.mxu0 0.0
      %1435 = vmatprep.subr.mxu0 0.0
      %1436 = vmatpush2.xpose.msra.mxu0 0.0
      %1437 = vmatprep.subr.mxu0 0.0
      %1438 = vmatpush2.xpose.msra.mxu0 0.0
      %1439 = vmatprep.subr.mxu0 0.0
      %1440 = vmatpush2.xpose.msra.mxu0 0.0
      %1441 = vmatprep.subr.mxu0 0.0
      %1442 = vmatpush2.xpose.msra.mxu0 0.0
      %1443 = vmatprep.subr.mxu0 0.0
      %1444 = vmatpush2.xpose.msra.mxu0 0.0
      %1445 = vmatprep.subr.mxu0 0.0
      %1446 = vmatpush2.xpose.msra.mxu0 0.0
      %1447 = vmatprep.subr.mxu0 0.0
      %1448 = vmatpush2.xpose.msra.mxu0 0.0
      %1449 = vmatprep.subr.mxu0 0.0
      %1450 = vmatpush2.xpose.msra.mxu0 0.0
      %1451 = vmatprep.subr.mxu0 0.0
      %1452 = vmatpush2.xpose.msra.mxu0 0.0
      %1453 = vmatprep.subr.mxu0 0.0
      %1454 = vmatpush2.xpose.msra.mxu0 0.0
      %1455 = vmatprep.subr.mxu0 0.0
      %1456 = vmatpush2.xpose.msra.mxu0 0.0
      %1457 = vmatprep.subr.mxu0 0.0
      %1458 = vmatpush2.xpose.msra.mxu0 0.0
      %1459 = vmatprep.subr.mxu0 0.0
      %1460 = vmatpush2.xpose.msra.mxu0 0.0
      %1461 = vmatprep.subr.mxu0 0.0
      %1462 = vmatpush2.xpose.msra.mxu0 0.0
      %1463 = vmatprep.mubr.f32.mxu0 0.0
      %1464 = vmatmul.mubr.f32.gmra.mxu0 %v1395
      %v1465 = vpop.f32.mrf.mxu0
      %v1466 = vadd.f32 0.0, %v1465
      %v1467 = vpop.f32.mrf.mxu0
      %1468 = vdwg.mxu0
      %v1469 = vmul.f32 %v927, 0.35355338
      %v1470 = vmul.f32 %v1004, 0.35355338
      %v1471 = vmul.f32 %v1081, 0.35355338
      %v1472 = vmul.f32 %v1158, 0.35355338
      %v1473 = vmul.f32 %v1235, 0.35355338
      %v1474 = vmul.f32 %v1312, 0.35355338
      %v1475 = vmul.f32 %v1389, 0.35355338
      %v1476 = vmul.f32 %v1466, 0.35355338
      %v1477 = vsel %vm703, -1e+09, %v1469
      %v1478 = vsel %vm704, -1e+09, %v1470
      %v1479 = vsel %vm705, -1e+09, %v1471
      %v1480 = vsel %vm706, -1e+09, %v1472
      %v1481 = vsel %vm707, -1e+09, %v1473
      %v1482 = vsel %vm708, -1e+09, %v1474
      %v1483 = vsel %vm709, -1e+09, %v1475
      %v1484 = vsel %vm710, -1e+09, %v1476
      %v1485 = vsel %vm855, %v1477, -inf
      %1486 = vmax.xlane.f32.xlu0 %v1485
      %v1487 = vpop.xlane.xlu0 %1486
      %v1488 = vsel %vm855, %v1478, -inf
      %1489 = vmax.xlane.f32.xlu0 %v1488
      %v1490 = vpop.xlane.xlu0 %1489
      %v1491 = vsel %vm855, %v1479, -inf
      %1492 = vmax.xlane.f32.xlu0 %v1491
      %v1493 = vpop.xlane.xlu0 %1492
      %v1494 = vsel %vm855, %v1480, -inf
      %1495 = vmax.xlane.f32.xlu0 %v1494
      %v1496 = vpop.xlane.xlu0 %1495
      %v1497 = vsel %vm855, %v1481, -inf
      %1498 = vmax.xlane.f32.xlu0 %v1497
      %v1499 = vpop.xlane.xlu0 %1498
      %v1500 = vsel %vm855, %v1482, -inf
      %1501 = vmax.xlane.f32.xlu0 %v1500
      %v1502 = vpop.xlane.xlu0 %1501
      %v1503 = vsel %vm855, %v1483, -inf
      %1504 = vmax.xlane.f32.xlu0 %v1503
      %v1505 = vpop.xlane.xlu0 %1504
      %v1506 = vsel %vm855, %v1484, -inf
      %1507 = vmax.xlane.f32.xlu0 %v1506
      %v1508 = vpop.xlane.xlu0 %1507
      %v1509 = vsub.f32 %v1477, %v1487
      %v1510 = vsub.f32 %v1478, %v1490
      %v1511 = vsub.f32 %v1479, %v1493
      %v1512 = vsub.f32 %v1480, %v1496
      %v1513 = vsub.f32 %v1481, %v1499
      %v1514 = vsub.f32 %v1482, %v1502
      %v1515 = vsub.f32 %v1483, %v1505
      %v1516 = vsub.f32 %v1484, %v1508
      %v1517 = vmul.f32 %v1509, 1.442695
      %v1518 = vpow.pop %v1517
      %v1519 = vmul.f32 %v1510, 1.442695
      %v1520 = vpow.pop %v1519
      %v1521 = vmul.f32 %v1511, 1.442695
      %v1522 = vpow.pop %v1521
      %v1523 = vmul.f32 %v1512, 1.442695
      %v1524 = vpow.pop %v1523
      %v1525 = vmul.f32 %v1513, 1.442695
      %v1526 = vpow.pop %v1525
      %v1527 = vmul.f32 %v1514, 1.442695
      %v1528 = vpow.pop %v1527
      %v1529 = vmul.f32 %v1515, 1.442695
      %v1530 = vpow.pop %v1529
      %v1531 = vmul.f32 %v1516, 1.442695
      %v1532 = vpow.pop %v1531
      %v1533 = vsel %vm855, %v1518, 0.0
      %1534 = vadd.xlane.f32.xlu0 %v1533
      %v1535 = vpop.xlane.xlu0 %1534
      %v1536 = vsel %vm855, %v1520, 0.0
      %1537 = vadd.xlane.f32.xlu0 %v1536
      %v1538 = vpop.xlane.xlu0 %1537
      %v1539 = vsel %vm855, %v1522, 0.0
      %1540 = vadd.xlane.f32.xlu0 %v1539
      %v1541 = vpop.xlane.xlu0 %1540
      %v1542 = vsel %vm855, %v1524, 0.0
      %1543 = vadd.xlane.f32.xlu0 %v1542
      %v1544 = vpop.xlane.xlu0 %1543
      %v1545 = vsel %vm855, %v1526, 0.0
      %1546 = vadd.xlane.f32.xlu0 %v1545
      %v1547 = vpop.xlane.xlu0 %1546
      %v1548 = vsel %vm855, %v1528, 0.0
      %1549 = vadd.xlane.f32.xlu0 %v1548
      %v1550 = vpop.xlane.xlu0 %1549
      %v1551 = vsel %vm855, %v1530, 0.0
      %1552 = vadd.xlane.f32.xlu0 %v1551
      %v1553 = vpop.xlane.xlu0 %1552
      %v1554 = vsel %vm855, %v1532, 0.0
      %1555 = vadd.xlane.f32.xlu0 %v1554
      %v1556 = vpop.xlane.xlu0 %1555
      %v1557 = vrcp.pop %v1535
      %v1558 = vrcp.pop %v1538
      %v1559 = vrcp.pop %v1541
      %v1560 = vrcp.pop %v1544
      %v1561 = vrcp.pop %v1547
      %v1562 = vrcp.pop %v1550
      %v1563 = vrcp.pop %v1553
      %v1564 = vrcp.pop %v1556
      %v1565 = vmul.f32 %v1518, %v1557
      %v1566 = vmul.f32 %v1520, %v1558
      %v1567 = vmul.f32 %v1522, %v1559
      %v1568 = vmul.f32 %v1524, %v1560
      %v1569 = vmul.f32 %v1526, %v1561
      %v1570 = vmul.f32 %v1528, %v1562
      %v1571 = vmul.f32 %v1530, %v1563
      %v1572 = vmul.f32 %v1532, %v1564
      %1573 = vrot.lane.b32.xlu0 %v814, 64
      %v1574 = vpop.permute.xlu0 %1573
      %v1577 = vsel %vm855, %v1565, 0
      %1579 = vmatprep.subr.mxu0 0.0
      %1580 = vmatpush1.msra.mxu0 0.0
      %1581 = vmatprep.subr.mxu0 0.0
      %1582 = vmatpush1.msra.mxu0 0.0
      %1583 = vmatprep.subr.mxu0 0.0
      %1584 = vmatpush1.msra.mxu0 0.0
      %1585 = vmatprep.subr.mxu0 0.0
      %1586 = vmatpush1.msra.mxu0 0.0
      %1587 = vmatprep.subr.mxu0 0.0
      %1588 = vmatpush1.msra.mxu0 0.0
      %1589 = vmatprep.subr.mxu0 0.0
      %1590 = vmatpush1.msra.mxu0 0.0
      %1591 = vmatprep.subr.mxu0 0.0
      %1592 = vmatpush1.msra.mxu0 0.0
      %1593 = vmatprep.subr.mxu0 0.0
      %1594 = vmatpush1.msra.mxu0 0.0
      %1595 = vmatprep.subr.mxu0 0.0
      %1596 = vmatpush1.msra.mxu0 0.0
      %1597 = vmatprep.subr.mxu0 0.0
      %1598 = vmatpush1.msra.mxu0 0.0
      %1599 = vmatprep.subr.mxu0 0.0
      %1600 = vmatpush1.msra.mxu0 0.0
      %1601 = vmatprep.subr.mxu0 0.0
      %1602 = vmatpush1.msra.mxu0 0.0
      %1603 = vmatprep.subr.mxu0 0.0
      %1604 = vmatpush1.msra.mxu0 0.0
      %1605 = vmatprep.subr.mxu0 0.0
      %1606 = vmatpush1.msra.mxu0 0.0
      %1607 = vmatprep.subr.mxu0 0.0
      %1608 = vmatpush1.msra.mxu0 0.0
      %1609 = vmatprep.subr.mxu0 0.0
      %1610 = vmatpush1.msra.mxu0 %v1574
      %1611 = vmatprep.subr.mxu0 0.0
      %1612 = vmatpush2.msra.mxu0 0.0
      %1613 = vmatprep.subr.mxu0 0.0
      %1614 = vmatpush2.msra.mxu0 0.0
      %1615 = vmatprep.subr.mxu0 0.0
      %1616 = vmatpush2.msra.mxu0 0.0
      %1617 = vmatprep.subr.mxu0 0.0
      %1618 = vmatpush2.msra.mxu0 0.0
      %1619 = vmatprep.subr.mxu0 0.0
      %1620 = vmatpush2.msra.mxu0 0.0
      %1621 = vmatprep.subr.mxu0 0.0
      %1622 = vmatpush2.msra.mxu0 0.0
      %1623 = vmatprep.subr.mxu0 0.0
      %1624 = vmatpush2.msra.mxu0 0.0
      %1625 = vmatprep.subr.mxu0 0.0
      %1626 = vmatpush2.msra.mxu0 0.0
      %1627 = vmatprep.subr.mxu0 0.0
      %1628 = vmatpush2.msra.mxu0 0.0
      %1629 = vmatprep.subr.mxu0 0.0
      %1630 = vmatpush2.msra.mxu0 0.0
      %1631 = vmatprep.subr.mxu0 0.0
      %1632 = vmatpush2.msra.mxu0 0.0
      %1633 = vmatprep.subr.mxu0 0.0
      %1634 = vmatpush2.msra.mxu0 0.0
      %1635 = vmatprep.subr.mxu0 0.0
      %1636 = vmatpush2.msra.mxu0 0.0
      %1637 = vmatprep.subr.mxu0 0.0
      %1638 = vmatpush2.msra.mxu0 0.0
      %1639 = vmatprep.subr.mxu0 0.0
      %1640 = vmatpush2.msra.mxu0 0.0
      %1641 = vmatprep.subr.mxu0 0.0
      %1642 = vmatpush2.msra.mxu0 0.0
      %1643 = vmatprep.mubr.f32.mxu0 0.0
      %1644 = vmatmul.mubr.f32.gmra.mxu0 %v1577
      %v1645 = vpop.f32.mrf.mxu0
      %v1646 = vadd.f32 0.0, %v1645
      %v1647 = vpop.f32.mrf.mxu0
      %1648 = vdwg.mxu0
      %1649 = vrot.lane.b32.xlu0 %v819, 64
      %v1650 = vpop.permute.xlu0 %1649
      %v1653 = vsel %vm855, %v1566, 0
      %1655 = vmatprep.subr.mxu0 0.0
      %1656 = vmatpush1.msra.mxu0 0.0
      %1657 = vmatprep.subr.mxu0 0.0
      %1658 = vmatpush1.msra.mxu0 0.0
      %1659 = vmatprep.subr.mxu0 0.0
      %1660 = vmatpush1.msra.mxu0 0.0
      %1661 = vmatprep.subr.mxu0 0.0
      %1662 = vmatpush1.msra.mxu0 0.0
      %1663 = vmatprep.subr.mxu0 0.0
      %1664 = vmatpush1.msra.mxu0 0.0
      %1665 = vmatprep.subr.mxu0 0.0
      %1666 = vmatpush1.msra.mxu0 0.0
      %1667 = vmatprep.subr.mxu0 0.0
      %1668 = vmatpush1.msra.mxu0 0.0
      %1669 = vmatprep.subr.mxu0 0.0
      %1670 = vmatpush1.msra.mxu0 0.0
      %1671 = vmatprep.subr.mxu0 0.0
      %1672 = vmatpush1.msra.mxu0 0.0
      %1673 = vmatprep.subr.mxu0 0.0
      %1674 = vmatpush1.msra.mxu0 0.0
      %1675 = vmatprep.subr.mxu0 0.0
      %1676 = vmatpush1.msra.mxu0 0.0
      %1677 = vmatprep.subr.mxu0 0.0
      %1678 = vmatpush1.msra.mxu0 0.0
      %1679 = vmatprep.subr.mxu0 0.0
      %1680 = vmatpush1.msra.mxu0 0.0
      %1681 = vmatprep.subr.mxu0 0.0
      %1682 = vmatpush1.msra.mxu0 0.0
      %1683 = vmatprep.subr.mxu0 0.0
      %1684 = vmatpush1.msra.mxu0 0.0
      %1685 = vmatprep.subr.mxu0 0.0
      %1686 = vmatpush1.msra.mxu0 %v1650
      %1687 = vmatprep.subr.mxu0 0.0
      %1688 = vmatpush2.msra.mxu0 0.0
      %1689 = vmatprep.subr.mxu0 0.0
      %1690 = vmatpush2.msra.mxu0 0.0
      %1691 = vmatprep.subr.mxu0 0.0
      %1692 = vmatpush2.msra.mxu0 0.0
      %1693 = vmatprep.subr.mxu0 0.0
      %1694 = vmatpush2.msra.mxu0 0.0
      %1695 = vmatprep.subr.mxu0 0.0
      %1696 = vmatpush2.msra.mxu0 0.0
      %1697 = vmatprep.subr.mxu0 0.0
      %1698 = vmatpush2.msra.mxu0 0.0
      %1699 = vmatprep.subr.mxu0 0.0
      %1700 = vmatpush2.msra.mxu0 0.0
      %1701 = vmatprep.subr.mxu0 0.0
      %1702 = vmatpush2.msra.mxu0 0.0
      %1703 = vmatprep.subr.mxu0 0.0
      %1704 = vmatpush2.msra.mxu0 0.0
      %1705 = vmatprep.subr.mxu0 0.0
      %1706 = vmatpush2.msra.mxu0 0.0
      %1707 = vmatprep.subr.mxu0 0.0
      %1708 = vmatpush2.msra.mxu0 0.0
      %1709 = vmatprep.subr.mxu0 0.0
      %1710 = vmatpush2.msra.mxu0 0.0
      %1711 = vmatprep.subr.mxu0 0.0
      %1712 = vmatpush2.msra.mxu0 0.0
      %1713 = vmatprep.subr.mxu0 0.0
      %1714 = vmatpush2.msra.mxu0 0.0
      %1715 = vmatprep.subr.mxu0 0.0
      %1716 = vmatpush2.msra.mxu0 0.0
      %1717 = vmatprep.subr.mxu0 0.0
      %1718 = vmatpush2.msra.mxu0 0.0
      %1719 = vmatprep.mubr.f32.mxu0 0.0
      %1720 = vmatmul.mubr.f32.gmra.mxu0 %v1653
      %v1721 = vpop.f32.mrf.mxu0
      %v1722 = vadd.f32 0.0, %v1721
      %v1723 = vpop.f32.mrf.mxu0
      %1724 = vdwg.mxu0
      %1725 = vrot.lane.b32.xlu0 %v824, 64
      %v1726 = vpop.permute.xlu0 %1725
      %v1729 = vsel %vm855, %v1567, 0
      %1731 = vmatprep.subr.mxu0 0.0
      %1732 = vmatpush1.msra.mxu0 0.0
      %1733 = vmatprep.subr.mxu0 0.0
      %1734 = vmatpush1.msra.mxu0 0.0
      %1735 = vmatprep.subr.mxu0 0.0
      %1736 = vmatpush1.msra.mxu0 0.0
      %1737 = vmatprep.subr.mxu0 0.0
      %1738 = vmatpush1.msra.mxu0 0.0
      %1739 = vmatprep.subr.mxu0 0.0
      %1740 = vmatpush1.msra.mxu0 0.0
      %1741 = vmatprep.subr.mxu0 0.0
      %1742 = vmatpush1.msra.mxu0 0.0
      %1743 = vmatprep.subr.mxu0 0.0
      %1744 = vmatpush1.msra.mxu0 0.0
      %1745 = vmatprep.subr.mxu0 0.0
      %1746 = vmatpush1.msra.mxu0 0.0
      %1747 = vmatprep.subr.mxu0 0.0
      %1748 = vmatpush1.msra.mxu0 0.0
      %1749 = vmatprep.subr.mxu0 0.0
      %1750 = vmatpush1.msra.mxu0 0.0
      %1751 = vmatprep.subr.mxu0 0.0
      %1752 = vmatpush1.msra.mxu0 0.0
      %1753 = vmatprep.subr.mxu0 0.0
      %1754 = vmatpush1.msra.mxu0 0.0
      %1755 = vmatprep.subr.mxu0 0.0
      %1756 = vmatpush1.msra.mxu0 0.0
      %1757 = vmatprep.subr.mxu0 0.0
      %1758 = vmatpush1.msra.mxu0 0.0
      %1759 = vmatprep.subr.mxu0 0.0
      %1760 = vmatpush1.msra.mxu0 0.0
      %1761 = vmatprep.subr.mxu0 0.0
      %1762 = vmatpush1.msra.mxu0 %v1726
      %1763 = vmatprep.subr.mxu0 0.0
      %1764 = vmatpush2.msra.mxu0 0.0
      %1765 = vmatprep.subr.mxu0 0.0
      %1766 = vmatpush2.msra.mxu0 0.0
      %1767 = vmatprep.subr.mxu0 0.0
      %1768 = vmatpush2.msra.mxu0 0.0
      %1769 = vmatprep.subr.mxu0 0.0
      %1770 = vmatpush2.msra.mxu0 0.0
      %1771 = vmatprep.subr.mxu0 0.0
      %1772 = vmatpush2.msra.mxu0 0.0
      %1773 = vmatprep.subr.mxu0 0.0
      %1774 = vmatpush2.msra.mxu0 0.0
      %1775 = vmatprep.subr.mxu0 0.0
      %1776 = vmatpush2.msra.mxu0 0.0
      %1777 = vmatprep.subr.mxu0 0.0
      %1778 = vmatpush2.msra.mxu0 0.0
      %1779 = vmatprep.subr.mxu0 0.0
      %1780 = vmatpush2.msra.mxu0 0.0
      %1781 = vmatprep.subr.mxu0 0.0
      %1782 = vmatpush2.msra.mxu0 0.0
      %1783 = vmatprep.subr.mxu0 0.0
      %1784 = vmatpush2.msra.mxu0 0.0
      %1785 = vmatprep.subr.mxu0 0.0
      %1786 = vmatpush2.msra.mxu0 0.0
      %1787 = vmatprep.subr.mxu0 0.0
      %1788 = vmatpush2.msra.mxu0 0.0
      %1789 = vmatprep.subr.mxu0 0.0
      %1790 = vmatpush2.msra.mxu0 0.0
      %1791 = vmatprep.subr.mxu0 0.0
      %1792 = vmatpush2.msra.mxu0 0.0
      %1793 = vmatprep.subr.mxu0 0.0
      %1794 = vmatpush2.msra.mxu0 0.0
      %1795 = vmatprep.mubr.f32.mxu0 0.0
      %1796 = vmatmul.mubr.f32.gmra.mxu0 %v1729
      %v1797 = vpop.f32.mrf.mxu0
      %v1798 = vadd.f32 0.0, %v1797
      %v1799 = vpop.f32.mrf.mxu0
      %1800 = vdwg.mxu0
      %1801 = vrot.lane.b32.xlu0 %v829, 64
      %v1802 = vpop.permute.xlu0 %1801
      %v1805 = vsel %vm855, %v1568, 0
      %1807 = vmatprep.subr.mxu0 0.0
      %1808 = vmatpush1.msra.mxu0 0.0
      %1809 = vmatprep.subr.mxu0 0.0
      %1810 = vmatpush1.msra.mxu0 0.0
      %1811 = vmatprep.subr.mxu0 0.0
      %1812 = vmatpush1.msra.mxu0 0.0
      %1813 = vmatprep.subr.mxu0 0.0
      %1814 = vmatpush1.msra.mxu0 0.0
      %1815 = vmatprep.subr.mxu0 0.0
      %1816 = vmatpush1.msra.mxu0 0.0
      %1817 = vmatprep.subr.mxu0 0.0
      %1818 = vmatpush1.msra.mxu0 0.0
      %1819 = vmatprep.subr.mxu0 0.0
      %1820 = vmatpush1.msra.mxu0 0.0
      %1821 = vmatprep.subr.mxu0 0.0
      %1822 = vmatpush1.msra.mxu0 0.0
      %1823 = vmatprep.subr.mxu0 0.0
      %1824 = vmatpush1.msra.mxu0 0.0
      %1825 = vmatprep.subr.mxu0 0.0
      %1826 = vmatpush1.msra.mxu0 0.0
      %1827 = vmatprep.subr.mxu0 0.0
      %1828 = vmatpush1.msra.mxu0 0.0
      %1829 = vmatprep.subr.mxu0 0.0
      %1830 = vmatpush1.msra.mxu0 0.0
      %1831 = vmatprep.subr.mxu0 0.0
      %1832 = vmatpush1.msra.mxu0 0.0
      %1833 = vmatprep.subr.mxu0 0.0
      %1834 = vmatpush1.msra.mxu0 0.0
      %1835 = vmatprep.subr.mxu0 0.0
      %1836 = vmatpush1.msra.mxu0 0.0
      %1837 = vmatprep.subr.mxu0 0.0
      %1838 = vmatpush1.msra.mxu0 %v1802
      %1839 = vmatprep.subr.mxu0 0.0
      %1840 = vmatpush2.msra.mxu0 0.0
      %1841 = vmatprep.subr.mxu0 0.0
      %1842 = vmatpush2.msra.mxu0 0.0
      %1843 = vmatprep.subr.mxu0 0.0
      %1844 = vmatpush2.msra.mxu0 0.0
      %1845 = vmatprep.subr.mxu0 0.0
      %1846 = vmatpush2.msra.mxu0 0.0
      %1847 = vmatprep.subr.mxu0 0.0
      %1848 = vmatpush2.msra.mxu0 0.0
      %1849 = vmatprep.subr.mxu0 0.0
      %1850 = vmatpush2.msra.mxu0 0.0
      %1851 = vmatprep.subr.mxu0 0.0
      %1852 = vmatpush2.msra.mxu0 0.0
      %1853 = vmatprep.subr.mxu0 0.0
      %1854 = vmatpush2.msra.mxu0 0.0
      %1855 = vmatprep.subr.mxu0 0.0
      %1856 = vmatpush2.msra.mxu0 0.0
      %1857 = vmatprep.subr.mxu0 0.0
      %1858 = vmatpush2.msra.mxu0 0.0
      %1859 = vmatprep.subr.mxu0 0.0
      %1860 = vmatpush2.msra.mxu0 0.0
      %1861 = vmatprep.subr.mxu0 0.0
      %1862 = vmatpush2.msra.mxu0 0.0
      %1863 = vmatprep.subr.mxu0 0.0
      %1864 = vmatpush2.msra.mxu0 0.0
      %1865 = vmatprep.subr.mxu0 0.0
      %1866 = vmatpush2.msra.mxu0 0.0
      %1867 = vmatprep.subr.mxu0 0.0
      %1868 = vmatpush2.msra.mxu0 0.0
      %1869 = vmatprep.subr.mxu0 0.0
      %1870 = vmatpush2.msra.mxu0 0.0
      %1871 = vmatprep.mubr.f32.mxu0 0.0
      %1872 = vmatmul.mubr.f32.gmra.mxu0 %v1805
      %v1873 = vpop.f32.mrf.mxu0
      %v1874 = vadd.f32 0.0, %v1873
      %v1875 = vpop.f32.mrf.mxu0
      %1876 = vdwg.mxu0
      %1877 = vrot.lane.b32.xlu0 %v834, 64
      %v1878 = vpop.permute.xlu0 %1877
      %v1881 = vsel %vm855, %v1569, 0
      %1883 = vmatprep.subr.mxu0 0.0
      %1884 = vmatpush1.msra.mxu0 0.0
      %1885 = vmatprep.subr.mxu0 0.0
      %1886 = vmatpush1.msra.mxu0 0.0
      %1887 = vmatprep.subr.mxu0 0.0
      %1888 = vmatpush1.msra.mxu0 0.0
      %1889 = vmatprep.subr.mxu0 0.0
      %1890 = vmatpush1.msra.mxu0 0.0
      %1891 = vmatprep.subr.mxu0 0.0
      %1892 = vmatpush1.msra.mxu0 0.0
      %1893 = vmatprep.subr.mxu0 0.0
      %1894 = vmatpush1.msra.mxu0 0.0
      %1895 = vmatprep.subr.mxu0 0.0
      %1896 = vmatpush1.msra.mxu0 0.0
      %1897 = vmatprep.subr.mxu0 0.0
      %1898 = vmatpush1.msra.mxu0 0.0
      %1899 = vmatprep.subr.mxu0 0.0
      %1900 = vmatpush1.msra.mxu0 0.0
      %1901 = vmatprep.subr.mxu0 0.0
      %1902 = vmatpush1.msra.mxu0 0.0
      %1903 = vmatprep.subr.mxu0 0.0
      %1904 = vmatpush1.msra.mxu0 0.0
      %1905 = vmatprep.subr.mxu0 0.0
      %1906 = vmatpush1.msra.mxu0 0.0
      %1907 = vmatprep.subr.mxu0 0.0
      %1908 = vmatpush1.msra.mxu0 0.0
      %1909 = vmatprep.subr.mxu0 0.0
      %1910 = vmatpush1.msra.mxu0 0.0
      %1911 = vmatprep.subr.mxu0 0.0
      %1912 = vmatpush1.msra.mxu0 0.0
      %1913 = vmatprep.subr.mxu0 0.0
      %1914 = vmatpush1.msra.mxu0 %v1878
      %1915 = vmatprep.subr.mxu0 0.0
      %1916 = vmatpush2.msra.mxu0 0.0
      %1917 = vmatprep.subr.mxu0 0.0
      %1918 = vmatpush2.msra.mxu0 0.0
      %1919 = vmatprep.subr.mxu0 0.0
      %1920 = vmatpush2.msra.mxu0 0.0
      %1921 = vmatprep.subr.mxu0 0.0
      %1922 = vmatpush2.msra.mxu0 0.0
      %1923 = vmatprep.subr.mxu0 0.0
      %1924 = vmatpush2.msra.mxu0 0.0
      %1925 = vmatprep.subr.mxu0 0.0
      %1926 = vmatpush2.msra.mxu0 0.0
      %1927 = vmatprep.subr.mxu0 0.0
      %1928 = vmatpush2.msra.mxu0 0.0
      %1929 = vmatprep.subr.mxu0 0.0
      %1930 = vmatpush2.msra.mxu0 0.0
      %1931 = vmatprep.subr.mxu0 0.0
      %1932 = vmatpush2.msra.mxu0 0.0
      %1933 = vmatprep.subr.mxu0 0.0
      %1934 = vmatpush2.msra.mxu0 0.0
      %1935 = vmatprep.subr.mxu0 0.0
      %1936 = vmatpush2.msra.mxu0 0.0
      %1937 = vmatprep.subr.mxu0 0.0
      %1938 = vmatpush2.msra.mxu0 0.0
      %1939 = vmatprep.subr.mxu0 0.0
      %1940 = vmatpush2.msra.mxu0 0.0
      %1941 = vmatprep.subr.mxu0 0.0
      %1942 = vmatpush2.msra.mxu0 0.0
      %1943 = vmatprep.subr.mxu0 0.0
      %1944 = vmatpush2.msra.mxu0 0.0
      %1945 = vmatprep.subr.mxu0 0.0
      %1946 = vmatpush2.msra.mxu0 0.0
      %1947 = vmatprep.mubr.f32.mxu0 0.0
      %1948 = vmatmul.mubr.f32.gmra.mxu0 %v1881
      %v1949 = vpop.f32.mrf.mxu0
      %v1950 = vadd.f32 0.0, %v1949
      %v1951 = vpop.f32.mrf.mxu0
      %1952 = vdwg.mxu0
      %1953 = vrot.lane.b32.xlu0 %v839, 64
      %v1954 = vpop.permute.xlu0 %1953
      %v1957 = vsel %vm855, %v1570, 0
      %1959 = vmatprep.subr.mxu0 0.0
      %1960 = vmatpush1.msra.mxu0 0.0
      %1961 = vmatprep.subr.mxu0 0.0
      %1962 = vmatpush1.msra.mxu0 0.0
      %1963 = vmatprep.subr.mxu0 0.0
      %1964 = vmatpush1.msra.mxu0 0.0
      %1965 = vmatprep.subr.mxu0 0.0
      %1966 = vmatpush1.msra.mxu0 0.0
      %1967 = vmatprep.subr.mxu0 0.0
      %1968 = vmatpush1.msra.mxu0 0.0
      %1969 = vmatprep.subr.mxu0 0.0
      %1970 = vmatpush1.msra.mxu0 0.0
      %1971 = vmatprep.subr.mxu0 0.0
      %1972 = vmatpush1.msra.mxu0 0.0
      %1973 = vmatprep.subr.mxu0 0.0
      %1974 = vmatpush1.msra.mxu0 0.0
      %1975 = vmatprep.subr.mxu0 0.0
      %1976 = vmatpush1.msra.mxu0 0.0
      %1977 = vmatprep.subr.mxu0 0.0
      %1978 = vmatpush1.msra.mxu0 0.0
      %1979 = vmatprep.subr.mxu0 0.0
      %1980 = vmatpush1.msra.mxu0 0.0
      %1981 = vmatprep.subr.mxu0 0.0
      %1982 = vmatpush1.msra.mxu0 0.0
      %1983 = vmatprep.subr.mxu0 0.0
      %1984 = vmatpush1.msra.mxu0 0.0
      %1985 = vmatprep.subr.mxu0 0.0
      %1986 = vmatpush1.msra.mxu0 0.0
      %1987 = vmatprep.subr.mxu0 0.0
      %1988 = vmatpush1.msra.mxu0 0.0
      %1989 = vmatprep.subr.mxu0 0.0
      %1990 = vmatpush1.msra.mxu0 %v1954
      %1991 = vmatprep.subr.mxu0 0.0
      %1992 = vmatpush2.msra.mxu0 0.0
      %1993 = vmatprep.subr.mxu0 0.0
      %1994 = vmatpush2.msra.mxu0 0.0
      %1995 = vmatprep.subr.mxu0 0.0
      %1996 = vmatpush2.msra.mxu0 0.0
      %1997 = vmatprep.subr.mxu0 0.0
      %1998 = vmatpush2.msra.mxu0 0.0
      %1999 = vmatprep.subr.mxu0 0.0
      %2000 = vmatpush2.msra.mxu0 0.0
      %2001 = vmatprep.subr.mxu0 0.0
      %2002 = vmatpush2.msra.mxu0 0.0
      %2003 = vmatprep.subr.mxu0 0.0
      %2004 = vmatpush2.msra.mxu0 0.0
      %2005 = vmatprep.subr.mxu0 0.0
      %2006 = vmatpush2.msra.mxu0 0.0
      %2007 = vmatprep.subr.mxu0 0.0
      %2008 = vmatpush2.msra.mxu0 0.0
      %2009 = vmatprep.subr.mxu0 0.0
      %2010 = vmatpush2.msra.mxu0 0.0
      %2011 = vmatprep.subr.mxu0 0.0
      %2012 = vmatpush2.msra.mxu0 0.0
      %2013 = vmatprep.subr.mxu0 0.0
      %2014 = vmatpush2.msra.mxu0 0.0
      %2015 = vmatprep.subr.mxu0 0.0
      %2016 = vmatpush2.msra.mxu0 0.0
      %2017 = vmatprep.subr.mxu0 0.0
      %2018 = vmatpush2.msra.mxu0 0.0
      %2019 = vmatprep.subr.mxu0 0.0
      %2020 = vmatpush2.msra.mxu0 0.0
      %2021 = vmatprep.subr.mxu0 0.0
      %2022 = vmatpush2.msra.mxu0 0.0
      %2023 = vmatprep.mubr.f32.mxu0 0.0
      %2024 = vmatmul.mubr.f32.gmra.mxu0 %v1957
      %v2025 = vpop.f32.mrf.mxu0
      %v2026 = vadd.f32 0.0, %v2025
      %v2027 = vpop.f32.mrf.mxu0
      %2028 = vdwg.mxu0
      %2029 = vrot.lane.b32.xlu0 %v844, 64
      %v2030 = vpop.permute.xlu0 %2029
      %v2033 = vsel %vm855, %v1571, 0
      %2035 = vmatprep.subr.mxu0 0.0
      %2036 = vmatpush1.msra.mxu0 0.0
      %2037 = vmatprep.subr.mxu0 0.0
      %2038 = vmatpush1.msra.mxu0 0.0
      %2039 = vmatprep.subr.mxu0 0.0
      %2040 = vmatpush1.msra.mxu0 0.0
      %2041 = vmatprep.subr.mxu0 0.0
      %2042 = vmatpush1.msra.mxu0 0.0
      %2043 = vmatprep.subr.mxu0 0.0
      %2044 = vmatpush1.msra.mxu0 0.0
      %2045 = vmatprep.subr.mxu0 0.0
      %2046 = vmatpush1.msra.mxu0 0.0
      %2047 = vmatprep.subr.mxu0 0.0
      %2048 = vmatpush1.msra.mxu0 0.0
      %2049 = vmatprep.subr.mxu0 0.0
      %2050 = vmatpush1.msra.mxu0 0.0
      %2051 = vmatprep.subr.mxu0 0.0
      %2052 = vmatpush1.msra.mxu0 0.0
      %2053 = vmatprep.subr.mxu0 0.0
      %2054 = vmatpush1.msra.mxu0 0.0
      %2055 = vmatprep.subr.mxu0 0.0
      %2056 = vmatpush1.msra.mxu0 0.0
      %2057 = vmatprep.subr.mxu0 0.0
      %2058 = vmatpush1.msra.mxu0 0.0
      %2059 = vmatprep.subr.mxu0 0.0
      %2060 = vmatpush1.msra.mxu0 0.0
      %2061 = vmatprep.subr.mxu0 0.0
      %2062 = vmatpush1.msra.mxu0 0.0
      %2063 = vmatprep.subr.mxu0 0.0
      %2064 = vmatpush1.msra.mxu0 0.0
      %2065 = vmatprep.subr.mxu0 0.0
      %2066 = vmatpush1.msra.mxu0 %v2030
      %2067 = vmatprep.subr.mxu0 0.0
      %2068 = vmatpush2.msra.mxu0 0.0
      %2069 = vmatprep.subr.mxu0 0.0
      %2070 = vmatpush2.msra.mxu0 0.0
      %2071 = vmatprep.subr.mxu0 0.0
      %2072 = vmatpush2.msra.mxu0 0.0
      %2073 = vmatprep.subr.mxu0 0.0
      %2074 = vmatpush2.msra.mxu0 0.0
      %2075 = vmatprep.subr.mxu0 0.0
      %2076 = vmatpush2.msra.mxu0 0.0
      %2077 = vmatprep.subr.mxu0 0.0
      %2078 = vmatpush2.msra.mxu0 0.0
      %2079 = vmatprep.subr.mxu0 0.0
      %2080 = vmatpush2.msra.mxu0 0.0
      %2081 = vmatprep.subr.mxu0 0.0
      %2082 = vmatpush2.msra.mxu0 0.0
      %2083 = vmatprep.subr.mxu0 0.0
      %2084 = vmatpush2.msra.mxu0 0.0
      %2085 = vmatprep.subr.mxu0 0.0
      %2086 = vmatpush2.msra.mxu0 0.0
      %2087 = vmatprep.subr.mxu0 0.0
      %2088 = vmatpush2.msra.mxu0 0.0
      %2089 = vmatprep.subr.mxu0 0.0
      %2090 = vmatpush2.msra.mxu0 0.0
      %2091 = vmatprep.subr.mxu0 0.0
      %2092 = vmatpush2.msra.mxu0 0.0
      %2093 = vmatprep.subr.mxu0 0.0
      %2094 = vmatpush2.msra.mxu0 0.0
      %2095 = vmatprep.subr.mxu0 0.0
      %2096 = vmatpush2.msra.mxu0 0.0
      %2097 = vmatprep.subr.mxu0 0.0
      %2098 = vmatpush2.msra.mxu0 0.0
      %2099 = vmatprep.mubr.f32.mxu0 0.0
      %2100 = vmatmul.mubr.f32.gmra.mxu0 %v2033
      %v2101 = vpop.f32.mrf.mxu0
      %v2102 = vadd.f32 0.0, %v2101
      %v2103 = vpop.f32.mrf.mxu0
      %2104 = vdwg.mxu0
      %2105 = vrot.lane.b32.xlu0 %v849, 64
      %v2106 = vpop.permute.xlu0 %2105
      %v2109 = vsel %vm855, %v1572, 0
      %2111 = vmatprep.subr.mxu0 0.0
      %2112 = vmatpush1.msra.mxu0 0.0
      %2113 = vmatprep.subr.mxu0 0.0
      %2114 = vmatpush1.msra.mxu0 0.0
      %2115 = vmatprep.subr.mxu0 0.0
      %2116 = vmatpush1.msra.mxu0 0.0
      %2117 = vmatprep.subr.mxu0 0.0
      %2118 = vmatpush1.msra.mxu0 0.0
      %2119 = vmatprep.subr.mxu0 0.0
      %2120 = vmatpush1.msra.mxu0 0.0
      %2121 = vmatprep.subr.mxu0 0.0
      %2122 = vmatpush1.msra.mxu0 0.0
      %2123 = vmatprep.subr.mxu0 0.0
      %2124 = vmatpush1.msra.mxu0 0.0
      %2125 = vmatprep.subr.mxu0 0.0
      %2126 = vmatpush1.msra.mxu0 0.0
      %2127 = vmatprep.subr.mxu0 0.0
      %2128 = vmatpush1.msra.mxu0 0.0
      %2129 = vmatprep.subr.mxu0 0.0
      %2130 = vmatpush1.msra.mxu0 0.0
      %2131 = vmatprep.subr.mxu0 0.0
      %2132 = vmatpush1.msra.mxu0 0.0
      %2133 = vmatprep.subr.mxu0 0.0
      %2134 = vmatpush1.msra.mxu0 0.0
      %2135 = vmatprep.subr.mxu0 0.0
      %2136 = vmatpush1.msra.mxu0 0.0
      %2137 = vmatprep.subr.mxu0 0.0
      %2138 = vmatpush1.msra.mxu0 0.0
      %2139 = vmatprep.subr.mxu0 0.0
      %2140 = vmatpush1.msra.mxu0 0.0
      %2141 = vmatprep.subr.mxu0 0.0
      %2142 = vmatpush1.msra.mxu0 %v2106
      %2143 = vmatprep.subr.mxu0 0.0
      %2144 = vmatpush2.msra.mxu0 0.0
      %2145 = vmatprep.subr.mxu0 0.0
      %2146 = vmatpush2.msra.mxu0 0.0
      %2147 = vmatprep.subr.mxu0 0.0
      %2148 = vmatpush2.msra.mxu0 0.0
      %2149 = vmatprep.subr.mxu0 0.0
      %2150 = vmatpush2.msra.mxu0 0.0
      %2151 = vmatprep.subr.mxu0 0.0
      %2152 = vmatpush2.msra.mxu0 0.0
      %2153 = vmatprep.subr.mxu0 0.0
      %2154 = vmatpush2.msra.mxu0 0.0
      %2155 = vmatprep.subr.mxu0 0.0
      %2156 = vmatpush2.msra.mxu0 0.0
      %2157 = vmatprep.subr.mxu0 0.0
      %2158 = vmatpush2.msra.mxu0 0.0
      %2159 = vmatprep.subr.mxu0 0.0
      %2160 = vmatpush2.msra.mxu0 0.0
      %2161 = vmatprep.subr.mxu0 0.0
      %2162 = vmatpush2.msra.mxu0 0.0
      %2163 = vmatprep.subr.mxu0 0.0
      %2164 = vmatpush2.msra.mxu0 0.0
      %2165 = vmatprep.subr.mxu0 0.0
      %2166 = vmatpush2.msra.mxu0 0.0
      %2167 = vmatprep.subr.mxu0 0.0
      %2168 = vmatpush2.msra.mxu0 0.0
      %2169 = vmatprep.subr.mxu0 0.0
      %2170 = vmatpush2.msra.mxu0 0.0
      %2171 = vmatprep.subr.mxu0 0.0
      %2172 = vmatpush2.msra.mxu0 0.0
      %2173 = vmatprep.subr.mxu0 0.0
      %2174 = vmatpush2.msra.mxu0 0.0
      %2175 = vmatprep.mubr.f32.mxu0 0.0
      %2176 = vmatmul.mubr.f32.gmra.mxu0 %v2109
      %v2177 = vpop.f32.mrf.mxu0
      %v2178 = vadd.f32 0.0, %v2177
      %v2179 = vpop.f32.mrf.mxu0
      %2180 = vdwg.mxu0
      %v2181 = vld [vmem:[%s636] sm:$0xff]
      %2182 = vrot.lane.b32.xlu0 %v814, 120
      %v2183 = vpop.permute.xlu0 %2182
      %2184 = vrot.lane.b32.xlu0 %v814, 88
      %v2185 = vpop.permute.xlu0 %2184
      %v2186 = vsel %vm855, %v2183, 0
      %v2188 = vsel %vm855, %v2185, 0
      %2190 = vmatprep.subr.mxu0 0.0
      %2191 = vmatpush1.xpose.msra.mxu0 0.0
      %2192 = vmatprep.subr.mxu0 0.0
      %2193 = vmatpush1.xpose.msra.mxu0 0.0
      %2194 = vmatprep.subr.mxu0 0.0
      %2195 = vmatpush1.xpose.msra.mxu0 0.0
      %2196 = vmatprep.subr.mxu0 0.0
      %2197 = vmatpush1.xpose.msra.mxu0 0.0
      %2198 = vmatprep.subr.mxu0 0.0
      %2199 = vmatpush1.xpose.msra.mxu0 0.0
      %2200 = vmatprep.subr.mxu0 0.0
      %2201 = vmatpush1.xpose.msra.mxu0 0.0
      %2202 = vmatprep.subr.mxu0 0.0
      %2203 = vmatpush1.xpose.msra.mxu0 0.0
      %2204 = vmatprep.subr.mxu0 0.0
      %2205 = vmatpush1.xpose.msra.mxu0 0.0
      %2206 = vmatprep.subr.mxu0 0.0
      %2207 = vmatpush1.xpose.msra.mxu0 0.0
      %2208 = vmatprep.subr.mxu0 0.0
      %2209 = vmatpush1.xpose.msra.mxu0 0.0
      %2210 = vmatprep.subr.mxu0 0.0
      %2211 = vmatpush1.xpose.msra.mxu0 0.0
      %2212 = vmatprep.subr.mxu0 0.0
      %2213 = vmatpush1.xpose.msra.mxu0 0.0
      %2214 = vmatprep.subr.mxu0 0.0
      %2215 = vmatpush1.xpose.msra.mxu0 0.0
      %2216 = vmatprep.subr.mxu0 0.0
      %2217 = vmatpush1.xpose.msra.mxu0 0.0
      %2218 = vmatprep.subr.mxu0 0.0
      %2219 = vmatpush1.xpose.msra.mxu0 0.0
      %2220 = vmatprep.subr.mxu0 0.0
      %2221 = vmatpush1.xpose.msra.mxu0 %v2188
      %2222 = vmatprep.subr.mxu0 0.0
      %2223 = vmatpush2.xpose.msra.mxu0 0.0
      %2224 = vmatprep.subr.mxu0 0.0
      %2225 = vmatpush2.xpose.msra.mxu0 0.0
      %2226 = vmatprep.subr.mxu0 0.0
      %2227 = vmatpush2.xpose.msra.mxu0 0.0
      %2228 = vmatprep.subr.mxu0 0.0
      %2229 = vmatpush2.xpose.msra.mxu0 0.0
      %2230 = vmatprep.subr.mxu0 0.0
      %2231 = vmatpush2.xpose.msra.mxu0 0.0
      %2232 = vmatprep.subr.mxu0 0.0
      %2233 = vmatpush2.xpose.msra.mxu0 0.0
      %2234 = vmatprep.subr.mxu0 0.0
      %2235 = vmatpush2.xpose.msra.mxu0 0.0
      %2236 = vmatprep.subr.mxu0 0.0
      %2237 = vmatpush2.xpose.msra.mxu0 0.0
      %2238 = vmatprep.subr.mxu0 0.0
      %2239 = vmatpush2.xpose.msra.mxu0 0.0
      %2240 = vmatprep.subr.mxu0 0.0
      %2241 = vmatpush2.xpose.msra.mxu0 0.0
      %2242 = vmatprep.subr.mxu0 0.0
      %2243 = vmatpush2.xpose.msra.mxu0 0.0
      %2244 = vmatprep.subr.mxu0 0.0
      %2245 = vmatpush2.xpose.msra.mxu0 0.0
      %2246 = vmatprep.subr.mxu0 0.0
      %2247 = vmatpush2.xpose.msra.mxu0 0.0
      %2248 = vmatprep.subr.mxu0 0.0
      %2249 = vmatpush2.xpose.msra.mxu0 0.0
      %2250 = vmatprep.subr.mxu0 0.0
      %2251 = vmatpush2.xpose.msra.mxu0 0.0
      %2252 = vmatprep.subr.mxu0 0.0
      %2253 = vmatpush2.xpose.msra.mxu0 0.0
      %2254 = vmatprep.mubr.f32.mxu0 0.0
      %2255 = vmatmul.mubr.f32.gmra.mxu0 %v2186
      %v2256 = vpop.f32.mrf.mxu0
      %v2257 = vadd.f32 0.0, %v2256
      %v2258 = vpop.f32.mrf.mxu0
      %2259 = vdwg.mxu0
      %2260 = vrot.lane.b32.xlu0 %v819, 120
      %v2261 = vpop.permute.xlu0 %2260
      %2262 = vrot.lane.b32.xlu0 %v819, 88
      %v2263 = vpop.permute.xlu0 %2262
      %v2264 = vsel %vm855, %v2261, 0
      %v2266 = vsel %vm855, %v2263, 0
      %2268 = vmatprep.subr.mxu0 0.0
      %2269 = vmatpush1.xpose.msra.mxu0 0.0
      %2270 = vmatprep.subr.mxu0 0.0
      %2271 = vmatpush1.xpose.msra.mxu0 0.0
      %2272 = vmatprep.subr.mxu0 0.0
      %2273 = vmatpush1.xpose.msra.mxu0 0.0
      %2274 = vmatprep.subr.mxu0 0.0
      %2275 = vmatpush1.xpose.msra.mxu0 0.0
      %2276 = vmatprep.subr.mxu0 0.0
      %2277 = vmatpush1.xpose.msra.mxu0 0.0
      %2278 = vmatprep.subr.mxu0 0.0
      %2279 = vmatpush1.xpose.msra.mxu0 0.0
      %2280 = vmatprep.subr.mxu0 0.0
      %2281 = vmatpush1.xpose.msra.mxu0 0.0
      %2282 = vmatprep.subr.mxu0 0.0
      %2283 = vmatpush1.xpose.msra.mxu0 0.0
      %2284 = vmatprep.subr.mxu0 0.0
      %2285 = vmatpush1.xpose.msra.mxu0 0.0
      %2286 = vmatprep.subr.mxu0 0.0
      %2287 = vmatpush1.xpose.msra.mxu0 0.0
      %2288 = vmatprep.subr.mxu0 0.0
      %2289 = vmatpush1.xpose.msra.mxu0 0.0
      %2290 = vmatprep.subr.mxu0 0.0
      %2291 = vmatpush1.xpose.msra.mxu0 0.0
      %2292 = vmatprep.subr.mxu0 0.0
      %2293 = vmatpush1.xpose.msra.mxu0 0.0
      %2294 = vmatprep.subr.mxu0 0.0
      %2295 = vmatpush1.xpose.msra.mxu0 0.0
      %2296 = vmatprep.subr.mxu0 0.0
      %2297 = vmatpush1.xpose.msra.mxu0 0.0
      %2298 = vmatprep.subr.mxu0 0.0
      %2299 = vmatpush1.xpose.msra.mxu0 %v2266
      %2300 = vmatprep.subr.mxu0 0.0
      %2301 = vmatpush2.xpose.msra.mxu0 0.0
      %2302 = vmatprep.subr.mxu0 0.0
      %2303 = vmatpush2.xpose.msra.mxu0 0.0
      %2304 = vmatprep.subr.mxu0 0.0
      %2305 = vmatpush2.xpose.msra.mxu0 0.0
      %2306 = vmatprep.subr.mxu0 0.0
      %2307 = vmatpush2.xpose.msra.mxu0 0.0
      %2308 = vmatprep.subr.mxu0 0.0
      %2309 = vmatpush2.xpose.msra.mxu0 0.0
      %2310 = vmatprep.subr.mxu0 0.0
      %2311 = vmatpush2.xpose.msra.mxu0 0.0
      %2312 = vmatprep.subr.mxu0 0.0
      %2313 = vmatpush2.xpose.msra.mxu0 0.0
      %2314 = vmatprep.subr.mxu0 0.0
      %2315 = vmatpush2.xpose.msra.mxu0 0.0
      %2316 = vmatprep.subr.mxu0 0.0
      %2317 = vmatpush2.xpose.msra.mxu0 0.0
      %2318 = vmatprep.subr.mxu0 0.0
      %2319 = vmatpush2.xpose.msra.mxu0 0.0
      %2320 = vmatprep.subr.mxu0 0.0
      %2321 = vmatpush2.xpose.msra.mxu0 0.0
      %2322 = vmatprep.subr.mxu0 0.0
      %2323 = vmatpush2.xpose.msra.mxu0 0.0
      %2324 = vmatprep.subr.mxu0 0.0
      %2325 = vmatpush2.xpose.msra.mxu0 0.0
      %2326 = vmatprep.subr.mxu0 0.0
      %2327 = vmatpush2.xpose.msra.mxu0 0.0
      %2328 = vmatprep.subr.mxu0 0.0
      %2329 = vmatpush2.xpose.msra.mxu0 0.0
      %2330 = vmatprep.subr.mxu0 0.0
      %2331 = vmatpush2.xpose.msra.mxu0 0.0
      %2332 = vmatprep.mubr.f32.mxu0 0.0
      %2333 = vmatmul.mubr.f32.gmra.mxu0 %v2264
      %v2334 = vpop.f32.mrf.mxu0
      %v2335 = vadd.f32 0.0, %v2334
      %v2336 = vpop.f32.mrf.mxu0
      %2337 = vdwg.mxu0
      %2338 = vrot.lane.b32.xlu0 %v824, 120
      %v2339 = vpop.permute.xlu0 %2338
      %2340 = vrot.lane.b32.xlu0 %v824, 88
      %v2341 = vpop.permute.xlu0 %2340
      %v2342 = vsel %vm855, %v2339, 0
      %v2344 = vsel %vm855, %v2341, 0
      %2346 = vmatprep.subr.mxu0 0.0
      %2347 = vmatpush1.xpose.msra.mxu0 0.0
      %2348 = vmatprep.subr.mxu0 0.0
      %2349 = vmatpush1.xpose.msra.mxu0 0.0
      %2350 = vmatprep.subr.mxu0 0.0
      %2351 = vmatpush1.xpose.msra.mxu0 0.0
      %2352 = vmatprep.subr.mxu0 0.0
      %2353 = vmatpush1.xpose.msra.mxu0 0.0
      %2354 = vmatprep.subr.mxu0 0.0
      %2355 = vmatpush1.xpose.msra.mxu0 0.0
      %2356 = vmatprep.subr.mxu0 0.0
      %2357 = vmatpush1.xpose.msra.mxu0 0.0
      %2358 = vmatprep.subr.mxu0 0.0
      %2359 = vmatpush1.xpose.msra.mxu0 0.0
      %2360 = vmatprep.subr.mxu0 0.0
      %2361 = vmatpush1.xpose.msra.mxu0 0.0
      %2362 = vmatprep.subr.mxu0 0.0
      %2363 = vmatpush1.xpose.msra.mxu0 0.0
      %2364 = vmatprep.subr.mxu0 0.0
      %2365 = vmatpush1.xpose.msra.mxu0 0.0
      %2366 = vmatprep.subr.mxu0 0.0
      %2367 = vmatpush1.xpose.msra.mxu0 0.0
      %2368 = vmatprep.subr.mxu0 0.0
      %2369 = vmatpush1.xpose.msra.mxu0 0.0
      %2370 = vmatprep.subr.mxu0 0.0
      %2371 = vmatpush1.xpose.msra.mxu0 0.0
      %2372 = vmatprep.subr.mxu0 0.0
      %2373 = vmatpush1.xpose.msra.mxu0 0.0
      %2374 = vmatprep.subr.mxu0 0.0
      %2375 = vmatpush1.xpose.msra.mxu0 0.0
      %2376 = vmatprep.subr.mxu0 0.0
      %2377 = vmatpush1.xpose.msra.mxu0 %v2344
      %2378 = vmatprep.subr.mxu0 0.0
      %2379 = vmatpush2.xpose.msra.mxu0 0.0
      %2380 = vmatprep.subr.mxu0 0.0
      %2381 = vmatpush2.xpose.msra.mxu0 0.0
      %2382 = vmatprep.subr.mxu0 0.0
      %2383 = vmatpush2.xpose.msra.mxu0 0.0
      %2384 = vmatprep.subr.mxu0 0.0
      %2385 = vmatpush2.xpose.msra.mxu0 0.0
      %2386 = vmatprep.subr.mxu0 0.0
      %2387 = vmatpush2.xpose.msra.mxu0 0.0
      %2388 = vmatprep.subr.mxu0 0.0
      %2389 = vmatpush2.xpose.msra.mxu0 0.0
      %2390 = vmatprep.subr.mxu0 0.0
      %2391 = vmatpush2.xpose.msra.mxu0 0.0
      %2392 = vmatprep.subr.mxu0 0.0
      %2393 = vmatpush2.xpose.msra.mxu0 0.0
      %2394 = vmatprep.subr.mxu0 0.0
      %2395 = vmatpush2.xpose.msra.mxu0 0.0
      %2396 = vmatprep.subr.mxu0 0.0
      %2397 = vmatpush2.xpose.msra.mxu0 0.0
      %2398 = vmatprep.subr.mxu0 0.0
      %2399 = vmatpush2.xpose.msra.mxu0 0.0
      %2400 = vmatprep.subr.mxu0 0.0
      %2401 = vmatpush2.xpose.msra.mxu0 0.0
      %2402 = vmatprep.subr.mxu0 0.0
      %2403 = vmatpush2.xpose.msra.mxu0 0.0
      %2404 = vmatprep.subr.mxu0 0.0
      %2405 = vmatpush2.xpose.msra.mxu0 0.0
      %2406 = vmatprep.subr.mxu0 0.0
      %2407 = vmatpush2.xpose.msra.mxu0 0.0
      %2408 = vmatprep.subr.mxu0 0.0
      %2409 = vmatpush2.xpose.msra.mxu0 0.0
      %2410 = vmatprep.mubr.f32.mxu0 0.0
      %2411 = vmatmul.mubr.f32.gmra.mxu0 %v2342
      %v2412 = vpop.f32.mrf.mxu0
      %v2413 = vadd.f32 0.0, %v2412
      %v2414 = vpop.f32.mrf.mxu0
      %2415 = vdwg.mxu0
      %2416 = vrot.lane.b32.xlu0 %v829, 120
      %v2417 = vpop.permute.xlu0 %2416
      %2418 = vrot.lane.b32.xlu0 %v829, 88
      %v2419 = vpop.permute.xlu0 %2418
      %v2420 = vsel %vm855, %v2417, 0
      %v2422 = vsel %vm855, %v2419, 0
      %2424 = vmatprep.subr.mxu0 0.0
      %2425 = vmatpush1.xpose.msra.mxu0 0.0
      %2426 = vmatprep.subr.mxu0 0.0
      %2427 = vmatpush1.xpose.msra.mxu0 0.0
      %2428 = vmatprep.subr.mxu0 0.0
      %2429 = vmatpush1.xpose.msra.mxu0 0.0
      %2430 = vmatprep.subr.mxu0 0.0
      %2431 = vmatpush1.xpose.msra.mxu0 0.0
      %2432 = vmatprep.subr.mxu0 0.0
      %2433 = vmatpush1.xpose.msra.mxu0 0.0
      %2434 = vmatprep.subr.mxu0 0.0
      %2435 = vmatpush1.xpose.msra.mxu0 0.0
      %2436 = vmatprep.subr.mxu0 0.0
      %2437 = vmatpush1.xpose.msra.mxu0 0.0
      %2438 = vmatprep.subr.mxu0 0.0
      %2439 = vmatpush1.xpose.msra.mxu0 0.0
      %2440 = vmatprep.subr.mxu0 0.0
      %2441 = vmatpush1.xpose.msra.mxu0 0.0
      %2442 = vmatprep.subr.mxu0 0.0
      %2443 = vmatpush1.xpose.msra.mxu0 0.0
      %2444 = vmatprep.subr.mxu0 0.0
      %2445 = vmatpush1.xpose.msra.mxu0 0.0
      %2446 = vmatprep.subr.mxu0 0.0
      %2447 = vmatpush1.xpose.msra.mxu0 0.0
      %2448 = vmatprep.subr.mxu0 0.0
      %2449 = vmatpush1.xpose.msra.mxu0 0.0
      %2450 = vmatprep.subr.mxu0 0.0
      %2451 = vmatpush1.xpose.msra.mxu0 0.0
      %2452 = vmatprep.subr.mxu0 0.0
      %2453 = vmatpush1.xpose.msra.mxu0 0.0
      %2454 = vmatprep.subr.mxu0 0.0
      %2455 = vmatpush1.xpose.msra.mxu0 %v2422
      %2456 = vmatprep.subr.mxu0 0.0
      %2457 = vmatpush2.xpose.msra.mxu0 0.0
      %2458 = vmatprep.subr.mxu0 0.0
      %2459 = vmatpush2.xpose.msra.mxu0 0.0
      %2460 = vmatprep.subr.mxu0 0.0
      %2461 = vmatpush2.xpose.msra.mxu0 0.0
      %2462 = vmatprep.subr.mxu0 0.0
      %2463 = vmatpush2.xpose.msra.mxu0 0.0
      %2464 = vmatprep.subr.mxu0 0.0
      %2465 = vmatpush2.xpose.msra.mxu0 0.0
      %2466 = vmatprep.subr.mxu0 0.0
      %2467 = vmatpush2.xpose.msra.mxu0 0.0
      %2468 = vmatprep.subr.mxu0 0.0
      %2469 = vmatpush2.xpose.msra.mxu0 0.0
      %2470 = vmatprep.subr.mxu0 0.0
      %2471 = vmatpush2.xpose.msra.mxu0 0.0
      %2472 = vmatprep.subr.mxu0 0.0
      %2473 = vmatpush2.xpose.msra.mxu0 0.0
      %2474 = vmatprep.subr.mxu0 0.0
      %2475 = vmatpush2.xpose.msra.mxu0 0.0
      %2476 = vmatprep.subr.mxu0 0.0
      %2477 = vmatpush2.xpose.msra.mxu0 0.0
      %2478 = vmatprep.subr.mxu0 0.0
      %2479 = vmatpush2.xpose.msra.mxu0 0.0
      %2480 = vmatprep.subr.mxu0 0.0
      %2481 = vmatpush2.xpose.msra.mxu0 0.0
      %2482 = vmatprep.subr.mxu0 0.0
      %2483 = vmatpush2.xpose.msra.mxu0 0.0
      %2484 = vmatprep.subr.mxu0 0.0
      %2485 = vmatpush2.xpose.msra.mxu0 0.0
      %2486 = vmatprep.subr.mxu0 0.0
      %2487 = vmatpush2.xpose.msra.mxu0 0.0
      %2488 = vmatprep.mubr.f32.mxu0 0.0
      %2489 = vmatmul.mubr.f32.gmra.mxu0 %v2420
      %v2490 = vpop.f32.mrf.mxu0
      %v2491 = vadd.f32 0.0, %v2490
      %v2492 = vpop.f32.mrf.mxu0
      %2493 = vdwg.mxu0
      %2494 = vrot.lane.b32.xlu0 %v834, 120
      %v2495 = vpop.permute.xlu0 %2494
      %2496 = vrot.lane.b32.xlu0 %v834, 88
      %v2497 = vpop.permute.xlu0 %2496
      %v2498 = vsel %vm855, %v2495, 0
      %v2500 = vsel %vm855, %v2497, 0
      %2502 = vmatprep.subr.mxu0 0.0
      %2503 = vmatpush1.xpose.msra.mxu0 0.0
      %2504 = vmatprep.subr.mxu0 0.0
      %2505 = vmatpush1.xpose.msra.mxu0 0.0
      %2506 = vmatprep.subr.mxu0 0.0
      %2507 = vmatpush1.xpose.msra.mxu0 0.0
      %2508 = vmatprep.subr.mxu0 0.0
      %2509 = vmatpush1.xpose.msra.mxu0 0.0
      %2510 = vmatprep.subr.mxu0 0.0
      %2511 = vmatpush1.xpose.msra.mxu0 0.0
      %2512 = vmatprep.subr.mxu0 0.0
      %2513 = vmatpush1.xpose.msra.mxu0 0.0
      %2514 = vmatprep.subr.mxu0 0.0
      %2515 = vmatpush1.xpose.msra.mxu0 0.0
      %2516 = vmatprep.subr.mxu0 0.0
      %2517 = vmatpush1.xpose.msra.mxu0 0.0
      %2518 = vmatprep.subr.mxu0 0.0
      %2519 = vmatpush1.xpose.msra.mxu0 0.0
      %2520 = vmatprep.subr.mxu0 0.0
      %2521 = vmatpush1.xpose.msra.mxu0 0.0
      %2522 = vmatprep.subr.mxu0 0.0
      %2523 = vmatpush1.xpose.msra.mxu0 0.0
      %2524 = vmatprep.subr.mxu0 0.0
      %2525 = vmatpush1.xpose.msra.mxu0 0.0
      %2526 = vmatprep.subr.mxu0 0.0
      %2527 = vmatpush1.xpose.msra.mxu0 0.0
      %2528 = vmatprep.subr.mxu0 0.0
      %2529 = vmatpush1.xpose.msra.mxu0 0.0
      %2530 = vmatprep.subr.mxu0 0.0
      %2531 = vmatpush1.xpose.msra.mxu0 0.0
      %2532 = vmatprep.subr.mxu0 0.0
      %2533 = vmatpush1.xpose.msra.mxu0 %v2500
      %2534 = vmatprep.subr.mxu0 0.0
      %2535 = vmatpush2.xpose.msra.mxu0 0.0
      %2536 = vmatprep.subr.mxu0 0.0
      %2537 = vmatpush2.xpose.msra.mxu0 0.0
      %2538 = vmatprep.subr.mxu0 0.0
      %2539 = vmatpush2.xpose.msra.mxu0 0.0
      %2540 = vmatprep.subr.mxu0 0.0
      %2541 = vmatpush2.xpose.msra.mxu0 0.0
      %2542 = vmatprep.subr.mxu0 0.0
      %2543 = vmatpush2.xpose.msra.mxu0 0.0
      %2544 = vmatprep.subr.mxu0 0.0
      %2545 = vmatpush2.xpose.msra.mxu0 0.0
      %2546 = vmatprep.subr.mxu0 0.0
      %2547 = vmatpush2.xpose.msra.mxu0 0.0
      %2548 = vmatprep.subr.mxu0 0.0
      %2549 = vmatpush2.xpose.msra.mxu0 0.0
      %2550 = vmatprep.subr.mxu0 0.0
      %2551 = vmatpush2.xpose.msra.mxu0 0.0
      %2552 = vmatprep.subr.mxu0 0.0
      %2553 = vmatpush2.xpose.msra.mxu0 0.0
      %2554 = vmatprep.subr.mxu0 0.0
      %2555 = vmatpush2.xpose.msra.mxu0 0.0
      %2556 = vmatprep.subr.mxu0 0.0
      %2557 = vmatpush2.xpose.msra.mxu0 0.0
      %2558 = vmatprep.subr.mxu0 0.0
      %2559 = vmatpush2.xpose.msra.mxu0 0.0
      %2560 = vmatprep.subr.mxu0 0.0
      %2561 = vmatpush2.xpose.msra.mxu0 0.0
      %2562 = vmatprep.subr.mxu0 0.0
      %2563 = vmatpush2.xpose.msra.mxu0 0.0
      %2564 = vmatprep.subr.mxu0 0.0
      %2565 = vmatpush2.xpose.msra.mxu0 0.0
      %2566 = vmatprep.mubr.f32.mxu0 0.0
      %2567 = vmatmul.mubr.f32.gmra.mxu0 %v2498
      %v2568 = vpop.f32.mrf.mxu0
      %v2569 = vadd.f32 0.0, %v2568
      %v2570 = vpop.f32.mrf.mxu0
      %2571 = vdwg.mxu0
      %2572 = vrot.lane.b32.xlu0 %v839, 120
      %v2573 = vpop.permute.xlu0 %2572
      %2574 = vrot.lane.b32.xlu0 %v839, 88
      %v2575 = vpop.permute.xlu0 %2574
      %v2576 = vsel %vm855, %v2573, 0
      %v2578 = vsel %vm855, %v2575, 0
      %2580 = vmatprep.subr.mxu0 0.0
      %2581 = vmatpush1.xpose.msra.mxu0 0.0
      %2582 = vmatprep.subr.mxu0 0.0
      %2583 = vmatpush1.xpose.msra.mxu0 0.0
      %2584 = vmatprep.subr.mxu0 0.0
      %2585 = vmatpush1.xpose.msra.mxu0 0.0
      %2586 = vmatprep.subr.mxu0 0.0
      %2587 = vmatpush1.xpose.msra.mxu0 0.0
      %2588 = vmatprep.subr.mxu0 0.0
      %2589 = vmatpush1.xpose.msra.mxu0 0.0
      %2590 = vmatprep.subr.mxu0 0.0
      %2591 = vmatpush1.xpose.msra.mxu0 0.0
      %2592 = vmatprep.subr.mxu0 0.0
      %2593 = vmatpush1.xpose.msra.mxu0 0.0
      %2594 = vmatprep.subr.mxu0 0.0
      %2595 = vmatpush1.xpose.msra.mxu0 0.0
      %2596 = vmatprep.subr.mxu0 0.0
      %2597 = vmatpush1.xpose.msra.mxu0 0.0
      %2598 = vmatprep.subr.mxu0 0.0
      %2599 = vmatpush1.xpose.msra.mxu0 0.0
      %2600 = vmatprep.subr.mxu0 0.0
      %2601 = vmatpush1.xpose.msra.mxu0 0.0
      %2602 = vmatprep.subr.mxu0 0.0
      %2603 = vmatpush1.xpose.msra.mxu0 0.0
      %2604 = vmatprep.subr.mxu0 0.0
      %2605 = vmatpush1.xpose.msra.mxu0 0.0
      %2606 = vmatprep.subr.mxu0 0.0
      %2607 = vmatpush1.xpose.msra.mxu0 0.0
      %2608 = vmatprep.subr.mxu0 0.0
      %2609 = vmatpush1.xpose.msra.mxu0 0.0
      %2610 = vmatprep.subr.mxu0 0.0
      %2611 = vmatpush1.xpose.msra.mxu0 %v2578
      %2612 = vmatprep.subr.mxu0 0.0
      %2613 = vmatpush2.xpose.msra.mxu0 0.0
      %2614 = vmatprep.subr.mxu0 0.0
      %2615 = vmatpush2.xpose.msra.mxu0 0.0
      %2616 = vmatprep.subr.mxu0 0.0
      %2617 = vmatpush2.xpose.msra.mxu0 0.0
      %2618 = vmatprep.subr.mxu0 0.0
      %2619 = vmatpush2.xpose.msra.mxu0 0.0
      %2620 = vmatprep.subr.mxu0 0.0
      %2621 = vmatpush2.xpose.msra.mxu0 0.0
      %2622 = vmatprep.subr.mxu0 0.0
      %2623 = vmatpush2.xpose.msra.mxu0 0.0
      %2624 = vmatprep.subr.mxu0 0.0
      %2625 = vmatpush2.xpose.msra.mxu0 0.0
      %2626 = vmatprep.subr.mxu0 0.0
      %2627 = vmatpush2.xpose.msra.mxu0 0.0
      %2628 = vmatprep.subr.mxu0 0.0
      %2629 = vmatpush2.xpose.msra.mxu0 0.0
      %2630 = vmatprep.subr.mxu0 0.0
      %2631 = vmatpush2.xpose.msra.mxu0 0.0
      %2632 = vmatprep.subr.mxu0 0.0
      %2633 = vmatpush2.xpose.msra.mxu0 0.0
      %2634 = vmatprep.subr.mxu0 0.0
      %2635 = vmatpush2.xpose.msra.mxu0 0.0
      %2636 = vmatprep.subr.mxu0 0.0
      %2637 = vmatpush2.xpose.msra.mxu0 0.0
      %2638 = vmatprep.subr.mxu0 0.0
      %2639 = vmatpush2.xpose.msra.mxu0 0.0
      %2640 = vmatprep.subr.mxu0 0.0
      %2641 = vmatpush2.xpose.msra.mxu0 0.0
      %2642 = vmatprep.subr.mxu0 0.0
      %2643 = vmatpush2.xpose.msra.mxu0 0.0
      %2644 = vmatprep.mubr.f32.mxu0 0.0
      %2645 = vmatmul.mubr.f32.gmra.mxu0 %v2576
      %v2646 = vpop.f32.mrf.mxu0
      %v2647 = vadd.f32 0.0, %v2646
      %v2648 = vpop.f32.mrf.mxu0
      %2649 = vdwg.mxu0
      %2650 = vrot.lane.b32.xlu0 %v844, 120
      %v2651 = vpop.permute.xlu0 %2650
      %2652 = vrot.lane.b32.xlu0 %v844, 88
      %v2653 = vpop.permute.xlu0 %2652
      %v2654 = vsel %vm855, %v2651, 0
      %v2656 = vsel %vm855, %v2653, 0
      %2658 = vmatprep.subr.mxu0 0.0
      %2659 = vmatpush1.xpose.msra.mxu0 0.0
      %2660 = vmatprep.subr.mxu0 0.0
      %2661 = vmatpush1.xpose.msra.mxu0 0.0
      %2662 = vmatprep.subr.mxu0 0.0
      %2663 = vmatpush1.xpose.msra.mxu0 0.0
      %2664 = vmatprep.subr.mxu0 0.0
      %2665 = vmatpush1.xpose.msra.mxu0 0.0
      %2666 = vmatprep.subr.mxu0 0.0
      %2667 = vmatpush1.xpose.msra.mxu0 0.0
      %2668 = vmatprep.subr.mxu0 0.0
      %2669 = vmatpush1.xpose.msra.mxu0 0.0
      %2670 = vmatprep.subr.mxu0 0.0
      %2671 = vmatpush1.xpose.msra.mxu0 0.0
      %2672 = vmatprep.subr.mxu0 0.0
      %2673 = vmatpush1.xpose.msra.mxu0 0.0
      %2674 = vmatprep.subr.mxu0 0.0
      %2675 = vmatpush1.xpose.msra.mxu0 0.0
      %2676 = vmatprep.subr.mxu0 0.0
      %2677 = vmatpush1.xpose.msra.mxu0 0.0
      %2678 = vmatprep.subr.mxu0 0.0
      %2679 = vmatpush1.xpose.msra.mxu0 0.0
      %2680 = vmatprep.subr.mxu0 0.0
      %2681 = vmatpush1.xpose.msra.mxu0 0.0
      %2682 = vmatprep.subr.mxu0 0.0
      %2683 = vmatpush1.xpose.msra.mxu0 0.0
      %2684 = vmatprep.subr.mxu0 0.0
      %2685 = vmatpush1.xpose.msra.mxu0 0.0
      %2686 = vmatprep.subr.mxu0 0.0
      %2687 = vmatpush1.xpose.msra.mxu0 0.0
      %2688 = vmatprep.subr.mxu0 0.0
      %2689 = vmatpush1.xpose.msra.mxu0 %v2656
      %2690 = vmatprep.subr.mxu0 0.0
      %2691 = vmatpush2.xpose.msra.mxu0 0.0
      %2692 = vmatprep.subr.mxu0 0.0
      %2693 = vmatpush2.xpose.msra.mxu0 0.0
      %2694 = vmatprep.subr.mxu0 0.0
      %2695 = vmatpush2.xpose.msra.mxu0 0.0
      %2696 = vmatprep.subr.mxu0 0.0
      %2697 = vmatpush2.xpose.msra.mxu0 0.0
      %2698 = vmatprep.subr.mxu0 0.0
      %2699 = vmatpush2.xpose.msra.mxu0 0.0
      %2700 = vmatprep.subr.mxu0 0.0
      %2701 = vmatpush2.xpose.msra.mxu0 0.0
      %2702 = vmatprep.subr.mxu0 0.0
      %2703 = vmatpush2.xpose.msra.mxu0 0.0
      %2704 = vmatprep.subr.mxu0 0.0
      %2705 = vmatpush2.xpose.msra.mxu0 0.0
      %2706 = vmatprep.subr.mxu0 0.0
      %2707 = vmatpush2.xpose.msra.mxu0 0.0
      %2708 = vmatprep.subr.mxu0 0.0
      %2709 = vmatpush2.xpose.msra.mxu0 0.0
      %2710 = vmatprep.subr.mxu0 0.0
      %2711 = vmatpush2.xpose.msra.mxu0 0.0
      %2712 = vmatprep.subr.mxu0 0.0
      %2713 = vmatpush2.xpose.msra.mxu0 0.0
      %2714 = vmatprep.subr.mxu0 0.0
      %2715 = vmatpush2.xpose.msra.mxu0 0.0
      %2716 = vmatprep.subr.mxu0 0.0
      %2717 = vmatpush2.xpose.msra.mxu0 0.0
      %2718 = vmatprep.subr.mxu0 0.0
      %2719 = vmatpush2.xpose.msra.mxu0 0.0
      %2720 = vmatprep.subr.mxu0 0.0
      %2721 = vmatpush2.xpose.msra.mxu0 0.0
      %2722 = vmatprep.mubr.f32.mxu0 0.0
      %2723 = vmatmul.mubr.f32.gmra.mxu0 %v2654
      %v2724 = vpop.f32.mrf.mxu0
      %v2725 = vadd.f32 0.0, %v2724
      %v2726 = vpop.f32.mrf.mxu0
      %2727 = vdwg.mxu0
      %2728 = vrot.lane.b32.xlu0 %v849, 120
      %v2729 = vpop.permute.xlu0 %2728
      %2730 = vrot.lane.b32.xlu0 %v849, 88
      %v2731 = vpop.permute.xlu0 %2730
      %v2732 = vsel %vm855, %v2729, 0
      %v2734 = vsel %vm855, %v2731, 0
      %2736 = vmatprep.subr.mxu0 0.0
      %2737 = vmatpush1.xpose.msra.mxu0 0.0
      %2738 = vmatprep.subr.mxu0 0.0
      %2739 = vmatpush1.xpose.msra.mxu0 0.0
      %2740 = vmatprep.subr.mxu0 0.0
      %2741 = vmatpush1.xpose.msra.mxu0 0.0
      %2742 = vmatprep.subr.mxu0 0.0
      %2743 = vmatpush1.xpose.msra.mxu0 0.0
      %2744 = vmatprep.subr.mxu0 0.0
      %2745 = vmatpush1.xpose.msra.mxu0 0.0
      %2746 = vmatprep.subr.mxu0 0.0
      %2747 = vmatpush1.xpose.msra.mxu0 0.0
      %2748 = vmatprep.subr.mxu0 0.0
      %2749 = vmatpush1.xpose.msra.mxu0 0.0
      %2750 = vmatprep.subr.mxu0 0.0
      %2751 = vmatpush1.xpose.msra.mxu0 0.0
      %2752 = vmatprep.subr.mxu0 0.0
      %2753 = vmatpush1.xpose.msra.mxu0 0.0
      %2754 = vmatprep.subr.mxu0 0.0
      %2755 = vmatpush1.xpose.msra.mxu0 0.0
      %2756 = vmatprep.subr.mxu0 0.0
      %2757 = vmatpush1.xpose.msra.mxu0 0.0
      %2758 = vmatprep.subr.mxu0 0.0
      %2759 = vmatpush1.xpose.msra.mxu0 0.0
      %2760 = vmatprep.subr.mxu0 0.0
      %2761 = vmatpush1.xpose.msra.mxu0 0.0
      %2762 = vmatprep.subr.mxu0 0.0
      %2763 = vmatpush1.xpose.msra.mxu0 0.0
      %2764 = vmatprep.subr.mxu0 0.0
      %2765 = vmatpush1.xpose.msra.mxu0 0.0
      %2766 = vmatprep.subr.mxu0 0.0
      %2767 = vmatpush1.xpose.msra.mxu0 %v2734
      %2768 = vmatprep.subr.mxu0 0.0
      %2769 = vmatpush2.xpose.msra.mxu0 0.0
      %2770 = vmatprep.subr.mxu0 0.0
      %2771 = vmatpush2.xpose.msra.mxu0 0.0
      %2772 = vmatprep.subr.mxu0 0.0
      %2773 = vmatpush2.xpose.msra.mxu0 0.0
      %2774 = vmatprep.subr.mxu0 0.0
      %2775 = vmatpush2.xpose.msra.mxu0 0.0
      %2776 = vmatprep.subr.mxu0 0.0
      %2777 = vmatpush2.xpose.msra.mxu0 0.0
      %2778 = vmatprep.subr.mxu0 0.0
      %2779 = vmatpush2.xpose.msra.mxu0 0.0
      %2780 = vmatprep.subr.mxu0 0.0
      %2781 = vmatpush2.xpose.msra.mxu0 0.0
      %2782 = vmatprep.subr.mxu0 0.0
      %2783 = vmatpush2.xpose.msra.mxu0 0.0
      %2784 = vmatprep.subr.mxu0 0.0
      %2785 = vmatpush2.xpose.msra.mxu0 0.0
      %2786 = vmatprep.subr.mxu0 0.0
      %2787 = vmatpush2.xpose.msra.mxu0 0.0
      %2788 = vmatprep.subr.mxu0 0.0
      %2789 = vmatpush2.xpose.msra.mxu0 0.0
      %2790 = vmatprep.subr.mxu0 0.0
      %2791 = vmatpush2.xpose.msra.mxu0 0.0
      %2792 = vmatprep.subr.mxu0 0.0
      %2793 = vmatpush2.xpose.msra.mxu0 0.0
      %2794 = vmatprep.subr.mxu0 0.0
      %2795 = vmatpush2.xpose.msra.mxu0 0.0
      %2796 = vmatprep.subr.mxu0 0.0
      %2797 = vmatpush2.xpose.msra.mxu0 0.0
      %2798 = vmatprep.subr.mxu0 0.0
      %2799 = vmatpush2.xpose.msra.mxu0 0.0
      %2800 = vmatprep.mubr.f32.mxu0 0.0
      %2801 = vmatmul.mubr.f32.gmra.mxu0 %v2732
      %v2802 = vpop.f32.mrf.mxu0
      %v2803 = vadd.f32 0.0, %v2802
      %v2804 = vpop.f32.mrf.mxu0
      %2805 = vdwg.mxu0
      %v2806 = vmul.f32 %v2257, 0.35355338
      %v2807 = vmul.f32 %v2335, 0.35355338
      %v2808 = vmul.f32 %v2413, 0.35355338
      %v2809 = vmul.f32 %v2491, 0.35355338
      %v2810 = vmul.f32 %v2569, 0.35355338
      %v2811 = vmul.f32 %v2647, 0.35355338
      %v2812 = vmul.f32 %v2725, 0.35355338
      %v2813 = vmul.f32 %v2803, 0.35355338
      %v2814 = vsel %vm703, -1e+09, %v2806
      %v2815 = vsel %vm704, -1e+09, %v2807
      %v2816 = vsel %vm705, -1e+09, %v2808
      %v2817 = vsel %vm706, -1e+09, %v2809
      %v2818 = vsel %vm707, -1e+09, %v2810
      %v2819 = vsel %vm708, -1e+09, %v2811
      %v2820 = vsel %vm709, -1e+09, %v2812
      %v2821 = vsel %vm710, -1e+09, %v2813
      %v2822 = vsel %vm855, %v2814, -inf
      %2823 = vmax.xlane.f32.xlu0 %v2822
      %v2824 = vpop.xlane.xlu0 %2823
      %v2825 = vsel %vm855, %v2815, -inf
      %2826 = vmax.xlane.f32.xlu0 %v2825
      %v2827 = vpop.xlane.xlu0 %2826
      %v2828 = vsel %vm855, %v2816, -inf
      %2829 = vmax.xlane.f32.xlu0 %v2828
      %v2830 = vpop.xlane.xlu0 %2829
      %v2831 = vsel %vm855, %v2817, -inf
      %2832 = vmax.xlane.f32.xlu0 %v2831
      %v2833 = vpop.xlane.xlu0 %2832
      %v2834 = vsel %vm855, %v2818, -inf
      %2835 = vmax.xlane.f32.xlu0 %v2834
      %v2836 = vpop.xlane.xlu0 %2835
      %v2837 = vsel %vm855, %v2819, -inf
      %2838 = vmax.xlane.f32.xlu0 %v2837
      %v2839 = vpop.xlane.xlu0 %2838
      %v2840 = vsel %vm855, %v2820, -inf
      %2841 = vmax.xlane.f32.xlu0 %v2840
      %v2842 = vpop.xlane.xlu0 %2841
      %v2843 = vsel %vm855, %v2821, -inf
      %2844 = vmax.xlane.f32.xlu0 %v2843
      %v2845 = vpop.xlane.xlu0 %2844
      %v2846 = vsub.f32 %v2814, %v2824
      %v2847 = vsub.f32 %v2815, %v2827
      %v2848 = vsub.f32 %v2816, %v2830
      %v2849 = vsub.f32 %v2817, %v2833
      %v2850 = vsub.f32 %v2818, %v2836
      %v2851 = vsub.f32 %v2819, %v2839
      %v2852 = vsub.f32 %v2820, %v2842
      %v2853 = vsub.f32 %v2821, %v2845
      %v2854 = vmul.f32 %v2846, 1.442695
      %v2855 = vpow.pop %v2854
      %v2856 = vmul.f32 %v2847, 1.442695
      %v2857 = vpow.pop %v2856
      %v2858 = vmul.f32 %v2848, 1.442695
      %v2859 = vpow.pop %v2858
      %v2860 = vmul.f32 %v2849, 1.442695
      %v2861 = vpow.pop %v2860
      %v2862 = vmul.f32 %v2850, 1.442695
      %v2863 = vpow.pop %v2862
      %v2864 = vmul.f32 %v2851, 1.442695
      %v2865 = vpow.pop %v2864
      %v2866 = vmul.f32 %v2852, 1.442695
      %v2867 = vpow.pop %v2866
      %v2868 = vmul.f32 %v2853, 1.442695
      %v2869 = vpow.pop %v2868
      %v2870 = vsel %vm855, %v2855, 0.0
      %2871 = vadd.xlane.f32.xlu0 %v2870
      %v2872 = vpop.xlane.xlu0 %2871
      %v2873 = vsel %vm855, %v2857, 0.0
      %2874 = vadd.xlane.f32.xlu0 %v2873
      %v2875 = vpop.xlane.xlu0 %2874
      %v2876 = vsel %vm855, %v2859, 0.0
      %2877 = vadd.xlane.f32.xlu0 %v2876
      %v2878 = vpop.xlane.xlu0 %2877
      %v2879 = vsel %vm855, %v2861, 0.0
      %2880 = vadd.xlane.f32.xlu0 %v2879
      %v2881 = vpop.xlane.xlu0 %2880
      %v2882 = vsel %vm855, %v2863, 0.0
      %2883 = vadd.xlane.f32.xlu0 %v2882
      %v2884 = vpop.xlane.xlu0 %2883
      %v2885 = vsel %vm855, %v2865, 0.0
      %2886 = vadd.xlane.f32.xlu0 %v2885
      %v2887 = vpop.xlane.xlu0 %2886
      %v2888 = vsel %vm855, %v2867, 0.0
      %2889 = vadd.xlane.f32.xlu0 %v2888
      %v2890 = vpop.xlane.xlu0 %2889
      %v2891 = vsel %vm855, %v2869, 0.0
      %2892 = vadd.xlane.f32.xlu0 %v2891
      %v2893 = vpop.xlane.xlu0 %2892
      %v2894 = vrcp.pop %v2872
      %v2895 = vrcp.pop %v2875
      %v2896 = vrcp.pop %v2878
      %v2897 = vrcp.pop %v2881
      %v2898 = vrcp.pop %v2884
      %v2899 = vrcp.pop %v2887
      %v2900 = vrcp.pop %v2890
      %v2901 = vrcp.pop %v2893
      %v2902 = vmul.f32 %v2855, %v2894
      %v2903 = vmul.f32 %v2857, %v2895
      %v2904 = vmul.f32 %v2859, %v2896
      %v2905 = vmul.f32 %v2861, %v2897
      %v2906 = vmul.f32 %v2863, %v2898
      %v2907 = vmul.f32 %v2865, %v2899
      %v2908 = vmul.f32 %v2867, %v2900
      %v2909 = vmul.f32 %v2869, %v2901
      %2910 = vrot.lane.b32.xlu0 %v814, 56
      %v2911 = vpop.permute.xlu0 %2910
      %v2914 = vsel %vm855, %v2902, 0
      %2916 = vmatprep.subr.mxu0 0.0
      %2917 = vmatpush1.msra.mxu0 0.0
      %2918 = vmatprep.subr.mxu0 0.0
      %2919 = vmatpush1.msra.mxu0 0.0
      %2920 = vmatprep.subr.mxu0 0.0
      %2921 = vmatpush1.msra.mxu0 0.0
      %2922 = vmatprep.subr.mxu0 0.0
      %2923 = vmatpush1.msra.mxu0 0.0
      %2924 = vmatprep.subr.mxu0 0.0
      %2925 = vmatpush1.msra.mxu0 0.0
      %2926 = vmatprep.subr.mxu0 0.0
      %2927 = vmatpush1.msra.mxu0 0.0
      %2928 = vmatprep.subr.mxu0 0.0
      %2929 = vmatpush1.msra.mxu0 0.0
      %2930 = vmatprep.subr.mxu0 0.0
      %2931 = vmatpush1.msra.mxu0 0.0
      %2932 = vmatprep.subr.mxu0 0.0
      %2933 = vmatpush1.msra.mxu0 0.0
      %2934 = vmatprep.subr.mxu0 0.0
      %2935 = vmatpush1.msra.mxu0 0.0
      %2936 = vmatprep.subr.mxu0 0.0
      %2937 = vmatpush1.msra.mxu0 0.0
      %2938 = vmatprep.subr.mxu0 0.0
      %2939 = vmatpush1.msra.mxu0 0.0
      %2940 = vmatprep.subr.mxu0 0.0
      %2941 = vmatpush1.msra.mxu0 0.0
      %2942 = vmatprep.subr.mxu0 0.0
      %2943 = vmatpush1.msra.mxu0 0.0
      %2944 = vmatprep.subr.mxu0 0.0
      %2945 = vmatpush1.msra.mxu0 0.0
      %2946 = vmatprep.subr.mxu0 0.0
      %2947 = vmatpush1.msra.mxu0 %v2911
      %2948 = vmatprep.subr.mxu0 0.0
      %2949 = vmatpush2.msra.mxu0 0.0
      %2950 = vmatprep.subr.mxu0 0.0
      %2951 = vmatpush2.msra.mxu0 0.0
      %2952 = vmatprep.subr.mxu0 0.0
      %2953 = vmatpush2.msra.mxu0 0.0
      %2954 = vmatprep.subr.mxu0 0.0
      %2955 = vmatpush2.msra.mxu0 0.0
      %2956 = vmatprep.subr.mxu0 0.0
      %2957 = vmatpush2.msra.mxu0 0.0
      %2958 = vmatprep.subr.mxu0 0.0
      %2959 = vmatpush2.msra.mxu0 0.0
      %2960 = vmatprep.subr.mxu0 0.0
      %2961 = vmatpush2.msra.mxu0 0.0
      %2962 = vmatprep.subr.mxu0 0.0
      %2963 = vmatpush2.msra.mxu0 0.0
      %2964 = vmatprep.subr.mxu0 0.0
      %2965 = vmatpush2.msra.mxu0 0.0
      %2966 = vmatprep.subr.mxu0 0.0
      %2967 = vmatpush2.msra.mxu0 0.0
      %2968 = vmatprep.subr.mxu0 0.0
      %2969 = vmatpush2.msra.mxu0 0.0
      %2970 = vmatprep.subr.mxu0 0.0
      %2971 = vmatpush2.msra.mxu0 0.0
      %2972 = vmatprep.subr.mxu0 0.0
      %2973 = vmatpush2.msra.mxu0 0.0
      %2974 = vmatprep.subr.mxu0 0.0
      %2975 = vmatpush2.msra.mxu0 0.0
      %2976 = vmatprep.subr.mxu0 0.0
      %2977 = vmatpush2.msra.mxu0 0.0
      %2978 = vmatprep.subr.mxu0 0.0
      %2979 = vmatpush2.msra.mxu0 0.0
      %2980 = vmatprep.mubr.f32.mxu0 0.0
      %2981 = vmatmul.mubr.f32.gmra.mxu0 %v2914
      %v2982 = vpop.f32.mrf.mxu0
      %v2983 = vadd.f32 0.0, %v2982
      %v2984 = vpop.f32.mrf.mxu0
      %2985 = vdwg.mxu0
      %2986 = vrot.lane.b32.xlu0 %v819, 56
      %v2987 = vpop.permute.xlu0 %2986
      %v2990 = vsel %vm855, %v2903, 0
      %2992 = vmatprep.subr.mxu0 0.0
      %2993 = vmatpush1.msra.mxu0 0.0
      %2994 = vmatprep.subr.mxu0 0.0
      %2995 = vmatpush1.msra.mxu0 0.0
      %2996 = vmatprep.subr.mxu0 0.0
      %2997 = vmatpush1.msra.mxu0 0.0
      %2998 = vmatprep.subr.mxu0 0.0
      %2999 = vmatpush1.msra.mxu0 0.0
      %3000 = vmatprep.subr.mxu0 0.0
      %3001 = vmatpush1.msra.mxu0 0.0
      %3002 = vmatprep.subr.mxu0 0.0
      %3003 = vmatpush1.msra.mxu0 0.0
      %3004 = vmatprep.subr.mxu0 0.0
      %3005 = vmatpush1.msra.mxu0 0.0
      %3006 = vmatprep.subr.mxu0 0.0
      %3007 = vmatpush1.msra.mxu0 0.0
      %3008 = vmatprep.subr.mxu0 0.0
      %3009 = vmatpush1.msra.mxu0 0.0
      %3010 = vmatprep.subr.mxu0 0.0
      %3011 = vmatpush1.msra.mxu0 0.0
      %3012 = vmatprep.subr.mxu0 0.0
      %3013 = vmatpush1.msra.mxu0 0.0
      %3014 = vmatprep.subr.mxu0 0.0
      %3015 = vmatpush1.msra.mxu0 0.0
      %3016 = vmatprep.subr.mxu0 0.0
      %3017 = vmatpush1.msra.mxu0 0.0
      %3018 = vmatprep.subr.mxu0 0.0
      %3019 = vmatpush1.msra.mxu0 0.0
      %3020 = vmatprep.subr.mxu0 0.0
      %3021 = vmatpush1.msra.mxu0 0.0
      %3022 = vmatprep.subr.mxu0 0.0
      %3023 = vmatpush1.msra.mxu0 %v2987
      %3024 = vmatprep.subr.mxu0 0.0
      %3025 = vmatpush2.msra.mxu0 0.0
      %3026 = vmatprep.subr.mxu0 0.0
      %3027 = vmatpush2.msra.mxu0 0.0
      %3028 = vmatprep.subr.mxu0 0.0
      %3029 = vmatpush2.msra.mxu0 0.0
      %3030 = vmatprep.subr.mxu0 0.0
      %3031 = vmatpush2.msra.mxu0 0.0
      %3032 = vmatprep.subr.mxu0 0.0
      %3033 = vmatpush2.msra.mxu0 0.0
      %3034 = vmatprep.subr.mxu0 0.0
      %3035 = vmatpush2.msra.mxu0 0.0
      %3036 = vmatprep.subr.mxu0 0.0
      %3037 = vmatpush2.msra.mxu0 0.0
      %3038 = vmatprep.subr.mxu0 0.0
      %3039 = vmatpush2.msra.mxu0 0.0
      %3040 = vmatprep.subr.mxu0 0.0
      %3041 = vmatpush2.msra.mxu0 0.0
      %3042 = vmatprep.subr.mxu0 0.0
      %3043 = vmatpush2.msra.mxu0 0.0
      %3044 = vmatprep.subr.mxu0 0.0
      %3045 = vmatpush2.msra.mxu0 0.0
      %3046 = vmatprep.subr.mxu0 0.0
      %3047 = vmatpush2.msra.mxu0 0.0
      %3048 = vmatprep.subr.mxu0 0.0
      %3049 = vmatpush2.msra.mxu0 0.0
      %3050 = vmatprep.subr.mxu0 0.0
      %3051 = vmatpush2.msra.mxu0 0.0
      %3052 = vmatprep.subr.mxu0 0.0
      %3053 = vmatpush2.msra.mxu0 0.0
      %3054 = vmatprep.subr.mxu0 0.0
      %3055 = vmatpush2.msra.mxu0 0.0
      %3056 = vmatprep.mubr.f32.mxu0 0.0
      %3057 = vmatmul.mubr.f32.gmra.mxu0 %v2990
      %v3058 = vpop.f32.mrf.mxu0
      %v3059 = vadd.f32 0.0, %v3058
      %v3060 = vpop.f32.mrf.mxu0
      %3061 = vdwg.mxu0
      %3062 = vrot.lane.b32.xlu0 %v824, 56
      %v3063 = vpop.permute.xlu0 %3062
      %v3066 = vsel %vm855, %v2904, 0
      %3068 = vmatprep.subr.mxu0 0.0
      %3069 = vmatpush1.msra.mxu0 0.0
      %3070 = vmatprep.subr.mxu0 0.0
      %3071 = vmatpush1.msra.mxu0 0.0
      %3072 = vmatprep.subr.mxu0 0.0
      %3073 = vmatpush1.msra.mxu0 0.0
      %3074 = vmatprep.subr.mxu0 0.0
      %3075 = vmatpush1.msra.mxu0 0.0
      %3076 = vmatprep.subr.mxu0 0.0
      %3077 = vmatpush1.msra.mxu0 0.0
      %3078 = vmatprep.subr.mxu0 0.0
      %3079 = vmatpush1.msra.mxu0 0.0
      %3080 = vmatprep.subr.mxu0 0.0
      %3081 = vmatpush1.msra.mxu0 0.0
      %3082 = vmatprep.subr.mxu0 0.0
      %3083 = vmatpush1.msra.mxu0 0.0
      %3084 = vmatprep.subr.mxu0 0.0
      %3085 = vmatpush1.msra.mxu0 0.0
      %3086 = vmatprep.subr.mxu0 0.0
      %3087 = vmatpush1.msra.mxu0 0.0
      %3088 = vmatprep.subr.mxu0 0.0
      %3089 = vmatpush1.msra.mxu0 0.0
      %3090 = vmatprep.subr.mxu0 0.0
      %3091 = vmatpush1.msra.mxu0 0.0
      %3092 = vmatprep.subr.mxu0 0.0
      %3093 = vmatpush1.msra.mxu0 0.0
      %3094 = vmatprep.subr.mxu0 0.0
      %3095 = vmatpush1.msra.mxu0 0.0
      %3096 = vmatprep.subr.mxu0 0.0
      %3097 = vmatpush1.msra.mxu0 0.0
      %3098 = vmatprep.subr.mxu0 0.0
      %3099 = vmatpush1.msra.mxu0 %v3063
      %3100 = vmatprep.subr.mxu0 0.0
      %3101 = vmatpush2.msra.mxu0 0.0
      %3102 = vmatprep.subr.mxu0 0.0
      %3103 = vmatpush2.msra.mxu0 0.0
      %3104 = vmatprep.subr.mxu0 0.0
      %3105 = vmatpush2.msra.mxu0 0.0
      %3106 = vmatprep.subr.mxu0 0.0
      %3107 = vmatpush2.msra.mxu0 0.0
      %3108 = vmatprep.subr.mxu0 0.0
      %3109 = vmatpush2.msra.mxu0 0.0
      %3110 = vmatprep.subr.mxu0 0.0
      %3111 = vmatpush2.msra.mxu0 0.0
      %3112 = vmatprep.subr.mxu0 0.0
      %3113 = vmatpush2.msra.mxu0 0.0
      %3114 = vmatprep.subr.mxu0 0.0
      %3115 = vmatpush2.msra.mxu0 0.0
      %3116 = vmatprep.subr.mxu0 0.0
      %3117 = vmatpush2.msra.mxu0 0.0
      %3118 = vmatprep.subr.mxu0 0.0
      %3119 = vmatpush2.msra.mxu0 0.0
      %3120 = vmatprep.subr.mxu0 0.0
      %3121 = vmatpush2.msra.mxu0 0.0
      %3122 = vmatprep.subr.mxu0 0.0
      %3123 = vmatpush2.msra.mxu0 0.0
      %3124 = vmatprep.subr.mxu0 0.0
      %3125 = vmatpush2.msra.mxu0 0.0
      %3126 = vmatprep.subr.mxu0 0.0
      %3127 = vmatpush2.msra.mxu0 0.0
      %3128 = vmatprep.subr.mxu0 0.0
      %3129 = vmatpush2.msra.mxu0 0.0
      %3130 = vmatprep.subr.mxu0 0.0
      %3131 = vmatpush2.msra.mxu0 0.0
      %3132 = vmatprep.mubr.f32.mxu0 0.0
      %3133 = vmatmul.mubr.f32.gmra.mxu0 %v3066
      %v3134 = vpop.f32.mrf.mxu0
      %v3135 = vadd.f32 0.0, %v3134
      %v3136 = vpop.f32.mrf.mxu0
      %3137 = vdwg.mxu0
      %3138 = vrot.lane.b32.xlu0 %v829, 56
      %v3139 = vpop.permute.xlu0 %3138
      %v3142 = vsel %vm855, %v2905, 0
      %3144 = vmatprep.subr.mxu0 0.0
      %3145 = vmatpush1.msra.mxu0 0.0
      %3146 = vmatprep.subr.mxu0 0.0
      %3147 = vmatpush1.msra.mxu0 0.0
      %3148 = vmatprep.subr.mxu0 0.0
      %3149 = vmatpush1.msra.mxu0 0.0
      %3150 = vmatprep.subr.mxu0 0.0
      %3151 = vmatpush1.msra.mxu0 0.0
      %3152 = vmatprep.subr.mxu0 0.0
      %3153 = vmatpush1.msra.mxu0 0.0
      %3154 = vmatprep.subr.mxu0 0.0
      %3155 = vmatpush1.msra.mxu0 0.0
      %3156 = vmatprep.subr.mxu0 0.0
      %3157 = vmatpush1.msra.mxu0 0.0
      %3158 = vmatprep.subr.mxu0 0.0
      %3159 = vmatpush1.msra.mxu0 0.0
      %3160 = vmatprep.subr.mxu0 0.0
      %3161 = vmatpush1.msra.mxu0 0.0
      %3162 = vmatprep.subr.mxu0 0.0
      %3163 = vmatpush1.msra.mxu0 0.0
      %3164 = vmatprep.subr.mxu0 0.0
      %3165 = vmatpush1.msra.mxu0 0.0
      %3166 = vmatprep.subr.mxu0 0.0
      %3167 = vmatpush1.msra.mxu0 0.0
      %3168 = vmatprep.subr.mxu0 0.0
      %3169 = vmatpush1.msra.mxu0 0.0
      %3170 = vmatprep.subr.mxu0 0.0
      %3171 = vmatpush1.msra.mxu0 0.0
      %3172 = vmatprep.subr.mxu0 0.0
      %3173 = vmatpush1.msra.mxu0 0.0
      %3174 = vmatprep.subr.mxu0 0.0
      %3175 = vmatpush1.msra.mxu0 %v3139
      %3176 = vmatprep.subr.mxu0 0.0
      %3177 = vmatpush2.msra.mxu0 0.0
      %3178 = vmatprep.subr.mxu0 0.0
      %3179 = vmatpush2.msra.mxu0 0.0
      %3180 = vmatprep.subr.mxu0 0.0
      %3181 = vmatpush2.msra.mxu0 0.0
      %3182 = vmatprep.subr.mxu0 0.0
      %3183 = vmatpush2.msra.mxu0 0.0
      %3184 = vmatprep.subr.mxu0 0.0
      %3185 = vmatpush2.msra.mxu0 0.0
      %3186 = vmatprep.subr.mxu0 0.0
      %3187 = vmatpush2.msra.mxu0 0.0
      %3188 = vmatprep.subr.mxu0 0.0
      %3189 = vmatpush2.msra.mxu0 0.0
      %3190 = vmatprep.subr.mxu0 0.0
      %3191 = vmatpush2.msra.mxu0 0.0
      %3192 = vmatprep.subr.mxu0 0.0
      %3193 = vmatpush2.msra.mxu0 0.0
      %3194 = vmatprep.subr.mxu0 0.0
      %3195 = vmatpush2.msra.mxu0 0.0
      %3196 = vmatprep.subr.mxu0 0.0
      %3197 = vmatpush2.msra.mxu0 0.0
      %3198 = vmatprep.subr.mxu0 0.0
      %3199 = vmatpush2.msra.mxu0 0.0
      %3200 = vmatprep.subr.mxu0 0.0
      %3201 = vmatpush2.msra.mxu0 0.0
      %3202 = vmatprep.subr.mxu0 0.0
      %3203 = vmatpush2.msra.mxu0 0.0
      %3204 = vmatprep.subr.mxu0 0.0
      %3205 = vmatpush2.msra.mxu0 0.0
      %3206 = vmatprep.subr.mxu0 0.0
      %3207 = vmatpush2.msra.mxu0 0.0
      %3208 = vmatprep.mubr.f32.mxu0 0.0
      %3209 = vmatmul.mubr.f32.gmra.mxu0 %v3142
      %v3210 = vpop.f32.mrf.mxu0
      %v3211 = vadd.f32 0.0, %v3210
      %v3212 = vpop.f32.mrf.mxu0
      %3213 = vdwg.mxu0
      %3214 = vrot.lane.b32.xlu0 %v834, 56
      %v3215 = vpop.permute.xlu0 %3214
      %v3218 = vsel %vm855, %v2906, 0
      %3220 = vmatprep.subr.mxu0 0.0
      %3221 = vmatpush1.msra.mxu0 0.0
      %3222 = vmatprep.subr.mxu0 0.0
      %3223 = vmatpush1.msra.mxu0 0.0
      %3224 = vmatprep.subr.mxu0 0.0
      %3225 = vmatpush1.msra.mxu0 0.0
      %3226 = vmatprep.subr.mxu0 0.0
      %3227 = vmatpush1.msra.mxu0 0.0
      %3228 = vmatprep.subr.mxu0 0.0
      %3229 = vmatpush1.msra.mxu0 0.0
      %3230 = vmatprep.subr.mxu0 0.0
      %3231 = vmatpush1.msra.mxu0 0.0
      %3232 = vmatprep.subr.mxu0 0.0
      %3233 = vmatpush1.msra.mxu0 0.0
      %3234 = vmatprep.subr.mxu0 0.0
      %3235 = vmatpush1.msra.mxu0 0.0
      %3236 = vmatprep.subr.mxu0 0.0
      %3237 = vmatpush1.msra.mxu0 0.0
      %3238 = vmatprep.subr.mxu0 0.0
      %3239 = vmatpush1.msra.mxu0 0.0
      %3240 = vmatprep.subr.mxu0 0.0
      %3241 = vmatpush1.msra.mxu0 0.0
      %3242 = vmatprep.subr.mxu0 0.0
      %3243 = vmatpush1.msra.mxu0 0.0
      %3244 = vmatprep.subr.mxu0 0.0
      %3245 = vmatpush1.msra.mxu0 0.0
      %3246 = vmatprep.subr.mxu0 0.0
      %3247 = vmatpush1.msra.mxu0 0.0
      %3248 = vmatprep.subr.mxu0 0.0
      %3249 = vmatpush1.msra.mxu0 0.0
      %3250 = vmatprep.subr.mxu0 0.0
      %3251 = vmatpush1.msra.mxu0 %v3215
      %3252 = vmatprep.subr.mxu0 0.0
      %3253 = vmatpush2.msra.mxu0 0.0
      %3254 = vmatprep.subr.mxu0 0.0
      %3255 = vmatpush2.msra.mxu0 0.0
      %3256 = vmatprep.subr.mxu0 0.0
      %3257 = vmatpush2.msra.mxu0 0.0
      %3258 = vmatprep.subr.mxu0 0.0
      %3259 = vmatpush2.msra.mxu0 0.0
      %3260 = vmatprep.subr.mxu0 0.0
      %3261 = vmatpush2.msra.mxu0 0.0
      %3262 = vmatprep.subr.mxu0 0.0
      %3263 = vmatpush2.msra.mxu0 0.0
      %3264 = vmatprep.subr.mxu0 0.0
      %3265 = vmatpush2.msra.mxu0 0.0
      %3266 = vmatprep.subr.mxu0 0.0
      %3267 = vmatpush2.msra.mxu0 0.0
      %3268 = vmatprep.subr.mxu0 0.0
      %3269 = vmatpush2.msra.mxu0 0.0
      %3270 = vmatprep.subr.mxu0 0.0
      %3271 = vmatpush2.msra.mxu0 0.0
      %3272 = vmatprep.subr.mxu0 0.0
      %3273 = vmatpush2.msra.mxu0 0.0
      %3274 = vmatprep.subr.mxu0 0.0
      %3275 = vmatpush2.msra.mxu0 0.0
      %3276 = vmatprep.subr.mxu0 0.0
      %3277 = vmatpush2.msra.mxu0 0.0
      %3278 = vmatprep.subr.mxu0 0.0
      %3279 = vmatpush2.msra.mxu0 0.0
      %3280 = vmatprep.subr.mxu0 0.0
      %3281 = vmatpush2.msra.mxu0 0.0
      %3282 = vmatprep.subr.mxu0 0.0
      %3283 = vmatpush2.msra.mxu0 0.0
      %3284 = vmatprep.mubr.f32.mxu0 0.0
      %3285 = vmatmul.mubr.f32.gmra.mxu0 %v3218
      %v3286 = vpop.f32.mrf.mxu0
      %v3287 = vadd.f32 0.0, %v3286
      %v3288 = vpop.f32.mrf.mxu0
      %3289 = vdwg.mxu0
      %3290 = vrot.lane.b32.xlu0 %v839, 56
      %v3291 = vpop.permute.xlu0 %3290
      %v3294 = vsel %vm855, %v2907, 0
      %3296 = vmatprep.subr.mxu0 0.0
      %3297 = vmatpush1.msra.mxu0 0.0
      %3298 = vmatprep.subr.mxu0 0.0
      %3299 = vmatpush1.msra.mxu0 0.0
      %3300 = vmatprep.subr.mxu0 0.0
      %3301 = vmatpush1.msra.mxu0 0.0
      %3302 = vmatprep.subr.mxu0 0.0
      %3303 = vmatpush1.msra.mxu0 0.0
      %3304 = vmatprep.subr.mxu0 0.0
      %3305 = vmatpush1.msra.mxu0 0.0
      %3306 = vmatprep.subr.mxu0 0.0
      %3307 = vmatpush1.msra.mxu0 0.0
      %3308 = vmatprep.subr.mxu0 0.0
      %3309 = vmatpush1.msra.mxu0 0.0
      %3310 = vmatprep.subr.mxu0 0.0
      %3311 = vmatpush1.msra.mxu0 0.0
      %3312 = vmatprep.subr.mxu0 0.0
      %3313 = vmatpush1.msra.mxu0 0.0
      %3314 = vmatprep.subr.mxu0 0.0
      %3315 = vmatpush1.msra.mxu0 0.0
      %3316 = vmatprep.subr.mxu0 0.0
      %3317 = vmatpush1.msra.mxu0 0.0
      %3318 = vmatprep.subr.mxu0 0.0
      %3319 = vmatpush1.msra.mxu0 0.0
      %3320 = vmatprep.subr.mxu0 0.0
      %3321 = vmatpush1.msra.mxu0 0.0
      %3322 = vmatprep.subr.mxu0 0.0
      %3323 = vmatpush1.msra.mxu0 0.0
      %3324 = vmatprep.subr.mxu0 0.0
      %3325 = vmatpush1.msra.mxu0 0.0
      %3326 = vmatprep.subr.mxu0 0.0
      %3327 = vmatpush1.msra.mxu0 %v3291
      %3328 = vmatprep.subr.mxu0 0.0
      %3329 = vmatpush2.msra.mxu0 0.0
      %3330 = vmatprep.subr.mxu0 0.0
      %3331 = vmatpush2.msra.mxu0 0.0
      %3332 = vmatprep.subr.mxu0 0.0
      %3333 = vmatpush2.msra.mxu0 0.0
      %3334 = vmatprep.subr.mxu0 0.0
      %3335 = vmatpush2.msra.mxu0 0.0
      %3336 = vmatprep.subr.mxu0 0.0
      %3337 = vmatpush2.msra.mxu0 0.0
      %3338 = vmatprep.subr.mxu0 0.0
      %3339 = vmatpush2.msra.mxu0 0.0
      %3340 = vmatprep.subr.mxu0 0.0
      %3341 = vmatpush2.msra.mxu0 0.0
      %3342 = vmatprep.subr.mxu0 0.0
      %3343 = vmatpush2.msra.mxu0 0.0
      %3344 = vmatprep.subr.mxu0 0.0
      %3345 = vmatpush2.msra.mxu0 0.0
      %3346 = vmatprep.subr.mxu0 0.0
      %3347 = vmatpush2.msra.mxu0 0.0
      %3348 = vmatprep.subr.mxu0 0.0
      %3349 = vmatpush2.msra.mxu0 0.0
      %3350 = vmatprep.subr.mxu0 0.0
      %3351 = vmatpush2.msra.mxu0 0.0
      %3352 = vmatprep.subr.mxu0 0.0
      %3353 = vmatpush2.msra.mxu0 0.0
      %3354 = vmatprep.subr.mxu0 0.0
      %3355 = vmatpush2.msra.mxu0 0.0
      %3356 = vmatprep.subr.mxu0 0.0
      %3357 = vmatpush2.msra.mxu0 0.0
      %3358 = vmatprep.subr.mxu0 0.0
      %3359 = vmatpush2.msra.mxu0 0.0
      %3360 = vmatprep.mubr.f32.mxu0 0.0
      %3361 = vmatmul.mubr.f32.gmra.mxu0 %v3294
      %v3362 = vpop.f32.mrf.mxu0
      %v3363 = vadd.f32 0.0, %v3362
      %v3364 = vpop.f32.mrf.mxu0
      %3365 = vdwg.mxu0
      %3366 = vrot.lane.b32.xlu0 %v844, 56
      %v3367 = vpop.permute.xlu0 %3366
      %v3370 = vsel %vm855, %v2908, 0
      %3372 = vmatprep.subr.mxu0 0.0
      %3373 = vmatpush1.msra.mxu0 0.0
      %3374 = vmatprep.subr.mxu0 0.0
      %3375 = vmatpush1.msra.mxu0 0.0
      %3376 = vmatprep.subr.mxu0 0.0
      %3377 = vmatpush1.msra.mxu0 0.0
      %3378 = vmatprep.subr.mxu0 0.0
      %3379 = vmatpush1.msra.mxu0 0.0
      %3380 = vmatprep.subr.mxu0 0.0
      %3381 = vmatpush1.msra.mxu0 0.0
      %3382 = vmatprep.subr.mxu0 0.0
      %3383 = vmatpush1.msra.mxu0 0.0
      %3384 = vmatprep.subr.mxu0 0.0
      %3385 = vmatpush1.msra.mxu0 0.0
      %3386 = vmatprep.subr.mxu0 0.0
      %3387 = vmatpush1.msra.mxu0 0.0
      %3388 = vmatprep.subr.mxu0 0.0
      %3389 = vmatpush1.msra.mxu0 0.0
      %3390 = vmatprep.subr.mxu0 0.0
      %3391 = vmatpush1.msra.mxu0 0.0
      %3392 = vmatprep.subr.mxu0 0.0
      %3393 = vmatpush1.msra.mxu0 0.0
      %3394 = vmatprep.subr.mxu0 0.0
      %3395 = vmatpush1.msra.mxu0 0.0
      %3396 = vmatprep.subr.mxu0 0.0
      %3397 = vmatpush1.msra.mxu0 0.0
      %3398 = vmatprep.subr.mxu0 0.0
      %3399 = vmatpush1.msra.mxu0 0.0
      %3400 = vmatprep.subr.mxu0 0.0
      %3401 = vmatpush1.msra.mxu0 0.0
      %3402 = vmatprep.subr.mxu0 0.0
      %3403 = vmatpush1.msra.mxu0 %v3367
      %3404 = vmatprep.subr.mxu0 0.0
      %3405 = vmatpush2.msra.mxu0 0.0
      %3406 = vmatprep.subr.mxu0 0.0
      %3407 = vmatpush2.msra.mxu0 0.0
      %3408 = vmatprep.subr.mxu0 0.0
      %3409 = vmatpush2.msra.mxu0 0.0
      %3410 = vmatprep.subr.mxu0 0.0
      %3411 = vmatpush2.msra.mxu0 0.0
      %3412 = vmatprep.subr.mxu0 0.0
      %3413 = vmatpush2.msra.mxu0 0.0
      %3414 = vmatprep.subr.mxu0 0.0
      %3415 = vmatpush2.msra.mxu0 0.0
      %3416 = vmatprep.subr.mxu0 0.0
      %3417 = vmatpush2.msra.mxu0 0.0
      %3418 = vmatprep.subr.mxu0 0.0
      %3419 = vmatpush2.msra.mxu0 0.0
      %3420 = vmatprep.subr.mxu0 0.0
      %3421 = vmatpush2.msra.mxu0 0.0
      %3422 = vmatprep.subr.mxu0 0.0
      %3423 = vmatpush2.msra.mxu0 0.0
      %3424 = vmatprep.subr.mxu0 0.0
      %3425 = vmatpush2.msra.mxu0 0.0
      %3426 = vmatprep.subr.mxu0 0.0
      %3427 = vmatpush2.msra.mxu0 0.0
      %3428 = vmatprep.subr.mxu0 0.0
      %3429 = vmatpush2.msra.mxu0 0.0
      %3430 = vmatprep.subr.mxu0 0.0
      %3431 = vmatpush2.msra.mxu0 0.0
      %3432 = vmatprep.subr.mxu0 0.0
      %3433 = vmatpush2.msra.mxu0 0.0
      %3434 = vmatprep.subr.mxu0 0.0
      %3435 = vmatpush2.msra.mxu0 0.0
      %3436 = vmatprep.mubr.f32.mxu0 0.0
      %3437 = vmatmul.mubr.f32.gmra.mxu0 %v3370
      %v3438 = vpop.f32.mrf.mxu0
      %v3439 = vadd.f32 0.0, %v3438
      %v3440 = vpop.f32.mrf.mxu0
      %3441 = vdwg.mxu0
      %3442 = vrot.lane.b32.xlu0 %v849, 56
      %v3443 = vpop.permute.xlu0 %3442
      %v3446 = vsel %vm855, %v2909, 0
      %3448 = vmatprep.subr.mxu0 0.0
      %3449 = vmatpush1.msra.mxu0 0.0
      %3450 = vmatprep.subr.mxu0 0.0
      %3451 = vmatpush1.msra.mxu0 0.0
      %3452 = vmatprep.subr.mxu0 0.0
      %3453 = vmatpush1.msra.mxu0 0.0
      %3454 = vmatprep.subr.mxu0 0.0
      %3455 = vmatpush1.msra.mxu0 0.0
      %3456 = vmatprep.subr.mxu0 0.0
      %3457 = vmatpush1.msra.mxu0 0.0
      %3458 = vmatprep.subr.mxu0 0.0
      %3459 = vmatpush1.msra.mxu0 0.0
      %3460 = vmatprep.subr.mxu0 0.0
      %3461 = vmatpush1.msra.mxu0 0.0
      %3462 = vmatprep.subr.mxu0 0.0
      %3463 = vmatpush1.msra.mxu0 0.0
      %3464 = vmatprep.subr.mxu0 0.0
      %3465 = vmatpush1.msra.mxu0 0.0
      %3466 = vmatprep.subr.mxu0 0.0
      %3467 = vmatpush1.msra.mxu0 0.0
      %3468 = vmatprep.subr.mxu0 0.0
      %3469 = vmatpush1.msra.mxu0 0.0
      %3470 = vmatprep.subr.mxu0 0.0
      %3471 = vmatpush1.msra.mxu0 0.0
      %3472 = vmatprep.subr.mxu0 0.0
      %3473 = vmatpush1.msra.mxu0 0.0
      %3474 = vmatprep.subr.mxu0 0.0
      %3475 = vmatpush1.msra.mxu0 0.0
      %3476 = vmatprep.subr.mxu0 0.0
      %3477 = vmatpush1.msra.mxu0 0.0
      %3478 = vmatprep.subr.mxu0 0.0
      %3479 = vmatpush1.msra.mxu0 %v3443
      %3480 = vmatprep.subr.mxu0 0.0
      %3481 = vmatpush2.msra.mxu0 0.0
      %3482 = vmatprep.subr.mxu0 0.0
      %3483 = vmatpush2.msra.mxu0 0.0
      %3484 = vmatprep.subr.mxu0 0.0
      %3485 = vmatpush2.msra.mxu0 0.0
      %3486 = vmatprep.subr.mxu0 0.0
      %3487 = vmatpush2.msra.mxu0 0.0
      %3488 = vmatprep.subr.mxu0 0.0
      %3489 = vmatpush2.msra.mxu0 0.0
      %3490 = vmatprep.subr.mxu0 0.0
      %3491 = vmatpush2.msra.mxu0 0.0
      %3492 = vmatprep.subr.mxu0 0.0
      %3493 = vmatpush2.msra.mxu0 0.0
      %3494 = vmatprep.subr.mxu0 0.0
      %3495 = vmatpush2.msra.mxu0 0.0
      %3496 = vmatprep.subr.mxu0 0.0
      %3497 = vmatpush2.msra.mxu0 0.0
      %3498 = vmatprep.subr.mxu0 0.0
      %3499 = vmatpush2.msra.mxu0 0.0
      %3500 = vmatprep.subr.mxu0 0.0
      %3501 = vmatpush2.msra.mxu0 0.0
      %3502 = vmatprep.subr.mxu0 0.0
      %3503 = vmatpush2.msra.mxu0 0.0
      %3504 = vmatprep.subr.mxu0 0.0
      %3505 = vmatpush2.msra.mxu0 0.0
      %3506 = vmatprep.subr.mxu0 0.0
      %3507 = vmatpush2.msra.mxu0 0.0
      %3508 = vmatprep.subr.mxu0 0.0
      %3509 = vmatpush2.msra.mxu0 0.0
      %3510 = vmatprep.subr.mxu0 0.0
      %3511 = vmatpush2.msra.mxu0 0.0
      %3512 = vmatprep.mubr.f32.mxu0 0.0
      %3513 = vmatmul.mubr.f32.gmra.mxu0 %v3446
      %v3514 = vpop.f32.mrf.mxu0
      %v3515 = vadd.f32 0.0, %v3514
      %v3516 = vpop.f32.mrf.mxu0
      %3517 = vdwg.mxu0
      %v3518 = vld [vmem:[%s636 + $0x8] sm:$0xff]
      %v3520 = vsel %vm855, %v2983, 0
      %v3523 = vsel %vm855, %v3059, 0
      %v3526 = vsel %vm855, %v3135, 0
      %v3529 = vsel %vm855, %v3211, 0
      %v3532 = vsel %vm855, %v3287, 0
      %v3535 = vsel %vm855, %v3363, 0
      %v3538 = vsel %vm855, %v3439, 0
      %v3541 = vsel %vm855, %v3515, 0
      %3543 = vmatprep.subr.mxu0 0.0
      %3544 = vmatpush1.msra.mxu0 0.0
      %3545 = vmatprep.subr.mxu0 0.0
      %3546 = vmatpush1.msra.mxu0 0.0
      %3547 = vmatprep.subr.mxu0 0.0
      %3548 = vmatpush1.msra.mxu0 0.0
      %3549 = vmatprep.subr.mxu0 0.0
      %3550 = vmatpush1.msra.mxu0 0.0
      %3551 = vmatprep.subr.mxu0 0.0
      %3552 = vmatpush1.msra.mxu0 0.0
      %3553 = vmatprep.subr.mxu0 0.0
      %3554 = vmatpush1.msra.mxu0 0.0
      %3555 = vmatprep.subr.mxu0 0.0
      %3556 = vmatpush1.msra.mxu0 0.0
      %3557 = vmatprep.subr.mxu0 0.0
      %3558 = vmatpush1.msra.mxu0 0.0
      %3559 = vmatprep.subr.mxu0 0.0
      %3560 = vmatpush1.msra.mxu0 0.0
      %3561 = vmatprep.subr.mxu0 0.0
      %3562 = vmatpush1.msra.mxu0 0.0
      %3563 = vmatprep.subr.mxu0 0.0
      %3564 = vmatpush1.msra.mxu0 0.0
      %3565 = vmatprep.subr.mxu0 0.0
      %3566 = vmatpush1.msra.mxu0 0.0
      %3567 = vmatprep.subr.mxu0 0.0
      %3568 = vmatpush1.msra.mxu0 0.0
      %3569 = vmatprep.subr.mxu0 0.0
      %3570 = vmatpush1.msra.mxu0 0.0
      %3571 = vmatprep.subr.mxu0 0.0
      %3572 = vmatpush1.msra.mxu0 0.0
      %3573 = vmatprep.subr.mxu0 0.0
      %3574 = vmatpush1.msra.mxu0 %v3518
      %3575 = vmatprep.subr.mxu0 0.0
      %3576 = vmatpush2.msra.mxu0 0.0
      %3577 = vmatprep.subr.mxu0 0.0
      %3578 = vmatpush2.msra.mxu0 0.0
      %3579 = vmatprep.subr.mxu0 0.0
      %3580 = vmatpush2.msra.mxu0 0.0
      %3581 = vmatprep.subr.mxu0 0.0
      %3582 = vmatpush2.msra.mxu0 0.0
      %3583 = vmatprep.subr.mxu0 0.0
      %3584 = vmatpush2.msra.mxu0 0.0
      %3585 = vmatprep.subr.mxu0 0.0
      %3586 = vmatpush2.msra.mxu0 0.0
      %3587 = vmatprep.subr.mxu0 0.0
      %3588 = vmatpush2.msra.mxu0 0.0
      %3589 = vmatprep.subr.mxu0 0.0
      %3590 = vmatpush2.msra.mxu0 0.0
      %3591 = vmatprep.subr.mxu0 0.0
      %3592 = vmatpush2.msra.mxu0 0.0
      %3593 = vmatprep.subr.mxu0 0.0
      %3594 = vmatpush2.msra.mxu0 0.0
      %3595 = vmatprep.subr.mxu0 0.0
      %3596 = vmatpush2.msra.mxu0 0.0
      %3597 = vmatprep.subr.mxu0 0.0
      %3598 = vmatpush2.msra.mxu0 0.0
      %3599 = vmatprep.subr.mxu0 0.0
      %3600 = vmatpush2.msra.mxu0 0.0
      %3601 = vmatprep.subr.mxu0 0.0
      %3602 = vmatpush2.msra.mxu0 0.0
      %3603 = vmatprep.subr.mxu0 0.0
      %3604 = vmatpush2.msra.mxu0 0.0
      %3605 = vmatprep.subr.mxu0 0.0
      %3606 = vmatpush2.msra.mxu0 0.0
      %3607 = vmatprep.mubr.f32.mxu0 0.0
      %3608 = vmatmul.mubr.f32.gmra.mxu0 %v3520
      %v3609 = vpop.f32.mrf.mxu0
      %v3610 = vadd.f32 0.0, %v3609
      %v3611 = vpop.f32.mrf.mxu0
      %3612 = vmatprep.mubr.f32.mxu0 0.0
      %3613 = vmatmul.mubr.f32.gmra.mxu0 %v3523
      %v3614 = vpop.f32.mrf.mxu0
      %v3615 = vadd.f32 0.0, %v3614
      %v3616 = vpop.f32.mrf.mxu0
      %3617 = vmatprep.mubr.f32.mxu0 0.0
      %3618 = vmatmul.mubr.f32.gmra.mxu0 %v3526
      %v3619 = vpop.f32.mrf.mxu0
      %v3620 = vadd.f32 0.0, %v3619
      %v3621 = vpop.f32.mrf.mxu0
      %3622 = vmatprep.mubr.f32.mxu0 0.0
      %3623 = vmatmul.mubr.f32.gmra.mxu0 %v3529
      %v3624 = vpop.f32.mrf.mxu0
      %v3625 = vadd.f32 0.0, %v3624
      %v3626 = vpop.f32.mrf.mxu0
      %3627 = vmatprep.mubr.f32.mxu0 0.0
      %3628 = vmatmul.mubr.f32.gmra.mxu0 %v3532
      %v3629 = vpop.f32.mrf.mxu0
      %v3630 = vadd.f32 0.0, %v3629
      %v3631 = vpop.f32.mrf.mxu0
      %3632 = vmatprep.mubr.f32.mxu0 0.0
      %3633 = vmatmul.mubr.f32.gmra.mxu0 %v3535
      %v3634 = vpop.f32.mrf.mxu0
      %v3635 = vadd.f32 0.0, %v3634
      %v3636 = vpop.f32.mrf.mxu0
      %3637 = vmatprep.mubr.f32.mxu0 0.0
      %3638 = vmatmul.mubr.f32.gmra.mxu0 %v3538
      %v3639 = vpop.f32.mrf.mxu0
      %v3640 = vadd.f32 0.0, %v3639
      %v3641 = vpop.f32.mrf.mxu0
      %3642 = vmatprep.mubr.f32.mxu0 0.0
      %3643 = vmatmul.mubr.f32.gmra.mxu0 %v3541
      %v3644 = vpop.f32.mrf.mxu0
      %v3645 = vadd.f32 0.0, %v3644
      %v3646 = vpop.f32.mrf.mxu0
      %3647 = vdwg.mxu0
      %v3649 = vsel %vm855, %v1646, 0
      %v3652 = vsel %vm855, %v1722, 0
      %v3655 = vsel %vm855, %v1798, 0
      %v3658 = vsel %vm855, %v1874, 0
      %v3661 = vsel %vm855, %v1950, 0
      %v3664 = vsel %vm855, %v2026, 0
      %v3667 = vsel %vm855, %v2102, 0
      %v3670 = vsel %vm855, %v2178, 0
      %3672 = vmatprep.subr.mxu0 0.0
      %3673 = vmatpush1.msra.mxu0 0.0
      %3674 = vmatprep.subr.mxu0 0.0
      %3675 = vmatpush1.msra.mxu0 0.0
      %3676 = vmatprep.subr.mxu0 0.0
      %3677 = vmatpush1.msra.mxu0 0.0
      %3678 = vmatprep.subr.mxu0 0.0
      %3679 = vmatpush1.msra.mxu0 0.0
      %3680 = vmatprep.subr.mxu0 0.0
      %3681 = vmatpush1.msra.mxu0 0.0
      %3682 = vmatprep.subr.mxu0 0.0
      %3683 = vmatpush1.msra.mxu0 0.0
      %3684 = vmatprep.subr.mxu0 0.0
      %3685 = vmatpush1.msra.mxu0 0.0
      %3686 = vmatprep.subr.mxu0 0.0
      %3687 = vmatpush1.msra.mxu0 0.0
      %3688 = vmatprep.subr.mxu0 0.0
      %3689 = vmatpush1.msra.mxu0 0.0
      %3690 = vmatprep.subr.mxu0 0.0
      %3691 = vmatpush1.msra.mxu0 0.0
      %3692 = vmatprep.subr.mxu0 0.0
      %3693 = vmatpush1.msra.mxu0 0.0
      %3694 = vmatprep.subr.mxu0 0.0
      %3695 = vmatpush1.msra.mxu0 0.0
      %3696 = vmatprep.subr.mxu0 0.0
      %3697 = vmatpush1.msra.mxu0 0.0
      %3698 = vmatprep.subr.mxu0 0.0
      %3699 = vmatpush1.msra.mxu0 0.0
      %3700 = vmatprep.subr.mxu0 0.0
      %3701 = vmatpush1.msra.mxu0 0.0
      %3702 = vmatprep.subr.mxu0 0.0
      %3703 = vmatpush1.msra.mxu0 %v2181
      %3704 = vmatprep.subr.mxu0 0.0
      %3705 = vmatpush2.msra.mxu0 0.0
      %3706 = vmatprep.subr.mxu0 0.0
      %3707 = vmatpush2.msra.mxu0 0.0
      %3708 = vmatprep.subr.mxu0 0.0
      %3709 = vmatpush2.msra.mxu0 0.0
      %3710 = vmatprep.subr.mxu0 0.0
      %3711 = vmatpush2.msra.mxu0 0.0
      %3712 = vmatprep.subr.mxu0 0.0
      %3713 = vmatpush2.msra.mxu0 0.0
      %3714 = vmatprep.subr.mxu0 0.0
      %3715 = vmatpush2.msra.mxu0 0.0
      %3716 = vmatprep.subr.mxu0 0.0
      %3717 = vmatpush2.msra.mxu0 0.0
      %3718 = vmatprep.subr.mxu0 0.0
      %3719 = vmatpush2.msra.mxu0 0.0
      %3720 = vmatprep.subr.mxu0 0.0
      %3721 = vmatpush2.msra.mxu0 0.0
      %3722 = vmatprep.subr.mxu0 0.0
      %3723 = vmatpush2.msra.mxu0 0.0
      %3724 = vmatprep.subr.mxu0 0.0
      %3725 = vmatpush2.msra.mxu0 0.0
      %3726 = vmatprep.subr.mxu0 0.0
      %3727 = vmatpush2.msra.mxu0 0.0
      %3728 = vmatprep.subr.mxu0 0.0
      %3729 = vmatpush2.msra.mxu0 0.0
      %3730 = vmatprep.subr.mxu0 0.0
      %3731 = vmatpush2.msra.mxu0 0.0
      %3732 = vmatprep.subr.mxu0 0.0
      %3733 = vmatpush2.msra.mxu0 0.0
      %3734 = vmatprep.subr.mxu0 0.0
      %3735 = vmatpush2.msra.mxu0 0.0
      %3736 = vmatprep.mubr.f32.mxu0 0.0
      %3737 = vmatmul.mubr.f32.gmra.mxu0 %v3649
      %v3738 = vpop.f32.mrf.mxu0
      %v3739 = vadd.f32 %v3610, %v3738
      %v3740 = vpop.f32.mrf.mxu0
      %3741 = vmatprep.mubr.f32.mxu0 0.0
      %3742 = vmatmul.mubr.f32.gmra.mxu0 %v3652
      %v3743 = vpop.f32.mrf.mxu0
      %v3744 = vadd.f32 %v3615, %v3743
      %v3745 = vpop.f32.mrf.mxu0
      %3746 = vmatprep.mubr.f32.mxu0 0.0
      %3747 = vmatmul.mubr.f32.gmra.mxu0 %v3655
      %v3748 = vpop.f32.mrf.mxu0
      %v3749 = vadd.f32 %v3620, %v3748
      %v3750 = vpop.f32.mrf.mxu0
      %3751 = vmatprep.mubr.f32.mxu0 0.0
      %3752 = vmatmul.mubr.f32.gmra.mxu0 %v3658
      %v3753 = vpop.f32.mrf.mxu0
      %v3754 = vadd.f32 %v3625, %v3753
      %v3755 = vpop.f32.mrf.mxu0
      %3756 = vmatprep.mubr.f32.mxu0 0.0
      %3757 = vmatmul.mubr.f32.gmra.mxu0 %v3661
      %v3758 = vpop.f32.mrf.mxu0
      %v3759 = vadd.f32 %v3630, %v3758
      %v3760 = vpop.f32.mrf.mxu0
      %3761 = vmatprep.mubr.f32.mxu0 0.0
      %3762 = vmatmul.mubr.f32.gmra.mxu0 %v3664
      %v3763 = vpop.f32.mrf.mxu0
      %v3764 = vadd.f32 %v3635, %v3763
      %v3765 = vpop.f32.mrf.mxu0
      %3766 = vmatprep.mubr.f32.mxu0 0.0
      %3767 = vmatmul.mubr.f32.gmra.mxu0 %v3667
      %v3768 = vpop.f32.mrf.mxu0
      %v3769 = vadd.f32 %v3640, %v3768
      %v3770 = vpop.f32.mrf.mxu0
      %3771 = vmatprep.mubr.f32.mxu0 0.0
      %3772 = vmatmul.mubr.f32.gmra.mxu0 %v3670
      %v3773 = vpop.f32.mrf.mxu0
      %v3774 = vadd.f32 %v3645, %v3773
      %v3775 = vpop.f32.mrf.mxu0
      %3776 = vdwg.mxu0
      %3777 = vrot.lane.b32.xlu0 %v814, 112
      %v3778 = vpop.permute.xlu0 %3777
      %3779 = vrot.lane.b32.xlu0 %v814, 80
      %v3780 = vpop.permute.xlu0 %3779
      %v3781 = vsel %vm855, %v3778, 0
      %v3783 = vsel %vm855, %v3780, 0
      %3785 = vmatprep.subr.mxu0 0.0
      %3786 = vmatpush1.xpose.msra.mxu0 0.0
      %3787 = vmatprep.subr.mxu0 0.0
      %3788 = vmatpush1.xpose.msra.mxu0 0.0
      %3789 = vmatprep.subr.mxu0 0.0
      %3790 = vmatpush1.xpose.msra.mxu0 0.0
      %3791 = vmatprep.subr.mxu0 0.0
      %3792 = vmatpush1.xpose.msra.mxu0 0.0
      %3793 = vmatprep.subr.mxu0 0.0
      %3794 = vmatpush1.xpose.msra.mxu0 0.0
      %3795 = vmatprep.subr.mxu0 0.0
      %3796 = vmatpush1.xpose.msra.mxu0 0.0
      %3797 = vmatprep.subr.mxu0 0.0
      %3798 = vmatpush1.xpose.msra.mxu0 0.0
      %3799 = vmatprep.subr.mxu0 0.0
      %3800 = vmatpush1.xpose.msra.mxu0 0.0
      %3801 = vmatprep.subr.mxu0 0.0
      %3802 = vmatpush1.xpose.msra.mxu0 0.0
      %3803 = vmatprep.subr.mxu0 0.0
      %3804 = vmatpush1.xpose.msra.mxu0 0.0
      %3805 = vmatprep.subr.mxu0 0.0
      %3806 = vmatpush1.xpose.msra.mxu0 0.0
      %3807 = vmatprep.subr.mxu0 0.0
      %3808 = vmatpush1.xpose.msra.mxu0 0.0
      %3809 = vmatprep.subr.mxu0 0.0
      %3810 = vmatpush1.xpose.msra.mxu0 0.0
      %3811 = vmatprep.subr.mxu0 0.0
      %3812 = vmatpush1.xpose.msra.mxu0 0.0
      %3813 = vmatprep.subr.mxu0 0.0
      %3814 = vmatpush1.xpose.msra.mxu0 0.0
      %3815 = vmatprep.subr.mxu0 0.0
      %3816 = vmatpush1.xpose.msra.mxu0 %v3783
      %3817 = vmatprep.subr.mxu0 0.0
      %3818 = vmatpush2.xpose.msra.mxu0 0.0
      %3819 = vmatprep.subr.mxu0 0.0
      %3820 = vmatpush2.xpose.msra.mxu0 0.0
      %3821 = vmatprep.subr.mxu0 0.0
      %3822 = vmatpush2.xpose.msra.mxu0 0.0
      %3823 = vmatprep.subr.mxu0 0.0
      %3824 = vmatpush2.xpose.msra.mxu0 0.0
      %3825 = vmatprep.subr.mxu0 0.0
      %3826 = vmatpush2.xpose.msra.mxu0 0.0
      %3827 = vmatprep.subr.mxu0 0.0
      %3828 = vmatpush2.xpose.msra.mxu0 0.0
      %3829 = vmatprep.subr.mxu0 0.0
      %3830 = vmatpush2.xpose.msra.mxu0 0.0
      %3831 = vmatprep.subr.mxu0 0.0
      %3832 = vmatpush2.xpose.msra.mxu0 0.0
      %3833 = vmatprep.subr.mxu0 0.0
      %3834 = vmatpush2.xpose.msra.mxu0 0.0
      %3835 = vmatprep.subr.mxu0 0.0
      %3836 = vmatpush2.xpose.msra.mxu0 0.0
      %3837 = vmatprep.subr.mxu0 0.0
      %3838 = vmatpush2.xpose.msra.mxu0 0.0
      %3839 = vmatprep.subr.mxu0 0.0
      %3840 = vmatpush2.xpose.msra.mxu0 0.0
      %3841 = vmatprep.subr.mxu0 0.0
      %3842 = vmatpush2.xpose.msra.mxu0 0.0
      %3843 = vmatprep.subr.mxu0 0.0
      %3844 = vmatpush2.xpose.msra.mxu0 0.0
      %3845 = vmatprep.subr.mxu0 0.0
      %3846 = vmatpush2.xpose.msra.mxu0 0.0
      %3847 = vmatprep.subr.mxu0 0.0
      %3848 = vmatpush2.xpose.msra.mxu0 0.0
      %3849 = vmatprep.mubr.f32.mxu0 0.0
      %3850 = vmatmul.mubr.f32.gmra.mxu0 %v3781
      %v3851 = vpop.f32.mrf.mxu0
      %v3852 = vadd.f32 0.0, %v3851
      %v3853 = vpop.f32.mrf.mxu0
      %3854 = vdwg.mxu0
      %3855 = vrot.lane.b32.xlu0 %v819, 112
      %v3856 = vpop.permute.xlu0 %3855
      %3857 = vrot.lane.b32.xlu0 %v819, 80
      %v3858 = vpop.permute.xlu0 %3857
      %v3859 = vsel %vm855, %v3856, 0
      %v3861 = vsel %vm855, %v3858, 0
      %3863 = vmatprep.subr.mxu0 0.0
      %3864 = vmatpush1.xpose.msra.mxu0 0.0
      %3865 = vmatprep.subr.mxu0 0.0
      %3866 = vmatpush1.xpose.msra.mxu0 0.0
      %3867 = vmatprep.subr.mxu0 0.0
      %3868 = vmatpush1.xpose.msra.mxu0 0.0
      %3869 = vmatprep.subr.mxu0 0.0
      %3870 = vmatpush1.xpose.msra.mxu0 0.0
      %3871 = vmatprep.subr.mxu0 0.0
      %3872 = vmatpush1.xpose.msra.mxu0 0.0
      %3873 = vmatprep.subr.mxu0 0.0
      %3874 = vmatpush1.xpose.msra.mxu0 0.0
      %3875 = vmatprep.subr.mxu0 0.0
      %3876 = vmatpush1.xpose.msra.mxu0 0.0
      %3877 = vmatprep.subr.mxu0 0.0
      %3878 = vmatpush1.xpose.msra.mxu0 0.0
      %3879 = vmatprep.subr.mxu0 0.0
      %3880 = vmatpush1.xpose.msra.mxu0 0.0
      %3881 = vmatprep.subr.mxu0 0.0
      %3882 = vmatpush1.xpose.msra.mxu0 0.0
      %3883 = vmatprep.subr.mxu0 0.0
      %3884 = vmatpush1.xpose.msra.mxu0 0.0
      %3885 = vmatprep.subr.mxu0 0.0
      %3886 = vmatpush1.xpose.msra.mxu0 0.0
      %3887 = vmatprep.subr.mxu0 0.0
      %3888 = vmatpush1.xpose.msra.mxu0 0.0
      %3889 = vmatprep.subr.mxu0 0.0
      %3890 = vmatpush1.xpose.msra.mxu0 0.0
      %3891 = vmatprep.subr.mxu0 0.0
      %3892 = vmatpush1.xpose.msra.mxu0 0.0
      %3893 = vmatprep.subr.mxu0 0.0
      %3894 = vmatpush1.xpose.msra.mxu0 %v3861
      %3895 = vmatprep.subr.mxu0 0.0
      %3896 = vmatpush2.xpose.msra.mxu0 0.0
      %3897 = vmatprep.subr.mxu0 0.0
      %3898 = vmatpush2.xpose.msra.mxu0 0.0
      %3899 = vmatprep.subr.mxu0 0.0
      %3900 = vmatpush2.xpose.msra.mxu0 0.0
      %3901 = vmatprep.subr.mxu0 0.0
      %3902 = vmatpush2.xpose.msra.mxu0 0.0
      %3903 = vmatprep.subr.mxu0 0.0
      %3904 = vmatpush2.xpose.msra.mxu0 0.0
      %3905 = vmatprep.subr.mxu0 0.0
      %3906 = vmatpush2.xpose.msra.mxu0 0.0
      %3907 = vmatprep.subr.mxu0 0.0
      %3908 = vmatpush2.xpose.msra.mxu0 0.0
      %3909 = vmatprep.subr.mxu0 0.0
      %3910 = vmatpush2.xpose.msra.mxu0 0.0
      %3911 = vmatprep.subr.mxu0 0.0
      %3912 = vmatpush2.xpose.msra.mxu0 0.0
      %3913 = vmatprep.subr.mxu0 0.0
      %3914 = vmatpush2.xpose.msra.mxu0 0.0
      %3915 = vmatprep.subr.mxu0 0.0
      %3916 = vmatpush2.xpose.msra.mxu0 0.0
      %3917 = vmatprep.subr.mxu0 0.0
      %3918 = vmatpush2.xpose.msra.mxu0 0.0
      %3919 = vmatprep.subr.mxu0 0.0
      %3920 = vmatpush2.xpose.msra.mxu0 0.0
      %3921 = vmatprep.subr.mxu0 0.0
      %3922 = vmatpush2.xpose.msra.mxu0 0.0
      %3923 = vmatprep.subr.mxu0 0.0
      %3924 = vmatpush2.xpose.msra.mxu0 0.0
      %3925 = vmatprep.subr.mxu0 0.0
      %3926 = vmatpush2.xpose.msra.mxu0 0.0
      %3927 = vmatprep.mubr.f32.mxu0 0.0
      %3928 = vmatmul.mubr.f32.gmra.mxu0 %v3859
      %v3929 = vpop.f32.mrf.mxu0
      %v3930 = vadd.f32 0.0, %v3929
      %v3931 = vpop.f32.mrf.mxu0
      %3932 = vdwg.mxu0
      %3933 = vrot.lane.b32.xlu0 %v824, 112
      %v3934 = vpop.permute.xlu0 %3933
      %3935 = vrot.lane.b32.xlu0 %v824, 80
      %v3936 = vpop.permute.xlu0 %3935
      %v3937 = vsel %vm855, %v3934, 0
      %v3939 = vsel %vm855, %v3936, 0
      %3941 = vmatprep.subr.mxu0 0.0
      %3942 = vmatpush1.xpose.msra.mxu0 0.0
      %3943 = vmatprep.subr.mxu0 0.0
      %3944 = vmatpush1.xpose.msra.mxu0 0.0
      %3945 = vmatprep.subr.mxu0 0.0
      %3946 = vmatpush1.xpose.msra.mxu0 0.0
      %3947 = vmatprep.subr.mxu0 0.0
      %3948 = vmatpush1.xpose.msra.mxu0 0.0
      %3949 = vmatprep.subr.mxu0 0.0
      %3950 = vmatpush1.xpose.msra.mxu0 0.0
      %3951 = vmatprep.subr.mxu0 0.0
      %3952 = vmatpush1.xpose.msra.mxu0 0.0
      %3953 = vmatprep.subr.mxu0 0.0
      %3954 = vmatpush1.xpose.msra.mxu0 0.0
      %3955 = vmatprep.subr.mxu0 0.0
      %3956 = vmatpush1.xpose.msra.mxu0 0.0
      %3957 = vmatprep.subr.mxu0 0.0
      %3958 = vmatpush1.xpose.msra.mxu0 0.0
      %3959 = vmatprep.subr.mxu0 0.0
      %3960 = vmatpush1.xpose.msra.mxu0 0.0
      %3961 = vmatprep.subr.mxu0 0.0
      %3962 = vmatpush1.xpose.msra.mxu0 0.0
      %3963 = vmatprep.subr.mxu0 0.0
      %3964 = vmatpush1.xpose.msra.mxu0 0.0
      %3965 = vmatprep.subr.mxu0 0.0
      %3966 = vmatpush1.xpose.msra.mxu0 0.0
      %3967 = vmatprep.subr.mxu0 0.0
      %3968 = vmatpush1.xpose.msra.mxu0 0.0
      %3969 = vmatprep.subr.mxu0 0.0
      %3970 = vmatpush1.xpose.msra.mxu0 0.0
      %3971 = vmatprep.subr.mxu0 0.0
      %3972 = vmatpush1.xpose.msra.mxu0 %v3939
      %3973 = vmatprep.subr.mxu0 0.0
      %3974 = vmatpush2.xpose.msra.mxu0 0.0
      %3975 = vmatprep.subr.mxu0 0.0
      %3976 = vmatpush2.xpose.msra.mxu0 0.0
      %3977 = vmatprep.subr.mxu0 0.0
      %3978 = vmatpush2.xpose.msra.mxu0 0.0
      %3979 = vmatprep.subr.mxu0 0.0
      %3980 = vmatpush2.xpose.msra.mxu0 0.0
      %3981 = vmatprep.subr.mxu0 0.0
      %3982 = vmatpush2.xpose.msra.mxu0 0.0
      %3983 = vmatprep.subr.mxu0 0.0
      %3984 = vmatpush2.xpose.msra.mxu0 0.0
      %3985 = vmatprep.subr.mxu0 0.0
      %3986 = vmatpush2.xpose.msra.mxu0 0.0
      %3987 = vmatprep.subr.mxu0 0.0
      %3988 = vmatpush2.xpose.msra.mxu0 0.0
      %3989 = vmatprep.subr.mxu0 0.0
      %3990 = vmatpush2.xpose.msra.mxu0 0.0
      %3991 = vmatprep.subr.mxu0 0.0
      %3992 = vmatpush2.xpose.msra.mxu0 0.0
      %3993 = vmatprep.subr.mxu0 0.0
      %3994 = vmatpush2.xpose.msra.mxu0 0.0
      %3995 = vmatprep.subr.mxu0 0.0
      %3996 = vmatpush2.xpose.msra.mxu0 0.0
      %3997 = vmatprep.subr.mxu0 0.0
      %3998 = vmatpush2.xpose.msra.mxu0 0.0
      %3999 = vmatprep.subr.mxu0 0.0
      %4000 = vmatpush2.xpose.msra.mxu0 0.0
      %4001 = vmatprep.subr.mxu0 0.0
      %4002 = vmatpush2.xpose.msra.mxu0 0.0
      %4003 = vmatprep.subr.mxu0 0.0
      %4004 = vmatpush2.xpose.msra.mxu0 0.0
      %4005 = vmatprep.mubr.f32.mxu0 0.0
      %4006 = vmatmul.mubr.f32.gmra.mxu0 %v3937
      %v4007 = vpop.f32.mrf.mxu0
      %v4008 = vadd.f32 0.0, %v4007
      %v4009 = vpop.f32.mrf.mxu0
      %4010 = vdwg.mxu0
      %4011 = vrot.lane.b32.xlu0 %v829, 112
      %v4012 = vpop.permute.xlu0 %4011
      %4013 = vrot.lane.b32.xlu0 %v829, 80
      %v4014 = vpop.permute.xlu0 %4013
      %v4015 = vsel %vm855, %v4012, 0
      %v4017 = vsel %vm855, %v4014, 0
      %4019 = vmatprep.subr.mxu0 0.0
      %4020 = vmatpush1.xpose.msra.mxu0 0.0
      %4021 = vmatprep.subr.mxu0 0.0
      %4022 = vmatpush1.xpose.msra.mxu0 0.0
      %4023 = vmatprep.subr.mxu0 0.0
      %4024 = vmatpush1.xpose.msra.mxu0 0.0
      %4025 = vmatprep.subr.mxu0 0.0
      %4026 = vmatpush1.xpose.msra.mxu0 0.0
      %4027 = vmatprep.subr.mxu0 0.0
      %4028 = vmatpush1.xpose.msra.mxu0 0.0
      %4029 = vmatprep.subr.mxu0 0.0
      %4030 = vmatpush1.xpose.msra.mxu0 0.0
      %4031 = vmatprep.subr.mxu0 0.0
      %4032 = vmatpush1.xpose.msra.mxu0 0.0
      %4033 = vmatprep.subr.mxu0 0.0
      %4034 = vmatpush1.xpose.msra.mxu0 0.0
      %4035 = vmatprep.subr.mxu0 0.0
      %4036 = vmatpush1.xpose.msra.mxu0 0.0
      %4037 = vmatprep.subr.mxu0 0.0
      %4038 = vmatpush1.xpose.msra.mxu0 0.0
      %4039 = vmatprep.subr.mxu0 0.0
      %4040 = vmatpush1.xpose.msra.mxu0 0.0
      %4041 = vmatprep.subr.mxu0 0.0
      %4042 = vmatpush1.xpose.msra.mxu0 0.0
      %4043 = vmatprep.subr.mxu0 0.0
      %4044 = vmatpush1.xpose.msra.mxu0 0.0
      %4045 = vmatprep.subr.mxu0 0.0
      %4046 = vmatpush1.xpose.msra.mxu0 0.0
      %4047 = vmatprep.subr.mxu0 0.0
      %4048 = vmatpush1.xpose.msra.mxu0 0.0
      %4049 = vmatprep.subr.mxu0 0.0
      %4050 = vmatpush1.xpose.msra.mxu0 %v4017
      %4051 = vmatprep.subr.mxu0 0.0
      %4052 = vmatpush2.xpose.msra.mxu0 0.0
      %4053 = vmatprep.subr.mxu0 0.0
      %4054 = vmatpush2.xpose.msra.mxu0 0.0
      %4055 = vmatprep.subr.mxu0 0.0
      %4056 = vmatpush2.xpose.msra.mxu0 0.0
      %4057 = vmatprep.subr.mxu0 0.0
      %4058 = vmatpush2.xpose.msra.mxu0 0.0
      %4059 = vmatprep.subr.mxu0 0.0
      %4060 = vmatpush2.xpose.msra.mxu0 0.0
      %4061 = vmatprep.subr.mxu0 0.0
      %4062 = vmatpush2.xpose.msra.mxu0 0.0
      %4063 = vmatprep.subr.mxu0 0.0
      %4064 = vmatpush2.xpose.msra.mxu0 0.0
      %4065 = vmatprep.subr.mxu0 0.0
      %4066 = vmatpush2.xpose.msra.mxu0 0.0
      %4067 = vmatprep.subr.mxu0 0.0
      %4068 = vmatpush2.xpose.msra.mxu0 0.0
      %4069 = vmatprep.subr.mxu0 0.0
      %4070 = vmatpush2.xpose.msra.mxu0 0.0
      %4071 = vmatprep.subr.mxu0 0.0
      %4072 = vmatpush2.xpose.msra.mxu0 0.0
      %4073 = vmatprep.subr.mxu0 0.0
      %4074 = vmatpush2.xpose.msra.mxu0 0.0
      %4075 = vmatprep.subr.mxu0 0.0
      %4076 = vmatpush2.xpose.msra.mxu0 0.0
      %4077 = vmatprep.subr.mxu0 0.0
      %4078 = vmatpush2.xpose.msra.mxu0 0.0
      %4079 = vmatprep.subr.mxu0 0.0
      %4080 = vmatpush2.xpose.msra.mxu0 0.0
      %4081 = vmatprep.subr.mxu0 0.0
      %4082 = vmatpush2.xpose.msra.mxu0 0.0
      %4083 = vmatprep.mubr.f32.mxu0 0.0
      %4084 = vmatmul.mubr.f32.gmra.mxu0 %v4015
      %v4085 = vpop.f32.mrf.mxu0
      %v4086 = vadd.f32 0.0, %v4085
      %v4087 = vpop.f32.mrf.mxu0
      %4088 = vdwg.mxu0
      %4089 = vrot.lane.b32.xlu0 %v834, 112
      %v4090 = vpop.permute.xlu0 %4089
      %4091 = vrot.lane.b32.xlu0 %v834, 80
      %v4092 = vpop.permute.xlu0 %4091
      %v4093 = vsel %vm855, %v4090, 0
      %v4095 = vsel %vm855, %v4092, 0
      %4097 = vmatprep.subr.mxu0 0.0
      %4098 = vmatpush1.xpose.msra.mxu0 0.0
      %4099 = vmatprep.subr.mxu0 0.0
      %4100 = vmatpush1.xpose.msra.mxu0 0.0
      %4101 = vmatprep.subr.mxu0 0.0
      %4102 = vmatpush1.xpose.msra.mxu0 0.0
      %4103 = vmatprep.subr.mxu0 0.0
      %4104 = vmatpush1.xpose.msra.mxu0 0.0
      %4105 = vmatprep.subr.mxu0 0.0
      %4106 = vmatpush1.xpose.msra.mxu0 0.0
      %4107 = vmatprep.subr.mxu0 0.0
      %4108 = vmatpush1.xpose.msra.mxu0 0.0
      %4109 = vmatprep.subr.mxu0 0.0
      %4110 = vmatpush1.xpose.msra.mxu0 0.0
      %4111 = vmatprep.subr.mxu0 0.0
      %4112 = vmatpush1.xpose.msra.mxu0 0.0
      %4113 = vmatprep.subr.mxu0 0.0
      %4114 = vmatpush1.xpose.msra.mxu0 0.0
      %4115 = vmatprep.subr.mxu0 0.0
      %4116 = vmatpush1.xpose.msra.mxu0 0.0
      %4117 = vmatprep.subr.mxu0 0.0
      %4118 = vmatpush1.xpose.msra.mxu0 0.0
      %4119 = vmatprep.subr.mxu0 0.0
      %4120 = vmatpush1.xpose.msra.mxu0 0.0
      %4121 = vmatprep.subr.mxu0 0.0
      %4122 = vmatpush1.xpose.msra.mxu0 0.0
      %4123 = vmatprep.subr.mxu0 0.0
      %4124 = vmatpush1.xpose.msra.mxu0 0.0
      %4125 = vmatprep.subr.mxu0 0.0
      %4126 = vmatpush1.xpose.msra.mxu0 0.0
      %4127 = vmatprep.subr.mxu0 0.0
      %4128 = vmatpush1.xpose.msra.mxu0 %v4095
      %4129 = vmatprep.subr.mxu0 0.0
      %4130 = vmatpush2.xpose.msra.mxu0 0.0
      %4131 = vmatprep.subr.mxu0 0.0
      %4132 = vmatpush2.xpose.msra.mxu0 0.0
      %4133 = vmatprep.subr.mxu0 0.0
      %4134 = vmatpush2.xpose.msra.mxu0 0.0
      %4135 = vmatprep.subr.mxu0 0.0
      %4136 = vmatpush2.xpose.msra.mxu0 0.0
      %4137 = vmatprep.subr.mxu0 0.0
      %4138 = vmatpush2.xpose.msra.mxu0 0.0
      %4139 = vmatprep.subr.mxu0 0.0
      %4140 = vmatpush2.xpose.msra.mxu0 0.0
      %4141 = vmatprep.subr.mxu0 0.0
      %4142 = vmatpush2.xpose.msra.mxu0 0.0
      %4143 = vmatprep.subr.mxu0 0.0
      %4144 = vmatpush2.xpose.msra.mxu0 0.0
      %4145 = vmatprep.subr.mxu0 0.0
      %4146 = vmatpush2.xpose.msra.mxu0 0.0
      %4147 = vmatprep.subr.mxu0 0.0
      %4148 = vmatpush2.xpose.msra.mxu0 0.0
      %4149 = vmatprep.subr.mxu0 0.0
      %4150 = vmatpush2.xpose.msra.mxu0 0.0
      %4151 = vmatprep.subr.mxu0 0.0
      %4152 = vmatpush2.xpose.msra.mxu0 0.0
      %4153 = vmatprep.subr.mxu0 0.0
      %4154 = vmatpush2.xpose.msra.mxu0 0.0
      %4155 = vmatprep.subr.mxu0 0.0
      %4156 = vmatpush2.xpose.msra.mxu0 0.0
      %4157 = vmatprep.subr.mxu0 0.0
      %4158 = vmatpush2.xpose.msra.mxu0 0.0
      %4159 = vmatprep.subr.mxu0 0.0
      %4160 = vmatpush2.xpose.msra.mxu0 0.0
      %4161 = vmatprep.mubr.f32.mxu0 0.0
      %4162 = vmatmul.mubr.f32.gmra.mxu0 %v4093
      %v4163 = vpop.f32.mrf.mxu0
      %v4164 = vadd.f32 0.0, %v4163
      %v4165 = vpop.f32.mrf.mxu0
      %4166 = vdwg.mxu0
      %4167 = vrot.lane.b32.xlu0 %v839, 112
      %v4168 = vpop.permute.xlu0 %4167
      %4169 = vrot.lane.b32.xlu0 %v839, 80
      %v4170 = vpop.permute.xlu0 %4169
      %v4171 = vsel %vm855, %v4168, 0
      %v4173 = vsel %vm855, %v4170, 0
      %4175 = vmatprep.subr.mxu0 0.0
      %4176 = vmatpush1.xpose.msra.mxu0 0.0
      %4177 = vmatprep.subr.mxu0 0.0
      %4178 = vmatpush1.xpose.msra.mxu0 0.0
      %4179 = vmatprep.subr.mxu0 0.0
      %4180 = vmatpush1.xpose.msra.mxu0 0.0
      %4181 = vmatprep.subr.mxu0 0.0
      %4182 = vmatpush1.xpose.msra.mxu0 0.0
      %4183 = vmatprep.subr.mxu0 0.0
      %4184 = vmatpush1.xpose.msra.mxu0 0.0
      %4185 = vmatprep.subr.mxu0 0.0
      %4186 = vmatpush1.xpose.msra.mxu0 0.0
      %4187 = vmatprep.subr.mxu0 0.0
      %4188 = vmatpush1.xpose.msra.mxu0 0.0
      %4189 = vmatprep.subr.mxu0 0.0
      %4190 = vmatpush1.xpose.msra.mxu0 0.0
      %4191 = vmatprep.subr.mxu0 0.0
      %4192 = vmatpush1.xpose.msra.mxu0 0.0
      %4193 = vmatprep.subr.mxu0 0.0
      %4194 = vmatpush1.xpose.msra.mxu0 0.0
      %4195 = vmatprep.subr.mxu0 0.0
      %4196 = vmatpush1.xpose.msra.mxu0 0.0
      %4197 = vmatprep.subr.mxu0 0.0
      %4198 = vmatpush1.xpose.msra.mxu0 0.0
      %4199 = vmatprep.subr.mxu0 0.0
      %4200 = vmatpush1.xpose.msra.mxu0 0.0
      %4201 = vmatprep.subr.mxu0 0.0
      %4202 = vmatpush1.xpose.msra.mxu0 0.0
      %4203 = vmatprep.subr.mxu0 0.0
      %4204 = vmatpush1.xpose.msra.mxu0 0.0
      %4205 = vmatprep.subr.mxu0 0.0
      %4206 = vmatpush1.xpose.msra.mxu0 %v4173
      %4207 = vmatprep.subr.mxu0 0.0
      %4208 = vmatpush2.xpose.msra.mxu0 0.0
      %4209 = vmatprep.subr.mxu0 0.0
      %4210 = vmatpush2.xpose.msra.mxu0 0.0
      %4211 = vmatprep.subr.mxu0 0.0
      %4212 = vmatpush2.xpose.msra.mxu0 0.0
      %4213 = vmatprep.subr.mxu0 0.0
      %4214 = vmatpush2.xpose.msra.mxu0 0.0
      %4215 = vmatprep.subr.mxu0 0.0
      %4216 = vmatpush2.xpose.msra.mxu0 0.0
      %4217 = vmatprep.subr.mxu0 0.0
      %4218 = vmatpush2.xpose.msra.mxu0 0.0
      %4219 = vmatprep.subr.mxu0 0.0
      %4220 = vmatpush2.xpose.msra.mxu0 0.0
      %4221 = vmatprep.subr.mxu0 0.0
      %4222 = vmatpush2.xpose.msra.mxu0 0.0
      %4223 = vmatprep.subr.mxu0 0.0
      %4224 = vmatpush2.xpose.msra.mxu0 0.0
      %4225 = vmatprep.subr.mxu0 0.0
      %4226 = vmatpush2.xpose.msra.mxu0 0.0
      %4227 = vmatprep.subr.mxu0 0.0
      %4228 = vmatpush2.xpose.msra.mxu0 0.0
      %4229 = vmatprep.subr.mxu0 0.0
      %4230 = vmatpush2.xpose.msra.mxu0 0.0
      %4231 = vmatprep.subr.mxu0 0.0
      %4232 = vmatpush2.xpose.msra.mxu0 0.0
      %4233 = vmatprep.subr.mxu0 0.0
      %4234 = vmatpush2.xpose.msra.mxu0 0.0
      %4235 = vmatprep.subr.mxu0 0.0
      %4236 = vmatpush2.xpose.msra.mxu0 0.0
      %4237 = vmatprep.subr.mxu0 0.0
      %4238 = vmatpush2.xpose.msra.mxu0 0.0
      %4239 = vmatprep.mubr.f32.mxu0 0.0
      %4240 = vmatmul.mubr.f32.gmra.mxu0 %v4171
      %v4241 = vpop.f32.mrf.mxu0
      %v4242 = vadd.f32 0.0, %v4241
      %v4243 = vpop.f32.mrf.mxu0
      %4244 = vdwg.mxu0
      %4245 = vrot.lane.b32.xlu0 %v844, 112
      %v4246 = vpop.permute.xlu0 %4245
      %4247 = vrot.lane.b32.xlu0 %v844, 80
      %v4248 = vpop.permute.xlu0 %4247
      %v4249 = vsel %vm855, %v4246, 0
      %v4251 = vsel %vm855, %v4248, 0
      %4253 = vmatprep.subr.mxu0 0.0
      %4254 = vmatpush1.xpose.msra.mxu0 0.0
      %4255 = vmatprep.subr.mxu0 0.0
      %4256 = vmatpush1.xpose.msra.mxu0 0.0
      %4257 = vmatprep.subr.mxu0 0.0
      %4258 = vmatpush1.xpose.msra.mxu0 0.0
      %4259 = vmatprep.subr.mxu0 0.0
      %4260 = vmatpush1.xpose.msra.mxu0 0.0
      %4261 = vmatprep.subr.mxu0 0.0
      %4262 = vmatpush1.xpose.msra.mxu0 0.0
      %4263 = vmatprep.subr.mxu0 0.0
      %4264 = vmatpush1.xpose.msra.mxu0 0.0
      %4265 = vmatprep.subr.mxu0 0.0
      %4266 = vmatpush1.xpose.msra.mxu0 0.0
      %4267 = vmatprep.subr.mxu0 0.0
      %4268 = vmatpush1.xpose.msra.mxu0 0.0
      %4269 = vmatprep.subr.mxu0 0.0
      %4270 = vmatpush1.xpose.msra.mxu0 0.0
      %4271 = vmatprep.subr.mxu0 0.0
      %4272 = vmatpush1.xpose.msra.mxu0 0.0
      %4273 = vmatprep.subr.mxu0 0.0
      %4274 = vmatpush1.xpose.msra.mxu0 0.0
      %4275 = vmatprep.subr.mxu0 0.0
      %4276 = vmatpush1.xpose.msra.mxu0 0.0
      %4277 = vmatprep.subr.mxu0 0.0
      %4278 = vmatpush1.xpose.msra.mxu0 0.0
      %4279 = vmatprep.subr.mxu0 0.0
      %4280 = vmatpush1.xpose.msra.mxu0 0.0
      %4281 = vmatprep.subr.mxu0 0.0
      %4282 = vmatpush1.xpose.msra.mxu0 0.0
      %4283 = vmatprep.subr.mxu0 0.0
      %4284 = vmatpush1.xpose.msra.mxu0 %v4251
      %4285 = vmatprep.subr.mxu0 0.0
      %4286 = vmatpush2.xpose.msra.mxu0 0.0
      %4287 = vmatprep.subr.mxu0 0.0
      %4288 = vmatpush2.xpose.msra.mxu0 0.0
      %4289 = vmatprep.subr.mxu0 0.0
      %4290 = vmatpush2.xpose.msra.mxu0 0.0
      %4291 = vmatprep.subr.mxu0 0.0
      %4292 = vmatpush2.xpose.msra.mxu0 0.0
      %4293 = vmatprep.subr.mxu0 0.0
      %4294 = vmatpush2.xpose.msra.mxu0 0.0
      %4295 = vmatprep.subr.mxu0 0.0
      %4296 = vmatpush2.xpose.msra.mxu0 0.0
      %4297 = vmatprep.subr.mxu0 0.0
      %4298 = vmatpush2.xpose.msra.mxu0 0.0
      %4299 = vmatprep.subr.mxu0 0.0
      %4300 = vmatpush2.xpose.msra.mxu0 0.0
      %4301 = vmatprep.subr.mxu0 0.0
      %4302 = vmatpush2.xpose.msra.mxu0 0.0
      %4303 = vmatprep.subr.mxu0 0.0
      %4304 = vmatpush2.xpose.msra.mxu0 0.0
      %4305 = vmatprep.subr.mxu0 0.0
      %4306 = vmatpush2.xpose.msra.mxu0 0.0
      %4307 = vmatprep.subr.mxu0 0.0
      %4308 = vmatpush2.xpose.msra.mxu0 0.0
      %4309 = vmatprep.subr.mxu0 0.0
      %4310 = vmatpush2.xpose.msra.mxu0 0.0
      %4311 = vmatprep.subr.mxu0 0.0
      %4312 = vmatpush2.xpose.msra.mxu0 0.0
      %4313 = vmatprep.subr.mxu0 0.0
      %4314 = vmatpush2.xpose.msra.mxu0 0.0
      %4315 = vmatprep.subr.mxu0 0.0
      %4316 = vmatpush2.xpose.msra.mxu0 0.0
      %4317 = vmatprep.mubr.f32.mxu0 0.0
      %4318 = vmatmul.mubr.f32.gmra.mxu0 %v4249
      %v4319 = vpop.f32.mrf.mxu0
      %v4320 = vadd.f32 0.0, %v4319
      %v4321 = vpop.f32.mrf.mxu0
      %4322 = vdwg.mxu0
      %4323 = vrot.lane.b32.xlu0 %v849, 112
      %v4324 = vpop.permute.xlu0 %4323
      %4325 = vrot.lane.b32.xlu0 %v849, 80
      %v4326 = vpop.permute.xlu0 %4325
      %v4327 = vsel %vm855, %v4324, 0
      %v4329 = vsel %vm855, %v4326, 0
      %4331 = vmatprep.subr.mxu0 0.0
      %4332 = vmatpush1.xpose.msra.mxu0 0.0
      %4333 = vmatprep.subr.mxu0 0.0
      %4334 = vmatpush1.xpose.msra.mxu0 0.0
      %4335 = vmatprep.subr.mxu0 0.0
      %4336 = vmatpush1.xpose.msra.mxu0 0.0
      %4337 = vmatprep.subr.mxu0 0.0
      %4338 = vmatpush1.xpose.msra.mxu0 0.0
      %4339 = vmatprep.subr.mxu0 0.0
      %4340 = vmatpush1.xpose.msra.mxu0 0.0
      %4341 = vmatprep.subr.mxu0 0.0
      %4342 = vmatpush1.xpose.msra.mxu0 0.0
      %4343 = vmatprep.subr.mxu0 0.0
      %4344 = vmatpush1.xpose.msra.mxu0 0.0
      %4345 = vmatprep.subr.mxu0 0.0
      %4346 = vmatpush1.xpose.msra.mxu0 0.0
      %4347 = vmatprep.subr.mxu0 0.0
      %4348 = vmatpush1.xpose.msra.mxu0 0.0
      %4349 = vmatprep.subr.mxu0 0.0
      %4350 = vmatpush1.xpose.msra.mxu0 0.0
      %4351 = vmatprep.subr.mxu0 0.0
      %4352 = vmatpush1.xpose.msra.mxu0 0.0
      %4353 = vmatprep.subr.mxu0 0.0
      %4354 = vmatpush1.xpose.msra.mxu0 0.0
      %4355 = vmatprep.subr.mxu0 0.0
      %4356 = vmatpush1.xpose.msra.mxu0 0.0
      %4357 = vmatprep.subr.mxu0 0.0
      %4358 = vmatpush1.xpose.msra.mxu0 0.0
      %4359 = vmatprep.subr.mxu0 0.0
      %4360 = vmatpush1.xpose.msra.mxu0 0.0
      %4361 = vmatprep.subr.mxu0 0.0
      %4362 = vmatpush1.xpose.msra.mxu0 %v4329
      %4363 = vmatprep.subr.mxu0 0.0
      %4364 = vmatpush2.xpose.msra.mxu0 0.0
      %4365 = vmatprep.subr.mxu0 0.0
      %4366 = vmatpush2.xpose.msra.mxu0 0.0
      %4367 = vmatprep.subr.mxu0 0.0
      %4368 = vmatpush2.xpose.msra.mxu0 0.0
      %4369 = vmatprep.subr.mxu0 0.0
      %4370 = vmatpush2.xpose.msra.mxu0 0.0
      %4371 = vmatprep.subr.mxu0 0.0
      %4372 = vmatpush2.xpose.msra.mxu0 0.0
      %4373 = vmatprep.subr.mxu0 0.0
      %4374 = vmatpush2.xpose.msra.mxu0 0.0
      %4375 = vmatprep.subr.mxu0 0.0
      %4376 = vmatpush2.xpose.msra.mxu0 0.0
      %4377 = vmatprep.subr.mxu0 0.0
      %4378 = vmatpush2.xpose.msra.mxu0 0.0
      %4379 = vmatprep.subr.mxu0 0.0
      %4380 = vmatpush2.xpose.msra.mxu0 0.0
      %4381 = vmatprep.subr.mxu0 0.0
      %4382 = vmatpush2.xpose.msra.mxu0 0.0
      %4383 = vmatprep.subr.mxu0 0.0
      %4384 = vmatpush2.xpose.msra.mxu0 0.0
      %4385 = vmatprep.subr.mxu0 0.0
      %4386 = vmatpush2.xpose.msra.mxu0 0.0
      %4387 = vmatprep.subr.mxu0 0.0
      %4388 = vmatpush2.xpose.msra.mxu0 0.0
      %4389 = vmatprep.subr.mxu0 0.0
      %4390 = vmatpush2.xpose.msra.mxu0 0.0
      %4391 = vmatprep.subr.mxu0 0.0
      %4392 = vmatpush2.xpose.msra.mxu0 0.0
      %4393 = vmatprep.subr.mxu0 0.0
      %4394 = vmatpush2.xpose.msra.mxu0 0.0
      %4395 = vmatprep.mubr.f32.mxu0 0.0
      %4396 = vmatmul.mubr.f32.gmra.mxu0 %v4327
      %v4397 = vpop.f32.mrf.mxu0
      %v4398 = vadd.f32 0.0, %v4397
      %v4399 = vpop.f32.mrf.mxu0
      %4400 = vdwg.mxu0
      %v4401 = vmul.f32 %v3852, 0.35355338
      %v4402 = vmul.f32 %v3930, 0.35355338
      %v4403 = vmul.f32 %v4008, 0.35355338
      %v4404 = vmul.f32 %v4086, 0.35355338
      %v4405 = vmul.f32 %v4164, 0.35355338
      %v4406 = vmul.f32 %v4242, 0.35355338
      %v4407 = vmul.f32 %v4320, 0.35355338
      %v4408 = vmul.f32 %v4398, 0.35355338
      %v4409 = vsel %vm703, -1e+09, %v4401
      %v4410 = vsel %vm704, -1e+09, %v4402
      %v4411 = vsel %vm705, -1e+09, %v4403
      %v4412 = vsel %vm706, -1e+09, %v4404
      %v4413 = vsel %vm707, -1e+09, %v4405
      %v4414 = vsel %vm708, -1e+09, %v4406
      %v4415 = vsel %vm709, -1e+09, %v4407
      %v4416 = vsel %vm710, -1e+09, %v4408
      %v4417 = vsel %vm855, %v4409, -inf
      %4418 = vmax.xlane.f32.xlu0 %v4417
      %v4419 = vpop.xlane.xlu0 %4418
      %v4420 = vsel %vm855, %v4410, -inf
      %4421 = vmax.xlane.f32.xlu0 %v4420
      %v4422 = vpop.xlane.xlu0 %4421
      %v4423 = vsel %vm855, %v4411, -inf
      %4424 = vmax.xlane.f32.xlu0 %v4423
      %v4425 = vpop.xlane.xlu0 %4424
      %v4426 = vsel %vm855, %v4412, -inf
      %4427 = vmax.xlane.f32.xlu0 %v4426
      %v4428 = vpop.xlane.xlu0 %4427
      %v4429 = vsel %vm855, %v4413, -inf
      %4430 = vmax.xlane.f32.xlu0 %v4429
      %v4431 = vpop.xlane.xlu0 %4430
      %v4432 = vsel %vm855, %v4414, -inf
      %4433 = vmax.xlane.f32.xlu0 %v4432
      %v4434 = vpop.xlane.xlu0 %4433
      %v4435 = vsel %vm855, %v4415, -inf
      %4436 = vmax.xlane.f32.xlu0 %v4435
      %v4437 = vpop.xlane.xlu0 %4436
      %v4438 = vsel %vm855, %v4416, -inf
      %4439 = vmax.xlane.f32.xlu0 %v4438
      %v4440 = vpop.xlane.xlu0 %4439
      %v4441 = vsub.f32 %v4409, %v4419
      %v4442 = vsub.f32 %v4410, %v4422
      %v4443 = vsub.f32 %v4411, %v4425
      %v4444 = vsub.f32 %v4412, %v4428
      %v4445 = vsub.f32 %v4413, %v4431
      %v4446 = vsub.f32 %v4414, %v4434
      %v4447 = vsub.f32 %v4415, %v4437
      %v4448 = vsub.f32 %v4416, %v4440
      %v4449 = vmul.f32 %v4441, 1.442695
      %v4450 = vpow.pop %v4449
      %v4451 = vmul.f32 %v4442, 1.442695
      %v4452 = vpow.pop %v4451
      %v4453 = vmul.f32 %v4443, 1.442695
      %v4454 = vpow.pop %v4453
      %v4455 = vmul.f32 %v4444, 1.442695
      %v4456 = vpow.pop %v4455
      %v4457 = vmul.f32 %v4445, 1.442695
      %v4458 = vpow.pop %v4457
      %v4459 = vmul.f32 %v4446, 1.442695
      %v4460 = vpow.pop %v4459
      %v4461 = vmul.f32 %v4447, 1.442695
      %v4462 = vpow.pop %v4461
      %v4463 = vmul.f32 %v4448, 1.442695
      %v4464 = vpow.pop %v4463
      %v4465 = vsel %vm855, %v4450, 0.0
      %4466 = vadd.xlane.f32.xlu0 %v4465
      %v4467 = vpop.xlane.xlu0 %4466
      %v4468 = vsel %vm855, %v4452, 0.0
      %4469 = vadd.xlane.f32.xlu0 %v4468
      %v4470 = vpop.xlane.xlu0 %4469
      %v4471 = vsel %vm855, %v4454, 0.0
      %4472 = vadd.xlane.f32.xlu0 %v4471
      %v4473 = vpop.xlane.xlu0 %4472
      %v4474 = vsel %vm855, %v4456, 0.0
      %4475 = vadd.xlane.f32.xlu0 %v4474
      %v4476 = vpop.xlane.xlu0 %4475
      %v4477 = vsel %vm855, %v4458, 0.0
      %4478 = vadd.xlane.f32.xlu0 %v4477
      %v4479 = vpop.xlane.xlu0 %4478
      %v4480 = vsel %vm855, %v4460, 0.0
      %4481 = vadd.xlane.f32.xlu0 %v4480
      %v4482 = vpop.xlane.xlu0 %4481
      %v4483 = vsel %vm855, %v4462, 0.0
      %4484 = vadd.xlane.f32.xlu0 %v4483
      %v4485 = vpop.xlane.xlu0 %4484
      %v4486 = vsel %vm855, %v4464, 0.0
      %4487 = vadd.xlane.f32.xlu0 %v4486
      %v4488 = vpop.xlane.xlu0 %4487
      %v4489 = vrcp.pop %v4467
      %v4490 = vrcp.pop %v4470
      %v4491 = vrcp.pop %v4473
      %v4492 = vrcp.pop %v4476
      %v4493 = vrcp.pop %v4479
      %v4494 = vrcp.pop %v4482
      %v4495 = vrcp.pop %v4485
      %v4496 = vrcp.pop %v4488
      %v4497 = vmul.f32 %v4450, %v4489
      %v4498 = vmul.f32 %v4452, %v4490
      %v4499 = vmul.f32 %v4454, %v4491
      %v4500 = vmul.f32 %v4456, %v4492
      %v4501 = vmul.f32 %v4458, %v4493
      %v4502 = vmul.f32 %v4460, %v4494
      %v4503 = vmul.f32 %v4462, %v4495
      %v4504 = vmul.f32 %v4464, %v4496
      %4505 = vrot.lane.b32.xlu0 %v814, 48
      %v4506 = vpop.permute.xlu0 %4505
      %v4509 = vsel %vm855, %v4497, 0
      %4511 = vmatprep.subr.mxu0 0.0
      %4512 = vmatpush1.msra.mxu0 0.0
      %4513 = vmatprep.subr.mxu0 0.0
      %4514 = vmatpush1.msra.mxu0 0.0
      %4515 = vmatprep.subr.mxu0 0.0
      %4516 = vmatpush1.msra.mxu0 0.0
      %4517 = vmatprep.subr.mxu0 0.0
      %4518 = vmatpush1.msra.mxu0 0.0
      %4519 = vmatprep.subr.mxu0 0.0
      %4520 = vmatpush1.msra.mxu0 0.0
      %4521 = vmatprep.subr.mxu0 0.0
      %4522 = vmatpush1.msra.mxu0 0.0
      %4523 = vmatprep.subr.mxu0 0.0
      %4524 = vmatpush1.msra.mxu0 0.0
      %4525 = vmatprep.subr.mxu0 0.0
      %4526 = vmatpush1.msra.mxu0 0.0
      %4527 = vmatprep.subr.mxu0 0.0
      %4528 = vmatpush1.msra.mxu0 0.0
      %4529 = vmatprep.subr.mxu0 0.0
      %4530 = vmatpush1.msra.mxu0 0.0
      %4531 = vmatprep.subr.mxu0 0.0
      %4532 = vmatpush1.msra.mxu0 0.0
      %4533 = vmatprep.subr.mxu0 0.0
      %4534 = vmatpush1.msra.mxu0 0.0
      %4535 = vmatprep.subr.mxu0 0.0
      %4536 = vmatpush1.msra.mxu0 0.0
      %4537 = vmatprep.subr.mxu0 0.0
      %4538 = vmatpush1.msra.mxu0 0.0
      %4539 = vmatprep.subr.mxu0 0.0
      %4540 = vmatpush1.msra.mxu0 0.0
      %4541 = vmatprep.subr.mxu0 0.0
      %4542 = vmatpush1.msra.mxu0 %v4506
      %4543 = vmatprep.subr.mxu0 0.0
      %4544 = vmatpush2.msra.mxu0 0.0
      %4545 = vmatprep.subr.mxu0 0.0
      %4546 = vmatpush2.msra.mxu0 0.0
      %4547 = vmatprep.subr.mxu0 0.0
      %4548 = vmatpush2.msra.mxu0 0.0
      %4549 = vmatprep.subr.mxu0 0.0
      %4550 = vmatpush2.msra.mxu0 0.0
      %4551 = vmatprep.subr.mxu0 0.0
      %4552 = vmatpush2.msra.mxu0 0.0
      %4553 = vmatprep.subr.mxu0 0.0
      %4554 = vmatpush2.msra.mxu0 0.0
      %4555 = vmatprep.subr.mxu0 0.0
      %4556 = vmatpush2.msra.mxu0 0.0
      %4557 = vmatprep.subr.mxu0 0.0
      %4558 = vmatpush2.msra.mxu0 0.0
      %4559 = vmatprep.subr.mxu0 0.0
      %4560 = vmatpush2.msra.mxu0 0.0
      %4561 = vmatprep.subr.mxu0 0.0
      %4562 = vmatpush2.msra.mxu0 0.0
      %4563 = vmatprep.subr.mxu0 0.0
      %4564 = vmatpush2.msra.mxu0 0.0
      %4565 = vmatprep.subr.mxu0 0.0
      %4566 = vmatpush2.msra.mxu0 0.0
      %4567 = vmatprep.subr.mxu0 0.0
      %4568 = vmatpush2.msra.mxu0 0.0
      %4569 = vmatprep.subr.mxu0 0.0
      %4570 = vmatpush2.msra.mxu0 0.0
      %4571 = vmatprep.subr.mxu0 0.0
      %4572 = vmatpush2.msra.mxu0 0.0
      %4573 = vmatprep.subr.mxu0 0.0
      %4574 = vmatpush2.msra.mxu0 0.0
      %4575 = vmatprep.mubr.f32.mxu0 0.0
      %4576 = vmatmul.mubr.f32.gmra.mxu0 %v4509
      %v4577 = vpop.f32.mrf.mxu0
      %v4578 = vadd.f32 0.0, %v4577
      %v4579 = vpop.f32.mrf.mxu0
      %4580 = vdwg.mxu0
      %4581 = vrot.lane.b32.xlu0 %v819, 48
      %v4582 = vpop.permute.xlu0 %4581
      %v4585 = vsel %vm855, %v4498, 0
      %4587 = vmatprep.subr.mxu0 0.0
      %4588 = vmatpush1.msra.mxu0 0.0
      %4589 = vmatprep.subr.mxu0 0.0
      %4590 = vmatpush1.msra.mxu0 0.0
      %4591 = vmatprep.subr.mxu0 0.0
      %4592 = vmatpush1.msra.mxu0 0.0
      %4593 = vmatprep.subr.mxu0 0.0
      %4594 = vmatpush1.msra.mxu0 0.0
      %4595 = vmatprep.subr.mxu0 0.0
      %4596 = vmatpush1.msra.mxu0 0.0
      %4597 = vmatprep.subr.mxu0 0.0
      %4598 = vmatpush1.msra.mxu0 0.0
      %4599 = vmatprep.subr.mxu0 0.0
      %4600 = vmatpush1.msra.mxu0 0.0
      %4601 = vmatprep.subr.mxu0 0.0
      %4602 = vmatpush1.msra.mxu0 0.0
      %4603 = vmatprep.subr.mxu0 0.0
      %4604 = vmatpush1.msra.mxu0 0.0
      %4605 = vmatprep.subr.mxu0 0.0
      %4606 = vmatpush1.msra.mxu0 0.0
      %4607 = vmatprep.subr.mxu0 0.0
      %4608 = vmatpush1.msra.mxu0 0.0
      %4609 = vmatprep.subr.mxu0 0.0
      %4610 = vmatpush1.msra.mxu0 0.0
      %4611 = vmatprep.subr.mxu0 0.0
      %4612 = vmatpush1.msra.mxu0 0.0
      %4613 = vmatprep.subr.mxu0 0.0
      %4614 = vmatpush1.msra.mxu0 0.0
      %4615 = vmatprep.subr.mxu0 0.0
      %4616 = vmatpush1.msra.mxu0 0.0
      %4617 = vmatprep.subr.mxu0 0.0
      %4618 = vmatpush1.msra.mxu0 %v4582
      %4619 = vmatprep.subr.mxu0 0.0
      %4620 = vmatpush2.msra.mxu0 0.0
      %4621 = vmatprep.subr.mxu0 0.0
      %4622 = vmatpush2.msra.mxu0 0.0
      %4623 = vmatprep.subr.mxu0 0.0
      %4624 = vmatpush2.msra.mxu0 0.0
      %4625 = vmatprep.subr.mxu0 0.0
      %4626 = vmatpush2.msra.mxu0 0.0
      %4627 = vmatprep.subr.mxu0 0.0
      %4628 = vmatpush2.msra.mxu0 0.0
      %4629 = vmatprep.subr.mxu0 0.0
      %4630 = vmatpush2.msra.mxu0 0.0
      %4631 = vmatprep.subr.mxu0 0.0
      %4632 = vmatpush2.msra.mxu0 0.0
      %4633 = vmatprep.subr.mxu0 0.0
      %4634 = vmatpush2.msra.mxu0 0.0
      %4635 = vmatprep.subr.mxu0 0.0
      %4636 = vmatpush2.msra.mxu0 0.0
      %4637 = vmatprep.subr.mxu0 0.0
      %4638 = vmatpush2.msra.mxu0 0.0
      %4639 = vmatprep.subr.mxu0 0.0
      %4640 = vmatpush2.msra.mxu0 0.0
      %4641 = vmatprep.subr.mxu0 0.0
      %4642 = vmatpush2.msra.mxu0 0.0
      %4643 = vmatprep.subr.mxu0 0.0
      %4644 = vmatpush2.msra.mxu0 0.0
      %4645 = vmatprep.subr.mxu0 0.0
      %4646 = vmatpush2.msra.mxu0 0.0
      %4647 = vmatprep.subr.mxu0 0.0
      %4648 = vmatpush2.msra.mxu0 0.0
      %4649 = vmatprep.subr.mxu0 0.0
      %4650 = vmatpush2.msra.mxu0 0.0
      %4651 = vmatprep.mubr.f32.mxu0 0.0
      %4652 = vmatmul.mubr.f32.gmra.mxu0 %v4585
      %v4653 = vpop.f32.mrf.mxu0
      %v4654 = vadd.f32 0.0, %v4653
      %v4655 = vpop.f32.mrf.mxu0
      %4656 = vdwg.mxu0
      %4657 = vrot.lane.b32.xlu0 %v824, 48
      %v4658 = vpop.permute.xlu0 %4657
      %v4661 = vsel %vm855, %v4499, 0
      %4663 = vmatprep.subr.mxu0 0.0
      %4664 = vmatpush1.msra.mxu0 0.0
      %4665 = vmatprep.subr.mxu0 0.0
      %4666 = vmatpush1.msra.mxu0 0.0
      %4667 = vmatprep.subr.mxu0 0.0
      %4668 = vmatpush1.msra.mxu0 0.0
      %4669 = vmatprep.subr.mxu0 0.0
      %4670 = vmatpush1.msra.mxu0 0.0
      %4671 = vmatprep.subr.mxu0 0.0
      %4672 = vmatpush1.msra.mxu0 0.0
      %4673 = vmatprep.subr.mxu0 0.0
      %4674 = vmatpush1.msra.mxu0 0.0
      %4675 = vmatprep.subr.mxu0 0.0
      %4676 = vmatpush1.msra.mxu0 0.0
      %4677 = vmatprep.subr.mxu0 0.0
      %4678 = vmatpush1.msra.mxu0 0.0
      %4679 = vmatprep.subr.mxu0 0.0
      %4680 = vmatpush1.msra.mxu0 0.0
      %4681 = vmatprep.subr.mxu0 0.0
      %4682 = vmatpush1.msra.mxu0 0.0
      %4683 = vmatprep.subr.mxu0 0.0
      %4684 = vmatpush1.msra.mxu0 0.0
      %4685 = vmatprep.subr.mxu0 0.0
      %4686 = vmatpush1.msra.mxu0 0.0
      %4687 = vmatprep.subr.mxu0 0.0
      %4688 = vmatpush1.msra.mxu0 0.0
      %4689 = vmatprep.subr.mxu0 0.0
      %4690 = vmatpush1.msra.mxu0 0.0
      %4691 = vmatprep.subr.mxu0 0.0
      %4692 = vmatpush1.msra.mxu0 0.0
      %4693 = vmatprep.subr.mxu0 0.0
      %4694 = vmatpush1.msra.mxu0 %v4658
      %4695 = vmatprep.subr.mxu0 0.0
      %4696 = vmatpush2.msra.mxu0 0.0
      %4697 = vmatprep.subr.mxu0 0.0
      %4698 = vmatpush2.msra.mxu0 0.0
      %4699 = vmatprep.subr.mxu0 0.0
      %4700 = vmatpush2.msra.mxu0 0.0
      %4701 = vmatprep.subr.mxu0 0.0
      %4702 = vmatpush2.msra.mxu0 0.0
      %4703 = vmatprep.subr.mxu0 0.0
      %4704 = vmatpush2.msra.mxu0 0.0
      %4705 = vmatprep.subr.mxu0 0.0
      %4706 = vmatpush2.msra.mxu0 0.0
      %4707 = vmatprep.subr.mxu0 0.0
      %4708 = vmatpush2.msra.mxu0 0.0
      %4709 = vmatprep.subr.mxu0 0.0
      %4710 = vmatpush2.msra.mxu0 0.0
      %4711 = vmatprep.subr.mxu0 0.0
      %4712 = vmatpush2.msra.mxu0 0.0
      %4713 = vmatprep.subr.mxu0 0.0
      %4714 = vmatpush2.msra.mxu0 0.0
      %4715 = vmatprep.subr.mxu0 0.0
      %4716 = vmatpush2.msra.mxu0 0.0
      %4717 = vmatprep.subr.mxu0 0.0
      %4718 = vmatpush2.msra.mxu0 0.0
      %4719 = vmatprep.subr.mxu0 0.0
      %4720 = vmatpush2.msra.mxu0 0.0
      %4721 = vmatprep.subr.mxu0 0.0
      %4722 = vmatpush2.msra.mxu0 0.0
      %4723 = vmatprep.subr.mxu0 0.0
      %4724 = vmatpush2.msra.mxu0 0.0
      %4725 = vmatprep.subr.mxu0 0.0
      %4726 = vmatpush2.msra.mxu0 0.0
      %4727 = vmatprep.mubr.f32.mxu0 0.0
      %4728 = vmatmul.mubr.f32.gmra.mxu0 %v4661
      %v4729 = vpop.f32.mrf.mxu0
      %v4730 = vadd.f32 0.0, %v4729
      %v4731 = vpop.f32.mrf.mxu0
      %4732 = vdwg.mxu0
      %4733 = vrot.lane.b32.xlu0 %v829, 48
      %v4734 = vpop.permute.xlu0 %4733
      %v4737 = vsel %vm855, %v4500, 0
      %4739 = vmatprep.subr.mxu0 0.0
      %4740 = vmatpush1.msra.mxu0 0.0
      %4741 = vmatprep.subr.mxu0 0.0
      %4742 = vmatpush1.msra.mxu0 0.0
      %4743 = vmatprep.subr.mxu0 0.0
      %4744 = vmatpush1.msra.mxu0 0.0
      %4745 = vmatprep.subr.mxu0 0.0
      %4746 = vmatpush1.msra.mxu0 0.0
      %4747 = vmatprep.subr.mxu0 0.0
      %4748 = vmatpush1.msra.mxu0 0.0
      %4749 = vmatprep.subr.mxu0 0.0
      %4750 = vmatpush1.msra.mxu0 0.0
      %4751 = vmatprep.subr.mxu0 0.0
      %4752 = vmatpush1.msra.mxu0 0.0
      %4753 = vmatprep.subr.mxu0 0.0
      %4754 = vmatpush1.msra.mxu0 0.0
      %4755 = vmatprep.subr.mxu0 0.0
      %4756 = vmatpush1.msra.mxu0 0.0
      %4757 = vmatprep.subr.mxu0 0.0
      %4758 = vmatpush1.msra.mxu0 0.0
      %4759 = vmatprep.subr.mxu0 0.0
      %4760 = vmatpush1.msra.mxu0 0.0
      %4761 = vmatprep.subr.mxu0 0.0
      %4762 = vmatpush1.msra.mxu0 0.0
      %4763 = vmatprep.subr.mxu0 0.0
      %4764 = vmatpush1.msra.mxu0 0.0
      %4765 = vmatprep.subr.mxu0 0.0
      %4766 = vmatpush1.msra.mxu0 0.0
      %4767 = vmatprep.subr.mxu0 0.0
      %4768 = vmatpush1.msra.mxu0 0.0
      %4769 = vmatprep.subr.mxu0 0.0
      %4770 = vmatpush1.msra.mxu0 %v4734
      %4771 = vmatprep.subr.mxu0 0.0
      %4772 = vmatpush2.msra.mxu0 0.0
      %4773 = vmatprep.subr.mxu0 0.0
      %4774 = vmatpush2.msra.mxu0 0.0
      %4775 = vmatprep.subr.mxu0 0.0
      %4776 = vmatpush2.msra.mxu0 0.0
      %4777 = vmatprep.subr.mxu0 0.0
      %4778 = vmatpush2.msra.mxu0 0.0
      %4779 = vmatprep.subr.mxu0 0.0
      %4780 = vmatpush2.msra.mxu0 0.0
      %4781 = vmatprep.subr.mxu0 0.0
      %4782 = vmatpush2.msra.mxu0 0.0
      %4783 = vmatprep.subr.mxu0 0.0
      %4784 = vmatpush2.msra.mxu0 0.0
      %4785 = vmatprep.subr.mxu0 0.0
      %4786 = vmatpush2.msra.mxu0 0.0
      %4787 = vmatprep.subr.mxu0 0.0
      %4788 = vmatpush2.msra.mxu0 0.0
      %4789 = vmatprep.subr.mxu0 0.0
      %4790 = vmatpush2.msra.mxu0 0.0
      %4791 = vmatprep.subr.mxu0 0.0
      %4792 = vmatpush2.msra.mxu0 0.0
      %4793 = vmatprep.subr.mxu0 0.0
      %4794 = vmatpush2.msra.mxu0 0.0
      %4795 = vmatprep.subr.mxu0 0.0
      %4796 = vmatpush2.msra.mxu0 0.0
      %4797 = vmatprep.subr.mxu0 0.0
      %4798 = vmatpush2.msra.mxu0 0.0
      %4799 = vmatprep.subr.mxu0 0.0
      %4800 = vmatpush2.msra.mxu0 0.0
      %4801 = vmatprep.subr.mxu0 0.0
      %4802 = vmatpush2.msra.mxu0 0.0
      %4803 = vmatprep.mubr.f32.mxu0 0.0
      %4804 = vmatmul.mubr.f32.gmra.mxu0 %v4737
      %v4805 = vpop.f32.mrf.mxu0
      %v4806 = vadd.f32 0.0, %v4805
      %v4807 = vpop.f32.mrf.mxu0
      %4808 = vdwg.mxu0
      %4809 = vrot.lane.b32.xlu0 %v834, 48
      %v4810 = vpop.permute.xlu0 %4809
      %v4813 = vsel %vm855, %v4501, 0
      %4815 = vmatprep.subr.mxu0 0.0
      %4816 = vmatpush1.msra.mxu0 0.0
      %4817 = vmatprep.subr.mxu0 0.0
      %4818 = vmatpush1.msra.mxu0 0.0
      %4819 = vmatprep.subr.mxu0 0.0
      %4820 = vmatpush1.msra.mxu0 0.0
      %4821 = vmatprep.subr.mxu0 0.0
      %4822 = vmatpush1.msra.mxu0 0.0
      %4823 = vmatprep.subr.mxu0 0.0
      %4824 = vmatpush1.msra.mxu0 0.0
      %4825 = vmatprep.subr.mxu0 0.0
      %4826 = vmatpush1.msra.mxu0 0.0
      %4827 = vmatprep.subr.mxu0 0.0
      %4828 = vmatpush1.msra.mxu0 0.0
      %4829 = vmatprep.subr.mxu0 0.0
      %4830 = vmatpush1.msra.mxu0 0.0
      %4831 = vmatprep.subr.mxu0 0.0
      %4832 = vmatpush1.msra.mxu0 0.0
      %4833 = vmatprep.subr.mxu0 0.0
      %4834 = vmatpush1.msra.mxu0 0.0
      %4835 = vmatprep.subr.mxu0 0.0
      %4836 = vmatpush1.msra.mxu0 0.0
      %4837 = vmatprep.subr.mxu0 0.0
      %4838 = vmatpush1.msra.mxu0 0.0
      %4839 = vmatprep.subr.mxu0 0.0
      %4840 = vmatpush1.msra.mxu0 0.0
      %4841 = vmatprep.subr.mxu0 0.0
      %4842 = vmatpush1.msra.mxu0 0.0
      %4843 = vmatprep.subr.mxu0 0.0
      %4844 = vmatpush1.msra.mxu0 0.0
      %4845 = vmatprep.subr.mxu0 0.0
      %4846 = vmatpush1.msra.mxu0 %v4810
      %4847 = vmatprep.subr.mxu0 0.0
      %4848 = vmatpush2.msra.mxu0 0.0
      %4849 = vmatprep.subr.mxu0 0.0
      %4850 = vmatpush2.msra.mxu0 0.0
      %4851 = vmatprep.subr.mxu0 0.0
      %4852 = vmatpush2.msra.mxu0 0.0
      %4853 = vmatprep.subr.mxu0 0.0
      %4854 = vmatpush2.msra.mxu0 0.0
      %4855 = vmatprep.subr.mxu0 0.0
      %4856 = vmatpush2.msra.mxu0 0.0
      %4857 = vmatprep.subr.mxu0 0.0
      %4858 = vmatpush2.msra.mxu0 0.0
      %4859 = vmatprep.subr.mxu0 0.0
      %4860 = vmatpush2.msra.mxu0 0.0
      %4861 = vmatprep.subr.mxu0 0.0
      %4862 = vmatpush2.msra.mxu0 0.0
      %4863 = vmatprep.subr.mxu0 0.0
      %4864 = vmatpush2.msra.mxu0 0.0
      %4865 = vmatprep.subr.mxu0 0.0
      %4866 = vmatpush2.msra.mxu0 0.0
      %4867 = vmatprep.subr.mxu0 0.0
      %4868 = vmatpush2.msra.mxu0 0.0
      %4869 = vmatprep.subr.mxu0 0.0
      %4870 = vmatpush2.msra.mxu0 0.0
      %4871 = vmatprep.subr.mxu0 0.0
      %4872 = vmatpush2.msra.mxu0 0.0
      %4873 = vmatprep.subr.mxu0 0.0
      %4874 = vmatpush2.msra.mxu0 0.0
      %4875 = vmatprep.subr.mxu0 0.0
      %4876 = vmatpush2.msra.mxu0 0.0
      %4877 = vmatprep.subr.mxu0 0.0
      %4878 = vmatpush2.msra.mxu0 0.0
      %4879 = vmatprep.mubr.f32.mxu0 0.0
      %4880 = vmatmul.mubr.f32.gmra.mxu0 %v4813
      %v4881 = vpop.f32.mrf.mxu0
      %v4882 = vadd.f32 0.0, %v4881
      %v4883 = vpop.f32.mrf.mxu0
      %4884 = vdwg.mxu0
      %4885 = vrot.lane.b32.xlu0 %v839, 48
      %v4886 = vpop.permute.xlu0 %4885
      %v4889 = vsel %vm855, %v4502, 0
      %4891 = vmatprep.subr.mxu0 0.0
      %4892 = vmatpush1.msra.mxu0 0.0
      %4893 = vmatprep.subr.mxu0 0.0
      %4894 = vmatpush1.msra.mxu0 0.0
      %4895 = vmatprep.subr.mxu0 0.0
      %4896 = vmatpush1.msra.mxu0 0.0
      %4897 = vmatprep.subr.mxu0 0.0
      %4898 = vmatpush1.msra.mxu0 0.0
      %4899 = vmatprep.subr.mxu0 0.0
      %4900 = vmatpush1.msra.mxu0 0.0
      %4901 = vmatprep.subr.mxu0 0.0
      %4902 = vmatpush1.msra.mxu0 0.0
      %4903 = vmatprep.subr.mxu0 0.0
      %4904 = vmatpush1.msra.mxu0 0.0
      %4905 = vmatprep.subr.mxu0 0.0
      %4906 = vmatpush1.msra.mxu0 0.0
      %4907 = vmatprep.subr.mxu0 0.0
      %4908 = vmatpush1.msra.mxu0 0.0
      %4909 = vmatprep.subr.mxu0 0.0
      %4910 = vmatpush1.msra.mxu0 0.0
      %4911 = vmatprep.subr.mxu0 0.0
      %4912 = vmatpush1.msra.mxu0 0.0
      %4913 = vmatprep.subr.mxu0 0.0
      %4914 = vmatpush1.msra.mxu0 0.0
      %4915 = vmatprep.subr.mxu0 0.0
      %4916 = vmatpush1.msra.mxu0 0.0
      %4917 = vmatprep.subr.mxu0 0.0
      %4918 = vmatpush1.msra.mxu0 0.0
      %4919 = vmatprep.subr.mxu0 0.0
      %4920 = vmatpush1.msra.mxu0 0.0
      %4921 = vmatprep.subr.mxu0 0.0
      %4922 = vmatpush1.msra.mxu0 %v4886
      %4923 = vmatprep.subr.mxu0 0.0
      %4924 = vmatpush2.msra.mxu0 0.0
      %4925 = vmatprep.subr.mxu0 0.0
      %4926 = vmatpush2.msra.mxu0 0.0
      %4927 = vmatprep.subr.mxu0 0.0
      %4928 = vmatpush2.msra.mxu0 0.0
      %4929 = vmatprep.subr.mxu0 0.0
      %4930 = vmatpush2.msra.mxu0 0.0
      %4931 = vmatprep.subr.mxu0 0.0
      %4932 = vmatpush2.msra.mxu0 0.0
      %4933 = vmatprep.subr.mxu0 0.0
      %4934 = vmatpush2.msra.mxu0 0.0
      %4935 = vmatprep.subr.mxu0 0.0
      %4936 = vmatpush2.msra.mxu0 0.0
      %4937 = vmatprep.subr.mxu0 0.0
      %4938 = vmatpush2.msra.mxu0 0.0
      %4939 = vmatprep.subr.mxu0 0.0
      %4940 = vmatpush2.msra.mxu0 0.0
      %4941 = vmatprep.subr.mxu0 0.0
      %4942 = vmatpush2.msra.mxu0 0.0
      %4943 = vmatprep.subr.mxu0 0.0
      %4944 = vmatpush2.msra.mxu0 0.0
      %4945 = vmatprep.subr.mxu0 0.0
      %4946 = vmatpush2.msra.mxu0 0.0
      %4947 = vmatprep.subr.mxu0 0.0
      %4948 = vmatpush2.msra.mxu0 0.0
      %4949 = vmatprep.subr.mxu0 0.0
      %4950 = vmatpush2.msra.mxu0 0.0
      %4951 = vmatprep.subr.mxu0 0.0
      %4952 = vmatpush2.msra.mxu0 0.0
      %4953 = vmatprep.subr.mxu0 0.0
      %4954 = vmatpush2.msra.mxu0 0.0
      %4955 = vmatprep.mubr.f32.mxu0 0.0
      %4956 = vmatmul.mubr.f32.gmra.mxu0 %v4889
      %v4957 = vpop.f32.mrf.mxu0
      %v4958 = vadd.f32 0.0, %v4957
      %v4959 = vpop.f32.mrf.mxu0
      %4960 = vdwg.mxu0
      %4961 = vrot.lane.b32.xlu0 %v844, 48
      %v4962 = vpop.permute.xlu0 %4961
      %v4965 = vsel %vm855, %v4503, 0
      %4967 = vmatprep.subr.mxu0 0.0
      %4968 = vmatpush1.msra.mxu0 0.0
      %4969 = vmatprep.subr.mxu0 0.0
      %4970 = vmatpush1.msra.mxu0 0.0
      %4971 = vmatprep.subr.mxu0 0.0
      %4972 = vmatpush1.msra.mxu0 0.0
      %4973 = vmatprep.subr.mxu0 0.0
      %4974 = vmatpush1.msra.mxu0 0.0
      %4975 = vmatprep.subr.mxu0 0.0
      %4976 = vmatpush1.msra.mxu0 0.0
      %4977 = vmatprep.subr.mxu0 0.0
      %4978 = vmatpush1.msra.mxu0 0.0
      %4979 = vmatprep.subr.mxu0 0.0
      %4980 = vmatpush1.msra.mxu0 0.0
      %4981 = vmatprep.subr.mxu0 0.0
      %4982 = vmatpush1.msra.mxu0 0.0
      %4983 = vmatprep.subr.mxu0 0.0
      %4984 = vmatpush1.msra.mxu0 0.0
      %4985 = vmatprep.subr.mxu0 0.0
      %4986 = vmatpush1.msra.mxu0 0.0
      %4987 = vmatprep.subr.mxu0 0.0
      %4988 = vmatpush1.msra.mxu0 0.0
      %4989 = vmatprep.subr.mxu0 0.0
      %4990 = vmatpush1.msra.mxu0 0.0
      %4991 = vmatprep.subr.mxu0 0.0
      %4992 = vmatpush1.msra.mxu0 0.0
      %4993 = vmatprep.subr.mxu0 0.0
      %4994 = vmatpush1.msra.mxu0 0.0
      %4995 = vmatprep.subr.mxu0 0.0
      %4996 = vmatpush1.msra.mxu0 0.0
      %4997 = vmatprep.subr.mxu0 0.0
      %4998 = vmatpush1.msra.mxu0 %v4962
      %4999 = vmatprep.subr.mxu0 0.0
      %5000 = vmatpush2.msra.mxu0 0.0
      %5001 = vmatprep.subr.mxu0 0.0
      %5002 = vmatpush2.msra.mxu0 0.0
      %5003 = vmatprep.subr.mxu0 0.0
      %5004 = vmatpush2.msra.mxu0 0.0
      %5005 = vmatprep.subr.mxu0 0.0
      %5006 = vmatpush2.msra.mxu0 0.0
      %5007 = vmatprep.subr.mxu0 0.0
      %5008 = vmatpush2.msra.mxu0 0.0
      %5009 = vmatprep.subr.mxu0 0.0
      %5010 = vmatpush2.msra.mxu0 0.0
      %5011 = vmatprep.subr.mxu0 0.0
      %5012 = vmatpush2.msra.mxu0 0.0
      %5013 = vmatprep.subr.mxu0 0.0
      %5014 = vmatpush2.msra.mxu0 0.0
      %5015 = vmatprep.subr.mxu0 0.0
      %5016 = vmatpush2.msra.mxu0 0.0
      %5017 = vmatprep.subr.mxu0 0.0
      %5018 = vmatpush2.msra.mxu0 0.0
      %5019 = vmatprep.subr.mxu0 0.0
      %5020 = vmatpush2.msra.mxu0 0.0
      %5021 = vmatprep.subr.mxu0 0.0
      %5022 = vmatpush2.msra.mxu0 0.0
      %5023 = vmatprep.subr.mxu0 0.0
      %5024 = vmatpush2.msra.mxu0 0.0
      %5025 = vmatprep.subr.mxu0 0.0
      %5026 = vmatpush2.msra.mxu0 0.0
      %5027 = vmatprep.subr.mxu0 0.0
      %5028 = vmatpush2.msra.mxu0 0.0
      %5029 = vmatprep.subr.mxu0 0.0
      %5030 = vmatpush2.msra.mxu0 0.0
      %5031 = vmatprep.mubr.f32.mxu0 0.0
      %5032 = vmatmul.mubr.f32.gmra.mxu0 %v4965
      %v5033 = vpop.f32.mrf.mxu0
      %v5034 = vadd.f32 0.0, %v5033
      %v5035 = vpop.f32.mrf.mxu0
      %5036 = vdwg.mxu0
      %5037 = vrot.lane.b32.xlu0 %v849, 48
      %v5038 = vpop.permute.xlu0 %5037
      %v5041 = vsel %vm855, %v4504, 0
      %5043 = vmatprep.subr.mxu0 0.0
      %5044 = vmatpush1.msra.mxu0 0.0
      %5045 = vmatprep.subr.mxu0 0.0
      %5046 = vmatpush1.msra.mxu0 0.0
      %5047 = vmatprep.subr.mxu0 0.0
      %5048 = vmatpush1.msra.mxu0 0.0
      %5049 = vmatprep.subr.mxu0 0.0
      %5050 = vmatpush1.msra.mxu0 0.0
      %5051 = vmatprep.subr.mxu0 0.0
      %5052 = vmatpush1.msra.mxu0 0.0
      %5053 = vmatprep.subr.mxu0 0.0
      %5054 = vmatpush1.msra.mxu0 0.0
      %5055 = vmatprep.subr.mxu0 0.0
      %5056 = vmatpush1.msra.mxu0 0.0
      %5057 = vmatprep.subr.mxu0 0.0
      %5058 = vmatpush1.msra.mxu0 0.0
      %5059 = vmatprep.subr.mxu0 0.0
      %5060 = vmatpush1.msra.mxu0 0.0
      %5061 = vmatprep.subr.mxu0 0.0
      %5062 = vmatpush1.msra.mxu0 0.0
      %5063 = vmatprep.subr.mxu0 0.0
      %5064 = vmatpush1.msra.mxu0 0.0
      %5065 = vmatprep.subr.mxu0 0.0
      %5066 = vmatpush1.msra.mxu0 0.0
      %5067 = vmatprep.subr.mxu0 0.0
      %5068 = vmatpush1.msra.mxu0 0.0
      %5069 = vmatprep.subr.mxu0 0.0
      %5070 = vmatpush1.msra.mxu0 0.0
      %5071 = vmatprep.subr.mxu0 0.0
      %5072 = vmatpush1.msra.mxu0 0.0
      %5073 = vmatprep.subr.mxu0 0.0
      %5074 = vmatpush1.msra.mxu0 %v5038
      %5075 = vmatprep.subr.mxu0 0.0
      %5076 = vmatpush2.msra.mxu0 0.0
      %5077 = vmatprep.subr.mxu0 0.0
      %5078 = vmatpush2.msra.mxu0 0.0
      %5079 = vmatprep.subr.mxu0 0.0
      %5080 = vmatpush2.msra.mxu0 0.0
      %5081 = vmatprep.subr.mxu0 0.0
      %5082 = vmatpush2.msra.mxu0 0.0
      %5083 = vmatprep.subr.mxu0 0.0
      %5084 = vmatpush2.msra.mxu0 0.0
      %5085 = vmatprep.subr.mxu0 0.0
      %5086 = vmatpush2.msra.mxu0 0.0
      %5087 = vmatprep.subr.mxu0 0.0
      %5088 = vmatpush2.msra.mxu0 0.0
      %5089 = vmatprep.subr.mxu0 0.0
      %5090 = vmatpush2.msra.mxu0 0.0
      %5091 = vmatprep.subr.mxu0 0.0
      %5092 = vmatpush2.msra.mxu0 0.0
      %5093 = vmatprep.subr.mxu0 0.0
      %5094 = vmatpush2.msra.mxu0 0.0
      %5095 = vmatprep.subr.mxu0 0.0
      %5096 = vmatpush2.msra.mxu0 0.0
      %5097 = vmatprep.subr.mxu0 0.0
      %5098 = vmatpush2.msra.mxu0 0.0
      %5099 = vmatprep.subr.mxu0 0.0
      %5100 = vmatpush2.msra.mxu0 0.0
      %5101 = vmatprep.subr.mxu0 0.0
      %5102 = vmatpush2.msra.mxu0 0.0
      %5103 = vmatprep.subr.mxu0 0.0
      %5104 = vmatpush2.msra.mxu0 0.0
      %5105 = vmatprep.subr.mxu0 0.0
      %5106 = vmatpush2.msra.mxu0 0.0
      %5107 = vmatprep.mubr.f32.mxu0 0.0
      %5108 = vmatmul.mubr.f32.gmra.mxu0 %v5041
      %v5109 = vpop.f32.mrf.mxu0
      %v5110 = vadd.f32 0.0, %v5109
      %v5111 = vpop.f32.mrf.mxu0
      %5112 = vdwg.mxu0
      %v5113 = vld [vmem:[%s636 + $0x10] sm:$0xff]
      %v5115 = vsel %vm855, %v4578, 0
      %v5118 = vsel %vm855, %v4654, 0
      %v5121 = vsel %vm855, %v4730, 0
      %v5124 = vsel %vm855, %v4806, 0
      %v5127 = vsel %vm855, %v4882, 0
      %v5130 = vsel %vm855, %v4958, 0
      %v5133 = vsel %vm855, %v5034, 0
      %v5136 = vsel %vm855, %v5110, 0
      %5138 = vmatprep.subr.mxu0 0.0
      %5139 = vmatpush1.msra.mxu0 0.0
      %5140 = vmatprep.subr.mxu0 0.0
      %5141 = vmatpush1.msra.mxu0 0.0
      %5142 = vmatprep.subr.mxu0 0.0
      %5143 = vmatpush1.msra.mxu0 0.0
      %5144 = vmatprep.subr.mxu0 0.0
      %5145 = vmatpush1.msra.mxu0 0.0
      %5146 = vmatprep.subr.mxu0 0.0
      %5147 = vmatpush1.msra.mxu0 0.0
      %5148 = vmatprep.subr.mxu0 0.0
      %5149 = vmatpush1.msra.mxu0 0.0
      %5150 = vmatprep.subr.mxu0 0.0
      %5151 = vmatpush1.msra.mxu0 0.0
      %5152 = vmatprep.subr.mxu0 0.0
      %5153 = vmatpush1.msra.mxu0 0.0
      %5154 = vmatprep.subr.mxu0 0.0
      %5155 = vmatpush1.msra.mxu0 0.0
      %5156 = vmatprep.subr.mxu0 0.0
      %5157 = vmatpush1.msra.mxu0 0.0
      %5158 = vmatprep.subr.mxu0 0.0
      %5159 = vmatpush1.msra.mxu0 0.0
      %5160 = vmatprep.subr.mxu0 0.0
      %5161 = vmatpush1.msra.mxu0 0.0
      %5162 = vmatprep.subr.mxu0 0.0
      %5163 = vmatpush1.msra.mxu0 0.0
      %5164 = vmatprep.subr.mxu0 0.0
      %5165 = vmatpush1.msra.mxu0 0.0
      %5166 = vmatprep.subr.mxu0 0.0
      %5167 = vmatpush1.msra.mxu0 0.0
      %5168 = vmatprep.subr.mxu0 0.0
      %5169 = vmatpush1.msra.mxu0 %v5113
      %5170 = vmatprep.subr.mxu0 0.0
      %5171 = vmatpush2.msra.mxu0 0.0
      %5172 = vmatprep.subr.mxu0 0.0
      %5173 = vmatpush2.msra.mxu0 0.0
      %5174 = vmatprep.subr.mxu0 0.0
      %5175 = vmatpush2.msra.mxu0 0.0
      %5176 = vmatprep.subr.mxu0 0.0
      %5177 = vmatpush2.msra.mxu0 0.0
      %5178 = vmatprep.subr.mxu0 0.0
      %5179 = vmatpush2.msra.mxu0 0.0
      %5180 = vmatprep.subr.mxu0 0.0
      %5181 = vmatpush2.msra.mxu0 0.0
      %5182 = vmatprep.subr.mxu0 0.0
      %5183 = vmatpush2.msra.mxu0 0.0
      %5184 = vmatprep.subr.mxu0 0.0
      %5185 = vmatpush2.msra.mxu0 0.0
      %5186 = vmatprep.subr.mxu0 0.0
      %5187 = vmatpush2.msra.mxu0 0.0
      %5188 = vmatprep.subr.mxu0 0.0
      %5189 = vmatpush2.msra.mxu0 0.0
      %5190 = vmatprep.subr.mxu0 0.0
      %5191 = vmatpush2.msra.mxu0 0.0
      %5192 = vmatprep.subr.mxu0 0.0
      %5193 = vmatpush2.msra.mxu0 0.0
      %5194 = vmatprep.subr.mxu0 0.0
      %5195 = vmatpush2.msra.mxu0 0.0
      %5196 = vmatprep.subr.mxu0 0.0
      %5197 = vmatpush2.msra.mxu0 0.0
      %5198 = vmatprep.subr.mxu0 0.0
      %5199 = vmatpush2.msra.mxu0 0.0
      %5200 = vmatprep.subr.mxu0 0.0
      %5201 = vmatpush2.msra.mxu0 0.0
      %5202 = vmatprep.mubr.f32.mxu0 0.0
      %5203 = vmatmul.mubr.f32.gmra.mxu0 %v5115
      %v5204 = vpop.f32.mrf.mxu0
      %v5205 = vadd.f32 0.0, %v5204
      %v5206 = vpop.f32.mrf.mxu0
      %5207 = vmatprep.mubr.f32.mxu0 0.0
      %5208 = vmatmul.mubr.f32.gmra.mxu0 %v5118
      %v5209 = vpop.f32.mrf.mxu0
      %v5210 = vadd.f32 0.0, %v5209
      %v5211 = vpop.f32.mrf.mxu0
      %5212 = vmatprep.mubr.f32.mxu0 0.0
      %5213 = vmatmul.mubr.f32.gmra.mxu0 %v5121
      %v5214 = vpop.f32.mrf.mxu0
      %v5215 = vadd.f32 0.0, %v5214
      %v5216 = vpop.f32.mrf.mxu0
      %5217 = vmatprep.mubr.f32.mxu0 0.0
      %5218 = vmatmul.mubr.f32.gmra.mxu0 %v5124
      %v5219 = vpop.f32.mrf.mxu0
      %v5220 = vadd.f32 0.0, %v5219
      %v5221 = vpop.f32.mrf.mxu0
      %5222 = vmatprep.mubr.f32.mxu0 0.0
      %5223 = vmatmul.mubr.f32.gmra.mxu0 %v5127
      %v5224 = vpop.f32.mrf.mxu0
      %v5225 = vadd.f32 0.0, %v5224
      %v5226 = vpop.f32.mrf.mxu0
      %5227 = vmatprep.mubr.f32.mxu0 0.0
      %5228 = vmatmul.mubr.f32.gmra.mxu0 %v5130
      %v5229 = vpop.f32.mrf.mxu0
      %v5230 = vadd.f32 0.0, %v5229
      %v5231 = vpop.f32.mrf.mxu0
      %5232 = vmatprep.mubr.f32.mxu0 0.0
      %5233 = vmatmul.mubr.f32.gmra.mxu0 %v5133
      %v5234 = vpop.f32.mrf.mxu0
      %v5235 = vadd.f32 0.0, %v5234
      %v5236 = vpop.f32.mrf.mxu0
      %5237 = vmatprep.mubr.f32.mxu0 0.0
      %5238 = vmatmul.mubr.f32.gmra.mxu0 %v5136
      %v5239 = vpop.f32.mrf.mxu0
      %v5240 = vadd.f32 0.0, %v5239
      %v5241 = vpop.f32.mrf.mxu0
      %5242 = vdwg.mxu0
      %v5243 = vadd.f32 %v3739, %v5205
      %v5244 = vadd.f32 %v3744, %v5210
      %v5245 = vadd.f32 %v3749, %v5215
      %v5246 = vadd.f32 %v3754, %v5220
      %v5247 = vadd.f32 %v3759, %v5225
      %v5248 = vadd.f32 %v3764, %v5230
      %v5249 = vadd.f32 %v3769, %v5235
      %v5250 = vadd.f32 %v3774, %v5240
      %5251 = vrot.lane.b32.xlu0 %v814, 104
      %v5252 = vpop.permute.xlu0 %5251
      %5253 = vrot.lane.b32.xlu0 %v814, 72
      %v5254 = vpop.permute.xlu0 %5253
      %v5255 = vsel %vm855, %v5252, 0
      %v5257 = vsel %vm855, %v5254, 0
      %5259 = vmatprep.subr.mxu0 0.0
      %5260 = vmatpush1.xpose.msra.mxu0 0.0
      %5261 = vmatprep.subr.mxu0 0.0
      %5262 = vmatpush1.xpose.msra.mxu0 0.0
      %5263 = vmatprep.subr.mxu0 0.0
      %5264 = vmatpush1.xpose.msra.mxu0 0.0
      %5265 = vmatprep.subr.mxu0 0.0
      %5266 = vmatpush1.xpose.msra.mxu0 0.0
      %5267 = vmatprep.subr.mxu0 0.0
      %5268 = vmatpush1.xpose.msra.mxu0 0.0
      %5269 = vmatprep.subr.mxu0 0.0
      %5270 = vmatpush1.xpose.msra.mxu0 0.0
      %5271 = vmatprep.subr.mxu0 0.0
      %5272 = vmatpush1.xpose.msra.mxu0 0.0
      %5273 = vmatprep.subr.mxu0 0.0
      %5274 = vmatpush1.xpose.msra.mxu0 0.0
      %5275 = vmatprep.subr.mxu0 0.0
      %5276 = vmatpush1.xpose.msra.mxu0 0.0
      %5277 = vmatprep.subr.mxu0 0.0
      %5278 = vmatpush1.xpose.msra.mxu0 0.0
      %5279 = vmatprep.subr.mxu0 0.0
      %5280 = vmatpush1.xpose.msra.mxu0 0.0
      %5281 = vmatprep.subr.mxu0 0.0
      %5282 = vmatpush1.xpose.msra.mxu0 0.0
      %5283 = vmatprep.subr.mxu0 0.0
      %5284 = vmatpush1.xpose.msra.mxu0 0.0
      %5285 = vmatprep.subr.mxu0 0.0
      %5286 = vmatpush1.xpose.msra.mxu0 0.0
      %5287 = vmatprep.subr.mxu0 0.0
      %5288 = vmatpush1.xpose.msra.mxu0 0.0
      %5289 = vmatprep.subr.mxu0 0.0
      %5290 = vmatpush1.xpose.msra.mxu0 %v5257
      %5291 = vmatprep.subr.mxu0 0.0
      %5292 = vmatpush2.xpose.msra.mxu0 0.0
      %5293 = vmatprep.subr.mxu0 0.0
      %5294 = vmatpush2.xpose.msra.mxu0 0.0
      %5295 = vmatprep.subr.mxu0 0.0
      %5296 = vmatpush2.xpose.msra.mxu0 0.0
      %5297 = vmatprep.subr.mxu0 0.0
      %5298 = vmatpush2.xpose.msra.mxu0 0.0
      %5299 = vmatprep.subr.mxu0 0.0
      %5300 = vmatpush2.xpose.msra.mxu0 0.0
      %5301 = vmatprep.subr.mxu0 0.0
      %5302 = vmatpush2.xpose.msra.mxu0 0.0
      %5303 = vmatprep.subr.mxu0 0.0
      %5304 = vmatpush2.xpose.msra.mxu0 0.0
      %5305 = vmatprep.subr.mxu0 0.0
      %5306 = vmatpush2.xpose.msra.mxu0 0.0
      %5307 = vmatprep.subr.mxu0 0.0
      %5308 = vmatpush2.xpose.msra.mxu0 0.0
      %5309 = vmatprep.subr.mxu0 0.0
      %5310 = vmatpush2.xpose.msra.mxu0 0.0
      %5311 = vmatprep.subr.mxu0 0.0
      %5312 = vmatpush2.xpose.msra.mxu0 0.0
      %5313 = vmatprep.subr.mxu0 0.0
      %5314 = vmatpush2.xpose.msra.mxu0 0.0
      %5315 = vmatprep.subr.mxu0 0.0
      %5316 = vmatpush2.xpose.msra.mxu0 0.0
      %5317 = vmatprep.subr.mxu0 0.0
      %5318 = vmatpush2.xpose.msra.mxu0 0.0
      %5319 = vmatprep.subr.mxu0 0.0
      %5320 = vmatpush2.xpose.msra.mxu0 0.0
      %5321 = vmatprep.subr.mxu0 0.0
      %5322 = vmatpush2.xpose.msra.mxu0 0.0
      %5323 = vmatprep.mubr.f32.mxu0 0.0
      %5324 = vmatmul.mubr.f32.gmra.mxu0 %v5255
      %v5325 = vpop.f32.mrf.mxu0
      %v5326 = vadd.f32 0.0, %v5325
      %v5327 = vpop.f32.mrf.mxu0
      %5328 = vdwg.mxu0
      %5329 = vrot.lane.b32.xlu0 %v819, 104
      %v5330 = vpop.permute.xlu0 %5329
      %5331 = vrot.lane.b32.xlu0 %v819, 72
      %v5332 = vpop.permute.xlu0 %5331
      %v5333 = vsel %vm855, %v5330, 0
      %v5335 = vsel %vm855, %v5332, 0
      %5337 = vmatprep.subr.mxu0 0.0
      %5338 = vmatpush1.xpose.msra.mxu0 0.0
      %5339 = vmatprep.subr.mxu0 0.0
      %5340 = vmatpush1.xpose.msra.mxu0 0.0
      %5341 = vmatprep.subr.mxu0 0.0
      %5342 = vmatpush1.xpose.msra.mxu0 0.0
      %5343 = vmatprep.subr.mxu0 0.0
      %5344 = vmatpush1.xpose.msra.mxu0 0.0
      %5345 = vmatprep.subr.mxu0 0.0
      %5346 = vmatpush1.xpose.msra.mxu0 0.0
      %5347 = vmatprep.subr.mxu0 0.0
      %5348 = vmatpush1.xpose.msra.mxu0 0.0
      %5349 = vmatprep.subr.mxu0 0.0
      %5350 = vmatpush1.xpose.msra.mxu0 0.0
      %5351 = vmatprep.subr.mxu0 0.0
      %5352 = vmatpush1.xpose.msra.mxu0 0.0
      %5353 = vmatprep.subr.mxu0 0.0
      %5354 = vmatpush1.xpose.msra.mxu0 0.0
      %5355 = vmatprep.subr.mxu0 0.0
      %5356 = vmatpush1.xpose.msra.mxu0 0.0
      %5357 = vmatprep.subr.mxu0 0.0
      %5358 = vmatpush1.xpose.msra.mxu0 0.0
      %5359 = vmatprep.subr.mxu0 0.0
      %5360 = vmatpush1.xpose.msra.mxu0 0.0
      %5361 = vmatprep.subr.mxu0 0.0
      %5362 = vmatpush1.xpose.msra.mxu0 0.0
      %5363 = vmatprep.subr.mxu0 0.0
      %5364 = vmatpush1.xpose.msra.mxu0 0.0
      %5365 = vmatprep.subr.mxu0 0.0
      %5366 = vmatpush1.xpose.msra.mxu0 0.0
      %5367 = vmatprep.subr.mxu0 0.0
      %5368 = vmatpush1.xpose.msra.mxu0 %v5335
      %5369 = vmatprep.subr.mxu0 0.0
      %5370 = vmatpush2.xpose.msra.mxu0 0.0
      %5371 = vmatprep.subr.mxu0 0.0
      %5372 = vmatpush2.xpose.msra.mxu0 0.0
      %5373 = vmatprep.subr.mxu0 0.0
      %5374 = vmatpush2.xpose.msra.mxu0 0.0
      %5375 = vmatprep.subr.mxu0 0.0
      %5376 = vmatpush2.xpose.msra.mxu0 0.0
      %5377 = vmatprep.subr.mxu0 0.0
      %5378 = vmatpush2.xpose.msra.mxu0 0.0
      %5379 = vmatprep.subr.mxu0 0.0
      %5380 = vmatpush2.xpose.msra.mxu0 0.0
      %5381 = vmatprep.subr.mxu0 0.0
      %5382 = vmatpush2.xpose.msra.mxu0 0.0
      %5383 = vmatprep.subr.mxu0 0.0
      %5384 = vmatpush2.xpose.msra.mxu0 0.0
      %5385 = vmatprep.subr.mxu0 0.0
      %5386 = vmatpush2.xpose.msra.mxu0 0.0
      %5387 = vmatprep.subr.mxu0 0.0
      %5388 = vmatpush2.xpose.msra.mxu0 0.0
      %5389 = vmatprep.subr.mxu0 0.0
      %5390 = vmatpush2.xpose.msra.mxu0 0.0
      %5391 = vmatprep.subr.mxu0 0.0
      %5392 = vmatpush2.xpose.msra.mxu0 0.0
      %5393 = vmatprep.subr.mxu0 0.0
      %5394 = vmatpush2.xpose.msra.mxu0 0.0
      %5395 = vmatprep.subr.mxu0 0.0
      %5396 = vmatpush2.xpose.msra.mxu0 0.0
      %5397 = vmatprep.subr.mxu0 0.0
      %5398 = vmatpush2.xpose.msra.mxu0 0.0
      %5399 = vmatprep.subr.mxu0 0.0
      %5400 = vmatpush2.xpose.msra.mxu0 0.0
      %5401 = vmatprep.mubr.f32.mxu0 0.0
      %5402 = vmatmul.mubr.f32.gmra.mxu0 %v5333
      %v5403 = vpop.f32.mrf.mxu0
      %v5404 = vadd.f32 0.0, %v5403
      %v5405 = vpop.f32.mrf.mxu0
      %5406 = vdwg.mxu0
      %5407 = vrot.lane.b32.xlu0 %v824, 104
      %v5408 = vpop.permute.xlu0 %5407
      %5409 = vrot.lane.b32.xlu0 %v824, 72
      %v5410 = vpop.permute.xlu0 %5409
      %v5411 = vsel %vm855, %v5408, 0
      %v5413 = vsel %vm855, %v5410, 0
      %5415 = vmatprep.subr.mxu0 0.0
      %5416 = vmatpush1.xpose.msra.mxu0 0.0
      %5417 = vmatprep.subr.mxu0 0.0
      %5418 = vmatpush1.xpose.msra.mxu0 0.0
      %5419 = vmatprep.subr.mxu0 0.0
      %5420 = vmatpush1.xpose.msra.mxu0 0.0
      %5421 = vmatprep.subr.mxu0 0.0
      %5422 = vmatpush1.xpose.msra.mxu0 0.0
      %5423 = vmatprep.subr.mxu0 0.0
      %5424 = vmatpush1.xpose.msra.mxu0 0.0
      %5425 = vmatprep.subr.mxu0 0.0
      %5426 = vmatpush1.xpose.msra.mxu0 0.0
      %5427 = vmatprep.subr.mxu0 0.0
      %5428 = vmatpush1.xpose.msra.mxu0 0.0
      %5429 = vmatprep.subr.mxu0 0.0
      %5430 = vmatpush1.xpose.msra.mxu0 0.0
      %5431 = vmatprep.subr.mxu0 0.0
      %5432 = vmatpush1.xpose.msra.mxu0 0.0
      %5433 = vmatprep.subr.mxu0 0.0
      %5434 = vmatpush1.xpose.msra.mxu0 0.0
      %5435 = vmatprep.subr.mxu0 0.0
      %5436 = vmatpush1.xpose.msra.mxu0 0.0
      %5437 = vmatprep.subr.mxu0 0.0
      %5438 = vmatpush1.xpose.msra.mxu0 0.0
      %5439 = vmatprep.subr.mxu0 0.0
      %5440 = vmatpush1.xpose.msra.mxu0 0.0
      %5441 = vmatprep.subr.mxu0 0.0
      %5442 = vmatpush1.xpose.msra.mxu0 0.0
      %5443 = vmatprep.subr.mxu0 0.0
      %5444 = vmatpush1.xpose.msra.mxu0 0.0
      %5445 = vmatprep.subr.mxu0 0.0
      %5446 = vmatpush1.xpose.msra.mxu0 %v5413
      %5447 = vmatprep.subr.mxu0 0.0
      %5448 = vmatpush2.xpose.msra.mxu0 0.0
      %5449 = vmatprep.subr.mxu0 0.0
      %5450 = vmatpush2.xpose.msra.mxu0 0.0
      %5451 = vmatprep.subr.mxu0 0.0
      %5452 = vmatpush2.xpose.msra.mxu0 0.0
      %5453 = vmatprep.subr.mxu0 0.0
      %5454 = vmatpush2.xpose.msra.mxu0 0.0
      %5455 = vmatprep.subr.mxu0 0.0
      %5456 = vmatpush2.xpose.msra.mxu0 0.0
      %5457 = vmatprep.subr.mxu0 0.0
      %5458 = vmatpush2.xpose.msra.mxu0 0.0
      %5459 = vmatprep.subr.mxu0 0.0
      %5460 = vmatpush2.xpose.msra.mxu0 0.0
      %5461 = vmatprep.subr.mxu0 0.0
      %5462 = vmatpush2.xpose.msra.mxu0 0.0
      %5463 = vmatprep.subr.mxu0 0.0
      %5464 = vmatpush2.xpose.msra.mxu0 0.0
      %5465 = vmatprep.subr.mxu0 0.0
      %5466 = vmatpush2.xpose.msra.mxu0 0.0
      %5467 = vmatprep.subr.mxu0 0.0
      %5468 = vmatpush2.xpose.msra.mxu0 0.0
      %5469 = vmatprep.subr.mxu0 0.0
      %5470 = vmatpush2.xpose.msra.mxu0 0.0
      %5471 = vmatprep.subr.mxu0 0.0
      %5472 = vmatpush2.xpose.msra.mxu0 0.0
      %5473 = vmatprep.subr.mxu0 0.0
      %5474 = vmatpush2.xpose.msra.mxu0 0.0
      %5475 = vmatprep.subr.mxu0 0.0
      %5476 = vmatpush2.xpose.msra.mxu0 0.0
      %5477 = vmatprep.subr.mxu0 0.0
      %5478 = vmatpush2.xpose.msra.mxu0 0.0
      %5479 = vmatprep.mubr.f32.mxu0 0.0
      %5480 = vmatmul.mubr.f32.gmra.mxu0 %v5411
      %v5481 = vpop.f32.mrf.mxu0
      %v5482 = vadd.f32 0.0, %v5481
      %v5483 = vpop.f32.mrf.mxu0
      %5484 = vdwg.mxu0
      %5485 = vrot.lane.b32.xlu0 %v829, 104
      %v5486 = vpop.permute.xlu0 %5485
      %5487 = vrot.lane.b32.xlu0 %v829, 72
      %v5488 = vpop.permute.xlu0 %5487
      %v5489 = vsel %vm855, %v5486, 0
      %v5491 = vsel %vm855, %v5488, 0
      %5493 = vmatprep.subr.mxu0 0.0
      %5494 = vmatpush1.xpose.msra.mxu0 0.0
      %5495 = vmatprep.subr.mxu0 0.0
      %5496 = vmatpush1.xpose.msra.mxu0 0.0
      %5497 = vmatprep.subr.mxu0 0.0
      %5498 = vmatpush1.xpose.msra.mxu0 0.0
      %5499 = vmatprep.subr.mxu0 0.0
      %5500 = vmatpush1.xpose.msra.mxu0 0.0
      %5501 = vmatprep.subr.mxu0 0.0
      %5502 = vmatpush1.xpose.msra.mxu0 0.0
      %5503 = vmatprep.subr.mxu0 0.0
      %5504 = vmatpush1.xpose.msra.mxu0 0.0
      %5505 = vmatprep.subr.mxu0 0.0
      %5506 = vmatpush1.xpose.msra.mxu0 0.0
      %5507 = vmatprep.subr.mxu0 0.0
      %5508 = vmatpush1.xpose.msra.mxu0 0.0
      %5509 = vmatprep.subr.mxu0 0.0
      %5510 = vmatpush1.xpose.msra.mxu0 0.0
      %5511 = vmatprep.subr.mxu0 0.0
      %5512 = vmatpush1.xpose.msra.mxu0 0.0
      %5513 = vmatprep.subr.mxu0 0.0
      %5514 = vmatpush1.xpose.msra.mxu0 0.0
      %5515 = vmatprep.subr.mxu0 0.0
      %5516 = vmatpush1.xpose.msra.mxu0 0.0
      %5517 = vmatprep.subr.mxu0 0.0
      %5518 = vmatpush1.xpose.msra.mxu0 0.0
      %5519 = vmatprep.subr.mxu0 0.0
      %5520 = vmatpush1.xpose.msra.mxu0 0.0
      %5521 = vmatprep.subr.mxu0 0.0
      %5522 = vmatpush1.xpose.msra.mxu0 0.0
      %5523 = vmatprep.subr.mxu0 0.0
      %5524 = vmatpush1.xpose.msra.mxu0 %v5491
      %5525 = vmatprep.subr.mxu0 0.0
      %5526 = vmatpush2.xpose.msra.mxu0 0.0
      %5527 = vmatprep.subr.mxu0 0.0
      %5528 = vmatpush2.xpose.msra.mxu0 0.0
      %5529 = vmatprep.subr.mxu0 0.0
      %5530 = vmatpush2.xpose.msra.mxu0 0.0
      %5531 = vmatprep.subr.mxu0 0.0
      %5532 = vmatpush2.xpose.msra.mxu0 0.0
      %5533 = vmatprep.subr.mxu0 0.0
      %5534 = vmatpush2.xpose.msra.mxu0 0.0
      %5535 = vmatprep.subr.mxu0 0.0
      %5536 = vmatpush2.xpose.msra.mxu0 0.0
      %5537 = vmatprep.subr.mxu0 0.0
      %5538 = vmatpush2.xpose.msra.mxu0 0.0
      %5539 = vmatprep.subr.mxu0 0.0
      %5540 = vmatpush2.xpose.msra.mxu0 0.0
      %5541 = vmatprep.subr.mxu0 0.0
      %5542 = vmatpush2.xpose.msra.mxu0 0.0
      %5543 = vmatprep.subr.mxu0 0.0
      %5544 = vmatpush2.xpose.msra.mxu0 0.0
      %5545 = vmatprep.subr.mxu0 0.0
      %5546 = vmatpush2.xpose.msra.mxu0 0.0
      %5547 = vmatprep.subr.mxu0 0.0
      %5548 = vmatpush2.xpose.msra.mxu0 0.0
      %5549 = vmatprep.subr.mxu0 0.0
      %5550 = vmatpush2.xpose.msra.mxu0 0.0
      %5551 = vmatprep.subr.mxu0 0.0
      %5552 = vmatpush2.xpose.msra.mxu0 0.0
      %5553 = vmatprep.subr.mxu0 0.0
      %5554 = vmatpush2.xpose.msra.mxu0 0.0
      %5555 = vmatprep.subr.mxu0 0.0
      %5556 = vmatpush2.xpose.msra.mxu0 0.0
      %5557 = vmatprep.mubr.f32.mxu0 0.0
      %5558 = vmatmul.mubr.f32.gmra.mxu0 %v5489
      %v5559 = vpop.f32.mrf.mxu0
      %v5560 = vadd.f32 0.0, %v5559
      %v5561 = vpop.f32.mrf.mxu0
      %5562 = vdwg.mxu0
      %5563 = vrot.lane.b32.xlu0 %v834, 104
      %v5564 = vpop.permute.xlu0 %5563
      %5565 = vrot.lane.b32.xlu0 %v834, 72
      %v5566 = vpop.permute.xlu0 %5565
      %v5567 = vsel %vm855, %v5564, 0
      %v5569 = vsel %vm855, %v5566, 0
      %5571 = vmatprep.subr.mxu0 0.0
      %5572 = vmatpush1.xpose.msra.mxu0 0.0
      %5573 = vmatprep.subr.mxu0 0.0
      %5574 = vmatpush1.xpose.msra.mxu0 0.0
      %5575 = vmatprep.subr.mxu0 0.0
      %5576 = vmatpush1.xpose.msra.mxu0 0.0
      %5577 = vmatprep.subr.mxu0 0.0
      %5578 = vmatpush1.xpose.msra.mxu0 0.0
      %5579 = vmatprep.subr.mxu0 0.0
      %5580 = vmatpush1.xpose.msra.mxu0 0.0
      %5581 = vmatprep.subr.mxu0 0.0
      %5582 = vmatpush1.xpose.msra.mxu0 0.0
      %5583 = vmatprep.subr.mxu0 0.0
      %5584 = vmatpush1.xpose.msra.mxu0 0.0
      %5585 = vmatprep.subr.mxu0 0.0
      %5586 = vmatpush1.xpose.msra.mxu0 0.0
      %5587 = vmatprep.subr.mxu0 0.0
      %5588 = vmatpush1.xpose.msra.mxu0 0.0
      %5589 = vmatprep.subr.mxu0 0.0
      %5590 = vmatpush1.xpose.msra.mxu0 0.0
      %5591 = vmatprep.subr.mxu0 0.0
      %5592 = vmatpush1.xpose.msra.mxu0 0.0
      %5593 = vmatprep.subr.mxu0 0.0
      %5594 = vmatpush1.xpose.msra.mxu0 0.0
      %5595 = vmatprep.subr.mxu0 0.0
      %5596 = vmatpush1.xpose.msra.mxu0 0.0
      %5597 = vmatprep.subr.mxu0 0.0
      %5598 = vmatpush1.xpose.msra.mxu0 0.0
      %5599 = vmatprep.subr.mxu0 0.0
      %5600 = vmatpush1.xpose.msra.mxu0 0.0
      %5601 = vmatprep.subr.mxu0 0.0
      %5602 = vmatpush1.xpose.msra.mxu0 %v5569
      %5603 = vmatprep.subr.mxu0 0.0
      %5604 = vmatpush2.xpose.msra.mxu0 0.0
      %5605 = vmatprep.subr.mxu0 0.0
      %5606 = vmatpush2.xpose.msra.mxu0 0.0
      %5607 = vmatprep.subr.mxu0 0.0
      %5608 = vmatpush2.xpose.msra.mxu0 0.0
      %5609 = vmatprep.subr.mxu0 0.0
      %5610 = vmatpush2.xpose.msra.mxu0 0.0
      %5611 = vmatprep.subr.mxu0 0.0
      %5612 = vmatpush2.xpose.msra.mxu0 0.0
      %5613 = vmatprep.subr.mxu0 0.0
      %5614 = vmatpush2.xpose.msra.mxu0 0.0
      %5615 = vmatprep.subr.mxu0 0.0
      %5616 = vmatpush2.xpose.msra.mxu0 0.0
      %5617 = vmatprep.subr.mxu0 0.0
      %5618 = vmatpush2.xpose.msra.mxu0 0.0
      %5619 = vmatprep.subr.mxu0 0.0
      %5620 = vmatpush2.xpose.msra.mxu0 0.0
      %5621 = vmatprep.subr.mxu0 0.0
      %5622 = vmatpush2.xpose.msra.mxu0 0.0
      %5623 = vmatprep.subr.mxu0 0.0
      %5624 = vmatpush2.xpose.msra.mxu0 0.0
      %5625 = vmatprep.subr.mxu0 0.0
      %5626 = vmatpush2.xpose.msra.mxu0 0.0
      %5627 = vmatprep.subr.mxu0 0.0
      %5628 = vmatpush2.xpose.msra.mxu0 0.0
      %5629 = vmatprep.subr.mxu0 0.0
      %5630 = vmatpush2.xpose.msra.mxu0 0.0
      %5631 = vmatprep.subr.mxu0 0.0
      %5632 = vmatpush2.xpose.msra.mxu0 0.0
      %5633 = vmatprep.subr.mxu0 0.0
      %5634 = vmatpush2.xpose.msra.mxu0 0.0
      %5635 = vmatprep.mubr.f32.mxu0 0.0
      %5636 = vmatmul.mubr.f32.gmra.mxu0 %v5567
      %v5637 = vpop.f32.mrf.mxu0
      %v5638 = vadd.f32 0.0, %v5637
      %v5639 = vpop.f32.mrf.mxu0
      %5640 = vdwg.mxu0
      %5641 = vrot.lane.b32.xlu0 %v839, 104
      %v5642 = vpop.permute.xlu0 %5641
      %5643 = vrot.lane.b32.xlu0 %v839, 72
      %v5644 = vpop.permute.xlu0 %5643
      %v5645 = vsel %vm855, %v5642, 0
      %v5647 = vsel %vm855, %v5644, 0
      %5649 = vmatprep.subr.mxu0 0.0
      %5650 = vmatpush1.xpose.msra.mxu0 0.0
      %5651 = vmatprep.subr.mxu0 0.0
      %5652 = vmatpush1.xpose.msra.mxu0 0.0
      %5653 = vmatprep.subr.mxu0 0.0
      %5654 = vmatpush1.xpose.msra.mxu0 0.0
      %5655 = vmatprep.subr.mxu0 0.0
      %5656 = vmatpush1.xpose.msra.mxu0 0.0
      %5657 = vmatprep.subr.mxu0 0.0
      %5658 = vmatpush1.xpose.msra.mxu0 0.0
      %5659 = vmatprep.subr.mxu0 0.0
      %5660 = vmatpush1.xpose.msra.mxu0 0.0
      %5661 = vmatprep.subr.mxu0 0.0
      %5662 = vmatpush1.xpose.msra.mxu0 0.0
      %5663 = vmatprep.subr.mxu0 0.0
      %5664 = vmatpush1.xpose.msra.mxu0 0.0
      %5665 = vmatprep.subr.mxu0 0.0
      %5666 = vmatpush1.xpose.msra.mxu0 0.0
      %5667 = vmatprep.subr.mxu0 0.0
      %5668 = vmatpush1.xpose.msra.mxu0 0.0
      %5669 = vmatprep.subr.mxu0 0.0
      %5670 = vmatpush1.xpose.msra.mxu0 0.0
      %5671 = vmatprep.subr.mxu0 0.0
      %5672 = vmatpush1.xpose.msra.mxu0 0.0
      %5673 = vmatprep.subr.mxu0 0.0
      %5674 = vmatpush1.xpose.msra.mxu0 0.0
      %5675 = vmatprep.subr.mxu0 0.0
      %5676 = vmatpush1.xpose.msra.mxu0 0.0
      %5677 = vmatprep.subr.mxu0 0.0
      %5678 = vmatpush1.xpose.msra.mxu0 0.0
      %5679 = vmatprep.subr.mxu0 0.0
      %5680 = vmatpush1.xpose.msra.mxu0 %v5647
      %5681 = vmatprep.subr.mxu0 0.0
      %5682 = vmatpush2.xpose.msra.mxu0 0.0
      %5683 = vmatprep.subr.mxu0 0.0
      %5684 = vmatpush2.xpose.msra.mxu0 0.0
      %5685 = vmatprep.subr.mxu0 0.0
      %5686 = vmatpush2.xpose.msra.mxu0 0.0
      %5687 = vmatprep.subr.mxu0 0.0
      %5688 = vmatpush2.xpose.msra.mxu0 0.0
      %5689 = vmatprep.subr.mxu0 0.0
      %5690 = vmatpush2.xpose.msra.mxu0 0.0
      %5691 = vmatprep.subr.mxu0 0.0
      %5692 = vmatpush2.xpose.msra.mxu0 0.0
      %5693 = vmatprep.subr.mxu0 0.0
      %5694 = vmatpush2.xpose.msra.mxu0 0.0
      %5695 = vmatprep.subr.mxu0 0.0
      %5696 = vmatpush2.xpose.msra.mxu0 0.0
      %5697 = vmatprep.subr.mxu0 0.0
      %5698 = vmatpush2.xpose.msra.mxu0 0.0
      %5699 = vmatprep.subr.mxu0 0.0
      %5700 = vmatpush2.xpose.msra.mxu0 0.0
      %5701 = vmatprep.subr.mxu0 0.0
      %5702 = vmatpush2.xpose.msra.mxu0 0.0
      %5703 = vmatprep.subr.mxu0 0.0
      %5704 = vmatpush2.xpose.msra.mxu0 0.0
      %5705 = vmatprep.subr.mxu0 0.0
      %5706 = vmatpush2.xpose.msra.mxu0 0.0
      %5707 = vmatprep.subr.mxu0 0.0
      %5708 = vmatpush2.xpose.msra.mxu0 0.0
      %5709 = vmatprep.subr.mxu0 0.0
      %5710 = vmatpush2.xpose.msra.mxu0 0.0
      %5711 = vmatprep.subr.mxu0 0.0
      %5712 = vmatpush2.xpose.msra.mxu0 0.0
      %5713 = vmatprep.mubr.f32.mxu0 0.0
      %5714 = vmatmul.mubr.f32.gmra.mxu0 %v5645
      %v5715 = vpop.f32.mrf.mxu0
      %v5716 = vadd.f32 0.0, %v5715
      %v5717 = vpop.f32.mrf.mxu0
      %5718 = vdwg.mxu0
      %5719 = vrot.lane.b32.xlu0 %v844, 104
      %v5720 = vpop.permute.xlu0 %5719
      %5721 = vrot.lane.b32.xlu0 %v844, 72
      %v5722 = vpop.permute.xlu0 %5721
      %v5723 = vsel %vm855, %v5720, 0
      %v5725 = vsel %vm855, %v5722, 0
      %5727 = vmatprep.subr.mxu0 0.0
      %5728 = vmatpush1.xpose.msra.mxu0 0.0
      %5729 = vmatprep.subr.mxu0 0.0
      %5730 = vmatpush1.xpose.msra.mxu0 0.0
      %5731 = vmatprep.subr.mxu0 0.0
      %5732 = vmatpush1.xpose.msra.mxu0 0.0
      %5733 = vmatprep.subr.mxu0 0.0
      %5734 = vmatpush1.xpose.msra.mxu0 0.0
      %5735 = vmatprep.subr.mxu0 0.0
      %5736 = vmatpush1.xpose.msra.mxu0 0.0
      %5737 = vmatprep.subr.mxu0 0.0
      %5738 = vmatpush1.xpose.msra.mxu0 0.0
      %5739 = vmatprep.subr.mxu0 0.0
      %5740 = vmatpush1.xpose.msra.mxu0 0.0
      %5741 = vmatprep.subr.mxu0 0.0
      %5742 = vmatpush1.xpose.msra.mxu0 0.0
      %5743 = vmatprep.subr.mxu0 0.0
      %5744 = vmatpush1.xpose.msra.mxu0 0.0
      %5745 = vmatprep.subr.mxu0 0.0
      %5746 = vmatpush1.xpose.msra.mxu0 0.0
      %5747 = vmatprep.subr.mxu0 0.0
      %5748 = vmatpush1.xpose.msra.mxu0 0.0
      %5749 = vmatprep.subr.mxu0 0.0
      %5750 = vmatpush1.xpose.msra.mxu0 0.0
      %5751 = vmatprep.subr.mxu0 0.0
      %5752 = vmatpush1.xpose.msra.mxu0 0.0
      %5753 = vmatprep.subr.mxu0 0.0
      %5754 = vmatpush1.xpose.msra.mxu0 0.0
      %5755 = vmatprep.subr.mxu0 0.0
      %5756 = vmatpush1.xpose.msra.mxu0 0.0
      %5757 = vmatprep.subr.mxu0 0.0
      %5758 = vmatpush1.xpose.msra.mxu0 %v5725
      %5759 = vmatprep.subr.mxu0 0.0
      %5760 = vmatpush2.xpose.msra.mxu0 0.0
      %5761 = vmatprep.subr.mxu0 0.0
      %5762 = vmatpush2.xpose.msra.mxu0 0.0
      %5763 = vmatprep.subr.mxu0 0.0
      %5764 = vmatpush2.xpose.msra.mxu0 0.0
      %5765 = vmatprep.subr.mxu0 0.0
      %5766 = vmatpush2.xpose.msra.mxu0 0.0
      %5767 = vmatprep.subr.mxu0 0.0
      %5768 = vmatpush2.xpose.msra.mxu0 0.0
      %5769 = vmatprep.subr.mxu0 0.0
      %5770 = vmatpush2.xpose.msra.mxu0 0.0
      %5771 = vmatprep.subr.mxu0 0.0
      %5772 = vmatpush2.xpose.msra.mxu0 0.0
      %5773 = vmatprep.subr.mxu0 0.0
      %5774 = vmatpush2.xpose.msra.mxu0 0.0
      %5775 = vmatprep.subr.mxu0 0.0
      %5776 = vmatpush2.xpose.msra.mxu0 0.0
      %5777 = vmatprep.subr.mxu0 0.0
      %5778 = vmatpush2.xpose.msra.mxu0 0.0
      %5779 = vmatprep.subr.mxu0 0.0
      %5780 = vmatpush2.xpose.msra.mxu0 0.0
      %5781 = vmatprep.subr.mxu0 0.0
      %5782 = vmatpush2.xpose.msra.mxu0 0.0
      %5783 = vmatprep.subr.mxu0 0.0
      %5784 = vmatpush2.xpose.msra.mxu0 0.0
      %5785 = vmatprep.subr.mxu0 0.0
      %5786 = vmatpush2.xpose.msra.mxu0 0.0
      %5787 = vmatprep.subr.mxu0 0.0
      %5788 = vmatpush2.xpose.msra.mxu0 0.0
      %5789 = vmatprep.subr.mxu0 0.0
      %5790 = vmatpush2.xpose.msra.mxu0 0.0
      %5791 = vmatprep.mubr.f32.mxu0 0.0
      %5792 = vmatmul.mubr.f32.gmra.mxu0 %v5723
      %v5793 = vpop.f32.mrf.mxu0
      %v5794 = vadd.f32 0.0, %v5793
      %v5795 = vpop.f32.mrf.mxu0
      %5796 = vdwg.mxu0
      %5797 = vrot.lane.b32.xlu0 %v849, 104
      %v5798 = vpop.permute.xlu0 %5797
      %5799 = vrot.lane.b32.xlu0 %v849, 72
      %v5800 = vpop.permute.xlu0 %5799
      %v5801 = vsel %vm855, %v5798, 0
      %v5803 = vsel %vm855, %v5800, 0
      %5805 = vmatprep.subr.mxu0 0.0
      %5806 = vmatpush1.xpose.msra.mxu0 0.0
      %5807 = vmatprep.subr.mxu0 0.0
      %5808 = vmatpush1.xpose.msra.mxu0 0.0
      %5809 = vmatprep.subr.mxu0 0.0
      %5810 = vmatpush1.xpose.msra.mxu0 0.0
      %5811 = vmatprep.subr.mxu0 0.0
      %5812 = vmatpush1.xpose.msra.mxu0 0.0
      %5813 = vmatprep.subr.mxu0 0.0
      %5814 = vmatpush1.xpose.msra.mxu0 0.0
      %5815 = vmatprep.subr.mxu0 0.0
      %5816 = vmatpush1.xpose.msra.mxu0 0.0
      %5817 = vmatprep.subr.mxu0 0.0
      %5818 = vmatpush1.xpose.msra.mxu0 0.0
      %5819 = vmatprep.subr.mxu0 0.0
      %5820 = vmatpush1.xpose.msra.mxu0 0.0
      %5821 = vmatprep.subr.mxu0 0.0
      %5822 = vmatpush1.xpose.msra.mxu0 0.0
      %5823 = vmatprep.subr.mxu0 0.0
      %5824 = vmatpush1.xpose.msra.mxu0 0.0
      %5825 = vmatprep.subr.mxu0 0.0
      %5826 = vmatpush1.xpose.msra.mxu0 0.0
      %5827 = vmatprep.subr.mxu0 0.0
      %5828 = vmatpush1.xpose.msra.mxu0 0.0
      %5829 = vmatprep.subr.mxu0 0.0
      %5830 = vmatpush1.xpose.msra.mxu0 0.0
      %5831 = vmatprep.subr.mxu0 0.0
      %5832 = vmatpush1.xpose.msra.mxu0 0.0
      %5833 = vmatprep.subr.mxu0 0.0
      %5834 = vmatpush1.xpose.msra.mxu0 0.0
      %5835 = vmatprep.subr.mxu0 0.0
      %5836 = vmatpush1.xpose.msra.mxu0 %v5803
      %5837 = vmatprep.subr.mxu0 0.0
      %5838 = vmatpush2.xpose.msra.mxu0 0.0
      %5839 = vmatprep.subr.mxu0 0.0
      %5840 = vmatpush2.xpose.msra.mxu0 0.0
      %5841 = vmatprep.subr.mxu0 0.0
      %5842 = vmatpush2.xpose.msra.mxu0 0.0
      %5843 = vmatprep.subr.mxu0 0.0
      %5844 = vmatpush2.xpose.msra.mxu0 0.0
      %5845 = vmatprep.subr.mxu0 0.0
      %5846 = vmatpush2.xpose.msra.mxu0 0.0
      %5847 = vmatprep.subr.mxu0 0.0
      %5848 = vmatpush2.xpose.msra.mxu0 0.0
      %5849 = vmatprep.subr.mxu0 0.0
      %5850 = vmatpush2.xpose.msra.mxu0 0.0
      %5851 = vmatprep.subr.mxu0 0.0
      %5852 = vmatpush2.xpose.msra.mxu0 0.0
      %5853 = vmatprep.subr.mxu0 0.0
      %5854 = vmatpush2.xpose.msra.mxu0 0.0
      %5855 = vmatprep.subr.mxu0 0.0
      %5856 = vmatpush2.xpose.msra.mxu0 0.0
      %5857 = vmatprep.subr.mxu0 0.0
      %5858 = vmatpush2.xpose.msra.mxu0 0.0
      %5859 = vmatprep.subr.mxu0 0.0
      %5860 = vmatpush2.xpose.msra.mxu0 0.0
      %5861 = vmatprep.subr.mxu0 0.0
      %5862 = vmatpush2.xpose.msra.mxu0 0.0
      %5863 = vmatprep.subr.mxu0 0.0
      %5864 = vmatpush2.xpose.msra.mxu0 0.0
      %5865 = vmatprep.subr.mxu0 0.0
      %5866 = vmatpush2.xpose.msra.mxu0 0.0
      %5867 = vmatprep.subr.mxu0 0.0
      %5868 = vmatpush2.xpose.msra.mxu0 0.0
      %5869 = vmatprep.mubr.f32.mxu0 0.0
      %5870 = vmatmul.mubr.f32.gmra.mxu0 %v5801
      %v5871 = vpop.f32.mrf.mxu0
      %v5872 = vadd.f32 0.0, %v5871
      %v5873 = vpop.f32.mrf.mxu0
      %5874 = vdwg.mxu0
      %v5875 = vmul.f32 %v5326, 0.35355338
      %v5876 = vmul.f32 %v5404, 0.35355338
      %v5877 = vmul.f32 %v5482, 0.35355338
      %v5878 = vmul.f32 %v5560, 0.35355338
      %v5879 = vmul.f32 %v5638, 0.35355338
      %v5880 = vmul.f32 %v5716, 0.35355338
      %v5881 = vmul.f32 %v5794, 0.35355338
      %v5882 = vmul.f32 %v5872, 0.35355338
      %v5883 = vsel %vm703, -1e+09, %v5875
      %v5884 = vsel %vm704, -1e+09, %v5876
      %v5885 = vsel %vm705, -1e+09, %v5877
      %v5886 = vsel %vm706, -1e+09, %v5878
      %v5887 = vsel %vm707, -1e+09, %v5879
      %v5888 = vsel %vm708, -1e+09, %v5880
      %v5889 = vsel %vm709, -1e+09, %v5881
      %v5890 = vsel %vm710, -1e+09, %v5882
      %v5891 = vsel %vm855, %v5883, -inf
      %5892 = vmax.xlane.f32.xlu0 %v5891
      %v5893 = vpop.xlane.xlu0 %5892
      %v5894 = vsel %vm855, %v5884, -inf
      %5895 = vmax.xlane.f32.xlu0 %v5894
      %v5896 = vpop.xlane.xlu0 %5895
      %v5897 = vsel %vm855, %v5885, -inf
      %5898 = vmax.xlane.f32.xlu0 %v5897
      %v5899 = vpop.xlane.xlu0 %5898
      %v5900 = vsel %vm855, %v5886, -inf
      %5901 = vmax.xlane.f32.xlu0 %v5900
      %v5902 = vpop.xlane.xlu0 %5901
      %v5903 = vsel %vm855, %v5887, -inf
      %5904 = vmax.xlane.f32.xlu0 %v5903
      %v5905 = vpop.xlane.xlu0 %5904
      %v5906 = vsel %vm855, %v5888, -inf
      %5907 = vmax.xlane.f32.xlu0 %v5906
      %v5908 = vpop.xlane.xlu0 %5907
      %v5909 = vsel %vm855, %v5889, -inf
      %5910 = vmax.xlane.f32.xlu0 %v5909
      %v5911 = vpop.xlane.xlu0 %5910
      %v5912 = vsel %vm855, %v5890, -inf
      %5913 = vmax.xlane.f32.xlu0 %v5912
      %v5914 = vpop.xlane.xlu0 %5913
      %v5915 = vsub.f32 %v5883, %v5893
      %v5916 = vsub.f32 %v5884, %v5896
      %v5917 = vsub.f32 %v5885, %v5899
      %v5918 = vsub.f32 %v5886, %v5902
      %v5919 = vsub.f32 %v5887, %v5905
      %v5920 = vsub.f32 %v5888, %v5908
      %v5921 = vsub.f32 %v5889, %v5911
      %v5922 = vsub.f32 %v5890, %v5914
      %v5923 = vmul.f32 %v5915, 1.442695
      %v5924 = vpow.pop %v5923
      %v5925 = vmul.f32 %v5916, 1.442695
      %v5926 = vpow.pop %v5925
      %v5927 = vmul.f32 %v5917, 1.442695
      %v5928 = vpow.pop %v5927
      %v5929 = vmul.f32 %v5918, 1.442695
      %v5930 = vpow.pop %v5929
      %v5931 = vmul.f32 %v5919, 1.442695
      %v5932 = vpow.pop %v5931
      %v5933 = vmul.f32 %v5920, 1.442695
      %v5934 = vpow.pop %v5933
      %v5935 = vmul.f32 %v5921, 1.442695
      %v5936 = vpow.pop %v5935
      %v5937 = vmul.f32 %v5922, 1.442695
      %v5938 = vpow.pop %v5937
      %v5939 = vsel %vm855, %v5924, 0.0
      %5940 = vadd.xlane.f32.xlu0 %v5939
      %v5941 = vpop.xlane.xlu0 %5940
      %v5942 = vsel %vm855, %v5926, 0.0
      %5943 = vadd.xlane.f32.xlu0 %v5942
      %v5944 = vpop.xlane.xlu0 %5943
      %v5945 = vsel %vm855, %v5928, 0.0
      %5946 = vadd.xlane.f32.xlu0 %v5945
      %v5947 = vpop.xlane.xlu0 %5946
      %v5948 = vsel %vm855, %v5930, 0.0
      %5949 = vadd.xlane.f32.xlu0 %v5948
      %v5950 = vpop.xlane.xlu0 %5949
      %v5951 = vsel %vm855, %v5932, 0.0
      %5952 = vadd.xlane.f32.xlu0 %v5951
      %v5953 = vpop.xlane.xlu0 %5952
      %v5954 = vsel %vm855, %v5934, 0.0
      %5955 = vadd.xlane.f32.xlu0 %v5954
      %v5956 = vpop.xlane.xlu0 %5955
      %v5957 = vsel %vm855, %v5936, 0.0
      %5958 = vadd.xlane.f32.xlu0 %v5957
      %v5959 = vpop.xlane.xlu0 %5958
      %v5960 = vsel %vm855, %v5938, 0.0
      %5961 = vadd.xlane.f32.xlu0 %v5960
      %v5962 = vpop.xlane.xlu0 %5961
      %v5963 = vrcp.pop %v5941
      %v5964 = vrcp.pop %v5944
      %v5965 = vrcp.pop %v5947
      %v5966 = vrcp.pop %v5950
      %v5967 = vrcp.pop %v5953
      %v5968 = vrcp.pop %v5956
      %v5969 = vrcp.pop %v5959
      %v5970 = vrcp.pop %v5962
      %v5971 = vmul.f32 %v5924, %v5963
      %v5972 = vmul.f32 %v5926, %v5964
      %v5973 = vmul.f32 %v5928, %v5965
      %v5974 = vmul.f32 %v5930, %v5966
      %v5975 = vmul.f32 %v5932, %v5967
      %v5976 = vmul.f32 %v5934, %v5968
      %v5977 = vmul.f32 %v5936, %v5969
      %v5978 = vmul.f32 %v5938, %v5970
      %5979 = vrot.lane.b32.xlu0 %v814, 40
      %v5980 = vpop.permute.xlu0 %5979
      %v5983 = vsel %vm855, %v5971, 0
      %5985 = vmatprep.subr.mxu0 0.0
      %5986 = vmatpush1.msra.mxu0 0.0
      %5987 = vmatprep.subr.mxu0 0.0
      %5988 = vmatpush1.msra.mxu0 0.0
      %5989 = vmatprep.subr.mxu0 0.0
      %5990 = vmatpush1.msra.mxu0 0.0
      %5991 = vmatprep.subr.mxu0 0.0
      %5992 = vmatpush1.msra.mxu0 0.0
      %5993 = vmatprep.subr.mxu0 0.0
      %5994 = vmatpush1.msra.mxu0 0.0
      %5995 = vmatprep.subr.mxu0 0.0
      %5996 = vmatpush1.msra.mxu0 0.0
      %5997 = vmatprep.subr.mxu0 0.0
      %5998 = vmatpush1.msra.mxu0 0.0
      %5999 = vmatprep.subr.mxu0 0.0
      %6000 = vmatpush1.msra.mxu0 0.0
      %6001 = vmatprep.subr.mxu0 0.0
      %6002 = vmatpush1.msra.mxu0 0.0
      %6003 = vmatprep.subr.mxu0 0.0
      %6004 = vmatpush1.msra.mxu0 0.0
      %6005 = vmatprep.subr.mxu0 0.0
      %6006 = vmatpush1.msra.mxu0 0.0
      %6007 = vmatprep.subr.mxu0 0.0
      %6008 = vmatpush1.msra.mxu0 0.0
      %6009 = vmatprep.subr.mxu0 0.0
      %6010 = vmatpush1.msra.mxu0 0.0
      %6011 = vmatprep.subr.mxu0 0.0
      %6012 = vmatpush1.msra.mxu0 0.0
      %6013 = vmatprep.subr.mxu0 0.0
      %6014 = vmatpush1.msra.mxu0 0.0
      %6015 = vmatprep.subr.mxu0 0.0
      %6016 = vmatpush1.msra.mxu0 %v5980
      %6017 = vmatprep.subr.mxu0 0.0
      %6018 = vmatpush2.msra.mxu0 0.0
      %6019 = vmatprep.subr.mxu0 0.0
      %6020 = vmatpush2.msra.mxu0 0.0
      %6021 = vmatprep.subr.mxu0 0.0
      %6022 = vmatpush2.msra.mxu0 0.0
      %6023 = vmatprep.subr.mxu0 0.0
      %6024 = vmatpush2.msra.mxu0 0.0
      %6025 = vmatprep.subr.mxu0 0.0
      %6026 = vmatpush2.msra.mxu0 0.0
      %6027 = vmatprep.subr.mxu0 0.0
      %6028 = vmatpush2.msra.mxu0 0.0
      %6029 = vmatprep.subr.mxu0 0.0
      %6030 = vmatpush2.msra.mxu0 0.0
      %6031 = vmatprep.subr.mxu0 0.0
      %6032 = vmatpush2.msra.mxu0 0.0
      %6033 = vmatprep.subr.mxu0 0.0
      %6034 = vmatpush2.msra.mxu0 0.0
      %6035 = vmatprep.subr.mxu0 0.0
      %6036 = vmatpush2.msra.mxu0 0.0
      %6037 = vmatprep.subr.mxu0 0.0
      %6038 = vmatpush2.msra.mxu0 0.0
      %6039 = vmatprep.subr.mxu0 0.0
      %6040 = vmatpush2.msra.mxu0 0.0
      %6041 = vmatprep.subr.mxu0 0.0
      %6042 = vmatpush2.msra.mxu0 0.0
      %6043 = vmatprep.subr.mxu0 0.0
      %6044 = vmatpush2.msra.mxu0 0.0
      %6045 = vmatprep.subr.mxu0 0.0
      %6046 = vmatpush2.msra.mxu0 0.0
      %6047 = vmatprep.subr.mxu0 0.0
      %6048 = vmatpush2.msra.mxu0 0.0
      %6049 = vmatprep.mubr.f32.mxu0 0.0
      %6050 = vmatmul.mubr.f32.gmra.mxu0 %v5983
      %v6051 = vpop.f32.mrf.mxu0
      %v6052 = vadd.f32 0.0, %v6051
      %v6053 = vpop.f32.mrf.mxu0
      %6054 = vdwg.mxu0
      %6055 = vrot.lane.b32.xlu0 %v819, 40
      %v6056 = vpop.permute.xlu0 %6055
      %v6059 = vsel %vm855, %v5972, 0
      %6061 = vmatprep.subr.mxu0 0.0
      %6062 = vmatpush1.msra.mxu0 0.0
      %6063 = vmatprep.subr.mxu0 0.0
      %6064 = vmatpush1.msra.mxu0 0.0
      %6065 = vmatprep.subr.mxu0 0.0
      %6066 = vmatpush1.msra.mxu0 0.0
      %6067 = vmatprep.subr.mxu0 0.0
      %6068 = vmatpush1.msra.mxu0 0.0
      %6069 = vmatprep.subr.mxu0 0.0
      %6070 = vmatpush1.msra.mxu0 0.0
      %6071 = vmatprep.subr.mxu0 0.0
      %6072 = vmatpush1.msra.mxu0 0.0
      %6073 = vmatprep.subr.mxu0 0.0
      %6074 = vmatpush1.msra.mxu0 0.0
      %6075 = vmatprep.subr.mxu0 0.0
      %6076 = vmatpush1.msra.mxu0 0.0
      %6077 = vmatprep.subr.mxu0 0.0
      %6078 = vmatpush1.msra.mxu0 0.0
      %6079 = vmatprep.subr.mxu0 0.0
      %6080 = vmatpush1.msra.mxu0 0.0
      %6081 = vmatprep.subr.mxu0 0.0
      %6082 = vmatpush1.msra.mxu0 0.0
      %6083 = vmatprep.subr.mxu0 0.0
      %6084 = vmatpush1.msra.mxu0 0.0
      %6085 = vmatprep.subr.mxu0 0.0
      %6086 = vmatpush1.msra.mxu0 0.0
      %6087 = vmatprep.subr.mxu0 0.0
      %6088 = vmatpush1.msra.mxu0 0.0
      %6089 = vmatprep.subr.mxu0 0.0
      %6090 = vmatpush1.msra.mxu0 0.0
      %6091 = vmatprep.subr.mxu0 0.0
      %6092 = vmatpush1.msra.mxu0 %v6056
      %6093 = vmatprep.subr.mxu0 0.0
      %6094 = vmatpush2.msra.mxu0 0.0
      %6095 = vmatprep.subr.mxu0 0.0
      %6096 = vmatpush2.msra.mxu0 0.0
      %6097 = vmatprep.subr.mxu0 0.0
      %6098 = vmatpush2.msra.mxu0 0.0
      %6099 = vmatprep.subr.mxu0 0.0
      %6100 = vmatpush2.msra.mxu0 0.0
      %6101 = vmatprep.subr.mxu0 0.0
      %6102 = vmatpush2.msra.mxu0 0.0
      %6103 = vmatprep.subr.mxu0 0.0
      %6104 = vmatpush2.msra.mxu0 0.0
      %6105 = vmatprep.subr.mxu0 0.0
      %6106 = vmatpush2.msra.mxu0 0.0
      %6107 = vmatprep.subr.mxu0 0.0
      %6108 = vmatpush2.msra.mxu0 0.0
      %6109 = vmatprep.subr.mxu0 0.0
      %6110 = vmatpush2.msra.mxu0 0.0
      %6111 = vmatprep.subr.mxu0 0.0
      %6112 = vmatpush2.msra.mxu0 0.0
      %6113 = vmatprep.subr.mxu0 0.0
      %6114 = vmatpush2.msra.mxu0 0.0
      %6115 = vmatprep.subr.mxu0 0.0
      %6116 = vmatpush2.msra.mxu0 0.0
      %6117 = vmatprep.subr.mxu0 0.0
      %6118 = vmatpush2.msra.mxu0 0.0
      %6119 = vmatprep.subr.mxu0 0.0
      %6120 = vmatpush2.msra.mxu0 0.0
      %6121 = vmatprep.subr.mxu0 0.0
      %6122 = vmatpush2.msra.mxu0 0.0
      %6123 = vmatprep.subr.mxu0 0.0
      %6124 = vmatpush2.msra.mxu0 0.0
      %6125 = vmatprep.mubr.f32.mxu0 0.0
      %6126 = vmatmul.mubr.f32.gmra.mxu0 %v6059
      %v6127 = vpop.f32.mrf.mxu0
      %v6128 = vadd.f32 0.0, %v6127
      %v6129 = vpop.f32.mrf.mxu0
      %6130 = vdwg.mxu0
      %6131 = vrot.lane.b32.xlu0 %v824, 40
      %v6132 = vpop.permute.xlu0 %6131
      %v6135 = vsel %vm855, %v5973, 0
      %6137 = vmatprep.subr.mxu0 0.0
      %6138 = vmatpush1.msra.mxu0 0.0
      %6139 = vmatprep.subr.mxu0 0.0
      %6140 = vmatpush1.msra.mxu0 0.0
      %6141 = vmatprep.subr.mxu0 0.0
      %6142 = vmatpush1.msra.mxu0 0.0
      %6143 = vmatprep.subr.mxu0 0.0
      %6144 = vmatpush1.msra.mxu0 0.0
      %6145 = vmatprep.subr.mxu0 0.0
      %6146 = vmatpush1.msra.mxu0 0.0
      %6147 = vmatprep.subr.mxu0 0.0
      %6148 = vmatpush1.msra.mxu0 0.0
      %6149 = vmatprep.subr.mxu0 0.0
      %6150 = vmatpush1.msra.mxu0 0.0
      %6151 = vmatprep.subr.mxu0 0.0
      %6152 = vmatpush1.msra.mxu0 0.0
      %6153 = vmatprep.subr.mxu0 0.0
      %6154 = vmatpush1.msra.mxu0 0.0
      %6155 = vmatprep.subr.mxu0 0.0
      %6156 = vmatpush1.msra.mxu0 0.0
      %6157 = vmatprep.subr.mxu0 0.0
      %6158 = vmatpush1.msra.mxu0 0.0
      %6159 = vmatprep.subr.mxu0 0.0
      %6160 = vmatpush1.msra.mxu0 0.0
      %6161 = vmatprep.subr.mxu0 0.0
      %6162 = vmatpush1.msra.mxu0 0.0
      %6163 = vmatprep.subr.mxu0 0.0
      %6164 = vmatpush1.msra.mxu0 0.0
      %6165 = vmatprep.subr.mxu0 0.0
      %6166 = vmatpush1.msra.mxu0 0.0
      %6167 = vmatprep.subr.mxu0 0.0
      %6168 = vmatpush1.msra.mxu0 %v6132
      %6169 = vmatprep.subr.mxu0 0.0
      %6170 = vmatpush2.msra.mxu0 0.0
      %6171 = vmatprep.subr.mxu0 0.0
      %6172 = vmatpush2.msra.mxu0 0.0
      %6173 = vmatprep.subr.mxu0 0.0
      %6174 = vmatpush2.msra.mxu0 0.0
      %6175 = vmatprep.subr.mxu0 0.0
      %6176 = vmatpush2.msra.mxu0 0.0
      %6177 = vmatprep.subr.mxu0 0.0
      %6178 = vmatpush2.msra.mxu0 0.0
      %6179 = vmatprep.subr.mxu0 0.0
      %6180 = vmatpush2.msra.mxu0 0.0
      %6181 = vmatprep.subr.mxu0 0.0
      %6182 = vmatpush2.msra.mxu0 0.0
      %6183 = vmatprep.subr.mxu0 0.0
      %6184 = vmatpush2.msra.mxu0 0.0
      %6185 = vmatprep.subr.mxu0 0.0
      %6186 = vmatpush2.msra.mxu0 0.0
      %6187 = vmatprep.subr.mxu0 0.0
      %6188 = vmatpush2.msra.mxu0 0.0
      %6189 = vmatprep.subr.mxu0 0.0
      %6190 = vmatpush2.msra.mxu0 0.0
      %6191 = vmatprep.subr.mxu0 0.0
      %6192 = vmatpush2.msra.mxu0 0.0
      %6193 = vmatprep.subr.mxu0 0.0
      %6194 = vmatpush2.msra.mxu0 0.0
      %6195 = vmatprep.subr.mxu0 0.0
      %6196 = vmatpush2.msra.mxu0 0.0
      %6197 = vmatprep.subr.mxu0 0.0
      %6198 = vmatpush2.msra.mxu0 0.0
      %6199 = vmatprep.subr.mxu0 0.0
      %6200 = vmatpush2.msra.mxu0 0.0
      %6201 = vmatprep.mubr.f32.mxu0 0.0
      %6202 = vmatmul.mubr.f32.gmra.mxu0 %v6135
      %v6203 = vpop.f32.mrf.mxu0
      %v6204 = vadd.f32 0.0, %v6203
      %v6205 = vpop.f32.mrf.mxu0
      %6206 = vdwg.mxu0
      %6207 = vrot.lane.b32.xlu0 %v829, 40
      %v6208 = vpop.permute.xlu0 %6207
      %v6211 = vsel %vm855, %v5974, 0
      %6213 = vmatprep.subr.mxu0 0.0
      %6214 = vmatpush1.msra.mxu0 0.0
      %6215 = vmatprep.subr.mxu0 0.0
      %6216 = vmatpush1.msra.mxu0 0.0
      %6217 = vmatprep.subr.mxu0 0.0
      %6218 = vmatpush1.msra.mxu0 0.0
      %6219 = vmatprep.subr.mxu0 0.0
      %6220 = vmatpush1.msra.mxu0 0.0
      %6221 = vmatprep.subr.mxu0 0.0
      %6222 = vmatpush1.msra.mxu0 0.0
      %6223 = vmatprep.subr.mxu0 0.0
      %6224 = vmatpush1.msra.mxu0 0.0
      %6225 = vmatprep.subr.mxu0 0.0
      %6226 = vmatpush1.msra.mxu0 0.0
      %6227 = vmatprep.subr.mxu0 0.0
      %6228 = vmatpush1.msra.mxu0 0.0
      %6229 = vmatprep.subr.mxu0 0.0
      %6230 = vmatpush1.msra.mxu0 0.0
      %6231 = vmatprep.subr.mxu0 0.0
      %6232 = vmatpush1.msra.mxu0 0.0
      %6233 = vmatprep.subr.mxu0 0.0
      %6234 = vmatpush1.msra.mxu0 0.0
      %6235 = vmatprep.subr.mxu0 0.0
      %6236 = vmatpush1.msra.mxu0 0.0
      %6237 = vmatprep.subr.mxu0 0.0
      %6238 = vmatpush1.msra.mxu0 0.0
      %6239 = vmatprep.subr.mxu0 0.0
      %6240 = vmatpush1.msra.mxu0 0.0
      %6241 = vmatprep.subr.mxu0 0.0
      %6242 = vmatpush1.msra.mxu0 0.0
      %6243 = vmatprep.subr.mxu0 0.0
      %6244 = vmatpush1.msra.mxu0 %v6208
      %6245 = vmatprep.subr.mxu0 0.0
      %6246 = vmatpush2.msra.mxu0 0.0
      %6247 = vmatprep.subr.mxu0 0.0
      %6248 = vmatpush2.msra.mxu0 0.0
      %6249 = vmatprep.subr.mxu0 0.0
      %6250 = vmatpush2.msra.mxu0 0.0
      %6251 = vmatprep.subr.mxu0 0.0
      %6252 = vmatpush2.msra.mxu0 0.0
      %6253 = vmatprep.subr.mxu0 0.0
      %6254 = vmatpush2.msra.mxu0 0.0
      %6255 = vmatprep.subr.mxu0 0.0
      %6256 = vmatpush2.msra.mxu0 0.0
      %6257 = vmatprep.subr.mxu0 0.0
      %6258 = vmatpush2.msra.mxu0 0.0
      %6259 = vmatprep.subr.mxu0 0.0
      %6260 = vmatpush2.msra.mxu0 0.0
      %6261 = vmatprep.subr.mxu0 0.0
      %6262 = vmatpush2.msra.mxu0 0.0
      %6263 = vmatprep.subr.mxu0 0.0
      %6264 = vmatpush2.msra.mxu0 0.0
      %6265 = vmatprep.subr.mxu0 0.0
      %6266 = vmatpush2.msra.mxu0 0.0
      %6267 = vmatprep.subr.mxu0 0.0
      %6268 = vmatpush2.msra.mxu0 0.0
      %6269 = vmatprep.subr.mxu0 0.0
      %6270 = vmatpush2.msra.mxu0 0.0
      %6271 = vmatprep.subr.mxu0 0.0
      %6272 = vmatpush2.msra.mxu0 0.0
      %6273 = vmatprep.subr.mxu0 0.0
      %6274 = vmatpush2.msra.mxu0 0.0
      %6275 = vmatprep.subr.mxu0 0.0
      %6276 = vmatpush2.msra.mxu0 0.0
      %6277 = vmatprep.mubr.f32.mxu0 0.0
      %6278 = vmatmul.mubr.f32.gmra.mxu0 %v6211
      %v6279 = vpop.f32.mrf.mxu0
      %v6280 = vadd.f32 0.0, %v6279
      %v6281 = vpop.f32.mrf.mxu0
      %6282 = vdwg.mxu0
      %6283 = vrot.lane.b32.xlu0 %v834, 40
      %v6284 = vpop.permute.xlu0 %6283
      %v6287 = vsel %vm855, %v5975, 0
      %6289 = vmatprep.subr.mxu0 0.0
      %6290 = vmatpush1.msra.mxu0 0.0
      %6291 = vmatprep.subr.mxu0 0.0
      %6292 = vmatpush1.msra.mxu0 0.0
      %6293 = vmatprep.subr.mxu0 0.0
      %6294 = vmatpush1.msra.mxu0 0.0
      %6295 = vmatprep.subr.mxu0 0.0
      %6296 = vmatpush1.msra.mxu0 0.0
      %6297 = vmatprep.subr.mxu0 0.0
      %6298 = vmatpush1.msra.mxu0 0.0
      %6299 = vmatprep.subr.mxu0 0.0
      %6300 = vmatpush1.msra.mxu0 0.0
      %6301 = vmatprep.subr.mxu0 0.0
      %6302 = vmatpush1.msra.mxu0 0.0
      %6303 = vmatprep.subr.mxu0 0.0
      %6304 = vmatpush1.msra.mxu0 0.0
      %6305 = vmatprep.subr.mxu0 0.0
      %6306 = vmatpush1.msra.mxu0 0.0
      %6307 = vmatprep.subr.mxu0 0.0
      %6308 = vmatpush1.msra.mxu0 0.0
      %6309 = vmatprep.subr.mxu0 0.0
      %6310 = vmatpush1.msra.mxu0 0.0
      %6311 = vmatprep.subr.mxu0 0.0
      %6312 = vmatpush1.msra.mxu0 0.0
      %6313 = vmatprep.subr.mxu0 0.0
      %6314 = vmatpush1.msra.mxu0 0.0
      %6315 = vmatprep.subr.mxu0 0.0
      %6316 = vmatpush1.msra.mxu0 0.0
      %6317 = vmatprep.subr.mxu0 0.0
      %6318 = vmatpush1.msra.mxu0 0.0
      %6319 = vmatprep.subr.mxu0 0.0
      %6320 = vmatpush1.msra.mxu0 %v6284
      %6321 = vmatprep.subr.mxu0 0.0
      %6322 = vmatpush2.msra.mxu0 0.0
      %6323 = vmatprep.subr.mxu0 0.0
      %6324 = vmatpush2.msra.mxu0 0.0
      %6325 = vmatprep.subr.mxu0 0.0
      %6326 = vmatpush2.msra.mxu0 0.0
      %6327 = vmatprep.subr.mxu0 0.0
      %6328 = vmatpush2.msra.mxu0 0.0
      %6329 = vmatprep.subr.mxu0 0.0
      %6330 = vmatpush2.msra.mxu0 0.0
      %6331 = vmatprep.subr.mxu0 0.0
      %6332 = vmatpush2.msra.mxu0 0.0
      %6333 = vmatprep.subr.mxu0 0.0
      %6334 = vmatpush2.msra.mxu0 0.0
      %6335 = vmatprep.subr.mxu0 0.0
      %6336 = vmatpush2.msra.mxu0 0.0
      %6337 = vmatprep.subr.mxu0 0.0
      %6338 = vmatpush2.msra.mxu0 0.0
      %6339 = vmatprep.subr.mxu0 0.0
      %6340 = vmatpush2.msra.mxu0 0.0
      %6341 = vmatprep.subr.mxu0 0.0
      %6342 = vmatpush2.msra.mxu0 0.0
      %6343 = vmatprep.subr.mxu0 0.0
      %6344 = vmatpush2.msra.mxu0 0.0
      %6345 = vmatprep.subr.mxu0 0.0
      %6346 = vmatpush2.msra.mxu0 0.0
      %6347 = vmatprep.subr.mxu0 0.0
      %6348 = vmatpush2.msra.mxu0 0.0
      %6349 = vmatprep.subr.mxu0 0.0
      %6350 = vmatpush2.msra.mxu0 0.0
      %6351 = vmatprep.subr.mxu0 0.0
      %6352 = vmatpush2.msra.mxu0 0.0
      %6353 = vmatprep.mubr.f32.mxu0 0.0
      %6354 = vmatmul.mubr.f32.gmra.mxu0 %v6287
      %v6355 = vpop.f32.mrf.mxu0
      %v6356 = vadd.f32 0.0, %v6355
      %v6357 = vpop.f32.mrf.mxu0
      %6358 = vdwg.mxu0
      %6359 = vrot.lane.b32.xlu0 %v839, 40
      %v6360 = vpop.permute.xlu0 %6359
      %v6363 = vsel %vm855, %v5976, 0
      %6365 = vmatprep.subr.mxu0 0.0
      %6366 = vmatpush1.msra.mxu0 0.0
      %6367 = vmatprep.subr.mxu0 0.0
      %6368 = vmatpush1.msra.mxu0 0.0
      %6369 = vmatprep.subr.mxu0 0.0
      %6370 = vmatpush1.msra.mxu0 0.0
      %6371 = vmatprep.subr.mxu0 0.0
      %6372 = vmatpush1.msra.mxu0 0.0
      %6373 = vmatprep.subr.mxu0 0.0
      %6374 = vmatpush1.msra.mxu0 0.0
      %6375 = vmatprep.subr.mxu0 0.0
      %6376 = vmatpush1.msra.mxu0 0.0
      %6377 = vmatprep.subr.mxu0 0.0
      %6378 = vmatpush1.msra.mxu0 0.0
      %6379 = vmatprep.subr.mxu0 0.0
      %6380 = vmatpush1.msra.mxu0 0.0
      %6381 = vmatprep.subr.mxu0 0.0
      %6382 = vmatpush1.msra.mxu0 0.0
      %6383 = vmatprep.subr.mxu0 0.0
      %6384 = vmatpush1.msra.mxu0 0.0
      %6385 = vmatprep.subr.mxu0 0.0
      %6386 = vmatpush1.msra.mxu0 0.0
      %6387 = vmatprep.subr.mxu0 0.0
      %6388 = vmatpush1.msra.mxu0 0.0
      %6389 = vmatprep.subr.mxu0 0.0
      %6390 = vmatpush1.msra.mxu0 0.0
      %6391 = vmatprep.subr.mxu0 0.0
      %6392 = vmatpush1.msra.mxu0 0.0
      %6393 = vmatprep.subr.mxu0 0.0
      %6394 = vmatpush1.msra.mxu0 0.0
      %6395 = vmatprep.subr.mxu0 0.0
      %6396 = vmatpush1.msra.mxu0 %v6360
      %6397 = vmatprep.subr.mxu0 0.0
      %6398 = vmatpush2.msra.mxu0 0.0
      %6399 = vmatprep.subr.mxu0 0.0
      %6400 = vmatpush2.msra.mxu0 0.0
      %6401 = vmatprep.subr.mxu0 0.0
      %6402 = vmatpush2.msra.mxu0 0.0
      %6403 = vmatprep.subr.mxu0 0.0
      %6404 = vmatpush2.msra.mxu0 0.0
      %6405 = vmatprep.subr.mxu0 0.0
      %6406 = vmatpush2.msra.mxu0 0.0
      %6407 = vmatprep.subr.mxu0 0.0
      %6408 = vmatpush2.msra.mxu0 0.0
      %6409 = vmatprep.subr.mxu0 0.0
      %6410 = vmatpush2.msra.mxu0 0.0
      %6411 = vmatprep.subr.mxu0 0.0
      %6412 = vmatpush2.msra.mxu0 0.0
      %6413 = vmatprep.subr.mxu0 0.0
      %6414 = vmatpush2.msra.mxu0 0.0
      %6415 = vmatprep.subr.mxu0 0.0
      %6416 = vmatpush2.msra.mxu0 0.0
      %6417 = vmatprep.subr.mxu0 0.0
      %6418 = vmatpush2.msra.mxu0 0.0
      %6419 = vmatprep.subr.mxu0 0.0
      %6420 = vmatpush2.msra.mxu0 0.0
      %6421 = vmatprep.subr.mxu0 0.0
      %6422 = vmatpush2.msra.mxu0 0.0
      %6423 = vmatprep.subr.mxu0 0.0
      %6424 = vmatpush2.msra.mxu0 0.0
      %6425 = vmatprep.subr.mxu0 0.0
      %6426 = vmatpush2.msra.mxu0 0.0
      %6427 = vmatprep.subr.mxu0 0.0
      %6428 = vmatpush2.msra.mxu0 0.0
      %6429 = vmatprep.mubr.f32.mxu0 0.0
      %6430 = vmatmul.mubr.f32.gmra.mxu0 %v6363
      %v6431 = vpop.f32.mrf.mxu0
      %v6432 = vadd.f32 0.0, %v6431
      %v6433 = vpop.f32.mrf.mxu0
      %6434 = vdwg.mxu0
      %6435 = vrot.lane.b32.xlu0 %v844, 40
      %v6436 = vpop.permute.xlu0 %6435
      %v6439 = vsel %vm855, %v5977, 0
      %6441 = vmatprep.subr.mxu0 0.0
      %6442 = vmatpush1.msra.mxu0 0.0
      %6443 = vmatprep.subr.mxu0 0.0
      %6444 = vmatpush1.msra.mxu0 0.0
      %6445 = vmatprep.subr.mxu0 0.0
      %6446 = vmatpush1.msra.mxu0 0.0
      %6447 = vmatprep.subr.mxu0 0.0
      %6448 = vmatpush1.msra.mxu0 0.0
      %6449 = vmatprep.subr.mxu0 0.0
      %6450 = vmatpush1.msra.mxu0 0.0
      %6451 = vmatprep.subr.mxu0 0.0
      %6452 = vmatpush1.msra.mxu0 0.0
      %6453 = vmatprep.subr.mxu0 0.0
      %6454 = vmatpush1.msra.mxu0 0.0
      %6455 = vmatprep.subr.mxu0 0.0
      %6456 = vmatpush1.msra.mxu0 0.0
      %6457 = vmatprep.subr.mxu0 0.0
      %6458 = vmatpush1.msra.mxu0 0.0
      %6459 = vmatprep.subr.mxu0 0.0
      %6460 = vmatpush1.msra.mxu0 0.0
      %6461 = vmatprep.subr.mxu0 0.0
      %6462 = vmatpush1.msra.mxu0 0.0
      %6463 = vmatprep.subr.mxu0 0.0
      %6464 = vmatpush1.msra.mxu0 0.0
      %6465 = vmatprep.subr.mxu0 0.0
      %6466 = vmatpush1.msra.mxu0 0.0
      %6467 = vmatprep.subr.mxu0 0.0
      %6468 = vmatpush1.msra.mxu0 0.0
      %6469 = vmatprep.subr.mxu0 0.0
      %6470 = vmatpush1.msra.mxu0 0.0
      %6471 = vmatprep.subr.mxu0 0.0
      %6472 = vmatpush1.msra.mxu0 %v6436
      %6473 = vmatprep.subr.mxu0 0.0
      %6474 = vmatpush2.msra.mxu0 0.0
      %6475 = vmatprep.subr.mxu0 0.0
      %6476 = vmatpush2.msra.mxu0 0.0
      %6477 = vmatprep.subr.mxu0 0.0
      %6478 = vmatpush2.msra.mxu0 0.0
      %6479 = vmatprep.subr.mxu0 0.0
      %6480 = vmatpush2.msra.mxu0 0.0
      %6481 = vmatprep.subr.mxu0 0.0
      %6482 = vmatpush2.msra.mxu0 0.0
      %6483 = vmatprep.subr.mxu0 0.0
      %6484 = vmatpush2.msra.mxu0 0.0
      %6485 = vmatprep.subr.mxu0 0.0
      %6486 = vmatpush2.msra.mxu0 0.0
      %6487 = vmatprep.subr.mxu0 0.0
      %6488 = vmatpush2.msra.mxu0 0.0
      %6489 = vmatprep.subr.mxu0 0.0
      %6490 = vmatpush2.msra.mxu0 0.0
      %6491 = vmatprep.subr.mxu0 0.0
      %6492 = vmatpush2.msra.mxu0 0.0
      %6493 = vmatprep.subr.mxu0 0.0
      %6494 = vmatpush2.msra.mxu0 0.0
      %6495 = vmatprep.subr.mxu0 0.0
      %6496 = vmatpush2.msra.mxu0 0.0
      %6497 = vmatprep.subr.mxu0 0.0
      %6498 = vmatpush2.msra.mxu0 0.0
      %6499 = vmatprep.subr.mxu0 0.0
      %6500 = vmatpush2.msra.mxu0 0.0
      %6501 = vmatprep.subr.mxu0 0.0
      %6502 = vmatpush2.msra.mxu0 0.0
      %6503 = vmatprep.subr.mxu0 0.0
      %6504 = vmatpush2.msra.mxu0 0.0
      %6505 = vmatprep.mubr.f32.mxu0 0.0
      %6506 = vmatmul.mubr.f32.gmra.mxu0 %v6439
      %v6507 = vpop.f32.mrf.mxu0
      %v6508 = vadd.f32 0.0, %v6507
      %v6509 = vpop.f32.mrf.mxu0
      %6510 = vdwg.mxu0
      %6511 = vrot.lane.b32.xlu0 %v849, 40
      %v6512 = vpop.permute.xlu0 %6511
      %v6515 = vsel %vm855, %v5978, 0
      %6517 = vmatprep.subr.mxu0 0.0
      %6518 = vmatpush1.msra.mxu0 0.0
      %6519 = vmatprep.subr.mxu0 0.0
      %6520 = vmatpush1.msra.mxu0 0.0
      %6521 = vmatprep.subr.mxu0 0.0
      %6522 = vmatpush1.msra.mxu0 0.0
      %6523 = vmatprep.subr.mxu0 0.0
      %6524 = vmatpush1.msra.mxu0 0.0
      %6525 = vmatprep.subr.mxu0 0.0
      %6526 = vmatpush1.msra.mxu0 0.0
      %6527 = vmatprep.subr.mxu0 0.0
      %6528 = vmatpush1.msra.mxu0 0.0
      %6529 = vmatprep.subr.mxu0 0.0
      %6530 = vmatpush1.msra.mxu0 0.0
      %6531 = vmatprep.subr.mxu0 0.0
      %6532 = vmatpush1.msra.mxu0 0.0
      %6533 = vmatprep.subr.mxu0 0.0
      %6534 = vmatpush1.msra.mxu0 0.0
      %6535 = vmatprep.subr.mxu0 0.0
      %6536 = vmatpush1.msra.mxu0 0.0
      %6537 = vmatprep.subr.mxu0 0.0
      %6538 = vmatpush1.msra.mxu0 0.0
      %6539 = vmatprep.subr.mxu0 0.0
      %6540 = vmatpush1.msra.mxu0 0.0
      %6541 = vmatprep.subr.mxu0 0.0
      %6542 = vmatpush1.msra.mxu0 0.0
      %6543 = vmatprep.subr.mxu0 0.0
      %6544 = vmatpush1.msra.mxu0 0.0
      %6545 = vmatprep.subr.mxu0 0.0
      %6546 = vmatpush1.msra.mxu0 0.0
      %6547 = vmatprep.subr.mxu0 0.0
      %6548 = vmatpush1.msra.mxu0 %v6512
      %6549 = vmatprep.subr.mxu0 0.0
      %6550 = vmatpush2.msra.mxu0 0.0
      %6551 = vmatprep.subr.mxu0 0.0
      %6552 = vmatpush2.msra.mxu0 0.0
      %6553 = vmatprep.subr.mxu0 0.0
      %6554 = vmatpush2.msra.mxu0 0.0
      %6555 = vmatprep.subr.mxu0 0.0
      %6556 = vmatpush2.msra.mxu0 0.0
      %6557 = vmatprep.subr.mxu0 0.0
      %6558 = vmatpush2.msra.mxu0 0.0
      %6559 = vmatprep.subr.mxu0 0.0
      %6560 = vmatpush2.msra.mxu0 0.0
      %6561 = vmatprep.subr.mxu0 0.0
      %6562 = vmatpush2.msra.mxu0 0.0
      %6563 = vmatprep.subr.mxu0 0.0
      %6564 = vmatpush2.msra.mxu0 0.0
      %6565 = vmatprep.subr.mxu0 0.0
      %6566 = vmatpush2.msra.mxu0 0.0
      %6567 = vmatprep.subr.mxu0 0.0
      %6568 = vmatpush2.msra.mxu0 0.0
      %6569 = vmatprep.subr.mxu0 0.0
      %6570 = vmatpush2.msra.mxu0 0.0
      %6571 = vmatprep.subr.mxu0 0.0
      %6572 = vmatpush2.msra.mxu0 0.0
      %6573 = vmatprep.subr.mxu0 0.0
      %6574 = vmatpush2.msra.mxu0 0.0
      %6575 = vmatprep.subr.mxu0 0.0
      %6576 = vmatpush2.msra.mxu0 0.0
      %6577 = vmatprep.subr.mxu0 0.0
      %6578 = vmatpush2.msra.mxu0 0.0
      %6579 = vmatprep.subr.mxu0 0.0
      %6580 = vmatpush2.msra.mxu0 0.0
      %6581 = vmatprep.mubr.f32.mxu0 0.0
      %6582 = vmatmul.mubr.f32.gmra.mxu0 %v6515
      %v6583 = vpop.f32.mrf.mxu0
      %v6584 = vadd.f32 0.0, %v6583
      %v6585 = vpop.f32.mrf.mxu0
      %6586 = vdwg.mxu0
      %v6587 = vld [vmem:[%s636 + $0x18] sm:$0xff]
      %v6589 = vsel %vm855, %v6052, 0
      %v6592 = vsel %vm855, %v6128, 0
      %v6595 = vsel %vm855, %v6204, 0
      %v6598 = vsel %vm855, %v6280, 0
      %v6601 = vsel %vm855, %v6356, 0
      %v6604 = vsel %vm855, %v6432, 0
      %v6607 = vsel %vm855, %v6508, 0
      %v6610 = vsel %vm855, %v6584, 0
      %6612 = vmatprep.subr.mxu0 0.0
      %6613 = vmatpush1.msra.mxu0 0.0
      %6614 = vmatprep.subr.mxu0 0.0
      %6615 = vmatpush1.msra.mxu0 0.0
      %6616 = vmatprep.subr.mxu0 0.0
      %6617 = vmatpush1.msra.mxu0 0.0
      %6618 = vmatprep.subr.mxu0 0.0
      %6619 = vmatpush1.msra.mxu0 0.0
      %6620 = vmatprep.subr.mxu0 0.0
      %6621 = vmatpush1.msra.mxu0 0.0
      %6622 = vmatprep.subr.mxu0 0.0
      %6623 = vmatpush1.msra.mxu0 0.0
      %6624 = vmatprep.subr.mxu0 0.0
      %6625 = vmatpush1.msra.mxu0 0.0
      %6626 = vmatprep.subr.mxu0 0.0
      %6627 = vmatpush1.msra.mxu0 0.0
      %6628 = vmatprep.subr.mxu0 0.0
      %6629 = vmatpush1.msra.mxu0 0.0
      %6630 = vmatprep.subr.mxu0 0.0
      %6631 = vmatpush1.msra.mxu0 0.0
      %6632 = vmatprep.subr.mxu0 0.0
      %6633 = vmatpush1.msra.mxu0 0.0
      %6634 = vmatprep.subr.mxu0 0.0
      %6635 = vmatpush1.msra.mxu0 0.0
      %6636 = vmatprep.subr.mxu0 0.0
      %6637 = vmatpush1.msra.mxu0 0.0
      %6638 = vmatprep.subr.mxu0 0.0
      %6639 = vmatpush1.msra.mxu0 0.0
      %6640 = vmatprep.subr.mxu0 0.0
      %6641 = vmatpush1.msra.mxu0 0.0
      %6642 = vmatprep.subr.mxu0 0.0
      %6643 = vmatpush1.msra.mxu0 %v6587
      %6644 = vmatprep.subr.mxu0 0.0
      %6645 = vmatpush2.msra.mxu0 0.0
      %6646 = vmatprep.subr.mxu0 0.0
      %6647 = vmatpush2.msra.mxu0 0.0
      %6648 = vmatprep.subr.mxu0 0.0
      %6649 = vmatpush2.msra.mxu0 0.0
      %6650 = vmatprep.subr.mxu0 0.0
      %6651 = vmatpush2.msra.mxu0 0.0
      %6652 = vmatprep.subr.mxu0 0.0
      %6653 = vmatpush2.msra.mxu0 0.0
      %6654 = vmatprep.subr.mxu0 0.0
      %6655 = vmatpush2.msra.mxu0 0.0
      %6656 = vmatprep.subr.mxu0 0.0
      %6657 = vmatpush2.msra.mxu0 0.0
      %6658 = vmatprep.subr.mxu0 0.0
      %6659 = vmatpush2.msra.mxu0 0.0
      %6660 = vmatprep.subr.mxu0 0.0
      %6661 = vmatpush2.msra.mxu0 0.0
      %6662 = vmatprep.subr.mxu0 0.0
      %6663 = vmatpush2.msra.mxu0 0.0
      %6664 = vmatprep.subr.mxu0 0.0
      %6665 = vmatpush2.msra.mxu0 0.0
      %6666 = vmatprep.subr.mxu0 0.0
      %6667 = vmatpush2.msra.mxu0 0.0
      %6668 = vmatprep.subr.mxu0 0.0
      %6669 = vmatpush2.msra.mxu0 0.0
      %6670 = vmatprep.subr.mxu0 0.0
      %6671 = vmatpush2.msra.mxu0 0.0
      %6672 = vmatprep.subr.mxu0 0.0
      %6673 = vmatpush2.msra.mxu0 0.0
      %6674 = vmatprep.subr.mxu0 0.0
      %6675 = vmatpush2.msra.mxu0 0.0
      %6676 = vmatprep.mubr.f32.mxu0 0.0
      %6677 = vmatmul.mubr.f32.gmra.mxu0 %v6589
      %v6678 = vpop.f32.mrf.mxu0
      %v6679 = vadd.f32 0.0, %v6678
      %v6680 = vpop.f32.mrf.mxu0
      %6681 = vmatprep.mubr.f32.mxu0 0.0
      %6682 = vmatmul.mubr.f32.gmra.mxu0 %v6592
      %v6683 = vpop.f32.mrf.mxu0
      %v6684 = vadd.f32 0.0, %v6683
      %v6685 = vpop.f32.mrf.mxu0
      %6686 = vmatprep.mubr.f32.mxu0 0.0
      %6687 = vmatmul.mubr.f32.gmra.mxu0 %v6595
      %v6688 = vpop.f32.mrf.mxu0
      %v6689 = vadd.f32 0.0, %v6688
      %v6690 = vpop.f32.mrf.mxu0
      %6691 = vmatprep.mubr.f32.mxu0 0.0
      %6692 = vmatmul.mubr.f32.gmra.mxu0 %v6598
      %v6693 = vpop.f32.mrf.mxu0
      %v6694 = vadd.f32 0.0, %v6693
      %v6695 = vpop.f32.mrf.mxu0
      %6696 = vmatprep.mubr.f32.mxu0 0.0
      %6697 = vmatmul.mubr.f32.gmra.mxu0 %v6601
      %v6698 = vpop.f32.mrf.mxu0
      %v6699 = vadd.f32 0.0, %v6698
      %v6700 = vpop.f32.mrf.mxu0
      %6701 = vmatprep.mubr.f32.mxu0 0.0
      %6702 = vmatmul.mubr.f32.gmra.mxu0 %v6604
      %v6703 = vpop.f32.mrf.mxu0
      %v6704 = vadd.f32 0.0, %v6703
      %v6705 = vpop.f32.mrf.mxu0
      %6706 = vmatprep.mubr.f32.mxu0 0.0
      %6707 = vmatmul.mubr.f32.gmra.mxu0 %v6607
      %v6708 = vpop.f32.mrf.mxu0
      %v6709 = vadd.f32 0.0, %v6708
      %v6710 = vpop.f32.mrf.mxu0
      %6711 = vmatprep.mubr.f32.mxu0 0.0
      %6712 = vmatmul.mubr.f32.gmra.mxu0 %v6610
      %v6713 = vpop.f32.mrf.mxu0
      %v6714 = vadd.f32 0.0, %v6713
      %v6715 = vpop.f32.mrf.mxu0
      %6716 = vdwg.mxu0
      %v6717 = vadd.f32 %v5243, %v6679
      %v6718 = vadd.f32 %v5244, %v6684
      %v6719 = vadd.f32 %v5245, %v6689
      %v6720 = vadd.f32 %v5246, %v6694
      %v6721 = vadd.f32 %v5247, %v6699
      %v6722 = vadd.f32 %v5248, %v6704
      %v6723 = vadd.f32 %v5249, %v6709
      %v6724 = vadd.f32 %v5250, %v6714
      %v6725 = vld [vmem:[%s639] sm:$0x1]
      %v6727 = vlaneseq
      %v6728 = vshrl.u32 %v6727, 7
      %v6729 = vsub.s32 0, %v6728
      %v6730 = vrot.slane %v6725, %v6729
      %v6732 = vadd.f32 %v6717, %v6730
      %v6733 = vadd.f32 %v6718, %v6730
      %v6734 = vadd.f32 %v6719, %v6730
      %v6735 = vadd.f32 %v6720, %v6730
      %v6736 = vadd.f32 %v6721, %v6730
      %v6737 = vadd.f32 %v6722, %v6730
      %v6738 = vadd.f32 %v6723, %v6730
      %v6739 = vadd.f32 %v6724, %v6730
      %v6740 = vld [vmem:[%s642] sm:$0x1]
      %v6741 = vld [vmem:[%s645] sm:$0x1]
      %v6742 = vsel %vm722, %v6732, 0.0
      %6743 = vadd.xlane.f32.xlu0 %v6742
      %v6744 = vpop.xlane.xlu0 %6743
      %v6745 = vsel %vm722, %v6733, 0.0
      %6746 = vadd.xlane.f32.xlu0 %v6745
      %v6747 = vpop.xlane.xlu0 %6746
      %v6748 = vsel %vm722, %v6734, 0.0
      %6749 = vadd.xlane.f32.xlu0 %v6748
      %v6750 = vpop.xlane.xlu0 %6749
      %v6751 = vsel %vm722, %v6735, 0.0
      %6752 = vadd.xlane.f32.xlu0 %v6751
      %v6753 = vpop.xlane.xlu0 %6752
      %v6754 = vsel %vm722, %v6736, 0.0
      %6755 = vadd.xlane.f32.xlu0 %v6754
      %v6756 = vpop.xlane.xlu0 %6755
      %v6757 = vsel %vm722, %v6737, 0.0
      %6758 = vadd.xlane.f32.xlu0 %v6757
      %v6759 = vpop.xlane.xlu0 %6758
      %v6760 = vsel %vm722, %v6738, 0.0
      %6761 = vadd.xlane.f32.xlu0 %v6760
      %v6762 = vpop.xlane.xlu0 %6761
      %v6763 = vsel %vm722, %v6739, 0.0
      %6764 = vadd.xlane.f32.xlu0 %v6763
      %v6765 = vpop.xlane.xlu0 %6764
      %v6766 = vrcp.pop 32.0
      %v6767 = vmul.f32 %v6744, %v6766
      %v6768 = vmul.f32 %v6747, %v6766
      %v6769 = vmul.f32 %v6750, %v6766
      %v6770 = vmul.f32 %v6753, %v6766
      %v6771 = vmul.f32 %v6756, %v6766
      %v6772 = vmul.f32 %v6759, %v6766
      %v6773 = vmul.f32 %v6762, %v6766
      %v6774 = vmul.f32 %v6765, %v6766
      %v6775 = vsub.f32 %v6732, %v6767
      %v6776 = vsub.f32 %v6733, %v6768
      %v6777 = vsub.f32 %v6734, %v6769
      %v6778 = vsub.f32 %v6735, %v6770
      %v6779 = vsub.f32 %v6736, %v6771
      %v6780 = vsub.f32 %v6737, %v6772
      %v6781 = vsub.f32 %v6738, %v6773
      %v6782 = vsub.f32 %v6739, %v6774
      %v6783 = vmul.f32 %v6775, %v6775
      %v6784 = vmul.f32 %v6776, %v6776
      %v6785 = vmul.f32 %v6777, %v6777
      %v6786 = vmul.f32 %v6778, %v6778
      %v6787 = vmul.f32 %v6779, %v6779
      %v6788 = vmul.f32 %v6780, %v6780
      %v6789 = vmul.f32 %v6781, %v6781
      %v6790 = vmul.f32 %v6782, %v6782
      %v6791 = vsel %vm722, %v6783, 0.0
      %6792 = vadd.xlane.f32.xlu0 %v6791
      %v6793 = vpop.xlane.xlu0 %6792
      %v6794 = vsel %vm722, %v6784, 0.0
      %6795 = vadd.xlane.f32.xlu0 %v6794
      %v6796 = vpop.xlane.xlu0 %6795
      %v6797 = vsel %vm722, %v6785, 0.0
      %6798 = vadd.xlane.f32.xlu0 %v6797
      %v6799 = vpop.xlane.xlu0 %6798
      %v6800 = vsel %vm722, %v6786, 0.0
      %6801 = vadd.xlane.f32.xlu0 %v6800
      %v6802 = vpop.xlane.xlu0 %6801
      %v6803 = vsel %vm722, %v6787, 0.0
      %6804 = vadd.xlane.f32.xlu0 %v6803
      %v6805 = vpop.xlane.xlu0 %6804
      %v6806 = vsel %vm722, %v6788, 0.0
      %6807 = vadd.xlane.f32.xlu0 %v6806
      %v6808 = vpop.xlane.xlu0 %6807
      %v6809 = vsel %vm722, %v6789, 0.0
      %6810 = vadd.xlane.f32.xlu0 %v6809
      %v6811 = vpop.xlane.xlu0 %6810
      %v6812 = vsel %vm722, %v6790, 0.0
      %6813 = vadd.xlane.f32.xlu0 %v6812
      %v6814 = vpop.xlane.xlu0 %6813
      %v6815 = vmul.f32 %v6793, %v6766
      %v6816 = vmul.f32 %v6796, %v6766
      %v6817 = vmul.f32 %v6799, %v6766
      %v6818 = vmul.f32 %v6802, %v6766
      %v6819 = vmul.f32 %v6805, %v6766
      %v6820 = vmul.f32 %v6808, %v6766
      %v6821 = vmul.f32 %v6811, %v6766
      %v6822 = vmul.f32 %v6814, %v6766
      %v6823 = vadd.f32 %v6815, 1e-05
      %v6824 = vadd.f32 %v6816, 1e-05
      %v6825 = vadd.f32 %v6817, 1e-05
      %v6826 = vadd.f32 %v6818, 1e-05
      %v6827 = vadd.f32 %v6819, 1e-05
      %v6828 = vadd.f32 %v6820, 1e-05
      %v6829 = vadd.f32 %v6821, 1e-05
      %v6830 = vadd.f32 %v6822, 1e-05
      %v6831 = vrsqrt.pop %v6823
      %v6832 = vrsqrt.pop %v6824
      %v6833 = vrsqrt.pop %v6825
      %v6834 = vrsqrt.pop %v6826
      %v6835 = vrsqrt.pop %v6827
      %v6836 = vrsqrt.pop %v6828
      %v6837 = vrsqrt.pop %v6829
      %v6838 = vrsqrt.pop %v6830
      %v6839 = vmul.f32 %v6775, %v6831
      %v6840 = vmul.f32 %v6776, %v6832
      %v6841 = vmul.f32 %v6777, %v6833
      %v6842 = vmul.f32 %v6778, %v6834
      %v6843 = vmul.f32 %v6779, %v6835
      %v6844 = vmul.f32 %v6780, %v6836
      %v6845 = vmul.f32 %v6781, %v6837
      %v6846 = vmul.f32 %v6782, %v6838
      %v6848 = vlaneseq
      %v6849 = vshrl.u32 %v6848, 7
      %v6850 = vsub.s32 0, %v6849
      %v6851 = vrot.slane %v6740, %v6850
      %v6853 = vmul.f32 %v6839, %v6851
      %v6854 = vmul.f32 %v6840, %v6851
      %v6855 = vmul.f32 %v6841, %v6851
      %v6856 = vmul.f32 %v6842, %v6851
      %v6857 = vmul.f32 %v6843, %v6851
      %v6858 = vmul.f32 %v6844, %v6851
      %v6859 = vmul.f32 %v6845, %v6851
      %v6860 = vmul.f32 %v6846, %v6851
      %v6862 = vlaneseq
      %v6863 = vshrl.u32 %v6862, 7
      %v6864 = vsub.s32 0, %v6863
      %v6865 = vrot.slane %v6741, %v6864
      %v6867 = vadd.f32 %v6853, %v6865
      %v6868 = vadd.f32 %v6854, %v6865
      %v6869 = vadd.f32 %v6855, %v6865
      %v6870 = vadd.f32 %v6856, %v6865
      %v6871 = vadd.f32 %v6857, %v6865
      %v6872 = vadd.f32 %v6858, %v6865
      %v6873 = vadd.f32 %v6859, %v6865
      %v6874 = vadd.f32 %v6860, %v6865
      %v6875 = vadd.f32 %v687, %v6867
      %v6876 = vadd.f32 %v688, %v6868
      %v6877 = vadd.f32 %v689, %v6869
      %v6878 = vadd.f32 %v690, %v6870
      %v6879 = vadd.f32 %v691, %v6871
      %v6880 = vadd.f32 %v692, %v6872
      %v6881 = vadd.f32 %v693, %v6873
      %v6882 = vadd.f32 %v694, %v6874
      %v6883 = vld [vmem:[%s650] sm:$0xff]
      %v6884 = vld [vmem:[%s650 + $0x8] sm:$0xff]
      %v6885 = vld [vmem:[%s650 + $0x10] sm:$0xff]
      %v6886 = vld [vmem:[%s650 + $0x18] sm:$0xff]
      %v6887 = vld [vmem:[%s653] sm:$0x1]
      %v6889 = vlaneseq
      %v6890 = vshrl.u32 %v6889, 7
      %v6891 = vsub.s32 0, %v6890
      %v6892 = vrot.slane %v6887, %v6891
      %v6895 = vsel %vm722, %v6875, 0
      %v6898 = vsel %vm722, %v6876, 0
      %v6901 = vsel %vm722, %v6877, 0
      %v6904 = vsel %vm722, %v6878, 0
      %v6907 = vsel %vm722, %v6879, 0
      %v6910 = vsel %vm722, %v6880, 0
      %v6913 = vsel %vm722, %v6881, 0
      %v6916 = vsel %vm722, %v6882, 0
      %6918 = vmatprep.subr.mxu0 0.0
      %6919 = vmatpush1.msra.mxu0 0.0
      %6920 = vmatprep.subr.mxu0 0.0
      %6921 = vmatpush1.msra.mxu0 0.0
      %6922 = vmatprep.subr.mxu0 0.0
      %6923 = vmatpush1.msra.mxu0 0.0
      %6924 = vmatprep.subr.mxu0 0.0
      %6925 = vmatpush1.msra.mxu0 0.0
      %6926 = vmatprep.subr.mxu0 0.0
      %6927 = vmatpush1.msra.mxu0 0.0
      %6928 = vmatprep.subr.mxu0 0.0
      %6929 = vmatpush1.msra.mxu0 0.0
      %6930 = vmatprep.subr.mxu0 0.0
      %6931 = vmatpush1.msra.mxu0 0.0
      %6932 = vmatprep.subr.mxu0 0.0
      %6933 = vmatpush1.msra.mxu0 0.0
      %6934 = vmatprep.subr.mxu0 0.0
      %6935 = vmatpush1.msra.mxu0 0.0
      %6936 = vmatprep.subr.mxu0 0.0
      %6937 = vmatpush1.msra.mxu0 0.0
      %6938 = vmatprep.subr.mxu0 0.0
      %6939 = vmatpush1.msra.mxu0 0.0
      %6940 = vmatprep.subr.mxu0 0.0
      %6941 = vmatpush1.msra.mxu0 0.0
      %6942 = vmatprep.subr.mxu0 0.0
      %6943 = vmatpush1.msra.mxu0 %v6886
      %6944 = vmatprep.subr.mxu0 0.0
      %6945 = vmatpush1.msra.mxu0 %v6885
      %6946 = vmatprep.subr.mxu0 0.0
      %6947 = vmatpush1.msra.mxu0 %v6884
      %6948 = vmatprep.subr.mxu0 0.0
      %6949 = vmatpush1.msra.mxu0 %v6883
      %6950 = vmatprep.subr.mxu0 0.0
      %6951 = vmatpush2.msra.mxu0 0.0
      %6952 = vmatprep.subr.mxu0 0.0
      %6953 = vmatpush2.msra.mxu0 0.0
      %6954 = vmatprep.subr.mxu0 0.0
      %6955 = vmatpush2.msra.mxu0 0.0
      %6956 = vmatprep.subr.mxu0 0.0
      %6957 = vmatpush2.msra.mxu0 0.0
      %6958 = vmatprep.subr.mxu0 0.0
      %6959 = vmatpush2.msra.mxu0 0.0
      %6960 = vmatprep.subr.mxu0 0.0
      %6961 = vmatpush2.msra.mxu0 0.0
      %6962 = vmatprep.subr.mxu0 0.0
      %6963 = vmatpush2.msra.mxu0 0.0
      %6964 = vmatprep.subr.mxu0 0.0
      %6965 = vmatpush2.msra.mxu0 0.0
      %6966 = vmatprep.subr.mxu0 0.0
      %6967 = vmatpush2.msra.mxu0 0.0
      %6968 = vmatprep.subr.mxu0 0.0
      %6969 = vmatpush2.msra.mxu0 0.0
      %6970 = vmatprep.subr.mxu0 0.0
      %6971 = vmatpush2.msra.mxu0 0.0
      %6972 = vmatprep.subr.mxu0 0.0
      %6973 = vmatpush2.msra.mxu0 0.0
      %6974 = vmatprep.subr.mxu0 0.0
      %6975 = vmatpush2.msra.mxu0 0.0
      %6976 = vmatprep.subr.mxu0 0.0
      %6977 = vmatpush2.msra.mxu0 0.0
      %6978 = vmatprep.subr.mxu0 0.0
      %6979 = vmatpush2.msra.mxu0 0.0
      %6980 = vmatprep.subr.mxu0 0.0
      %6981 = vmatpush2.msra.mxu0 0.0
      %6982 = vmatprep.mubr.f32.mxu0 0.0
      %6983 = vmatmul.mubr.f32.gmra.mxu0 %v6895
      %v6984 = vpop.f32.mrf.mxu0
      %v6985 = vadd.f32 %v6892, %v6984
      %v6986 = vpop.f32.mrf.mxu0
      %6987 = vmatprep.mubr.f32.mxu0 0.0
      %6988 = vmatmul.mubr.f32.gmra.mxu0 %v6898
      %v6989 = vpop.f32.mrf.mxu0
      %v6990 = vadd.f32 %v6892, %v6989
      %v6991 = vpop.f32.mrf.mxu0
      %6992 = vmatprep.mubr.f32.mxu0 0.0
      %6993 = vmatmul.mubr.f32.gmra.mxu0 %v6901
      %v6994 = vpop.f32.mrf.mxu0
      %v6995 = vadd.f32 %v6892, %v6994
      %v6996 = vpop.f32.mrf.mxu0
      %6997 = vmatprep.mubr.f32.mxu0 0.0
      %6998 = vmatmul.mubr.f32.gmra.mxu0 %v6904
      %v6999 = vpop.f32.mrf.mxu0
      %v7000 = vadd.f32 %v6892, %v6999
      %v7001 = vpop.f32.mrf.mxu0
      %7002 = vmatprep.mubr.f32.mxu0 0.0
      %7003 = vmatmul.mubr.f32.gmra.mxu0 %v6907
      %v7004 = vpop.f32.mrf.mxu0
      %v7005 = vadd.f32 %v6892, %v7004
      %v7006 = vpop.f32.mrf.mxu0
      %7007 = vmatprep.mubr.f32.mxu0 0.0
      %7008 = vmatmul.mubr.f32.gmra.mxu0 %v6910
      %v7009 = vpop.f32.mrf.mxu0
      %v7010 = vadd.f32 %v6892, %v7009
      %v7011 = vpop.f32.mrf.mxu0
      %7012 = vmatprep.mubr.f32.mxu0 0.0
      %7013 = vmatmul.mubr.f32.gmra.mxu0 %v6913
      %v7014 = vpop.f32.mrf.mxu0
      %v7015 = vadd.f32 %v6892, %v7014
      %v7016 = vpop.f32.mrf.mxu0
      %7017 = vmatprep.mubr.f32.mxu0 0.0
      %7018 = vmatmul.mubr.f32.gmra.mxu0 %v6916
      %v7019 = vpop.f32.mrf.mxu0
      %v7020 = vadd.f32 %v6892, %v7019
      %v7021 = vpop.f32.mrf.mxu0
      %7022 = vdwg.mxu0
      %v7023 = vmax.f32 %v6985, 0.0
      %v7024 = vmax.f32 %v6990, 0.0
      %v7025 = vmax.f32 %v6995, 0.0
      %v7026 = vmax.f32 %v7000, 0.0
      %v7027 = vmax.f32 %v7005, 0.0
      %v7028 = vmax.f32 %v7010, 0.0
      %v7029 = vmax.f32 %v7015, 0.0
      %v7030 = vmax.f32 %v7020, 0.0
      %v7031 = vld [vmem:[%s658] sm:$0xff]
      %v7032 = vld [vmem:[%s658 + $0x8] sm:$0xff]
      %v7033 = vld [vmem:[%s658 + $0x10] sm:$0xff]
      %v7034 = vld [vmem:[%s658 + $0x18] sm:$0xff]
      %v7035 = vld [vmem:[%s658 + $0x20] sm:$0xff]
      %v7036 = vld [vmem:[%s658 + $0x28] sm:$0xff]
      %v7037 = vld [vmem:[%s658 + $0x30] sm:$0xff]
      %v7038 = vld [vmem:[%s658 + $0x38] sm:$0xff]
      %v7039 = vld [vmem:[%s661] sm:$0x1]
      %v7041 = vlaneseq
      %v7042 = vshrl.u32 %v7041, 7
      %v7043 = vsub.s32 0, %v7042
      %v7044 = vrot.slane %v7039, %v7043
      %vm7046 = vcmask 523264
      %v7048 = vsel %vm7046, %v7023, 0
      %v7051 = vsel %vm7046, %v7024, 0
      %v7054 = vsel %vm7046, %v7025, 0
      %v7057 = vsel %vm7046, %v7026, 0
      %v7060 = vsel %vm7046, %v7027, 0
      %v7063 = vsel %vm7046, %v7028, 0
      %v7066 = vsel %vm7046, %v7029, 0
      %v7069 = vsel %vm7046, %v7030, 0
      %7071 = vmatprep.subr.mxu0 0.0
      %7072 = vmatpush1.msra.mxu0 0.0
      %7073 = vmatprep.subr.mxu0 0.0
      %7074 = vmatpush1.msra.mxu0 0.0
      %7075 = vmatprep.subr.mxu0 0.0
      %7076 = vmatpush1.msra.mxu0 0.0
      %7077 = vmatprep.subr.mxu0 0.0
      %7078 = vmatpush1.msra.mxu0 0.0
      %7079 = vmatprep.subr.mxu0 0.0
      %7080 = vmatpush1.msra.mxu0 0.0
      %7081 = vmatprep.subr.mxu0 0.0
      %7082 = vmatpush1.msra.mxu0 0.0
      %7083 = vmatprep.subr.mxu0 0.0
      %7084 = vmatpush1.msra.mxu0 0.0
      %7085 = vmatprep.subr.mxu0 0.0
      %7086 = vmatpush1.msra.mxu0 0.0
      %7087 = vmatprep.subr.mxu0 0.0
      %7088 = vmatpush1.msra.mxu0 %v7038
      %7089 = vmatprep.subr.mxu0 0.0
      %7090 = vmatpush1.msra.mxu0 %v7037
      %7091 = vmatprep.subr.mxu0 0.0
      %7092 = vmatpush1.msra.mxu0 %v7036
      %7093 = vmatprep.subr.mxu0 0.0
      %7094 = vmatpush1.msra.mxu0 %v7035
      %7095 = vmatprep.subr.mxu0 0.0
      %7096 = vmatpush1.msra.mxu0 %v7034
      %7097 = vmatprep.subr.mxu0 0.0
      %7098 = vmatpush1.msra.mxu0 %v7033
      %7099 = vmatprep.subr.mxu0 0.0
      %7100 = vmatpush1.msra.mxu0 %v7032
      %7101 = vmatprep.subr.mxu0 0.0
      %7102 = vmatpush1.msra.mxu0 %v7031
      %7103 = vmatprep.subr.mxu0 0.0
      %7104 = vmatpush2.msra.mxu0 0.0
      %7105 = vmatprep.subr.mxu0 0.0
      %7106 = vmatpush2.msra.mxu0 0.0
      %7107 = vmatprep.subr.mxu0 0.0
      %7108 = vmatpush2.msra.mxu0 0.0
      %7109 = vmatprep.subr.mxu0 0.0
      %7110 = vmatpush2.msra.mxu0 0.0
      %7111 = vmatprep.subr.mxu0 0.0
      %7112 = vmatpush2.msra.mxu0 0.0
      %7113 = vmatprep.subr.mxu0 0.0
      %7114 = vmatpush2.msra.mxu0 0.0
      %7115 = vmatprep.subr.mxu0 0.0
      %7116 = vmatpush2.msra.mxu0 0.0
      %7117 = vmatprep.subr.mxu0 0.0
      %7118 = vmatpush2.msra.mxu0 0.0
      %7119 = vmatprep.subr.mxu0 0.0
      %7120 = vmatpush2.msra.mxu0 0.0
      %7121 = vmatprep.subr.mxu0 0.0
      %7122 = vmatpush2.msra.mxu0 0.0
      %7123 = vmatprep.subr.mxu0 0.0
      %7124 = vmatpush2.msra.mxu0 0.0
      %7125 = vmatprep.subr.mxu0 0.0
      %7126 = vmatpush2.msra.mxu0 0.0
      %7127 = vmatprep.subr.mxu0 0.0
      %7128 = vmatpush2.msra.mxu0 0.0
      %7129 = vmatprep.subr.mxu0 0.0
      %7130 = vmatpush2.msra.mxu0 0.0
      %7131 = vmatprep.subr.mxu0 0.0
      %7132 = vmatpush2.msra.mxu0 0.0
      %7133 = vmatprep.subr.mxu0 0.0
      %7134 = vmatpush2.msra.mxu0 0.0
      %7135 = vmatprep.mubr.f32.mxu0 0.0
      %7136 = vmatmul.mubr.f32.gmra.mxu0 %v7048
      %v7137 = vpop.f32.mrf.mxu0
      %v7138 = vadd.f32 %v7044, %v7137
      %v7139 = vpop.f32.mrf.mxu0
      %7140 = vmatprep.mubr.f32.mxu0 0.0
      %7141 = vmatmul.mubr.f32.gmra.mxu0 %v7051
      %v7142 = vpop.f32.mrf.mxu0
      %v7143 = vadd.f32 %v7044, %v7142
      %v7144 = vpop.f32.mrf.mxu0
      %7145 = vmatprep.mubr.f32.mxu0 0.0
      %7146 = vmatmul.mubr.f32.gmra.mxu0 %v7054
      %v7147 = vpop.f32.mrf.mxu0
      %v7148 = vadd.f32 %v7044, %v7147
      %v7149 = vpop.f32.mrf.mxu0
      %7150 = vmatprep.mubr.f32.mxu0 0.0
      %7151 = vmatmul.mubr.f32.gmra.mxu0 %v7057
      %v7152 = vpop.f32.mrf.mxu0
      %v7153 = vadd.f32 %v7044, %v7152
      %v7154 = vpop.f32.mrf.mxu0
      %7155 = vmatprep.mubr.f32.mxu0 0.0
      %7156 = vmatmul.mubr.f32.gmra.mxu0 %v7060
      %v7157 = vpop.f32.mrf.mxu0
      %v7158 = vadd.f32 %v7044, %v7157
      %v7159 = vpop.f32.mrf.mxu0
      %7160 = vmatprep.mubr.f32.mxu0 0.0
      %7161 = vmatmul.mubr.f32.gmra.mxu0 %v7063
      %v7162 = vpop.f32.mrf.mxu0
      %v7163 = vadd.f32 %v7044, %v7162
      %v7164 = vpop.f32.mrf.mxu0
      %7165 = vmatprep.mubr.f32.mxu0 0.0
      %7166 = vmatmul.mubr.f32.gmra.mxu0 %v7066
      %v7167 = vpop.f32.mrf.mxu0
      %v7168 = vadd.f32 %v7044, %v7167
      %v7169 = vpop.f32.mrf.mxu0
      %7170 = vmatprep.mubr.f32.mxu0 0.0
      %7171 = vmatmul.mubr.f32.gmra.mxu0 %v7069
      %v7172 = vpop.f32.mrf.mxu0
      %v7173 = vadd.f32 %v7044, %v7172
      %v7174 = vpop.f32.mrf.mxu0
      %7175 = vdwg.mxu0
      %v7176 = vsel %vm722, %v7138, 0.0
      %7177 = vadd.xlane.f32.xlu0 %v7176
      %v7178 = vpop.xlane.xlu0 %7177
      %v7179 = vsel %vm722, %v7143, 0.0
      %7180 = vadd.xlane.f32.xlu0 %v7179
      %v7181 = vpop.xlane.xlu0 %7180
      %v7182 = vsel %vm722, %v7148, 0.0
      %7183 = vadd.xlane.f32.xlu0 %v7182
      %v7184 = vpop.xlane.xlu0 %7183
      %v7185 = vsel %vm722, %v7153, 0.0
      %7186 = vadd.xlane.f32.xlu0 %v7185
      %v7187 = vpop.xlane.xlu0 %7186
      %v7188 = vsel %vm722, %v7158, 0.0
      %7189 = vadd.xlane.f32.xlu0 %v7188
      %v7190 = vpop.xlane.xlu0 %7189
      %v7191 = vsel %vm722, %v7163, 0.0
      %7192 = vadd.xlane.f32.xlu0 %v7191
      %v7193 = vpop.xlane.xlu0 %7192
      %v7194 = vsel %vm722, %v7168, 0.0
      %7195 = vadd.xlane.f32.xlu0 %v7194
      %v7196 = vpop.xlane.xlu0 %7195
      %v7197 = vsel %vm722, %v7173, 0.0
      %7198 = vadd.xlane.f32.xlu0 %v7197
      %v7199 = vpop.xlane.xlu0 %7198
      %v7200 = vmul.f32 %v7178, %v6766
      %v7201 = vmul.f32 %v7181, %v6766
      %v7202 = vmul.f32 %v7184, %v6766
      %v7203 = vmul.f32 %v7187, %v6766
      %v7204 = vmul.f32 %v7190, %v6766
      %v7205 = vmul.f32 %v7193, %v6766
      %v7206 = vmul.f32 %v7196, %v6766
      %v7207 = vmul.f32 %v7199, %v6766
      %v7208 = vsub.f32 %v7138, %v7200
      %v7209 = vsub.f32 %v7143, %v7201
      %v7210 = vsub.f32 %v7148, %v7202
      %v7211 = vsub.f32 %v7153, %v7203
      %v7212 = vsub.f32 %v7158, %v7204
      %v7213 = vsub.f32 %v7163, %v7205
      %v7214 = vsub.f32 %v7168, %v7206
      %v7215 = vsub.f32 %v7173, %v7207
      %v7216 = vmul.f32 %v7208, %v7208
      %v7217 = vmul.f32 %v7209, %v7209
      %v7218 = vmul.f32 %v7210, %v7210
      %v7219 = vmul.f32 %v7211, %v7211
      %v7220 = vmul.f32 %v7212, %v7212
      %v7221 = vmul.f32 %v7213, %v7213
      %v7222 = vmul.f32 %v7214, %v7214
      %v7223 = vmul.f32 %v7215, %v7215
      %v7224 = vsel %vm722, %v7216, 0.0
      %7225 = vadd.xlane.f32.xlu0 %v7224
      %v7226 = vpop.xlane.xlu0 %7225
      %v7227 = vsel %vm722, %v7217, 0.0
      %7228 = vadd.xlane.f32.xlu0 %v7227
      %v7229 = vpop.xlane.xlu0 %7228
      %v7230 = vsel %vm722, %v7218, 0.0
      %7231 = vadd.xlane.f32.xlu0 %v7230
      %v7232 = vpop.xlane.xlu0 %7231
      %v7233 = vsel %vm722, %v7219, 0.0
      %7234 = vadd.xlane.f32.xlu0 %v7233
      %v7235 = vpop.xlane.xlu0 %7234
      %v7236 = vsel %vm722, %v7220, 0.0
      %7237 = vadd.xlane.f32.xlu0 %v7236
      %v7238 = vpop.xlane.xlu0 %7237
      %v7239 = vsel %vm722, %v7221, 0.0
      %7240 = vadd.xlane.f32.xlu0 %v7239
      %v7241 = vpop.xlane.xlu0 %7240
      %v7242 = vsel %vm722, %v7222, 0.0
      %7243 = vadd.xlane.f32.xlu0 %v7242
      %v7244 = vpop.xlane.xlu0 %7243
      %v7245 = vsel %vm722, %v7223, 0.0
      %7246 = vadd.xlane.f32.xlu0 %v7245
      %v7247 = vpop.xlane.xlu0 %7246
      %v7248 = vmul.f32 %v7226, %v6766
      %v7249 = vmul.f32 %v7229, %v6766
      %v7250 = vmul.f32 %v7232, %v6766
      %v7251 = vmul.f32 %v7235, %v6766
      %v7252 = vmul.f32 %v7238, %v6766
      %v7253 = vmul.f32 %v7241, %v6766
      %v7254 = vmul.f32 %v7244, %v6766
      %v7255 = vmul.f32 %v7247, %v6766
      %v7256 = vadd.f32 %v7248, 1e-05
      %v7257 = vadd.f32 %v7249, 1e-05
      %v7258 = vadd.f32 %v7250, 1e-05
      %v7259 = vadd.f32 %v7251, 1e-05
      %v7260 = vadd.f32 %v7252, 1e-05
      %v7261 = vadd.f32 %v7253, 1e-05
      %v7262 = vadd.f32 %v7254, 1e-05
      %v7263 = vadd.f32 %v7255, 1e-05
      %v7264 = vrsqrt.pop %v7256
      %v7265 = vrsqrt.pop %v7257
      %v7266 = vrsqrt.pop %v7258
      %v7267 = vrsqrt.pop %v7259
      %v7268 = vrsqrt.pop %v7260
      %v7269 = vrsqrt.pop %v7261
      %v7270 = vrsqrt.pop %v7262
      %v7271 = vrsqrt.pop %v7263
      %v7272 = vmul.f32 %v7208, %v7264
      %v7273 = vmul.f32 %v7209, %v7265
      %v7274 = vmul.f32 %v7210, %v7266
      %v7275 = vmul.f32 %v7211, %v7267
      %v7276 = vmul.f32 %v7212, %v7268
      %v7277 = vmul.f32 %v7213, %v7269
      %v7278 = vmul.f32 %v7214, %v7270
      %v7279 = vmul.f32 %v7215, %v7271
      %v7280 = vmul.f32 %v7272, %v6851
      %v7281 = vmul.f32 %v7273, %v6851
      %v7282 = vmul.f32 %v7274, %v6851
      %v7283 = vmul.f32 %v7275, %v6851
      %v7284 = vmul.f32 %v7276, %v6851
      %v7285 = vmul.f32 %v7277, %v6851
      %v7286 = vmul.f32 %v7278, %v6851
      %v7287 = vmul.f32 %v7279, %v6851
      %v7288 = vadd.f32 %v7280, %v6865
      %v7289 = vadd.f32 %v7281, %v6865
      %v7290 = vadd.f32 %v7282, %v6865
      %v7291 = vadd.f32 %v7283, %v6865
      %v7292 = vadd.f32 %v7284, %v6865
      %v7293 = vadd.f32 %v7285, %v6865
      %v7294 = vadd.f32 %v7286, %v6865
      %v7295 = vadd.f32 %v7287, %v6865
      %v7296 = vadd.f32 %v6875, %v7288
      %v7297 = vadd.f32 %v6876, %v7289
      %v7298 = vadd.f32 %v6877, %v7290
      %v7299 = vadd.f32 %v6878, %v7291
      %v7300 = vadd.f32 %v6879, %v7292
      %v7301 = vadd.f32 %v6880, %v7293
      %v7302 = vadd.f32 %v6881, %v7294
      %v7303 = vadd.f32 %v6882, %v7295
      %7304 = vst.msk [vmem:[#allocation2] sm:$0xff] %vm722, %v7296
      %7305 = vst.msk [vmem:[#allocation2 + $0x8] sm:$0xff] %vm722, %v7297
      %7306 = vst.msk [vmem:[#allocation2 + $0x10] sm:$0xff] %vm722, %v7298
      %7307 = vst.msk [vmem:[#allocation2 + $0x18] sm:$0xff] %vm722, %v7299
      %7308 = vst.msk [vmem:[#allocation2 + $0x20] sm:$0xff] %vm722, %v7300
      %7309 = vst.msk [vmem:[#allocation2 + $0x28] sm:$0xff] %vm722, %v7301
      %7310 = vst.msk [vmem:[#allocation2 + $0x30] sm:$0xff] %vm722, %v7302
      %7311 = vst.msk [vmem:[#allocation2 + $0x38] sm:$0xff] %vm722, %v7303
      %p7312 = scmp.eq.s32.totalorder %s30, 1
      // Predicated region
      $region81: #{transformer_forward.1} parent=75 // pred_check
        %p7313 = pneg %p7312
      $region82: #{transformer_forward.1} parent=75 // pred_check_branch
        %7315 = sbr.rel (%p7313) target = $region84
      $region83: #{transformer_forward.1} parent=75 // pred_region
        %v7316 = vsel %vm722, %v7296, 0.0
        %v7317 = vrot.slane %v7316, 4
        %v7318 = vadd.f32 %v7316, %v7317
        %v7319 = vrot.slane %v7318, 2
        %v7320 = vadd.f32 %v7318, %v7319
        %v7321 = vrot.slane %v7320, 1
        %v7322 = vadd.f32 %v7320, %v7321
        %v7323 = vsel %vm722, %v7297, 0.0
        %v7324 = vrot.slane %v7323, 4
        %v7325 = vadd.f32 %v7323, %v7324
        %v7326 = vrot.slane %v7325, 2
        %v7327 = vadd.f32 %v7325, %v7326
        %v7328 = vrot.slane %v7327, 1
        %v7329 = vadd.f32 %v7327, %v7328
        %v7330 = vsel %vm722, %v7298, 0.0
        %v7331 = vrot.slane %v7330, 4
        %v7332 = vadd.f32 %v7330, %v7331
        %v7333 = vrot.slane %v7332, 2
        %v7334 = vadd.f32 %v7332, %v7333
        %v7335 = vrot.slane %v7334, 1
        %v7336 = vadd.f32 %v7334, %v7335
        %v7337 = vsel %vm722, %v7299, 0.0
        %v7338 = vrot.slane %v7337, 4
        %v7339 = vadd.f32 %v7337, %v7338
        %v7340 = vrot.slane %v7339, 2
        %v7341 = vadd.f32 %v7339, %v7340
        %v7342 = vrot.slane %v7341, 1
        %v7343 = vadd.f32 %v7341, %v7342
        %v7344 = vsel %vm722, %v7300, 0.0
        %v7345 = vrot.slane %v7344, 4
        %v7346 = vadd.f32 %v7344, %v7345
        %v7347 = vrot.slane %v7346, 2
        %v7348 = vadd.f32 %v7346, %v7347
        %v7349 = vrot.slane %v7348, 1
        %v7350 = vadd.f32 %v7348, %v7349
        %v7351 = vsel %vm722, %v7301, 0.0
        %v7352 = vrot.slane %v7351, 4
        %v7353 = vadd.f32 %v7351, %v7352
        %v7354 = vrot.slane %v7353, 2
        %v7355 = vadd.f32 %v7353, %v7354
        %v7356 = vrot.slane %v7355, 1
        %v7357 = vadd.f32 %v7355, %v7356
        %v7358 = vsel %vm722, %v7302, 0.0
        %v7359 = vrot.slane %v7358, 4
        %v7360 = vadd.f32 %v7358, %v7359
        %v7361 = vrot.slane %v7360, 2
        %v7362 = vadd.f32 %v7360, %v7361
        %v7363 = vrot.slane %v7362, 1
        %v7364 = vadd.f32 %v7362, %v7363
        %v7365 = vsel %vm722, %v7303, 0.0
        %v7366 = vrot.slane %v7365, 4
        %v7367 = vadd.f32 %v7365, %v7366
        %v7368 = vrot.slane %v7367, 2
        %v7369 = vadd.f32 %v7367, %v7368
        %v7370 = vrot.slane %v7369, 1
        %v7371 = vadd.f32 %v7369, %v7370
        %v7372 = vrcp.pop 8.0
        %v7373 = vmul.f32 %v7322, %v7372
        %v7374 = vmul.f32 %v7329, %v7372
        %v7375 = vmul.f32 %v7336, %v7372
        %v7376 = vmul.f32 %v7343, %v7372
        %v7377 = vmul.f32 %v7350, %v7372
        %v7378 = vmul.f32 %v7357, %v7372
        %v7379 = vmul.f32 %v7364, %v7372
        %v7380 = vmul.f32 %v7371, %v7372
        %v7381 = vmax.f32 %v7373, 0.0
        %v7382 = vmax.f32 %v7374, 0.0
        %v7383 = vmax.f32 %v7375, 0.0
        %v7384 = vmax.f32 %v7376, 0.0
        %v7385 = vmax.f32 %v7377, 0.0
        %v7386 = vmax.f32 %v7378, 0.0
        %v7387 = vmax.f32 %v7379, 0.0
        %v7388 = vmax.f32 %v7380, 0.0
        %v7389 = vld [vmem:[%s12] sm:$0xff]
        %v7390 = vld [vmem:[%s12 + $0x8] sm:$0xff]
        %v7391 = vld [vmem:[%s12 + $0x10] sm:$0xff]
        %v7392 = vld [vmem:[%s12 + $0x18] sm:$0xff]
        %v7393 = vld [vmem:[%s13] sm:$0x1]
        %v7395 = vlaneseq
        %v7396 = vshrl.u32 %v7395, 7
        %v7397 = vsub.s32 0, %v7396
        %v7398 = vrot.slane %v7393, %v7397
        %vm7408 = vcmask 1041409
        %v7409 = vsel %vm7408, %v7382, %v7381
        %vm7410 = vcmask 1042434
        %v7411 = vsel %vm7410, %v7383, %v7409
        %vm7412 = vcmask 1043459
        %v7413 = vsel %vm7412, %v7384, %v7411
        %vm7414 = vcmask 1044484
        %v7415 = vsel %vm7414, %v7385, %v7413
        %vm7416 = vcmask 1045509
        %v7417 = vsel %vm7416, %v7386, %v7415
        %vm7418 = vcmask 1046534
        %v7419 = vsel %vm7418, %v7387, %v7417
        %vm7420 = vcmask 1047559
        %v7421 = vsel %vm7420, %v7388, %v7419
        %v7422 = vsel %vm722, %v7421, 0
        %7424 = vmatprep.subr.mxu0 0.0
        %7425 = vmatpush1.msra.mxu0 0.0
        %7426 = vmatprep.subr.mxu0 0.0
        %7427 = vmatpush1.msra.mxu0 0.0
        %7428 = vmatprep.subr.mxu0 0.0
        %7429 = vmatpush1.msra.mxu0 0.0
        %7430 = vmatprep.subr.mxu0 0.0
        %7431 = vmatpush1.msra.mxu0 0.0
        %7432 = vmatprep.subr.mxu0 0.0
        %7433 = vmatpush1.msra.mxu0 0.0
        %7434 = vmatprep.subr.mxu0 0.0
        %7435 = vmatpush1.msra.mxu0 0.0
        %7436 = vmatprep.subr.mxu0 0.0
        %7437 = vmatpush1.msra.mxu0 0.0
        %7438 = vmatprep.subr.mxu0 0.0
        %7439 = vmatpush1.msra.mxu0 0.0
        %7440 = vmatprep.subr.mxu0 0.0
        %7441 = vmatpush1.msra.mxu0 0.0
        %7442 = vmatprep.subr.mxu0 0.0
        %7443 = vmatpush1.msra.mxu0 0.0
        %7444 = vmatprep.subr.mxu0 0.0
        %7445 = vmatpush1.msra.mxu0 0.0
        %7446 = vmatprep.subr.mxu0 0.0
        %7447 = vmatpush1.msra.mxu0 0.0
        %7448 = vmatprep.subr.mxu0 0.0
        %7449 = vmatpush1.msra.mxu0 %v7392
        %7450 = vmatprep.subr.mxu0 0.0
        %7451 = vmatpush1.msra.mxu0 %v7391
        %7452 = vmatprep.subr.mxu0 0.0
        %7453 = vmatpush1.msra.mxu0 %v7390
        %7454 = vmatprep.subr.mxu0 0.0
        %7455 = vmatpush1.msra.mxu0 %v7389
        %7456 = vmatprep.subr.mxu0 0.0
        %7457 = vmatpush2.msra.mxu0 0.0
        %7458 = vmatprep.subr.mxu0 0.0
        %7459 = vmatpush2.msra.mxu0 0.0
        %7460 = vmatprep.subr.mxu0 0.0
        %7461 = vmatpush2.msra.mxu0 0.0
        %7462 = vmatprep.subr.mxu0 0.0
        %7463 = vmatpush2.msra.mxu0 0.0
        %7464 = vmatprep.subr.mxu0 0.0
        %7465 = vmatpush2.msra.mxu0 0.0
        %7466 = vmatprep.subr.mxu0 0.0
        %7467 = vmatpush2.msra.mxu0 0.0
        %7468 = vmatprep.subr.mxu0 0.0
        %7469 = vmatpush2.msra.mxu0 0.0
        %7470 = vmatprep.subr.mxu0 0.0
        %7471 = vmatpush2.msra.mxu0 0.0
        %7472 = vmatprep.subr.mxu0 0.0
        %7473 = vmatpush2.msra.mxu0 0.0
        %7474 = vmatprep.subr.mxu0 0.0
        %7475 = vmatpush2.msra.mxu0 0.0
        %7476 = vmatprep.subr.mxu0 0.0
        %7477 = vmatpush2.msra.mxu0 0.0
        %7478 = vmatprep.subr.mxu0 0.0
        %7479 = vmatpush2.msra.mxu0 0.0
        %7480 = vmatprep.subr.mxu0 0.0
        %7481 = vmatpush2.msra.mxu0 0.0
        %7482 = vmatprep.subr.mxu0 0.0
        %7483 = vmatpush2.msra.mxu0 0.0
        %7484 = vmatprep.subr.mxu0 0.0
        %7485 = vmatpush2.msra.mxu0 0.0
        %7486 = vmatprep.subr.mxu0 0.0
        %7487 = vmatpush2.msra.mxu0 0.0
        %7488 = vmatprep.mubr.f32.mxu0 0.0
        %7489 = vmatmul.mubr.f32.gmra.mxu0 %v7422
        %v7490 = vpop.f32.mrf.mxu0
        %v7491 = vadd.f32 %v7398, %v7490
        %v7492 = vpop.f32.mrf.mxu0
        %7493 = vdwg.mxu0
        %7494 = vst [vmem:[%s665] sm:$0xff] %v7491
      $region84: #{transformer_forward.1} parent=75 // pred_fallthru
        _
      %p7495 = scmp.lt.s32.totalorder %s29, 1
      %s7496 = scalar_select %p7495, %s29, 1
      %s7497 = smul.addr %s7496, 8
      %s7498 = scalar_lea.vmem %s14, %s7497
      // Predicated region
      $region85: #{transformer_forward.1} parent=75 // pred_check
        %p7499 = pneg %p409
      $region86: #{transformer_forward.1} parent=75 // pred_check_branch
        %7501 = sbr.rel (%p7499) target = $region88
      $region87: #{transformer_forward.1} parent=75 // pred_region
        _
      $region88: #{transformer_forward.1} parent=75 // pred_fallthru
        _
    $region76: #{transformer_forward.1} parent=5 // pred_fallthru
      _
    %p7502 = scmp.le.s32.totalorder 2, %s20
    // Predicated region
    $region89: #{transformer_forward.1} parent=5 // pred_check
      %p7503 = pneg %p7502
    $region90: #{transformer_forward.1} parent=5 // pred_check_branch
      %7505 = sbr.rel (%p7503) target = $region92
    $region91: #{transformer_forward.1} parent=5 // pred_region
      %s7506 = ssub.s32 %s20, 2
      // Predicated region
      $region93: #{transformer_forward.1} parent=91 // pred_check
        %p7507 = pneg %p415
      $region94: #{transformer_forward.1} parent=91 // pred_check_branch
        %7509 = sbr.rel (%p7507) target = $region96
      $region95: #{transformer_forward.1} parent=91 // pred_region
        %p7510 = scmp.lt.s32.totalorder %s31, 1
        %s7511 = scalar_select %p7510, %s31, 1
        %s7512 = smul.addr %s7511, 8
        %s7513 = scalar_lea.vmem %s14, %s7512
      $region96: #{transformer_forward.1} parent=91 // pred_fallthru
        _
    $region92: #{transformer_forward.1} parent=5 // pred_fallthru
      _
  $region6: #{transformer_forward.1} parent=0 // loop_footer
    %s24 = sadd.s32 1, %s20
  $region7: #{transformer_forward.1} parent=0 // loop_footer_branch
    %19 = sbr.rel target = $region3
  $region8: #{transformer_forward.1} parent=0 // loop_exit
    _

</llo_original>
